<compile_context>
chip_gen: v5e
topology: v5e:2x2
jax: 0.10.0
libtpu: 0.0.40
codegen_flags: <defaults>
</compile_context>

<pallas_src>
import math
from functools import partial

import jax
import jax.numpy as jnp
from jax.experimental import pallas as pl
from jax.experimental.pallas import tpu as pltpu

# ----- small, deterministic model hyper-parameters -----
D_MODEL = 32
N_HEADS = 4
D_K = D_MODEL // N_HEADS
D_FF = 64
N_LAYERS = 2
SRC_VOCAB = 16
TGT_VOCAB = 16
SEQ = 8
BATCH = 2
EPS = 1e-6
MAX_LEN = 64


# ----------------------- in-kernel numeric helpers (operate on values) -----------------------

def _layer_norm(x, g, b):
    # Annotated-Transformer LayerNorm: a_2 * (x - mean) / (std + eps) + b_2,
    # with the unbiased (n-1) std (matches the reference module, not nn.LayerNorm).
    mean = jnp.mean(x, axis=-1, keepdims=True)
    var = jnp.sum((x - mean) ** 2, axis=-1, keepdims=True) * (1.0 / (D_MODEL - 1))
    std = jnp.sqrt(var)
    return g * (x - mean) * pl.reciprocal(std + EPS, approx=False) + b


def _linear(x, w, b):
    return jnp.dot(x, w, preferred_element_type=jnp.float32) + b


def _heads_attention(q_all, k_all, v_all, mask3, batch, s_q, s_k):
    # q_all: (B*Sq, D), k_all/v_all: (B*Sk, D), mask3: (B, Sq, Sk)
    scale = 1.0 / math.sqrt(D_K)
    outs = []
    for h in range(N_HEADS):
        lo, hi = h * D_K, (h + 1) * D_K
        qh = q_all[:, lo:hi].reshape(batch, s_q, D_K)
        kh = k_all[:, lo:hi].reshape(batch, s_k, D_K)
        vh = v_all[:, lo:hi].reshape(batch, s_k, D_K)
        s = jnp.einsum("bqd,bkd->bqk", qh, kh,
                       preferred_element_type=jnp.float32) * scale
        s = jnp.where(mask3 != 0.0, s, jnp.float32(-1e9))
        s = s - jnp.max(s, axis=-1, keepdims=True)
        p = jnp.exp(s)
        p = p * pl.reciprocal(jnp.sum(p, axis=-1, keepdims=True), approx=False)
        oh = jnp.einsum("bqk,bkd->bqd", p, vh, preferred_element_type=jnp.float32)
        outs.append(oh.reshape(batch * s_q, D_K))
    return jnp.concatenate(outs, axis=-1)  # (B*Sq, D)


def _self_attention(x2d, qkv_w, qkv_b, o_w, o_b, mask3, batch, s):
    qkv = _linear(x2d, qkv_w, qkv_b)                       # (B*S, 3D)
    q = qkv[:, 0:D_MODEL]
    k = qkv[:, D_MODEL:2 * D_MODEL]
    v = qkv[:, 2 * D_MODEL:3 * D_MODEL]
    o = _heads_attention(q, k, v, mask3, batch, s, s)
    return _linear(o, o_w, o_b)


def _cross_attention(x2d, mem2d, q_w, q_b, kv_w, kv_b, o_w, o_b, mask3,
                     batch, s_q, s_k):
    q = _linear(x2d, q_w, q_b)                             # (B*Sq, D)
    kv = _linear(mem2d, kv_w, kv_b)                        # (B*Sk, 2D)
    k = kv[:, 0:D_MODEL]
    v = kv[:, D_MODEL:2 * D_MODEL]
    o = _heads_attention(q, k, v, mask3, batch, s_q, s_k)
    return _linear(o, o_w, o_b)


def _feed_forward(x2d, w1, b1, w2, b2):
    h = jnp.maximum(_linear(x2d, w1, b1), 0.0)
    return _linear(h, w2, b2)


# ----------------------- the single fused Pallas kernel -----------------------

def _transformer_kernel(
    # activations & masks
    src_x_ref, tgt_x_ref, src_mask_ref, tgt_mask_ref,
    # encoder per-layer params (stacked along leading layer axis, QKV fused)
    e_qkv_w, e_qkv_b, e_o_w, e_o_b, e_w1, e_b1, e_w2, e_b2, e_ln_g, e_ln_b,
    # encoder final norm
    e_norm_g, e_norm_b,
    # decoder per-layer params
    d_qkv_w, d_qkv_b, d_so_w, d_so_b,
    d_q_w, d_q_b, d_kv_w, d_kv_b, d_xo_w, d_xo_b,
    d_w1, d_b1, d_w2, d_b2, d_ln_g, d_ln_b,
    # decoder final norm + generator
    d_norm_g, d_norm_b, gen_w, gen_b,
    # output
    out_ref,
    *, batch, s_src, s_tgt,
):
    n_enc = e_qkv_w.shape[0]
    n_dec = d_qkv_w.shape[0]

    # Hoisted mask broadcasts (reused by every layer).
    src_mask = src_mask_ref[...]                                    # (B, 1, S_src)
    enc_mask3 = jnp.broadcast_to(src_mask, (batch, s_src, s_src))
    cross_mask3 = jnp.broadcast_to(src_mask, (batch, s_tgt, s_src))
    tgt_mask3 = tgt_mask_ref[...]                                   # (B, S_tgt, S_tgt)

    # ---------------- encoder ----------------
    x = src_x_ref[...]                                              # (B*S_src, D)
    for l in range(n_enc):
        nx = _layer_norm(x, e_ln_g[l, 0], e_ln_b[l, 0])
        x = x + _self_attention(nx, e_qkv_w[l], e_qkv_b[l], e_o_w[l], e_o_b[l],
                                enc_mask3, batch, s_src)
        nx = _layer_norm(x, e_ln_g[l, 1], e_ln_b[l, 1])
        x = x + _feed_forward(nx, e_w1[l], e_b1[l], e_w2[l], e_b2[l])
    memory = _layer_norm(x, e_norm_g[...], e_norm_b[...])           # (B*S_src, D)

    # ---------------- decoder ----------------
    y = tgt_x_ref[...]                                              # (B*S_tgt, D)
    for l in range(n_dec):
        ny = _layer_norm(y, d_ln_g[l, 0], d_ln_b[l, 0])
        y = y + _self_attention(ny, d_qkv_w[l], d_qkv_b[l], d_so_w[l], d_so_b[l],
                                tgt_mask3, batch, s_tgt)
        ny = _layer_norm(y, d_ln_g[l, 1], d_ln_b[l, 1])
        y = y + _cross_attention(ny, memory, d_q_w[l], d_q_b[l],
                                 d_kv_w[l], d_kv_b[l], d_xo_w[l], d_xo_b[l],
                                 cross_mask3, batch, s_tgt, s_src)
        ny = _layer_norm(y, d_ln_g[l, 2], d_ln_b[l, 2])
        y = y + _feed_forward(ny, d_w1[l], d_b1[l], d_w2[l], d_b2[l])
    y = _layer_norm(y, d_norm_g[...], d_norm_b[...])

    # ---------------- generator: log_softmax(y @ W + b) ----------------
    logits = _linear(y, gen_w[...], gen_b[...])                     # (B*S_tgt, V)
    m = jnp.max(logits, axis=-1, keepdims=True)
    lse = jnp.log(jnp.sum(jnp.exp(logits - m), axis=-1, keepdims=True)) + m
    out_ref[...] = (logits - lse).astype(out_ref.dtype)


# ----------------------- wrapper -----------------------

def encoder_decoder_forward(packed, source, target, source_mask, target_mask):
    B, s_src = source.shape
    s_tgt = target.shape[1]
    scale = math.sqrt(D_MODEL)

    # Embedding lookup + positional encoding: JAX glue (gather has no clean
    # in-kernel equivalent at this size); dropout is identity at inference.
    src_x = packed["src_emb"][source] * scale + packed["pe"][None, :s_src, :]
    tgt_x = packed["tgt_emb"][target] * scale + packed["pe"][None, :s_tgt, :]

    inputs = [
        src_x.reshape(B * s_src, D_MODEL).astype(jnp.float32),
        tgt_x.reshape(B * s_tgt, D_MODEL).astype(jnp.float32),
        source_mask.astype(jnp.float32),
        target_mask.astype(jnp.float32),
        packed["enc_qkv_w"], packed["enc_qkv_b"], packed["enc_o_w"], packed["enc_o_b"],
        packed["enc_w1"], packed["enc_b1"], packed["enc_w2"], packed["enc_b2"],
        packed["enc_ln_g"], packed["enc_ln_b"],
        packed["enc_norm_g"], packed["enc_norm_b"],
        packed["dec_qkv_w"], packed["dec_qkv_b"], packed["dec_so_w"], packed["dec_so_b"],
        packed["dec_q_w"], packed["dec_q_b"], packed["dec_kv_w"], packed["dec_kv_b"],
        packed["dec_xo_w"], packed["dec_xo_b"],
        packed["dec_w1"], packed["dec_b1"], packed["dec_w2"], packed["dec_b2"],
        packed["dec_ln_g"], packed["dec_ln_b"],
        packed["dec_norm_g"], packed["dec_norm_b"],
        packed["gen_w"], packed["gen_b"],
    ]

    out2d = pl.pallas_call(
        partial(_transformer_kernel, batch=B, s_src=s_src, s_tgt=s_tgt),
        out_shape=jax.ShapeDtypeStruct((B * s_tgt, TGT_VOCAB), jnp.float32),
        in_specs=[pl.BlockSpec(memory_space=pltpu.MemorySpace.VMEM)] * len(inputs),
        out_specs=pl.BlockSpec(memory_space=pltpu.MemorySpace.VMEM),
    )(*inputs)
    return out2d.reshape(B, s_tgt, TGT_VOCAB)


# ----------------------- deterministic parameter init -----------------------

def init_linear_params(key, din, dout, scale=0.05):
    kw, kb = jax.random.split(key)
    return {"w": jax.random.normal(kw, (din, dout), jnp.float32) * scale,
            "b": jax.random.normal(kb, (dout,), jnp.float32) * scale}


def init_mha(key, d):
    ks = jax.random.split(key, 4)
    return {"q": init_linear_params(ks[0], d, d),
            "k": init_linear_params(ks[1], d, d),
            "v": init_linear_params(ks[2], d, d),
            "o": init_linear_params(ks[3], d, d)}


def init_ln(d):
    return {"g": jnp.ones((d,), jnp.float32), "b": jnp.zeros((d,), jnp.float32)}


def init_ff(key, d, dff):
    k1, k2 = jax.random.split(key)
    return {"w1": init_linear_params(k1, d, dff), "w2": init_linear_params(k2, dff, d)}


def init_encoder_layer(key):
    k1, k2 = jax.random.split(key)
    return {"self_attn": init_mha(k1, D_MODEL), "ff": init_ff(k2, D_MODEL, D_FF),
            "ln0": init_ln(D_MODEL), "ln1": init_ln(D_MODEL)}


def init_decoder_layer(key):
    k1, k2, k3 = jax.random.split(key, 3)
    return {"self_attn": init_mha(k1, D_MODEL), "src_attn": init_mha(k2, D_MODEL),
            "ff": init_ff(k3, D_MODEL, D_FF),
            "ln0": init_ln(D_MODEL), "ln1": init_ln(D_MODEL), "ln2": init_ln(D_MODEL)}


def positional_encoding(max_len, d_model):
    pos = jnp.arange(max_len, dtype=jnp.float32)[:, None]
    div = jnp.exp(jnp.arange(0, d_model, 2, dtype=jnp.float32)
                  * (-math.log(10000.0) / d_model))
    pe = jnp.zeros((max_len, d_model), jnp.float32)
    pe = pe.at[:, 0::2].set(jnp.sin(pos * div))
    pe = pe.at[:, 1::2].set(jnp.cos(pos * div))
    return pe


def init_params(key):
    keys = jax.random.split(key, 5)
    return {
        "src_emb": jax.random.normal(keys[0], (SRC_VOCAB, D_MODEL), jnp.float32) * 0.05,
        "tgt_emb": jax.random.normal(keys[1], (TGT_VOCAB, D_MODEL), jnp.float32) * 0.05,
        "pe": positional_encoding(MAX_LEN, D_MODEL),
        "enc_layers": [init_encoder_layer(k) for k in jax.random.split(keys[2], N_LAYERS)],
        "enc_norm": init_ln(D_MODEL),
        "dec_layers": [init_decoder_layer(k) for k in jax.random.split(keys[3], N_LAYERS)],
        "dec_norm": init_ln(D_MODEL),
        "gen": init_linear_params(keys[4], D_MODEL, TGT_VOCAB),
    }


def pack_params(params):
    """Fuse QKV weights and stack per-layer tensors along a leading layer axis
    so the whole parameter set can be fed to one pallas_call."""
    def qkv_w(a): return jnp.concatenate([a["q"]["w"], a["k"]["w"], a["v"]["w"]], axis=1)
    def qkv_b(a): return jnp.concatenate([a["q"]["b"], a["k"]["b"], a["v"]["b"]])[None, :]
    def kv_w(a): return jnp.concatenate([a["k"]["w"], a["v"]["w"]], axis=1)
    def kv_b(a): return jnp.concatenate([a["k"]["b"], a["v"]["b"]])[None, :]
    def row(b): return b[None, :]

    enc = params["enc_layers"]
    dec = params["dec_layers"]
    return {
        "src_emb": params["src_emb"],
        "tgt_emb": params["tgt_emb"],
        "pe": params["pe"],
        # encoder layers
        "enc_qkv_w": jnp.stack([qkv_w(lp["self_attn"]) for lp in enc]),
        "enc_qkv_b": jnp.stack([qkv_b(lp["self_attn"]) for lp in enc]),
        "enc_o_w": jnp.stack([lp["self_attn"]["o"]["w"] for lp in enc]),
        "enc_o_b": jnp.stack([row(lp["self_attn"]["o"]["b"]) for lp in enc]),
        "enc_w1": jnp.stack([lp["ff"]["w1"]["w"] for lp in enc]),
        "enc_b1": jnp.stack([row(lp["ff"]["w1"]["b"]) for lp in enc]),
        "enc_w2": jnp.stack([lp["ff"]["w2"]["w"] for lp in enc]),
        "enc_b2": jnp.stack([row(lp["ff"]["w2"]["b"]) for lp in enc]),
        "enc_ln_g": jnp.stack([jnp.stack([row(lp["ln0"]["g"]), row(lp["ln1"]["g"])]) for lp in enc]),
        "enc_ln_b": jnp.stack([jnp.stack([row(lp["ln0"]["b"]), row(lp["ln1"]["b"])]) for lp in enc]),
        "enc_norm_g": row(params["enc_norm"]["g"]),
        "enc_norm_b": row(params["enc_norm"]["b"]),
        # decoder layers
        "dec_qkv_w": jnp.stack([qkv_w(lp["self_attn"]) for lp in dec]),
        "dec_qkv_b": jnp.stack([qkv_b(lp["self_attn"]) for lp in dec]),
        "dec_so_w": jnp.stack([lp["self_attn"]["o"]["w"] for lp in dec]),
        "dec_so_b": jnp.stack([row(lp["self_attn"]["o"]["b"]) for lp in dec]),
        "dec_q_w": jnp.stack([lp["src_attn"]["q"]["w"] for lp in dec]),
        "dec_q_b": jnp.stack([row(lp["src_attn"]["q"]["b"]) for lp in dec]),
        "dec_kv_w": jnp.stack([kv_w(lp["src_attn"]) for lp in dec]),
        "dec_kv_b": jnp.stack([kv_b(lp["src_attn"]) for lp in dec]),
        "dec_xo_w": jnp.stack([lp["src_attn"]["o"]["w"] for lp in dec]),
        "dec_xo_b": jnp.stack([row(lp["src_attn"]["o"]["b"]) for lp in dec]),
        "dec_w1": jnp.stack([lp["ff"]["w1"]["w"] for lp in dec]),
        "dec_b1": jnp.stack([row(lp["ff"]["w1"]["b"]) for lp in dec]),
        "dec_w2": jnp.stack([lp["ff"]["w2"]["w"] for lp in dec]),
        "dec_b2": jnp.stack([row(lp["ff"]["w2"]["b"]) for lp in dec]),
        "dec_ln_g": jnp.stack([jnp.stack([row(lp["ln0"]["g"]), row(lp["ln1"]["g"]),
                                          row(lp["ln2"]["g"])]) for lp in dec]),
        "dec_ln_b": jnp.stack([jnp.stack([row(lp["ln0"]["b"]), row(lp["ln1"]["b"]),
                                          row(lp["ln2"]["b"])]) for lp in dec]),
        "dec_norm_g": row(params["dec_norm"]["g"]),
        "dec_norm_b": row(params["dec_norm"]["b"]),
        # generator
        "gen_w": params["gen"]["w"],
        "gen_b": row(params["gen"]["b"]),
    }


if __name__ == "__main__":
    key = jax.random.PRNGKey(0)
    pkey, skey, tkey = jax.random.split(key, 3)
    params = init_params(pkey)
    packed = pack_params(params)

    source = jax.random.randint(skey, (BATCH, SEQ), 0, SRC_VOCAB, dtype=jnp.int32)
    target = jax.random.randint(tkey, (BATCH, SEQ), 0, TGT_VOCAB, dtype=jnp.int32)
    source_mask = jnp.ones((BATCH, 1, SEQ), jnp.float32)                     # (src != pad).unsqueeze(-2)
    target_mask = jnp.broadcast_to(jnp.tril(jnp.ones((SEQ, SEQ), jnp.float32))[None],
                                   (BATCH, SEQ, SEQ))                        # subsequent_mask

    out = jax.jit(encoder_decoder_forward)(packed, source, target, source_mask, target_mask)
    out = jax.block_until_ready(out)

    assert out.shape == (BATCH, SEQ, TGT_VOCAB), out.shape
    assert bool(jnp.all(jnp.isfinite(out)))
    # generator output is a log-softmax: rows should exp-sum to 1
    assert bool(jnp.allclose(jnp.sum(jnp.exp(out), axis=-1), 1.0, atol=1e-4))
    print("KERNEL_OK")
</pallas_src>

<mosaic_0001>
module attributes {stable_mosaic.version = 11 : i64} {
  func.func @_transformer_kernel(%arg0: memref<16x32xf32, #tpu.memory_space<vmem>>, %arg1: memref<16x32xf32, #tpu.memory_space<vmem>>, %arg2: memref<2x1x8xf32, #tpu.memory_space<vmem>>, %arg3: memref<2x8x8xf32, #tpu.memory_space<vmem>>, %arg4: memref<2x32x96xf32, #tpu.memory_space<vmem>>, %arg5: memref<2x1x96xf32, #tpu.memory_space<vmem>>, %arg6: memref<2x32x32xf32, #tpu.memory_space<vmem>>, %arg7: memref<2x1x32xf32, #tpu.memory_space<vmem>>, %arg8: memref<2x32x64xf32, #tpu.memory_space<vmem>>, %arg9: memref<2x1x64xf32, #tpu.memory_space<vmem>>, %arg10: memref<2x64x32xf32, #tpu.memory_space<vmem>>, %arg11: memref<2x1x32xf32, #tpu.memory_space<vmem>>, %arg12: memref<2x2x1x32xf32, #tpu.memory_space<vmem>>, %arg13: memref<2x2x1x32xf32, #tpu.memory_space<vmem>>, %arg14: memref<1x32xf32, #tpu.memory_space<vmem>>, %arg15: memref<1x32xf32, #tpu.memory_space<vmem>>, %arg16: memref<2x32x96xf32, #tpu.memory_space<vmem>>, %arg17: memref<2x1x96xf32, #tpu.memory_space<vmem>>, %arg18: memref<2x32x32xf32, #tpu.memory_space<vmem>>, %arg19: memref<2x1x32xf32, #tpu.memory_space<vmem>>, %arg20: memref<2x32x32xf32, #tpu.memory_space<vmem>>, %arg21: memref<2x1x32xf32, #tpu.memory_space<vmem>>, %arg22: memref<2x32x64xf32, #tpu.memory_space<vmem>>, %arg23: memref<2x1x64xf32, #tpu.memory_space<vmem>>, %arg24: memref<2x32x32xf32, #tpu.memory_space<vmem>>, %arg25: memref<2x1x32xf32, #tpu.memory_space<vmem>>, %arg26: memref<2x32x64xf32, #tpu.memory_space<vmem>>, %arg27: memref<2x1x64xf32, #tpu.memory_space<vmem>>, %arg28: memref<2x64x32xf32, #tpu.memory_space<vmem>>, %arg29: memref<2x1x32xf32, #tpu.memory_space<vmem>>, %arg30: memref<2x3x1x32xf32, #tpu.memory_space<vmem>>, %arg31: memref<2x3x1x32xf32, #tpu.memory_space<vmem>>, %arg32: memref<1x32xf32, #tpu.memory_space<vmem>>, %arg33: memref<1x32xf32, #tpu.memory_space<vmem>>, %arg34: memref<32x16xf32, #tpu.memory_space<vmem>>, %arg35: memref<1x16xf32, #tpu.memory_space<vmem>>, %arg36: memref<16x16xf32, #tpu.memory_space<vmem>>) attributes {dimension_semantics = [], scalar_prefetch = 0 : i64, scratch_operands = 0 : i64, tpu.core_type = #tpu.core_type<tc>} {
    %c0 = arith.constant 0 : index
    %c0_0 = arith.constant 0 : index
    %c0_1 = arith.constant 0 : index
    %0 = vector.load %arg2[%c0, %c0_0, %c0_1] : memref<2x1x8xf32, #tpu.memory_space<vmem>>, vector<2x1x8xf32>
    %1 = vector.shape_cast %0 : vector<2x1x8xf32> to vector<2x1x8xf32>
    %2 = vector.broadcast %1 : vector<2x1x8xf32> to vector<2x8x8xf32>
    %3 = vector.shape_cast %0 : vector<2x1x8xf32> to vector<2x1x8xf32>
    %4 = vector.broadcast %3 : vector<2x1x8xf32> to vector<2x8x8xf32>
    %c0_2 = arith.constant 0 : index
    %c0_3 = arith.constant 0 : index
    %c0_4 = arith.constant 0 : index
    %5 = vector.load %arg3[%c0_2, %c0_3, %c0_4] : memref<2x8x8xf32, #tpu.memory_space<vmem>>, vector<2x8x8xf32>
    %c0_5 = arith.constant 0 : index
    %c0_6 = arith.constant 0 : index
    %6 = vector.load %arg0[%c0_5, %c0_6] : memref<16x32xf32, #tpu.memory_space<vmem>>, vector<16x32xf32>
    %c0_7 = arith.constant 0 : index
    %c0_8 = arith.constant 0 : index
    %c0_9 = arith.constant 0 : index
    %c0_10 = arith.constant 0 : index
    %7 = vector.load %arg12[%c0_7, %c0_8, %c0_9, %c0_10] : memref<2x2x1x32xf32, #tpu.memory_space<vmem>>, vector<1x1x1x32xf32>
    %8 = vector.shape_cast %7 : vector<1x1x1x32xf32> to vector<1x32xf32>
    %c0_11 = arith.constant 0 : index
    %c0_12 = arith.constant 0 : index
    %c0_13 = arith.constant 0 : index
    %c0_14 = arith.constant 0 : index
    %9 = vector.load %arg13[%c0_11, %c0_12, %c0_13, %c0_14] : memref<2x2x1x32xf32, #tpu.memory_space<vmem>>, vector<1x1x1x32xf32>
    %10 = vector.shape_cast %9 : vector<1x1x1x32xf32> to vector<1x32xf32>
    %cst = arith.constant dense<0.000000e+00> : vector<16xf32>
    %11 = vector.multi_reduction <add>, %6, %cst [1] : vector<16x32xf32> to vector<16xf32>
    %12 = vector.shape_cast %11 : vector<16xf32> to vector<16x1xf32>
    %cst_15 = arith.constant 3.200000e+01 : f32
    %13 = vector.broadcast %cst_15 : f32 to vector<16x1xf32>
    %14 = arith.divf %12, %13 : vector<16x1xf32>
    %15 = vector.broadcast %14 : vector<16x1xf32> to vector<16x32xf32>
    %16 = arith.subf %6, %15 : vector<16x32xf32>
    %17 = arith.mulf %16, %16 : vector<16x32xf32>
    %cst_16 = arith.constant dense<0.000000e+00> : vector<16xf32>
    %18 = vector.multi_reduction <add>, %17, %cst_16 [1] : vector<16x32xf32> to vector<16xf32>
    %19 = vector.shape_cast %18 : vector<16xf32> to vector<16x1xf32>
    %cst_17 = arith.constant 0.0322580636 : f32
    %20 = vector.broadcast %cst_17 : f32 to vector<16x1xf32>
    %21 = arith.mulf %19, %20 : vector<16x1xf32>
    %22 = math.sqrt %21 : vector<16x1xf32>
    %23 = vector.broadcast %14 : vector<16x1xf32> to vector<16x32xf32>
    %24 = arith.subf %6, %23 : vector<16x32xf32>
    %25 = vector.broadcast %8 : vector<1x32xf32> to vector<16x32xf32>
    %26 = arith.mulf %25, %24 : vector<16x32xf32>
    %cst_18 = arith.constant 9.99999997E-7 : f32
    %27 = vector.broadcast %cst_18 : f32 to vector<16x1xf32>
    %28 = arith.addf %22, %27 : vector<16x1xf32>
    %29 = tpu.reciprocal %28 : vector<16x1xf32> -> vector<16x1xf32>
    %30 = vector.broadcast %29 : vector<16x1xf32> to vector<16x32xf32>
    %31 = arith.mulf %26, %30 : vector<16x32xf32>
    %32 = vector.broadcast %10 : vector<1x32xf32> to vector<16x32xf32>
    %33 = arith.addf %31, %32 : vector<16x32xf32>
    %c0_19 = arith.constant 0 : index
    %c0_20 = arith.constant 0 : index
    %c0_21 = arith.constant 0 : index
    %34 = vector.load %arg4[%c0_19, %c0_20, %c0_21] : memref<2x32x96xf32, #tpu.memory_space<vmem>>, vector<1x32x96xf32>
    %35 = vector.shape_cast %34 : vector<1x32x96xf32> to vector<32x96xf32>
    %c0_22 = arith.constant 0 : index
    %c0_23 = arith.constant 0 : index
    %c0_24 = arith.constant 0 : index
    %36 = vector.load %arg5[%c0_22, %c0_23, %c0_24] : memref<2x1x96xf32, #tpu.memory_space<vmem>>, vector<1x1x96xf32>
    %37 = vector.shape_cast %36 : vector<1x1x96xf32> to vector<1x96xf32>
    %c0_25 = arith.constant 0 : index
    %c0_26 = arith.constant 0 : index
    %c0_27 = arith.constant 0 : index
    %38 = vector.load %arg6[%c0_25, %c0_26, %c0_27] : memref<2x32x32xf32, #tpu.memory_space<vmem>>, vector<1x32x32xf32>
    %39 = vector.shape_cast %38 : vector<1x32x32xf32> to vector<32x32xf32>
    %c0_28 = arith.constant 0 : index
    %c0_29 = arith.constant 0 : index
    %c0_30 = arith.constant 0 : index
    %40 = vector.load %arg7[%c0_28, %c0_29, %c0_30] : memref<2x1x32xf32, #tpu.memory_space<vmem>>, vector<1x1x32xf32>
    %41 = vector.shape_cast %40 : vector<1x1x32xf32> to vector<1x32xf32>
    %cst_31 = arith.constant dense<0.000000e+00> : vector<16x96xf32>
    %42 = tpu.matmul %33, %35, %cst_31 {dimension_numbers = #tpu.dot_dimension_numbers<[1], [0], [0], [1], [0, 0, 1, 1], [], []>} : vector<16x32xf32>, vector<32x96xf32>, vector<16x96xf32> -> vector<16x96xf32>
    %43 = vector.broadcast %37 : vector<1x96xf32> to vector<16x96xf32>
    %44 = arith.addf %42, %43 : vector<16x96xf32>
    %45 = vector.extract_strided_slice %44 {offsets = [0, 0], sizes = [16, 32], strides = [1, 1]} : vector<16x96xf32> to vector<16x32xf32>
    %46 = vector.extract_strided_slice %44 {offsets = [0, 32], sizes = [16, 32], strides = [1, 1]} : vector<16x96xf32> to vector<16x32xf32>
    %47 = vector.extract_strided_slice %44 {offsets = [0, 64], sizes = [16, 32], strides = [1, 1]} : vector<16x96xf32> to vector<16x32xf32>
    %48 = vector.extract_strided_slice %45 {offsets = [0, 0], sizes = [16, 8], strides = [1, 1]} : vector<16x32xf32> to vector<16x8xf32>
    %49 = vector.shape_cast %48 : vector<16x8xf32> to vector<2x8x8xf32>
    %50 = vector.extract_strided_slice %46 {offsets = [0, 0], sizes = [16, 8], strides = [1, 1]} : vector<16x32xf32> to vector<16x8xf32>
    %51 = vector.shape_cast %50 : vector<16x8xf32> to vector<2x8x8xf32>
    %52 = vector.extract_strided_slice %47 {offsets = [0, 0], sizes = [16, 8], strides = [1, 1]} : vector<16x32xf32> to vector<16x8xf32>
    %53 = vector.shape_cast %52 : vector<16x8xf32> to vector<2x8x8xf32>
    "tpu.trace_start"() <{level = 10 : i32, message = "bqd,bkd->bqk"}> : () -> ()
    %cst_32 = arith.constant dense<0.000000e+00> : vector<2x8x8xf32>
    %54 = tpu.matmul %49, %51, %cst_32 {dimension_numbers = #tpu.dot_dimension_numbers<[2], [2], [1], [1], [0, 0, 0, 1, 1, 1], [0], [0]>} : vector<2x8x8xf32>, vector<2x8x8xf32>, vector<2x8x8xf32> -> vector<2x8x8xf32>
    "tpu.trace_stop"() : () -> ()
    %cst_33 = arith.constant 0.353553385 : f32
    %55 = vector.broadcast %cst_33 : f32 to vector<2x8x8xf32>
    %56 = arith.mulf %54, %55 : vector<2x8x8xf32>
    %cst_34 = arith.constant 0.000000e+00 : f32
    %57 = vector.broadcast %cst_34 : f32 to vector<2x8x8xf32>
    %58 = arith.cmpf one, %2, %57 : vector<2x8x8xf32>
    %cst_35 = arith.constant -1.000000e+09 : f32
    %59 = vector.broadcast %cst_35 : f32 to vector<2x8x8xf32>
    %60 = arith.select %58, %56, %59 : vector<2x8x8xi1>, vector<2x8x8xf32>
    %cst_36 = arith.constant dense<0xFF800000> : vector<2x8xf32>
    %61 = vector.multi_reduction <maximumf>, %60, %cst_36 [2] : vector<2x8x8xf32> to vector<2x8xf32>
    %62 = vector.shape_cast %61 : vector<2x8xf32> to vector<2x8x1xf32>
    %63 = vector.broadcast %62 : vector<2x8x1xf32> to vector<2x8x8xf32>
    %64 = arith.subf %60, %63 : vector<2x8x8xf32>
    %65 = math.exp %64 : vector<2x8x8xf32>
    %cst_37 = arith.constant dense<0.000000e+00> : vector<2x8xf32>
    %66 = vector.multi_reduction <add>, %65, %cst_37 [2] : vector<2x8x8xf32> to vector<2x8xf32>
    %67 = vector.shape_cast %66 : vector<2x8xf32> to vector<2x8x1xf32>
    %68 = tpu.reciprocal %67 : vector<2x8x1xf32> -> vector<2x8x1xf32>
    %69 = vector.broadcast %68 : vector<2x8x1xf32> to vector<2x8x8xf32>
    %70 = arith.mulf %65, %69 : vector<2x8x8xf32>
    "tpu.trace_start"() <{level = 10 : i32, message = "bqk,bkd->bqd"}> : () -> ()
    %cst_38 = arith.constant dense<0.000000e+00> : vector<2x8x8xf32>
    %71 = tpu.matmul %70, %53, %cst_38 {dimension_numbers = #tpu.dot_dimension_numbers<[2], [1], [1], [2], [0, 0, 0, 1, 1, 2], [0], [0]>} : vector<2x8x8xf32>, vector<2x8x8xf32>, vector<2x8x8xf32> -> vector<2x8x8xf32>
    "tpu.trace_stop"() : () -> ()
    %72 = vector.shape_cast %71 : vector<2x8x8xf32> to vector<16x8xf32>
    %73 = vector.extract_strided_slice %45 {offsets = [0, 8], sizes = [16, 8], strides = [1, 1]} : vector<16x32xf32> to vector<16x8xf32>
    %74 = vector.shape_cast %73 : vector<16x8xf32> to vector<2x8x8xf32>
    %75 = vector.extract_strided_slice %46 {offsets = [0, 8], sizes = [16, 8], strides = [1, 1]} : vector<16x32xf32> to vector<16x8xf32>
    %76 = vector.shape_cast %75 : vector<16x8xf32> to vector<2x8x8xf32>
    %77 = vector.extract_strided_slice %47 {offsets = [0, 8], sizes = [16, 8], strides = [1, 1]} : vector<16x32xf32> to vector<16x8xf32>
    %78 = vector.shape_cast %77 : vector<16x8xf32> to vector<2x8x8xf32>
    "tpu.trace_start"() <{level = 10 : i32, message = "bqd,bkd->bqk"}> : () -> ()
    %cst_39 = arith.constant dense<0.000000e+00> : vector<2x8x8xf32>
    %79 = tpu.matmul %74, %76, %cst_39 {dimension_numbers = #tpu.dot_dimension_numbers<[2], [2], [1], [1], [0, 0, 0, 1, 1, 1], [0], [0]>} : vector<2x8x8xf32>, vector<2x8x8xf32>, vector<2x8x8xf32> -> vector<2x8x8xf32>
    "tpu.trace_stop"() : () -> ()
    %cst_40 = arith.constant 0.353553385 : f32
    %80 = vector.broadcast %cst_40 : f32 to vector<2x8x8xf32>
    %81 = arith.mulf %79, %80 : vector<2x8x8xf32>
    %cst_41 = arith.constant 0.000000e+00 : f32
    %82 = vector.broadcast %cst_41 : f32 to vector<2x8x8xf32>
    %83 = arith.cmpf one, %2, %82 : vector<2x8x8xf32>
    %cst_42 = arith.constant -1.000000e+09 : f32
    %84 = vector.broadcast %cst_42 : f32 to vector<2x8x8xf32>
    %85 = arith.select %83, %81, %84 : vector<2x8x8xi1>, vector<2x8x8xf32>
    %cst_43 = arith.constant dense<0xFF800000> : vector<2x8xf32>
    %86 = vector.multi_reduction <maximumf>, %85, %cst_43 [2] : vector<2x8x8xf32> to vector<2x8xf32>
    %87 = vector.shape_cast %86 : vector<2x8xf32> to vector<2x8x1xf32>
    %88 = vector.broadcast %87 : vector<2x8x1xf32> to vector<2x8x8xf32>
    %89 = arith.subf %85, %88 : vector<2x8x8xf32>
    %90 = math.exp %89 : vector<2x8x8xf32>
    %cst_44 = arith.constant dense<0.000000e+00> : vector<2x8xf32>
    %91 = vector.multi_reduction <add>, %90, %cst_44 [2] : vector<2x8x8xf32> to vector<2x8xf32>
    %92 = vector.shape_cast %91 : vector<2x8xf32> to vector<2x8x1xf32>
    %93 = tpu.reciprocal %92 : vector<2x8x1xf32> -> vector<2x8x1xf32>
    %94 = vector.broadcast %93 : vector<2x8x1xf32> to vector<2x8x8xf32>
    %95 = arith.mulf %90, %94 : vector<2x8x8xf32>
    "tpu.trace_start"() <{level = 10 : i32, message = "bqk,bkd->bqd"}> : () -> ()
    %cst_45 = arith.constant dense<0.000000e+00> : vector<2x8x8xf32>
    %96 = tpu.matmul %95, %78, %cst_45 {dimension_numbers = #tpu.dot_dimension_numbers<[2], [1], [1], [2], [0, 0, 0, 1, 1, 2], [0], [0]>} : vector<2x8x8xf32>, vector<2x8x8xf32>, vector<2x8x8xf32> -> vector<2x8x8xf32>
    "tpu.trace_stop"() : () -> ()
    %97 = vector.shape_cast %96 : vector<2x8x8xf32> to vector<16x8xf32>
    %98 = vector.extract_strided_slice %45 {offsets = [0, 16], sizes = [16, 8], strides = [1, 1]} : vector<16x32xf32> to vector<16x8xf32>
    %99 = vector.shape_cast %98 : vector<16x8xf32> to vector<2x8x8xf32>
    %100 = vector.extract_strided_slice %46 {offsets = [0, 16], sizes = [16, 8], strides = [1, 1]} : vector<16x32xf32> to vector<16x8xf32>
    %101 = vector.shape_cast %100 : vector<16x8xf32> to vector<2x8x8xf32>
    %102 = vector.extract_strided_slice %47 {offsets = [0, 16], sizes = [16, 8], strides = [1, 1]} : vector<16x32xf32> to vector<16x8xf32>
    %103 = vector.shape_cast %102 : vector<16x8xf32> to vector<2x8x8xf32>
    "tpu.trace_start"() <{level = 10 : i32, message = "bqd,bkd->bqk"}> : () -> ()
    %cst_46 = arith.constant dense<0.000000e+00> : vector<2x8x8xf32>
    %104 = tpu.matmul %99, %101, %cst_46 {dimension_numbers = #tpu.dot_dimension_numbers<[2], [2], [1], [1], [0, 0, 0, 1, 1, 1], [0], [0]>} : vector<2x8x8xf32>, vector<2x8x8xf32>, vector<2x8x8xf32> -> vector<2x8x8xf32>
    "tpu.trace_stop"() : () -> ()
    %cst_47 = arith.constant 0.353553385 : f32
    %105 = vector.broadcast %cst_47 : f32 to vector<2x8x8xf32>
    %106 = arith.mulf %104, %105 : vector<2x8x8xf32>
    %cst_48 = arith.constant 0.000000e+00 : f32
    %107 = vector.broadcast %cst_48 : f32 to vector<2x8x8xf32>
    %108 = arith.cmpf one, %2, %107 : vector<2x8x8xf32>
    %cst_49 = arith.constant -1.000000e+09 : f32
    %109 = vector.broadcast %cst_49 : f32 to vector<2x8x8xf32>
    %110 = arith.select %108, %106, %109 : vector<2x8x8xi1>, vector<2x8x8xf32>
    %cst_50 = arith.constant dense<0xFF800000> : vector<2x8xf32>
    %111 = vector.multi_reduction <maximumf>, %110, %cst_50 [2] : vector<2x8x8xf32> to vector<2x8xf32>
    %112 = vector.shape_cast %111 : vector<2x8xf32> to vector<2x8x1xf32>
    %113 = vector.broadcast %112 : vector<2x8x1xf32> to vector<2x8x8xf32>
    %114 = arith.subf %110, %113 : vector<2x8x8xf32>
    %115 = math.exp %114 : vector<2x8x8xf32>
    %cst_51 = arith.constant dense<0.000000e+00> : vector<2x8xf32>
    %116 = vector.multi_reduction <add>, %115, %cst_51 [2] : vector<2x8x8xf32> to vector<2x8xf32>
    %117 = vector.shape_cast %116 : vector<2x8xf32> to vector<2x8x1xf32>
    %118 = tpu.reciprocal %117 : vector<2x8x1xf32> -> vector<2x8x1xf32>
    %119 = vector.broadcast %118 : vector<2x8x1xf32> to vector<2x8x8xf32>
    %120 = arith.mulf %115, %119 : vector<2x8x8xf32>
    "tpu.trace_start"() <{level = 10 : i32, message = "bqk,bkd->bqd"}> : () -> ()
    %cst_52 = arith.constant dense<0.000000e+00> : vector<2x8x8xf32>
    %121 = tpu.matmul %120, %103, %cst_52 {dimension_numbers = #tpu.dot_dimension_numbers<[2], [1], [1], [2], [0, 0, 0, 1, 1, 2], [0], [0]>} : vector<2x8x8xf32>, vector<2x8x8xf32>, vector<2x8x8xf32> -> vector<2x8x8xf32>
    "tpu.trace_stop"() : () -> ()
    %122 = vector.shape_cast %121 : vector<2x8x8xf32> to vector<16x8xf32>
    %123 = vector.extract_strided_slice %45 {offsets = [0, 24], sizes = [16, 8], strides = [1, 1]} : vector<16x32xf32> to vector<16x8xf32>
    %124 = vector.shape_cast %123 : vector<16x8xf32> to vector<2x8x8xf32>
    %125 = vector.extract_strided_slice %46 {offsets = [0, 24], sizes = [16, 8], strides = [1, 1]} : vector<16x32xf32> to vector<16x8xf32>
    %126 = vector.shape_cast %125 : vector<16x8xf32> to vector<2x8x8xf32>
    %127 = vector.extract_strided_slice %47 {offsets = [0, 24], sizes = [16, 8], strides = [1, 1]} : vector<16x32xf32> to vector<16x8xf32>
    %128 = vector.shape_cast %127 : vector<16x8xf32> to vector<2x8x8xf32>
    "tpu.trace_start"() <{level = 10 : i32, message = "bqd,bkd->bqk"}> : () -> ()
    %cst_53 = arith.constant dense<0.000000e+00> : vector<2x8x8xf32>
    %129 = tpu.matmul %124, %126, %cst_53 {dimension_numbers = #tpu.dot_dimension_numbers<[2], [2], [1], [1], [0, 0, 0, 1, 1, 1], [0], [0]>} : vector<2x8x8xf32>, vector<2x8x8xf32>, vector<2x8x8xf32> -> vector<2x8x8xf32>
    "tpu.trace_stop"() : () -> ()
    %cst_54 = arith.constant 0.353553385 : f32
    %130 = vector.broadcast %cst_54 : f32 to vector<2x8x8xf32>
    %131 = arith.mulf %129, %130 : vector<2x8x8xf32>
    %cst_55 = arith.constant 0.000000e+00 : f32
    %132 = vector.broadcast %cst_55 : f32 to vector<2x8x8xf32>
    %133 = arith.cmpf one, %2, %132 : vector<2x8x8xf32>
    %cst_56 = arith.constant -1.000000e+09 : f32
    %134 = vector.broadcast %cst_56 : f32 to vector<2x8x8xf32>
    %135 = arith.select %133, %131, %134 : vector<2x8x8xi1>, vector<2x8x8xf32>
    %cst_57 = arith.constant dense<0xFF800000> : vector<2x8xf32>
    %136 = vector.multi_reduction <maximumf>, %135, %cst_57 [2] : vector<2x8x8xf32> to vector<2x8xf32>
    %137 = vector.shape_cast %136 : vector<2x8xf32> to vector<2x8x1xf32>
    %138 = vector.broadcast %137 : vector<2x8x1xf32> to vector<2x8x8xf32>
    %139 = arith.subf %135, %138 : vector<2x8x8xf32>
    %140 = math.exp %139 : vector<2x8x8xf32>
    %cst_58 = arith.constant dense<0.000000e+00> : vector<2x8xf32>
    %141 = vector.multi_reduction <add>, %140, %cst_58 [2] : vector<2x8x8xf32> to vector<2x8xf32>
    %142 = vector.shape_cast %141 : vector<2x8xf32> to vector<2x8x1xf32>
    %143 = tpu.reciprocal %142 : vector<2x8x1xf32> -> vector<2x8x1xf32>
    %144 = vector.broadcast %143 : vector<2x8x1xf32> to vector<2x8x8xf32>
    %145 = arith.mulf %140, %144 : vector<2x8x8xf32>
    "tpu.trace_start"() <{level = 10 : i32, message = "bqk,bkd->bqd"}> : () -> ()
    %cst_59 = arith.constant dense<0.000000e+00> : vector<2x8x8xf32>
    %146 = tpu.matmul %145, %128, %cst_59 {dimension_numbers = #tpu.dot_dimension_numbers<[2], [1], [1], [2], [0, 0, 0, 1, 1, 2], [0], [0]>} : vector<2x8x8xf32>, vector<2x8x8xf32>, vector<2x8x8xf32> -> vector<2x8x8xf32>
    "tpu.trace_stop"() : () -> ()
    %147 = vector.shape_cast %146 : vector<2x8x8xf32> to vector<16x8xf32>
    %148 = tpu.concatenate %72, %97, %122, %147 in 1 : vector<16x8xf32>, vector<16x8xf32>, vector<16x8xf32>, vector<16x8xf32> -> vector<16x32xf32>
    %cst_60 = arith.constant dense<0.000000e+00> : vector<16x32xf32>
    %149 = tpu.matmul %148, %39, %cst_60 {dimension_numbers = #tpu.dot_dimension_numbers<[1], [0], [0], [1], [0, 0, 1, 1], [], []>} : vector<16x32xf32>, vector<32x32xf32>, vector<16x32xf32> -> vector<16x32xf32>
    %150 = vector.broadcast %41 : vector<1x32xf32> to vector<16x32xf32>
    %151 = arith.addf %149, %150 : vector<16x32xf32>
    %152 = arith.addf %6, %151 : vector<16x32xf32>
    %c0_61 = arith.constant 0 : index
    %c1 = arith.constant 1 : index
    %c0_62 = arith.constant 0 : index
    %c0_63 = arith.constant 0 : index
    %153 = vector.load %arg12[%c0_61, %c1, %c0_62, %c0_63] : memref<2x2x1x32xf32, #tpu.memory_space<vmem>>, vector<1x1x1x32xf32>
    %154 = vector.shape_cast %153 : vector<1x1x1x32xf32> to vector<1x32xf32>
    %c0_64 = arith.constant 0 : index
    %c1_65 = arith.constant 1 : index
    %c0_66 = arith.constant 0 : index
    %c0_67 = arith.constant 0 : index
    %155 = vector.load %arg13[%c0_64, %c1_65, %c0_66, %c0_67] : memref<2x2x1x32xf32, #tpu.memory_space<vmem>>, vector<1x1x1x32xf32>
    %156 = vector.shape_cast %155 : vector<1x1x1x32xf32> to vector<1x32xf32>
    %cst_68 = arith.constant dense<0.000000e+00> : vector<16xf32>
    %157 = vector.multi_reduction <add>, %152, %cst_68 [1] : vector<16x32xf32> to vector<16xf32>
    %158 = vector.shape_cast %157 : vector<16xf32> to vector<16x1xf32>
    %cst_69 = arith.constant 3.200000e+01 : f32
    %159 = vector.broadcast %cst_69 : f32 to vector<16x1xf32>
    %160 = arith.divf %158, %159 : vector<16x1xf32>
    %161 = vector.broadcast %160 : vector<16x1xf32> to vector<16x32xf32>
    %162 = arith.subf %152, %161 : vector<16x32xf32>
    %163 = arith.mulf %162, %162 : vector<16x32xf32>
    %cst_70 = arith.constant dense<0.000000e+00> : vector<16xf32>
    %164 = vector.multi_reduction <add>, %163, %cst_70 [1] : vector<16x32xf32> to vector<16xf32>
    %165 = vector.shape_cast %164 : vector<16xf32> to vector<16x1xf32>
    %cst_71 = arith.constant 0.0322580636 : f32
    %166 = vector.broadcast %cst_71 : f32 to vector<16x1xf32>
    %167 = arith.mulf %165, %166 : vector<16x1xf32>
    %168 = math.sqrt %167 : vector<16x1xf32>
    %169 = vector.broadcast %160 : vector<16x1xf32> to vector<16x32xf32>
    %170 = arith.subf %152, %169 : vector<16x32xf32>
    %171 = vector.broadcast %154 : vector<1x32xf32> to vector<16x32xf32>
    %172 = arith.mulf %171, %170 : vector<16x32xf32>
    %cst_72 = arith.constant 9.99999997E-7 : f32
    %173 = vector.broadcast %cst_72 : f32 to vector<16x1xf32>
    %174 = arith.addf %168, %173 : vector<16x1xf32>
    %175 = tpu.reciprocal %174 : vector<16x1xf32> -> vector<16x1xf32>
    %176 = vector.broadcast %175 : vector<16x1xf32> to vector<16x32xf32>
    %177 = arith.mulf %172, %176 : vector<16x32xf32>
    %178 = vector.broadcast %156 : vector<1x32xf32> to vector<16x32xf32>
    %179 = arith.addf %177, %178 : vector<16x32xf32>
    %c0_73 = arith.constant 0 : index
    %c0_74 = arith.constant 0 : index
    %c0_75 = arith.constant 0 : index
    %180 = vector.load %arg8[%c0_73, %c0_74, %c0_75] : memref<2x32x64xf32, #tpu.memory_space<vmem>>, vector<1x32x64xf32>
    %181 = vector.shape_cast %180 : vector<1x32x64xf32> to vector<32x64xf32>
    %c0_76 = arith.constant 0 : index
    %c0_77 = arith.constant 0 : index
    %c0_78 = arith.constant 0 : index
    %182 = vector.load %arg9[%c0_76, %c0_77, %c0_78] : memref<2x1x64xf32, #tpu.memory_space<vmem>>, vector<1x1x64xf32>
    %183 = vector.shape_cast %182 : vector<1x1x64xf32> to vector<1x64xf32>
    %c0_79 = arith.constant 0 : index
    %c0_80 = arith.constant 0 : index
    %c0_81 = arith.constant 0 : index
    %184 = vector.load %arg10[%c0_79, %c0_80, %c0_81] : memref<2x64x32xf32, #tpu.memory_space<vmem>>, vector<1x64x32xf32>
    %185 = vector.shape_cast %184 : vector<1x64x32xf32> to vector<64x32xf32>
    %c0_82 = arith.constant 0 : index
    %c0_83 = arith.constant 0 : index
    %c0_84 = arith.constant 0 : index
    %186 = vector.load %arg11[%c0_82, %c0_83, %c0_84] : memref<2x1x32xf32, #tpu.memory_space<vmem>>, vector<1x1x32xf32>
    %187 = vector.shape_cast %186 : vector<1x1x32xf32> to vector<1x32xf32>
    %cst_85 = arith.constant dense<0.000000e+00> : vector<16x64xf32>
    %188 = tpu.matmul %179, %181, %cst_85 {dimension_numbers = #tpu.dot_dimension_numbers<[1], [0], [0], [1], [0, 0, 1, 1], [], []>} : vector<16x32xf32>, vector<32x64xf32>, vector<16x64xf32> -> vector<16x64xf32>
    %189 = vector.broadcast %183 : vector<1x64xf32> to vector<16x64xf32>
    %190 = arith.addf %188, %189 : vector<16x64xf32>
    %cst_86 = arith.constant 0.000000e+00 : f32
    %191 = vector.broadcast %cst_86 : f32 to vector<16x64xf32>
    %192 = arith.maximumf %190, %191 : vector<16x64xf32>
    %cst_87 = arith.constant dense<0.000000e+00> : vector<16x32xf32>
    %193 = tpu.matmul %192, %185, %cst_87 {dimension_numbers = #tpu.dot_dimension_numbers<[1], [0], [0], [1], [0, 0, 1, 1], [], []>} : vector<16x64xf32>, vector<64x32xf32>, vector<16x32xf32> -> vector<16x32xf32>
    %194 = vector.broadcast %187 : vector<1x32xf32> to vector<16x32xf32>
    %195 = arith.addf %193, %194 : vector<16x32xf32>
    %196 = arith.addf %152, %195 : vector<16x32xf32>
    %c1_88 = arith.constant 1 : index
    %c0_89 = arith.constant 0 : index
    %c0_90 = arith.constant 0 : index
    %c0_91 = arith.constant 0 : index
    %197 = vector.load %arg12[%c1_88, %c0_89, %c0_90, %c0_91] : memref<2x2x1x32xf32, #tpu.memory_space<vmem>>, vector<1x1x1x32xf32>
    %198 = vector.shape_cast %197 : vector<1x1x1x32xf32> to vector<1x32xf32>
    %c1_92 = arith.constant 1 : index
    %c0_93 = arith.constant 0 : index
    %c0_94 = arith.constant 0 : index
    %c0_95 = arith.constant 0 : index
    %199 = vector.load %arg13[%c1_92, %c0_93, %c0_94, %c0_95] : memref<2x2x1x32xf32, #tpu.memory_space<vmem>>, vector<1x1x1x32xf32>
    %200 = vector.shape_cast %199 : vector<1x1x1x32xf32> to vector<1x32xf32>
    %cst_96 = arith.constant dense<0.000000e+00> : vector<16xf32>
    %201 = vector.multi_reduction <add>, %196, %cst_96 [1] : vector<16x32xf32> to vector<16xf32>
    %202 = vector.shape_cast %201 : vector<16xf32> to vector<16x1xf32>
    %cst_97 = arith.constant 3.200000e+01 : f32
    %203 = vector.broadcast %cst_97 : f32 to vector<16x1xf32>
    %204 = arith.divf %202, %203 : vector<16x1xf32>
    %205 = vector.broadcast %204 : vector<16x1xf32> to vector<16x32xf32>
    %206 = arith.subf %196, %205 : vector<16x32xf32>
    %207 = arith.mulf %206, %206 : vector<16x32xf32>
    %cst_98 = arith.constant dense<0.000000e+00> : vector<16xf32>
    %208 = vector.multi_reduction <add>, %207, %cst_98 [1] : vector<16x32xf32> to vector<16xf32>
    %209 = vector.shape_cast %208 : vector<16xf32> to vector<16x1xf32>
    %cst_99 = arith.constant 0.0322580636 : f32
    %210 = vector.broadcast %cst_99 : f32 to vector<16x1xf32>
    %211 = arith.mulf %209, %210 : vector<16x1xf32>
    %212 = math.sqrt %211 : vector<16x1xf32>
    %213 = vector.broadcast %204 : vector<16x1xf32> to vector<16x32xf32>
    %214 = arith.subf %196, %213 : vector<16x32xf32>
    %215 = vector.broadcast %198 : vector<1x32xf32> to vector<16x32xf32>
    %216 = arith.mulf %215, %214 : vector<16x32xf32>
    %cst_100 = arith.constant 9.99999997E-7 : f32
    %217 = vector.broadcast %cst_100 : f32 to vector<16x1xf32>
    %218 = arith.addf %212, %217 : vector<16x1xf32>
    %219 = tpu.reciprocal %218 : vector<16x1xf32> -> vector<16x1xf32>
    %220 = vector.broadcast %219 : vector<16x1xf32> to vector<16x32xf32>
    %221 = arith.mulf %216, %220 : vector<16x32xf32>
    %222 = vector.broadcast %200 : vector<1x32xf32> to vector<16x32xf32>
    %223 = arith.addf %221, %222 : vector<16x32xf32>
    %c1_101 = arith.constant 1 : index
    %c0_102 = arith.constant 0 : index
    %c0_103 = arith.constant 0 : index
    %224 = vector.load %arg4[%c1_101, %c0_102, %c0_103] : memref<2x32x96xf32, #tpu.memory_space<vmem>>, vector<1x32x96xf32>
    %225 = vector.shape_cast %224 : vector<1x32x96xf32> to vector<32x96xf32>
    %c1_104 = arith.constant 1 : index
    %c0_105 = arith.constant 0 : index
    %c0_106 = arith.constant 0 : index
    %226 = vector.load %arg5[%c1_104, %c0_105, %c0_106] : memref<2x1x96xf32, #tpu.memory_space<vmem>>, vector<1x1x96xf32>
    %227 = vector.shape_cast %226 : vector<1x1x96xf32> to vector<1x96xf32>
    %c1_107 = arith.constant 1 : index
    %c0_108 = arith.constant 0 : index
    %c0_109 = arith.constant 0 : index
    %228 = vector.load %arg6[%c1_107, %c0_108, %c0_109] : memref<2x32x32xf32, #tpu.memory_space<vmem>>, vector<1x32x32xf32>
    %229 = vector.shape_cast %228 : vector<1x32x32xf32> to vector<32x32xf32>
    %c1_110 = arith.constant 1 : index
    %c0_111 = arith.constant 0 : index
    %c0_112 = arith.constant 0 : index
    %230 = vector.load %arg7[%c1_110, %c0_111, %c0_112] : memref<2x1x32xf32, #tpu.memory_space<vmem>>, vector<1x1x32xf32>
    %231 = vector.shape_cast %230 : vector<1x1x32xf32> to vector<1x32xf32>
    %cst_113 = arith.constant dense<0.000000e+00> : vector<16x96xf32>
    %232 = tpu.matmul %223, %225, %cst_113 {dimension_numbers = #tpu.dot_dimension_numbers<[1], [0], [0], [1], [0, 0, 1, 1], [], []>} : vector<16x32xf32>, vector<32x96xf32>, vector<16x96xf32> -> vector<16x96xf32>
    %233 = vector.broadcast %227 : vector<1x96xf32> to vector<16x96xf32>
    %234 = arith.addf %232, %233 : vector<16x96xf32>
    %235 = vector.extract_strided_slice %234 {offsets = [0, 0], sizes = [16, 32], strides = [1, 1]} : vector<16x96xf32> to vector<16x32xf32>
    %236 = vector.extract_strided_slice %234 {offsets = [0, 32], sizes = [16, 32], strides = [1, 1]} : vector<16x96xf32> to vector<16x32xf32>
    %237 = vector.extract_strided_slice %234 {offsets = [0, 64], sizes = [16, 32], strides = [1, 1]} : vector<16x96xf32> to vector<16x32xf32>
    %238 = vector.extract_strided_slice %235 {offsets = [0, 0], sizes = [16, 8], strides = [1, 1]} : vector<16x32xf32> to vector<16x8xf32>
    %239 = vector.shape_cast %238 : vector<16x8xf32> to vector<2x8x8xf32>
    %240 = vector.extract_strided_slice %236 {offsets = [0, 0], sizes = [16, 8], strides = [1, 1]} : vector<16x32xf32> to vector<16x8xf32>
    %241 = vector.shape_cast %240 : vector<16x8xf32> to vector<2x8x8xf32>
    %242 = vector.extract_strided_slice %237 {offsets = [0, 0], sizes = [16, 8], strides = [1, 1]} : vector<16x32xf32> to vector<16x8xf32>
    %243 = vector.shape_cast %242 : vector<16x8xf32> to vector<2x8x8xf32>
    "tpu.trace_start"() <{level = 10 : i32, message = "bqd,bkd->bqk"}> : () -> ()
    %cst_114 = arith.constant dense<0.000000e+00> : vector<2x8x8xf32>
    %244 = tpu.matmul %239, %241, %cst_114 {dimension_numbers = #tpu.dot_dimension_numbers<[2], [2], [1], [1], [0, 0, 0, 1, 1, 1], [0], [0]>} : vector<2x8x8xf32>, vector<2x8x8xf32>, vector<2x8x8xf32> -> vector<2x8x8xf32>
    "tpu.trace_stop"() : () -> ()
    %cst_115 = arith.constant 0.353553385 : f32
    %245 = vector.broadcast %cst_115 : f32 to vector<2x8x8xf32>
    %246 = arith.mulf %244, %245 : vector<2x8x8xf32>
    %cst_116 = arith.constant 0.000000e+00 : f32
    %247 = vector.broadcast %cst_116 : f32 to vector<2x8x8xf32>
    %248 = arith.cmpf one, %2, %247 : vector<2x8x8xf32>
    %cst_117 = arith.constant -1.000000e+09 : f32
    %249 = vector.broadcast %cst_117 : f32 to vector<2x8x8xf32>
    %250 = arith.select %248, %246, %249 : vector<2x8x8xi1>, vector<2x8x8xf32>
    %cst_118 = arith.constant dense<0xFF800000> : vector<2x8xf32>
    %251 = vector.multi_reduction <maximumf>, %250, %cst_118 [2] : vector<2x8x8xf32> to vector<2x8xf32>
    %252 = vector.shape_cast %251 : vector<2x8xf32> to vector<2x8x1xf32>
    %253 = vector.broadcast %252 : vector<2x8x1xf32> to vector<2x8x8xf32>
    %254 = arith.subf %250, %253 : vector<2x8x8xf32>
    %255 = math.exp %254 : vector<2x8x8xf32>
    %cst_119 = arith.constant dense<0.000000e+00> : vector<2x8xf32>
    %256 = vector.multi_reduction <add>, %255, %cst_119 [2] : vector<2x8x8xf32> to vector<2x8xf32>
    %257 = vector.shape_cast %256 : vector<2x8xf32> to vector<2x8x1xf32>
    %258 = tpu.reciprocal %257 : vector<2x8x1xf32> -> vector<2x8x1xf32>
    %259 = vector.broadcast %258 : vector<2x8x1xf32> to vector<2x8x8xf32>
    %260 = arith.mulf %255, %259 : vector<2x8x8xf32>
    "tpu.trace_start"() <{level = 10 : i32, message = "bqk,bkd->bqd"}> : () -> ()
    %cst_120 = arith.constant dense<0.000000e+00> : vector<2x8x8xf32>
    %261 = tpu.matmul %260, %243, %cst_120 {dimension_numbers = #tpu.dot_dimension_numbers<[2], [1], [1], [2], [0, 0, 0, 1, 1, 2], [0], [0]>} : vector<2x8x8xf32>, vector<2x8x8xf32>, vector<2x8x8xf32> -> vector<2x8x8xf32>
    "tpu.trace_stop"() : () -> ()
    %262 = vector.shape_cast %261 : vector<2x8x8xf32> to vector<16x8xf32>
    %263 = vector.extract_strided_slice %235 {offsets = [0, 8], sizes = [16, 8], strides = [1, 1]} : vector<16x32xf32> to vector<16x8xf32>
    %264 = vector.shape_cast %263 : vector<16x8xf32> to vector<2x8x8xf32>
    %265 = vector.extract_strided_slice %236 {offsets = [0, 8], sizes = [16, 8], strides = [1, 1]} : vector<16x32xf32> to vector<16x8xf32>
    %266 = vector.shape_cast %265 : vector<16x8xf32> to vector<2x8x8xf32>
    %267 = vector.extract_strided_slice %237 {offsets = [0, 8], sizes = [16, 8], strides = [1, 1]} : vector<16x32xf32> to vector<16x8xf32>
    %268 = vector.shape_cast %267 : vector<16x8xf32> to vector<2x8x8xf32>
    "tpu.trace_start"() <{level = 10 : i32, message = "bqd,bkd->bqk"}> : () -> ()
    %cst_121 = arith.constant dense<0.000000e+00> : vector<2x8x8xf32>
    %269 = tpu.matmul %264, %266, %cst_121 {dimension_numbers = #tpu.dot_dimension_numbers<[2], [2], [1], [1], [0, 0, 0, 1, 1, 1], [0], [0]>} : vector<2x8x8xf32>, vector<2x8x8xf32>, vector<2x8x8xf32> -> vector<2x8x8xf32>
    "tpu.trace_stop"() : () -> ()
    %cst_122 = arith.constant 0.353553385 : f32
    %270 = vector.broadcast %cst_122 : f32 to vector<2x8x8xf32>
    %271 = arith.mulf %269, %270 : vector<2x8x8xf32>
    %cst_123 = arith.constant 0.000000e+00 : f32
    %272 = vector.broadcast %cst_123 : f32 to vector<2x8x8xf32>
    %273 = arith.cmpf one, %2, %272 : vector<2x8x8xf32>
    %cst_124 = arith.constant -1.000000e+09 : f32
    %274 = vector.broadcast %cst_124 : f32 to vector<2x8x8xf32>
    %275 = arith.select %273, %271, %274 : vector<2x8x8xi1>, vector<2x8x8xf32>
    %cst_125 = arith.constant dense<0xFF800000> : vector<2x8xf32>
    %276 = vector.multi_reduction <maximumf>, %275, %cst_125 [2] : vector<2x8x8xf32> to vector<2x8xf32>
    %277 = vector.shape_cast %276 : vector<2x8xf32> to vector<2x8x1xf32>
    %278 = vector.broadcast %277 : vector<2x8x1xf32> to vector<2x8x8xf32>
    %279 = arith.subf %275, %278 : vector<2x8x8xf32>
    %280 = math.exp %279 : vector<2x8x8xf32>
    %cst_126 = arith.constant dense<0.000000e+00> : vector<2x8xf32>
    %281 = vector.multi_reduction <add>, %280, %cst_126 [2] : vector<2x8x8xf32> to vector<2x8xf32>
    %282 = vector.shape_cast %281 : vector<2x8xf32> to vector<2x8x1xf32>
    %283 = tpu.reciprocal %282 : vector<2x8x1xf32> -> vector<2x8x1xf32>
    %284 = vector.broadcast %283 : vector<2x8x1xf32> to vector<2x8x8xf32>
    %285 = arith.mulf %280, %284 : vector<2x8x8xf32>
    "tpu.trace_start"() <{level = 10 : i32, message = "bqk,bkd->bqd"}> : () -> ()
    %cst_127 = arith.constant dense<0.000000e+00> : vector<2x8x8xf32>
    %286 = tpu.matmul %285, %268, %cst_127 {dimension_numbers = #tpu.dot_dimension_numbers<[2], [1], [1], [2], [0, 0, 0, 1, 1, 2], [0], [0]>} : vector<2x8x8xf32>, vector<2x8x8xf32>, vector<2x8x8xf32> -> vector<2x8x8xf32>
    "tpu.trace_stop"() : () -> ()
    %287 = vector.shape_cast %286 : vector<2x8x8xf32> to vector<16x8xf32>
    %288 = vector.extract_strided_slice %235 {offsets = [0, 16], sizes = [16, 8], strides = [1, 1]} : vector<16x32xf32> to vector<16x8xf32>
    %289 = vector.shape_cast %288 : vector<16x8xf32> to vector<2x8x8xf32>
    %290 = vector.extract_strided_slice %236 {offsets = [0, 16], sizes = [16, 8], strides = [1, 1]} : vector<16x32xf32> to vector<16x8xf32>
    %291 = vector.shape_cast %290 : vector<16x8xf32> to vector<2x8x8xf32>
    %292 = vector.extract_strided_slice %237 {offsets = [0, 16], sizes = [16, 8], strides = [1, 1]} : vector<16x32xf32> to vector<16x8xf32>
    %293 = vector.shape_cast %292 : vector<16x8xf32> to vector<2x8x8xf32>
    "tpu.trace_start"() <{level = 10 : i32, message = "bqd,bkd->bqk"}> : () -> ()
    %cst_128 = arith.constant dense<0.000000e+00> : vector<2x8x8xf32>
    %294 = tpu.matmul %289, %291, %cst_128 {dimension_numbers = #tpu.dot_dimension_numbers<[2], [2], [1], [1], [0, 0, 0, 1, 1, 1], [0], [0]>} : vector<2x8x8xf32>, vector<2x8x8xf32>, vector<2x8x8xf32> -> vector<2x8x8xf32>
    "tpu.trace_stop"() : () -> ()
    %cst_129 = arith.constant 0.353553385 : f32
    %295 = vector.broadcast %cst_129 : f32 to vector<2x8x8xf32>
    %296 = arith.mulf %294, %295 : vector<2x8x8xf32>
    %cst_130 = arith.constant 0.000000e+00 : f32
    %297 = vector.broadcast %cst_130 : f32 to vector<2x8x8xf32>
    %298 = arith.cmpf one, %2, %297 : vector<2x8x8xf32>
    %cst_131 = arith.constant -1.000000e+09 : f32
    %299 = vector.broadcast %cst_131 : f32 to vector<2x8x8xf32>
    %300 = arith.select %298, %296, %299 : vector<2x8x8xi1>, vector<2x8x8xf32>
    %cst_132 = arith.constant dense<0xFF800000> : vector<2x8xf32>
    %301 = vector.multi_reduction <maximumf>, %300, %cst_132 [2] : vector<2x8x8xf32> to vector<2x8xf32>
    %302 = vector.shape_cast %301 : vector<2x8xf32> to vector<2x8x1xf32>
    %303 = vector.broadcast %302 : vector<2x8x1xf32> to vector<2x8x8xf32>
    %304 = arith.subf %300, %303 : vector<2x8x8xf32>
    %305 = math.exp %304 : vector<2x8x8xf32>
    %cst_133 = arith.constant dense<0.000000e+00> : vector<2x8xf32>
    %306 = vector.multi_reduction <add>, %305, %cst_133 [2] : vector<2x8x8xf32> to vector<2x8xf32>
    %307 = vector.shape_cast %306 : vector<2x8xf32> to vector<2x8x1xf32>
    %308 = tpu.reciprocal %307 : vector<2x8x1xf32> -> vector<2x8x1xf32>
    %309 = vector.broadcast %308 : vector<2x8x1xf32> to vector<2x8x8xf32>
    %310 = arith.mulf %305, %309 : vector<2x8x8xf32>
    "tpu.trace_start"() <{level = 10 : i32, message = "bqk,bkd->bqd"}> : () -> ()
    %cst_134 = arith.constant dense<0.000000e+00> : vector<2x8x8xf32>
    %311 = tpu.matmul %310, %293, %cst_134 {dimension_numbers = #tpu.dot_dimension_numbers<[2], [1], [1], [2], [0, 0, 0, 1, 1, 2], [0], [0]>} : vector<2x8x8xf32>, vector<2x8x8xf32>, vector<2x8x8xf32> -> vector<2x8x8xf32>
    "tpu.trace_stop"() : () -> ()
    %312 = vector.shape_cast %311 : vector<2x8x8xf32> to vector<16x8xf32>
    %313 = vector.extract_strided_slice %235 {offsets = [0, 24], sizes = [16, 8], strides = [1, 1]} : vector<16x32xf32> to vector<16x8xf32>
    %314 = vector.shape_cast %313 : vector<16x8xf32> to vector<2x8x8xf32>
    %315 = vector.extract_strided_slice %236 {offsets = [0, 24], sizes = [16, 8], strides = [1, 1]} : vector<16x32xf32> to vector<16x8xf32>
    %316 = vector.shape_cast %315 : vector<16x8xf32> to vector<2x8x8xf32>
    %317 = vector.extract_strided_slice %237 {offsets = [0, 24], sizes = [16, 8], strides = [1, 1]} : vector<16x32xf32> to vector<16x8xf32>
    %318 = vector.shape_cast %317 : vector<16x8xf32> to vector<2x8x8xf32>
    "tpu.trace_start"() <{level = 10 : i32, message = "bqd,bkd->bqk"}> : () -> ()
    %cst_135 = arith.constant dense<0.000000e+00> : vector<2x8x8xf32>
    %319 = tpu.matmul %314, %316, %cst_135 {dimension_numbers = #tpu.dot_dimension_numbers<[2], [2], [1], [1], [0, 0, 0, 1, 1, 1], [0], [0]>} : vector<2x8x8xf32>, vector<2x8x8xf32>, vector<2x8x8xf32> -> vector<2x8x8xf32>
    "tpu.trace_stop"() : () -> ()
    %cst_136 = arith.constant 0.353553385 : f32
    %320 = vector.broadcast %cst_136 : f32 to vector<2x8x8xf32>
    %321 = arith.mulf %319, %320 : vector<2x8x8xf32>
    %cst_137 = arith.constant 0.000000e+00 : f32
    %322 = vector.broadcast %cst_137 : f32 to vector<2x8x8xf32>
    %323 = arith.cmpf one, %2, %322 : vector<2x8x8xf32>
    %cst_138 = arith.constant -1.000000e+09 : f32
    %324 = vector.broadcast %cst_138 : f32 to vector<2x8x8xf32>
    %325 = arith.select %323, %321, %324 : vector<2x8x8xi1>, vector<2x8x8xf32>
    %cst_139 = arith.constant dense<0xFF800000> : vector<2x8xf32>
    %326 = vector.multi_reduction <maximumf>, %325, %cst_139 [2] : vector<2x8x8xf32> to vector<2x8xf32>
    %327 = vector.shape_cast %326 : vector<2x8xf32> to vector<2x8x1xf32>
    %328 = vector.broadcast %327 : vector<2x8x1xf32> to vector<2x8x8xf32>
    %329 = arith.subf %325, %328 : vector<2x8x8xf32>
    %330 = math.exp %329 : vector<2x8x8xf32>
    %cst_140 = arith.constant dense<0.000000e+00> : vector<2x8xf32>
    %331 = vector.multi_reduction <add>, %330, %cst_140 [2] : vector<2x8x8xf32> to vector<2x8xf32>
    %332 = vector.shape_cast %331 : vector<2x8xf32> to vector<2x8x1xf32>
    %333 = tpu.reciprocal %332 : vector<2x8x1xf32> -> vector<2x8x1xf32>
    %334 = vector.broadcast %333 : vector<2x8x1xf32> to vector<2x8x8xf32>
    %335 = arith.mulf %330, %334 : vector<2x8x8xf32>
    "tpu.trace_start"() <{level = 10 : i32, message = "bqk,bkd->bqd"}> : () -> ()
    %cst_141 = arith.constant dense<0.000000e+00> : vector<2x8x8xf32>
    %336 = tpu.matmul %335, %318, %cst_141 {dimension_numbers = #tpu.dot_dimension_numbers<[2], [1], [1], [2], [0, 0, 0, 1, 1, 2], [0], [0]>} : vector<2x8x8xf32>, vector<2x8x8xf32>, vector<2x8x8xf32> -> vector<2x8x8xf32>
    "tpu.trace_stop"() : () -> ()
    %337 = vector.shape_cast %336 : vector<2x8x8xf32> to vector<16x8xf32>
    %338 = tpu.concatenate %262, %287, %312, %337 in 1 : vector<16x8xf32>, vector<16x8xf32>, vector<16x8xf32>, vector<16x8xf32> -> vector<16x32xf32>
    %cst_142 = arith.constant dense<0.000000e+00> : vector<16x32xf32>
    %339 = tpu.matmul %338, %229, %cst_142 {dimension_numbers = #tpu.dot_dimension_numbers<[1], [0], [0], [1], [0, 0, 1, 1], [], []>} : vector<16x32xf32>, vector<32x32xf32>, vector<16x32xf32> -> vector<16x32xf32>
    %340 = vector.broadcast %231 : vector<1x32xf32> to vector<16x32xf32>
    %341 = arith.addf %339, %340 : vector<16x32xf32>
    %342 = arith.addf %196, %341 : vector<16x32xf32>
    %c1_143 = arith.constant 1 : index
    %c1_144 = arith.constant 1 : index
    %c0_145 = arith.constant 0 : index
    %c0_146 = arith.constant 0 : index
    %343 = vector.load %arg12[%c1_143, %c1_144, %c0_145, %c0_146] : memref<2x2x1x32xf32, #tpu.memory_space<vmem>>, vector<1x1x1x32xf32>
    %344 = vector.shape_cast %343 : vector<1x1x1x32xf32> to vector<1x32xf32>
    %c1_147 = arith.constant 1 : index
    %c1_148 = arith.constant 1 : index
    %c0_149 = arith.constant 0 : index
    %c0_150 = arith.constant 0 : index
    %345 = vector.load %arg13[%c1_147, %c1_148, %c0_149, %c0_150] : memref<2x2x1x32xf32, #tpu.memory_space<vmem>>, vector<1x1x1x32xf32>
    %346 = vector.shape_cast %345 : vector<1x1x1x32xf32> to vector<1x32xf32>
    %cst_151 = arith.constant dense<0.000000e+00> : vector<16xf32>
    %347 = vector.multi_reduction <add>, %342, %cst_151 [1] : vector<16x32xf32> to vector<16xf32>
    %348 = vector.shape_cast %347 : vector<16xf32> to vector<16x1xf32>
    %cst_152 = arith.constant 3.200000e+01 : f32
    %349 = vector.broadcast %cst_152 : f32 to vector<16x1xf32>
    %350 = arith.divf %348, %349 : vector<16x1xf32>
    %351 = vector.broadcast %350 : vector<16x1xf32> to vector<16x32xf32>
    %352 = arith.subf %342, %351 : vector<16x32xf32>
    %353 = arith.mulf %352, %352 : vector<16x32xf32>
    %cst_153 = arith.constant dense<0.000000e+00> : vector<16xf32>
    %354 = vector.multi_reduction <add>, %353, %cst_153 [1] : vector<16x32xf32> to vector<16xf32>
    %355 = vector.shape_cast %354 : vector<16xf32> to vector<16x1xf32>
    %cst_154 = arith.constant 0.0322580636 : f32
    %356 = vector.broadcast %cst_154 : f32 to vector<16x1xf32>
    %357 = arith.mulf %355, %356 : vector<16x1xf32>
    %358 = math.sqrt %357 : vector<16x1xf32>
    %359 = vector.broadcast %350 : vector<16x1xf32> to vector<16x32xf32>
    %360 = arith.subf %342, %359 : vector<16x32xf32>
    %361 = vector.broadcast %344 : vector<1x32xf32> to vector<16x32xf32>
    %362 = arith.mulf %361, %360 : vector<16x32xf32>
    %cst_155 = arith.constant 9.99999997E-7 : f32
    %363 = vector.broadcast %cst_155 : f32 to vector<16x1xf32>
    %364 = arith.addf %358, %363 : vector<16x1xf32>
    %365 = tpu.reciprocal %364 : vector<16x1xf32> -> vector<16x1xf32>
    %366 = vector.broadcast %365 : vector<16x1xf32> to vector<16x32xf32>
    %367 = arith.mulf %362, %366 : vector<16x32xf32>
    %368 = vector.broadcast %346 : vector<1x32xf32> to vector<16x32xf32>
    %369 = arith.addf %367, %368 : vector<16x32xf32>
    %c1_156 = arith.constant 1 : index
    %c0_157 = arith.constant 0 : index
    %c0_158 = arith.constant 0 : index
    %370 = vector.load %arg8[%c1_156, %c0_157, %c0_158] : memref<2x32x64xf32, #tpu.memory_space<vmem>>, vector<1x32x64xf32>
    %371 = vector.shape_cast %370 : vector<1x32x64xf32> to vector<32x64xf32>
    %c1_159 = arith.constant 1 : index
    %c0_160 = arith.constant 0 : index
    %c0_161 = arith.constant 0 : index
    %372 = vector.load %arg9[%c1_159, %c0_160, %c0_161] : memref<2x1x64xf32, #tpu.memory_space<vmem>>, vector<1x1x64xf32>
    %373 = vector.shape_cast %372 : vector<1x1x64xf32> to vector<1x64xf32>
    %c1_162 = arith.constant 1 : index
    %c0_163 = arith.constant 0 : index
    %c0_164 = arith.constant 0 : index
    %374 = vector.load %arg10[%c1_162, %c0_163, %c0_164] : memref<2x64x32xf32, #tpu.memory_space<vmem>>, vector<1x64x32xf32>
    %375 = vector.shape_cast %374 : vector<1x64x32xf32> to vector<64x32xf32>
    %c1_165 = arith.constant 1 : index
    %c0_166 = arith.constant 0 : index
    %c0_167 = arith.constant 0 : index
    %376 = vector.load %arg11[%c1_165, %c0_166, %c0_167] : memref<2x1x32xf32, #tpu.memory_space<vmem>>, vector<1x1x32xf32>
    %377 = vector.shape_cast %376 : vector<1x1x32xf32> to vector<1x32xf32>
    %cst_168 = arith.constant dense<0.000000e+00> : vector<16x64xf32>
    %378 = tpu.matmul %369, %371, %cst_168 {dimension_numbers = #tpu.dot_dimension_numbers<[1], [0], [0], [1], [0, 0, 1, 1], [], []>} : vector<16x32xf32>, vector<32x64xf32>, vector<16x64xf32> -> vector<16x64xf32>
    %379 = vector.broadcast %373 : vector<1x64xf32> to vector<16x64xf32>
    %380 = arith.addf %378, %379 : vector<16x64xf32>
    %cst_169 = arith.constant 0.000000e+00 : f32
    %381 = vector.broadcast %cst_169 : f32 to vector<16x64xf32>
    %382 = arith.maximumf %380, %381 : vector<16x64xf32>
    %cst_170 = arith.constant dense<0.000000e+00> : vector<16x32xf32>
    %383 = tpu.matmul %382, %375, %cst_170 {dimension_numbers = #tpu.dot_dimension_numbers<[1], [0], [0], [1], [0, 0, 1, 1], [], []>} : vector<16x64xf32>, vector<64x32xf32>, vector<16x32xf32> -> vector<16x32xf32>
    %384 = vector.broadcast %377 : vector<1x32xf32> to vector<16x32xf32>
    %385 = arith.addf %383, %384 : vector<16x32xf32>
    %386 = arith.addf %342, %385 : vector<16x32xf32>
    %c0_171 = arith.constant 0 : index
    %c0_172 = arith.constant 0 : index
    %387 = vector.load %arg14[%c0_171, %c0_172] : memref<1x32xf32, #tpu.memory_space<vmem>>, vector<1x32xf32>
    %c0_173 = arith.constant 0 : index
    %c0_174 = arith.constant 0 : index
    %388 = vector.load %arg15[%c0_173, %c0_174] : memref<1x32xf32, #tpu.memory_space<vmem>>, vector<1x32xf32>
    %cst_175 = arith.constant dense<0.000000e+00> : vector<16xf32>
    %389 = vector.multi_reduction <add>, %386, %cst_175 [1] : vector<16x32xf32> to vector<16xf32>
    %390 = vector.shape_cast %389 : vector<16xf32> to vector<16x1xf32>
    %cst_176 = arith.constant 3.200000e+01 : f32
    %391 = vector.broadcast %cst_176 : f32 to vector<16x1xf32>
    %392 = arith.divf %390, %391 : vector<16x1xf32>
    %393 = vector.broadcast %392 : vector<16x1xf32> to vector<16x32xf32>
    %394 = arith.subf %386, %393 : vector<16x32xf32>
    %395 = arith.mulf %394, %394 : vector<16x32xf32>
    %cst_177 = arith.constant dense<0.000000e+00> : vector<16xf32>
    %396 = vector.multi_reduction <add>, %395, %cst_177 [1] : vector<16x32xf32> to vector<16xf32>
    %397 = vector.shape_cast %396 : vector<16xf32> to vector<16x1xf32>
    %cst_178 = arith.constant 0.0322580636 : f32
    %398 = vector.broadcast %cst_178 : f32 to vector<16x1xf32>
    %399 = arith.mulf %397, %398 : vector<16x1xf32>
    %400 = math.sqrt %399 : vector<16x1xf32>
    %401 = vector.broadcast %392 : vector<16x1xf32> to vector<16x32xf32>
    %402 = arith.subf %386, %401 : vector<16x32xf32>
    %403 = vector.broadcast %387 : vector<1x32xf32> to vector<16x32xf32>
    %404 = arith.mulf %403, %402 : vector<16x32xf32>
    %cst_179 = arith.constant 9.99999997E-7 : f32
    %405 = vector.broadcast %cst_179 : f32 to vector<16x1xf32>
    %406 = arith.addf %400, %405 : vector<16x1xf32>
    %407 = tpu.reciprocal %406 : vector<16x1xf32> -> vector<16x1xf32>
    %408 = vector.broadcast %407 : vector<16x1xf32> to vector<16x32xf32>
    %409 = arith.mulf %404, %408 : vector<16x32xf32>
    %410 = vector.broadcast %388 : vector<1x32xf32> to vector<16x32xf32>
    %411 = arith.addf %409, %410 : vector<16x32xf32>
    %c0_180 = arith.constant 0 : index
    %c0_181 = arith.constant 0 : index
    %412 = vector.load %arg1[%c0_180, %c0_181] : memref<16x32xf32, #tpu.memory_space<vmem>>, vector<16x32xf32>
    %c0_182 = arith.constant 0 : index
    %c0_183 = arith.constant 0 : index
    %c0_184 = arith.constant 0 : index
    %c0_185 = arith.constant 0 : index
    %413 = vector.load %arg30[%c0_182, %c0_183, %c0_184, %c0_185] : memref<2x3x1x32xf32, #tpu.memory_space<vmem>>, vector<1x1x1x32xf32>
    %414 = vector.shape_cast %413 : vector<1x1x1x32xf32> to vector<1x32xf32>
    %c0_186 = arith.constant 0 : index
    %c0_187 = arith.constant 0 : index
    %c0_188 = arith.constant 0 : index
    %c0_189 = arith.constant 0 : index
    %415 = vector.load %arg31[%c0_186, %c0_187, %c0_188, %c0_189] : memref<2x3x1x32xf32, #tpu.memory_space<vmem>>, vector<1x1x1x32xf32>
    %416 = vector.shape_cast %415 : vector<1x1x1x32xf32> to vector<1x32xf32>
    %cst_190 = arith.constant dense<0.000000e+00> : vector<16xf32>
    %417 = vector.multi_reduction <add>, %412, %cst_190 [1] : vector<16x32xf32> to vector<16xf32>
    %418 = vector.shape_cast %417 : vector<16xf32> to vector<16x1xf32>
    %cst_191 = arith.constant 3.200000e+01 : f32
    %419 = vector.broadcast %cst_191 : f32 to vector<16x1xf32>
    %420 = arith.divf %418, %419 : vector<16x1xf32>
    %421 = vector.broadcast %420 : vector<16x1xf32> to vector<16x32xf32>
    %422 = arith.subf %412, %421 : vector<16x32xf32>
    %423 = arith.mulf %422, %422 : vector<16x32xf32>
    %cst_192 = arith.constant dense<0.000000e+00> : vector<16xf32>
    %424 = vector.multi_reduction <add>, %423, %cst_192 [1] : vector<16x32xf32> to vector<16xf32>
    %425 = vector.shape_cast %424 : vector<16xf32> to vector<16x1xf32>
    %cst_193 = arith.constant 0.0322580636 : f32
    %426 = vector.broadcast %cst_193 : f32 to vector<16x1xf32>
    %427 = arith.mulf %425, %426 : vector<16x1xf32>
    %428 = math.sqrt %427 : vector<16x1xf32>
    %429 = vector.broadcast %420 : vector<16x1xf32> to vector<16x32xf32>
    %430 = arith.subf %412, %429 : vector<16x32xf32>
    %431 = vector.broadcast %414 : vector<1x32xf32> to vector<16x32xf32>
    %432 = arith.mulf %431, %430 : vector<16x32xf32>
    %cst_194 = arith.constant 9.99999997E-7 : f32
    %433 = vector.broadcast %cst_194 : f32 to vector<16x1xf32>
    %434 = arith.addf %428, %433 : vector<16x1xf32>
    %435 = tpu.reciprocal %434 : vector<16x1xf32> -> vector<16x1xf32>
    %436 = vector.broadcast %435 : vector<16x1xf32> to vector<16x32xf32>
    %437 = arith.mulf %432, %436 : vector<16x32xf32>
    %438 = vector.broadcast %416 : vector<1x32xf32> to vector<16x32xf32>
    %439 = arith.addf %437, %438 : vector<16x32xf32>
    %c0_195 = arith.constant 0 : index
    %c0_196 = arith.constant 0 : index
    %c0_197 = arith.constant 0 : index
    %440 = vector.load %arg16[%c0_195, %c0_196, %c0_197] : memref<2x32x96xf32, #tpu.memory_space<vmem>>, vector<1x32x96xf32>
    %441 = vector.shape_cast %440 : vector<1x32x96xf32> to vector<32x96xf32>
    %c0_198 = arith.constant 0 : index
    %c0_199 = arith.constant 0 : index
    %c0_200 = arith.constant 0 : index
    %442 = vector.load %arg17[%c0_198, %c0_199, %c0_200] : memref<2x1x96xf32, #tpu.memory_space<vmem>>, vector<1x1x96xf32>
    %443 = vector.shape_cast %442 : vector<1x1x96xf32> to vector<1x96xf32>
    %c0_201 = arith.constant 0 : index
    %c0_202 = arith.constant 0 : index
    %c0_203 = arith.constant 0 : index
    %444 = vector.load %arg18[%c0_201, %c0_202, %c0_203] : memref<2x32x32xf32, #tpu.memory_space<vmem>>, vector<1x32x32xf32>
    %445 = vector.shape_cast %444 : vector<1x32x32xf32> to vector<32x32xf32>
    %c0_204 = arith.constant 0 : index
    %c0_205 = arith.constant 0 : index
    %c0_206 = arith.constant 0 : index
    %446 = vector.load %arg19[%c0_204, %c0_205, %c0_206] : memref<2x1x32xf32, #tpu.memory_space<vmem>>, vector<1x1x32xf32>
    %447 = vector.shape_cast %446 : vector<1x1x32xf32> to vector<1x32xf32>
    %cst_207 = arith.constant dense<0.000000e+00> : vector<16x96xf32>
    %448 = tpu.matmul %439, %441, %cst_207 {dimension_numbers = #tpu.dot_dimension_numbers<[1], [0], [0], [1], [0, 0, 1, 1], [], []>} : vector<16x32xf32>, vector<32x96xf32>, vector<16x96xf32> -> vector<16x96xf32>
    %449 = vector.broadcast %443 : vector<1x96xf32> to vector<16x96xf32>
    %450 = arith.addf %448, %449 : vector<16x96xf32>
    %451 = vector.extract_strided_slice %450 {offsets = [0, 0], sizes = [16, 32], strides = [1, 1]} : vector<16x96xf32> to vector<16x32xf32>
    %452 = vector.extract_strided_slice %450 {offsets = [0, 32], sizes = [16, 32], strides = [1, 1]} : vector<16x96xf32> to vector<16x32xf32>
    %453 = vector.extract_strided_slice %450 {offsets = [0, 64], sizes = [16, 32], strides = [1, 1]} : vector<16x96xf32> to vector<16x32xf32>
    %454 = vector.extract_strided_slice %451 {offsets = [0, 0], sizes = [16, 8], strides = [1, 1]} : vector<16x32xf32> to vector<16x8xf32>
    %455 = vector.shape_cast %454 : vector<16x8xf32> to vector<2x8x8xf32>
    %456 = vector.extract_strided_slice %452 {offsets = [0, 0], sizes = [16, 8], strides = [1, 1]} : vector<16x32xf32> to vector<16x8xf32>
    %457 = vector.shape_cast %456 : vector<16x8xf32> to vector<2x8x8xf32>
    %458 = vector.extract_strided_slice %453 {offsets = [0, 0], sizes = [16, 8], strides = [1, 1]} : vector<16x32xf32> to vector<16x8xf32>
    %459 = vector.shape_cast %458 : vector<16x8xf32> to vector<2x8x8xf32>
    "tpu.trace_start"() <{level = 10 : i32, message = "bqd,bkd->bqk"}> : () -> ()
    %cst_208 = arith.constant dense<0.000000e+00> : vector<2x8x8xf32>
    %460 = tpu.matmul %455, %457, %cst_208 {dimension_numbers = #tpu.dot_dimension_numbers<[2], [2], [1], [1], [0, 0, 0, 1, 1, 1], [0], [0]>} : vector<2x8x8xf32>, vector<2x8x8xf32>, vector<2x8x8xf32> -> vector<2x8x8xf32>
    "tpu.trace_stop"() : () -> ()
    %cst_209 = arith.constant 0.353553385 : f32
    %461 = vector.broadcast %cst_209 : f32 to vector<2x8x8xf32>
    %462 = arith.mulf %460, %461 : vector<2x8x8xf32>
    %cst_210 = arith.constant 0.000000e+00 : f32
    %463 = vector.broadcast %cst_210 : f32 to vector<2x8x8xf32>
    %464 = arith.cmpf one, %5, %463 : vector<2x8x8xf32>
    %cst_211 = arith.constant -1.000000e+09 : f32
    %465 = vector.broadcast %cst_211 : f32 to vector<2x8x8xf32>
    %466 = arith.select %464, %462, %465 : vector<2x8x8xi1>, vector<2x8x8xf32>
    %cst_212 = arith.constant dense<0xFF800000> : vector<2x8xf32>
    %467 = vector.multi_reduction <maximumf>, %466, %cst_212 [2] : vector<2x8x8xf32> to vector<2x8xf32>
    %468 = vector.shape_cast %467 : vector<2x8xf32> to vector<2x8x1xf32>
    %469 = vector.broadcast %468 : vector<2x8x1xf32> to vector<2x8x8xf32>
    %470 = arith.subf %466, %469 : vector<2x8x8xf32>
    %471 = math.exp %470 : vector<2x8x8xf32>
    %cst_213 = arith.constant dense<0.000000e+00> : vector<2x8xf32>
    %472 = vector.multi_reduction <add>, %471, %cst_213 [2] : vector<2x8x8xf32> to vector<2x8xf32>
    %473 = vector.shape_cast %472 : vector<2x8xf32> to vector<2x8x1xf32>
    %474 = tpu.reciprocal %473 : vector<2x8x1xf32> -> vector<2x8x1xf32>
    %475 = vector.broadcast %474 : vector<2x8x1xf32> to vector<2x8x8xf32>
    %476 = arith.mulf %471, %475 : vector<2x8x8xf32>
    "tpu.trace_start"() <{level = 10 : i32, message = "bqk,bkd->bqd"}> : () -> ()
    %cst_214 = arith.constant dense<0.000000e+00> : vector<2x8x8xf32>
    %477 = tpu.matmul %476, %459, %cst_214 {dimension_numbers = #tpu.dot_dimension_numbers<[2], [1], [1], [2], [0, 0, 0, 1, 1, 2], [0], [0]>} : vector<2x8x8xf32>, vector<2x8x8xf32>, vector<2x8x8xf32> -> vector<2x8x8xf32>
    "tpu.trace_stop"() : () -> ()
    %478 = vector.shape_cast %477 : vector<2x8x8xf32> to vector<16x8xf32>
    %479 = vector.extract_strided_slice %451 {offsets = [0, 8], sizes = [16, 8], strides = [1, 1]} : vector<16x32xf32> to vector<16x8xf32>
    %480 = vector.shape_cast %479 : vector<16x8xf32> to vector<2x8x8xf32>
    %481 = vector.extract_strided_slice %452 {offsets = [0, 8], sizes = [16, 8], strides = [1, 1]} : vector<16x32xf32> to vector<16x8xf32>
    %482 = vector.shape_cast %481 : vector<16x8xf32> to vector<2x8x8xf32>
    %483 = vector.extract_strided_slice %453 {offsets = [0, 8], sizes = [16, 8], strides = [1, 1]} : vector<16x32xf32> to vector<16x8xf32>
    %484 = vector.shape_cast %483 : vector<16x8xf32> to vector<2x8x8xf32>
    "tpu.trace_start"() <{level = 10 : i32, message = "bqd,bkd->bqk"}> : () -> ()
    %cst_215 = arith.constant dense<0.000000e+00> : vector<2x8x8xf32>
    %485 = tpu.matmul %480, %482, %cst_215 {dimension_numbers = #tpu.dot_dimension_numbers<[2], [2], [1], [1], [0, 0, 0, 1, 1, 1], [0], [0]>} : vector<2x8x8xf32>, vector<2x8x8xf32>, vector<2x8x8xf32> -> vector<2x8x8xf32>
    "tpu.trace_stop"() : () -> ()
    %cst_216 = arith.constant 0.353553385 : f32
    %486 = vector.broadcast %cst_216 : f32 to vector<2x8x8xf32>
    %487 = arith.mulf %485, %486 : vector<2x8x8xf32>
    %cst_217 = arith.constant 0.000000e+00 : f32
    %488 = vector.broadcast %cst_217 : f32 to vector<2x8x8xf32>
    %489 = arith.cmpf one, %5, %488 : vector<2x8x8xf32>
    %cst_218 = arith.constant -1.000000e+09 : f32
    %490 = vector.broadcast %cst_218 : f32 to vector<2x8x8xf32>
    %491 = arith.select %489, %487, %490 : vector<2x8x8xi1>, vector<2x8x8xf32>
    %cst_219 = arith.constant dense<0xFF800000> : vector<2x8xf32>
    %492 = vector.multi_reduction <maximumf>, %491, %cst_219 [2] : vector<2x8x8xf32> to vector<2x8xf32>
    %493 = vector.shape_cast %492 : vector<2x8xf32> to vector<2x8x1xf32>
    %494 = vector.broadcast %493 : vector<2x8x1xf32> to vector<2x8x8xf32>
    %495 = arith.subf %491, %494 : vector<2x8x8xf32>
    %496 = math.exp %495 : vector<2x8x8xf32>
    %cst_220 = arith.constant dense<0.000000e+00> : vector<2x8xf32>
    %497 = vector.multi_reduction <add>, %496, %cst_220 [2] : vector<2x8x8xf32> to vector<2x8xf32>
    %498 = vector.shape_cast %497 : vector<2x8xf32> to vector<2x8x1xf32>
    %499 = tpu.reciprocal %498 : vector<2x8x1xf32> -> vector<2x8x1xf32>
    %500 = vector.broadcast %499 : vector<2x8x1xf32> to vector<2x8x8xf32>
    %501 = arith.mulf %496, %500 : vector<2x8x8xf32>
    "tpu.trace_start"() <{level = 10 : i32, message = "bqk,bkd->bqd"}> : () -> ()
    %cst_221 = arith.constant dense<0.000000e+00> : vector<2x8x8xf32>
    %502 = tpu.matmul %501, %484, %cst_221 {dimension_numbers = #tpu.dot_dimension_numbers<[2], [1], [1], [2], [0, 0, 0, 1, 1, 2], [0], [0]>} : vector<2x8x8xf32>, vector<2x8x8xf32>, vector<2x8x8xf32> -> vector<2x8x8xf32>
    "tpu.trace_stop"() : () -> ()
    %503 = vector.shape_cast %502 : vector<2x8x8xf32> to vector<16x8xf32>
    %504 = vector.extract_strided_slice %451 {offsets = [0, 16], sizes = [16, 8], strides = [1, 1]} : vector<16x32xf32> to vector<16x8xf32>
    %505 = vector.shape_cast %504 : vector<16x8xf32> to vector<2x8x8xf32>
    %506 = vector.extract_strided_slice %452 {offsets = [0, 16], sizes = [16, 8], strides = [1, 1]} : vector<16x32xf32> to vector<16x8xf32>
    %507 = vector.shape_cast %506 : vector<16x8xf32> to vector<2x8x8xf32>
    %508 = vector.extract_strided_slice %453 {offsets = [0, 16], sizes = [16, 8], strides = [1, 1]} : vector<16x32xf32> to vector<16x8xf32>
    %509 = vector.shape_cast %508 : vector<16x8xf32> to vector<2x8x8xf32>
    "tpu.trace_start"() <{level = 10 : i32, message = "bqd,bkd->bqk"}> : () -> ()
    %cst_222 = arith.constant dense<0.000000e+00> : vector<2x8x8xf32>
    %510 = tpu.matmul %505, %507, %cst_222 {dimension_numbers = #tpu.dot_dimension_numbers<[2], [2], [1], [1], [0, 0, 0, 1, 1, 1], [0], [0]>} : vector<2x8x8xf32>, vector<2x8x8xf32>, vector<2x8x8xf32> -> vector<2x8x8xf32>
    "tpu.trace_stop"() : () -> ()
    %cst_223 = arith.constant 0.353553385 : f32
    %511 = vector.broadcast %cst_223 : f32 to vector<2x8x8xf32>
    %512 = arith.mulf %510, %511 : vector<2x8x8xf32>
    %cst_224 = arith.constant 0.000000e+00 : f32
    %513 = vector.broadcast %cst_224 : f32 to vector<2x8x8xf32>
    %514 = arith.cmpf one, %5, %513 : vector<2x8x8xf32>
    %cst_225 = arith.constant -1.000000e+09 : f32
    %515 = vector.broadcast %cst_225 : f32 to vector<2x8x8xf32>
    %516 = arith.select %514, %512, %515 : vector<2x8x8xi1>, vector<2x8x8xf32>
    %cst_226 = arith.constant dense<0xFF800000> : vector<2x8xf32>
    %517 = vector.multi_reduction <maximumf>, %516, %cst_226 [2] : vector<2x8x8xf32> to vector<2x8xf32>
    %518 = vector.shape_cast %517 : vector<2x8xf32> to vector<2x8x1xf32>
    %519 = vector.broadcast %518 : vector<2x8x1xf32> to vector<2x8x8xf32>
    %520 = arith.subf %516, %519 : vector<2x8x8xf32>
    %521 = math.exp %520 : vector<2x8x8xf32>
    %cst_227 = arith.constant dense<0.000000e+00> : vector<2x8xf32>
    %522 = vector.multi_reduction <add>, %521, %cst_227 [2] : vector<2x8x8xf32> to vector<2x8xf32>
    %523 = vector.shape_cast %522 : vector<2x8xf32> to vector<2x8x1xf32>
    %524 = tpu.reciprocal %523 : vector<2x8x1xf32> -> vector<2x8x1xf32>
    %525 = vector.broadcast %524 : vector<2x8x1xf32> to vector<2x8x8xf32>
    %526 = arith.mulf %521, %525 : vector<2x8x8xf32>
    "tpu.trace_start"() <{level = 10 : i32, message = "bqk,bkd->bqd"}> : () -> ()
    %cst_228 = arith.constant dense<0.000000e+00> : vector<2x8x8xf32>
    %527 = tpu.matmul %526, %509, %cst_228 {dimension_numbers = #tpu.dot_dimension_numbers<[2], [1], [1], [2], [0, 0, 0, 1, 1, 2], [0], [0]>} : vector<2x8x8xf32>, vector<2x8x8xf32>, vector<2x8x8xf32> -> vector<2x8x8xf32>
    "tpu.trace_stop"() : () -> ()
    %528 = vector.shape_cast %527 : vector<2x8x8xf32> to vector<16x8xf32>
    %529 = vector.extract_strided_slice %451 {offsets = [0, 24], sizes = [16, 8], strides = [1, 1]} : vector<16x32xf32> to vector<16x8xf32>
    %530 = vector.shape_cast %529 : vector<16x8xf32> to vector<2x8x8xf32>
    %531 = vector.extract_strided_slice %452 {offsets = [0, 24], sizes = [16, 8], strides = [1, 1]} : vector<16x32xf32> to vector<16x8xf32>
    %532 = vector.shape_cast %531 : vector<16x8xf32> to vector<2x8x8xf32>
    %533 = vector.extract_strided_slice %453 {offsets = [0, 24], sizes = [16, 8], strides = [1, 1]} : vector<16x32xf32> to vector<16x8xf32>
    %534 = vector.shape_cast %533 : vector<16x8xf32> to vector<2x8x8xf32>
    "tpu.trace_start"() <{level = 10 : i32, message = "bqd,bkd->bqk"}> : () -> ()
    %cst_229 = arith.constant dense<0.000000e+00> : vector<2x8x8xf32>
    %535 = tpu.matmul %530, %532, %cst_229 {dimension_numbers = #tpu.dot_dimension_numbers<[2], [2], [1], [1], [0, 0, 0, 1, 1, 1], [0], [0]>} : vector<2x8x8xf32>, vector<2x8x8xf32>, vector<2x8x8xf32> -> vector<2x8x8xf32>
    "tpu.trace_stop"() : () -> ()
    %cst_230 = arith.constant 0.353553385 : f32
    %536 = vector.broadcast %cst_230 : f32 to vector<2x8x8xf32>
    %537 = arith.mulf %535, %536 : vector<2x8x8xf32>
    %cst_231 = arith.constant 0.000000e+00 : f32
    %538 = vector.broadcast %cst_231 : f32 to vector<2x8x8xf32>
    %539 = arith.cmpf one, %5, %538 : vector<2x8x8xf32>
    %cst_232 = arith.constant -1.000000e+09 : f32
    %540 = vector.broadcast %cst_232 : f32 to vector<2x8x8xf32>
    %541 = arith.select %539, %537, %540 : vector<2x8x8xi1>, vector<2x8x8xf32>
    %cst_233 = arith.constant dense<0xFF800000> : vector<2x8xf32>
    %542 = vector.multi_reduction <maximumf>, %541, %cst_233 [2] : vector<2x8x8xf32> to vector<2x8xf32>
    %543 = vector.shape_cast %542 : vector<2x8xf32> to vector<2x8x1xf32>
    %544 = vector.broadcast %543 : vector<2x8x1xf32> to vector<2x8x8xf32>
    %545 = arith.subf %541, %544 : vector<2x8x8xf32>
    %546 = math.exp %545 : vector<2x8x8xf32>
    %cst_234 = arith.constant dense<0.000000e+00> : vector<2x8xf32>
    %547 = vector.multi_reduction <add>, %546, %cst_234 [2] : vector<2x8x8xf32> to vector<2x8xf32>
    %548 = vector.shape_cast %547 : vector<2x8xf32> to vector<2x8x1xf32>
    %549 = tpu.reciprocal %548 : vector<2x8x1xf32> -> vector<2x8x1xf32>
    %550 = vector.broadcast %549 : vector<2x8x1xf32> to vector<2x8x8xf32>
    %551 = arith.mulf %546, %550 : vector<2x8x8xf32>
    "tpu.trace_start"() <{level = 10 : i32, message = "bqk,bkd->bqd"}> : () -> ()
    %cst_235 = arith.constant dense<0.000000e+00> : vector<2x8x8xf32>
    %552 = tpu.matmul %551, %534, %cst_235 {dimension_numbers = #tpu.dot_dimension_numbers<[2], [1], [1], [2], [0, 0, 0, 1, 1, 2], [0], [0]>} : vector<2x8x8xf32>, vector<2x8x8xf32>, vector<2x8x8xf32> -> vector<2x8x8xf32>
    "tpu.trace_stop"() : () -> ()
    %553 = vector.shape_cast %552 : vector<2x8x8xf32> to vector<16x8xf32>
    %554 = tpu.concatenate %478, %503, %528, %553 in 1 : vector<16x8xf32>, vector<16x8xf32>, vector<16x8xf32>, vector<16x8xf32> -> vector<16x32xf32>
    %cst_236 = arith.constant dense<0.000000e+00> : vector<16x32xf32>
    %555 = tpu.matmul %554, %445, %cst_236 {dimension_numbers = #tpu.dot_dimension_numbers<[1], [0], [0], [1], [0, 0, 1, 1], [], []>} : vector<16x32xf32>, vector<32x32xf32>, vector<16x32xf32> -> vector<16x32xf32>
    %556 = vector.broadcast %447 : vector<1x32xf32> to vector<16x32xf32>
    %557 = arith.addf %555, %556 : vector<16x32xf32>
    %558 = arith.addf %412, %557 : vector<16x32xf32>
    %c0_237 = arith.constant 0 : index
    %c1_238 = arith.constant 1 : index
    %c0_239 = arith.constant 0 : index
    %c0_240 = arith.constant 0 : index
    %559 = vector.load %arg30[%c0_237, %c1_238, %c0_239, %c0_240] : memref<2x3x1x32xf32, #tpu.memory_space<vmem>>, vector<1x1x1x32xf32>
    %560 = vector.shape_cast %559 : vector<1x1x1x32xf32> to vector<1x32xf32>
    %c0_241 = arith.constant 0 : index
    %c1_242 = arith.constant 1 : index
    %c0_243 = arith.constant 0 : index
    %c0_244 = arith.constant 0 : index
    %561 = vector.load %arg31[%c0_241, %c1_242, %c0_243, %c0_244] : memref<2x3x1x32xf32, #tpu.memory_space<vmem>>, vector<1x1x1x32xf32>
    %562 = vector.shape_cast %561 : vector<1x1x1x32xf32> to vector<1x32xf32>
    %cst_245 = arith.constant dense<0.000000e+00> : vector<16xf32>
    %563 = vector.multi_reduction <add>, %558, %cst_245 [1] : vector<16x32xf32> to vector<16xf32>
    %564 = vector.shape_cast %563 : vector<16xf32> to vector<16x1xf32>
    %cst_246 = arith.constant 3.200000e+01 : f32
    %565 = vector.broadcast %cst_246 : f32 to vector<16x1xf32>
    %566 = arith.divf %564, %565 : vector<16x1xf32>
    %567 = vector.broadcast %566 : vector<16x1xf32> to vector<16x32xf32>
    %568 = arith.subf %558, %567 : vector<16x32xf32>
    %569 = arith.mulf %568, %568 : vector<16x32xf32>
    %cst_247 = arith.constant dense<0.000000e+00> : vector<16xf32>
    %570 = vector.multi_reduction <add>, %569, %cst_247 [1] : vector<16x32xf32> to vector<16xf32>
    %571 = vector.shape_cast %570 : vector<16xf32> to vector<16x1xf32>
    %cst_248 = arith.constant 0.0322580636 : f32
    %572 = vector.broadcast %cst_248 : f32 to vector<16x1xf32>
    %573 = arith.mulf %571, %572 : vector<16x1xf32>
    %574 = math.sqrt %573 : vector<16x1xf32>
    %575 = vector.broadcast %566 : vector<16x1xf32> to vector<16x32xf32>
    %576 = arith.subf %558, %575 : vector<16x32xf32>
    %577 = vector.broadcast %560 : vector<1x32xf32> to vector<16x32xf32>
    %578 = arith.mulf %577, %576 : vector<16x32xf32>
    %cst_249 = arith.constant 9.99999997E-7 : f32
    %579 = vector.broadcast %cst_249 : f32 to vector<16x1xf32>
    %580 = arith.addf %574, %579 : vector<16x1xf32>
    %581 = tpu.reciprocal %580 : vector<16x1xf32> -> vector<16x1xf32>
    %582 = vector.broadcast %581 : vector<16x1xf32> to vector<16x32xf32>
    %583 = arith.mulf %578, %582 : vector<16x32xf32>
    %584 = vector.broadcast %562 : vector<1x32xf32> to vector<16x32xf32>
    %585 = arith.addf %583, %584 : vector<16x32xf32>
    %c0_250 = arith.constant 0 : index
    %c0_251 = arith.constant 0 : index
    %c0_252 = arith.constant 0 : index
    %586 = vector.load %arg20[%c0_250, %c0_251, %c0_252] : memref<2x32x32xf32, #tpu.memory_space<vmem>>, vector<1x32x32xf32>
    %587 = vector.shape_cast %586 : vector<1x32x32xf32> to vector<32x32xf32>
    %c0_253 = arith.constant 0 : index
    %c0_254 = arith.constant 0 : index
    %c0_255 = arith.constant 0 : index
    %588 = vector.load %arg21[%c0_253, %c0_254, %c0_255] : memref<2x1x32xf32, #tpu.memory_space<vmem>>, vector<1x1x32xf32>
    %589 = vector.shape_cast %588 : vector<1x1x32xf32> to vector<1x32xf32>
    %c0_256 = arith.constant 0 : index
    %c0_257 = arith.constant 0 : index
    %c0_258 = arith.constant 0 : index
    %590 = vector.load %arg22[%c0_256, %c0_257, %c0_258] : memref<2x32x64xf32, #tpu.memory_space<vmem>>, vector<1x32x64xf32>
    %591 = vector.shape_cast %590 : vector<1x32x64xf32> to vector<32x64xf32>
    %c0_259 = arith.constant 0 : index
    %c0_260 = arith.constant 0 : index
    %c0_261 = arith.constant 0 : index
    %592 = vector.load %arg23[%c0_259, %c0_260, %c0_261] : memref<2x1x64xf32, #tpu.memory_space<vmem>>, vector<1x1x64xf32>
    %593 = vector.shape_cast %592 : vector<1x1x64xf32> to vector<1x64xf32>
    %c0_262 = arith.constant 0 : index
    %c0_263 = arith.constant 0 : index
    %c0_264 = arith.constant 0 : index
    %594 = vector.load %arg24[%c0_262, %c0_263, %c0_264] : memref<2x32x32xf32, #tpu.memory_space<vmem>>, vector<1x32x32xf32>
    %595 = vector.shape_cast %594 : vector<1x32x32xf32> to vector<32x32xf32>
    %c0_265 = arith.constant 0 : index
    %c0_266 = arith.constant 0 : index
    %c0_267 = arith.constant 0 : index
    %596 = vector.load %arg25[%c0_265, %c0_266, %c0_267] : memref<2x1x32xf32, #tpu.memory_space<vmem>>, vector<1x1x32xf32>
    %597 = vector.shape_cast %596 : vector<1x1x32xf32> to vector<1x32xf32>
    %cst_268 = arith.constant dense<0.000000e+00> : vector<16x32xf32>
    %598 = tpu.matmul %585, %587, %cst_268 {dimension_numbers = #tpu.dot_dimension_numbers<[1], [0], [0], [1], [0, 0, 1, 1], [], []>} : vector<16x32xf32>, vector<32x32xf32>, vector<16x32xf32> -> vector<16x32xf32>
    %599 = vector.broadcast %589 : vector<1x32xf32> to vector<16x32xf32>
    %600 = arith.addf %598, %599 : vector<16x32xf32>
    %cst_269 = arith.constant dense<0.000000e+00> : vector<16x64xf32>
    %601 = tpu.matmul %411, %591, %cst_269 {dimension_numbers = #tpu.dot_dimension_numbers<[1], [0], [0], [1], [0, 0, 1, 1], [], []>} : vector<16x32xf32>, vector<32x64xf32>, vector<16x64xf32> -> vector<16x64xf32>
    %602 = vector.broadcast %593 : vector<1x64xf32> to vector<16x64xf32>
    %603 = arith.addf %601, %602 : vector<16x64xf32>
    %604 = vector.extract_strided_slice %603 {offsets = [0, 0], sizes = [16, 32], strides = [1, 1]} : vector<16x64xf32> to vector<16x32xf32>
    %605 = vector.extract_strided_slice %603 {offsets = [0, 32], sizes = [16, 32], strides = [1, 1]} : vector<16x64xf32> to vector<16x32xf32>
    %606 = vector.extract_strided_slice %600 {offsets = [0, 0], sizes = [16, 8], strides = [1, 1]} : vector<16x32xf32> to vector<16x8xf32>
    %607 = vector.shape_cast %606 : vector<16x8xf32> to vector<2x8x8xf32>
    %608 = vector.extract_strided_slice %604 {offsets = [0, 0], sizes = [16, 8], strides = [1, 1]} : vector<16x32xf32> to vector<16x8xf32>
    %609 = vector.shape_cast %608 : vector<16x8xf32> to vector<2x8x8xf32>
    %610 = vector.extract_strided_slice %605 {offsets = [0, 0], sizes = [16, 8], strides = [1, 1]} : vector<16x32xf32> to vector<16x8xf32>
    %611 = vector.shape_cast %610 : vector<16x8xf32> to vector<2x8x8xf32>
    "tpu.trace_start"() <{level = 10 : i32, message = "bqd,bkd->bqk"}> : () -> ()
    %cst_270 = arith.constant dense<0.000000e+00> : vector<2x8x8xf32>
    %612 = tpu.matmul %607, %609, %cst_270 {dimension_numbers = #tpu.dot_dimension_numbers<[2], [2], [1], [1], [0, 0, 0, 1, 1, 1], [0], [0]>} : vector<2x8x8xf32>, vector<2x8x8xf32>, vector<2x8x8xf32> -> vector<2x8x8xf32>
    "tpu.trace_stop"() : () -> ()
    %cst_271 = arith.constant 0.353553385 : f32
    %613 = vector.broadcast %cst_271 : f32 to vector<2x8x8xf32>
    %614 = arith.mulf %612, %613 : vector<2x8x8xf32>
    %cst_272 = arith.constant 0.000000e+00 : f32
    %615 = vector.broadcast %cst_272 : f32 to vector<2x8x8xf32>
    %616 = arith.cmpf one, %4, %615 : vector<2x8x8xf32>
    %cst_273 = arith.constant -1.000000e+09 : f32
    %617 = vector.broadcast %cst_273 : f32 to vector<2x8x8xf32>
    %618 = arith.select %616, %614, %617 : vector<2x8x8xi1>, vector<2x8x8xf32>
    %cst_274 = arith.constant dense<0xFF800000> : vector<2x8xf32>
    %619 = vector.multi_reduction <maximumf>, %618, %cst_274 [2] : vector<2x8x8xf32> to vector<2x8xf32>
    %620 = vector.shape_cast %619 : vector<2x8xf32> to vector<2x8x1xf32>
    %621 = vector.broadcast %620 : vector<2x8x1xf32> to vector<2x8x8xf32>
    %622 = arith.subf %618, %621 : vector<2x8x8xf32>
    %623 = math.exp %622 : vector<2x8x8xf32>
    %cst_275 = arith.constant dense<0.000000e+00> : vector<2x8xf32>
    %624 = vector.multi_reduction <add>, %623, %cst_275 [2] : vector<2x8x8xf32> to vector<2x8xf32>
    %625 = vector.shape_cast %624 : vector<2x8xf32> to vector<2x8x1xf32>
    %626 = tpu.reciprocal %625 : vector<2x8x1xf32> -> vector<2x8x1xf32>
    %627 = vector.broadcast %626 : vector<2x8x1xf32> to vector<2x8x8xf32>
    %628 = arith.mulf %623, %627 : vector<2x8x8xf32>
    "tpu.trace_start"() <{level = 10 : i32, message = "bqk,bkd->bqd"}> : () -> ()
    %cst_276 = arith.constant dense<0.000000e+00> : vector<2x8x8xf32>
    %629 = tpu.matmul %628, %611, %cst_276 {dimension_numbers = #tpu.dot_dimension_numbers<[2], [1], [1], [2], [0, 0, 0, 1, 1, 2], [0], [0]>} : vector<2x8x8xf32>, vector<2x8x8xf32>, vector<2x8x8xf32> -> vector<2x8x8xf32>
    "tpu.trace_stop"() : () -> ()
    %630 = vector.shape_cast %629 : vector<2x8x8xf32> to vector<16x8xf32>
    %631 = vector.extract_strided_slice %600 {offsets = [0, 8], sizes = [16, 8], strides = [1, 1]} : vector<16x32xf32> to vector<16x8xf32>
    %632 = vector.shape_cast %631 : vector<16x8xf32> to vector<2x8x8xf32>
    %633 = vector.extract_strided_slice %604 {offsets = [0, 8], sizes = [16, 8], strides = [1, 1]} : vector<16x32xf32> to vector<16x8xf32>
    %634 = vector.shape_cast %633 : vector<16x8xf32> to vector<2x8x8xf32>
    %635 = vector.extract_strided_slice %605 {offsets = [0, 8], sizes = [16, 8], strides = [1, 1]} : vector<16x32xf32> to vector<16x8xf32>
    %636 = vector.shape_cast %635 : vector<16x8xf32> to vector<2x8x8xf32>
    "tpu.trace_start"() <{level = 10 : i32, message = "bqd,bkd->bqk"}> : () -> ()
    %cst_277 = arith.constant dense<0.000000e+00> : vector<2x8x8xf32>
    %637 = tpu.matmul %632, %634, %cst_277 {dimension_numbers = #tpu.dot_dimension_numbers<[2], [2], [1], [1], [0, 0, 0, 1, 1, 1], [0], [0]>} : vector<2x8x8xf32>, vector<2x8x8xf32>, vector<2x8x8xf32> -> vector<2x8x8xf32>
    "tpu.trace_stop"() : () -> ()
    %cst_278 = arith.constant 0.353553385 : f32
    %638 = vector.broadcast %cst_278 : f32 to vector<2x8x8xf32>
    %639 = arith.mulf %637, %638 : vector<2x8x8xf32>
    %cst_279 = arith.constant 0.000000e+00 : f32
    %640 = vector.broadcast %cst_279 : f32 to vector<2x8x8xf32>
    %641 = arith.cmpf one, %4, %640 : vector<2x8x8xf32>
    %cst_280 = arith.constant -1.000000e+09 : f32
    %642 = vector.broadcast %cst_280 : f32 to vector<2x8x8xf32>
    %643 = arith.select %641, %639, %642 : vector<2x8x8xi1>, vector<2x8x8xf32>
    %cst_281 = arith.constant dense<0xFF800000> : vector<2x8xf32>
    %644 = vector.multi_reduction <maximumf>, %643, %cst_281 [2] : vector<2x8x8xf32> to vector<2x8xf32>
    %645 = vector.shape_cast %644 : vector<2x8xf32> to vector<2x8x1xf32>
    %646 = vector.broadcast %645 : vector<2x8x1xf32> to vector<2x8x8xf32>
    %647 = arith.subf %643, %646 : vector<2x8x8xf32>
    %648 = math.exp %647 : vector<2x8x8xf32>
    %cst_282 = arith.constant dense<0.000000e+00> : vector<2x8xf32>
    %649 = vector.multi_reduction <add>, %648, %cst_282 [2] : vector<2x8x8xf32> to vector<2x8xf32>
    %650 = vector.shape_cast %649 : vector<2x8xf32> to vector<2x8x1xf32>
    %651 = tpu.reciprocal %650 : vector<2x8x1xf32> -> vector<2x8x1xf32>
    %652 = vector.broadcast %651 : vector<2x8x1xf32> to vector<2x8x8xf32>
    %653 = arith.mulf %648, %652 : vector<2x8x8xf32>
    "tpu.trace_start"() <{level = 10 : i32, message = "bqk,bkd->bqd"}> : () -> ()
    %cst_283 = arith.constant dense<0.000000e+00> : vector<2x8x8xf32>
    %654 = tpu.matmul %653, %636, %cst_283 {dimension_numbers = #tpu.dot_dimension_numbers<[2], [1], [1], [2], [0, 0, 0, 1, 1, 2], [0], [0]>} : vector<2x8x8xf32>, vector<2x8x8xf32>, vector<2x8x8xf32> -> vector<2x8x8xf32>
    "tpu.trace_stop"() : () -> ()
    %655 = vector.shape_cast %654 : vector<2x8x8xf32> to vector<16x8xf32>
    %656 = vector.extract_strided_slice %600 {offsets = [0, 16], sizes = [16, 8], strides = [1, 1]} : vector<16x32xf32> to vector<16x8xf32>
    %657 = vector.shape_cast %656 : vector<16x8xf32> to vector<2x8x8xf32>
    %658 = vector.extract_strided_slice %604 {offsets = [0, 16], sizes = [16, 8], strides = [1, 1]} : vector<16x32xf32> to vector<16x8xf32>
    %659 = vector.shape_cast %658 : vector<16x8xf32> to vector<2x8x8xf32>
    %660 = vector.extract_strided_slice %605 {offsets = [0, 16], sizes = [16, 8], strides = [1, 1]} : vector<16x32xf32> to vector<16x8xf32>
    %661 = vector.shape_cast %660 : vector<16x8xf32> to vector<2x8x8xf32>
    "tpu.trace_start"() <{level = 10 : i32, message = "bqd,bkd->bqk"}> : () -> ()
    %cst_284 = arith.constant dense<0.000000e+00> : vector<2x8x8xf32>
    %662 = tpu.matmul %657, %659, %cst_284 {dimension_numbers = #tpu.dot_dimension_numbers<[2], [2], [1], [1], [0, 0, 0, 1, 1, 1], [0], [0]>} : vector<2x8x8xf32>, vector<2x8x8xf32>, vector<2x8x8xf32> -> vector<2x8x8xf32>
    "tpu.trace_stop"() : () -> ()
    %cst_285 = arith.constant 0.353553385 : f32
    %663 = vector.broadcast %cst_285 : f32 to vector<2x8x8xf32>
    %664 = arith.mulf %662, %663 : vector<2x8x8xf32>
    %cst_286 = arith.constant 0.000000e+00 : f32
    %665 = vector.broadcast %cst_286 : f32 to vector<2x8x8xf32>
    %666 = arith.cmpf one, %4, %665 : vector<2x8x8xf32>
    %cst_287 = arith.constant -1.000000e+09 : f32
    %667 = vector.broadcast %cst_287 : f32 to vector<2x8x8xf32>
    %668 = arith.select %666, %664, %667 : vector<2x8x8xi1>, vector<2x8x8xf32>
    %cst_288 = arith.constant dense<0xFF800000> : vector<2x8xf32>
    %669 = vector.multi_reduction <maximumf>, %668, %cst_288 [2] : vector<2x8x8xf32> to vector<2x8xf32>
    %670 = vector.shape_cast %669 : vector<2x8xf32> to vector<2x8x1xf32>
    %671 = vector.broadcast %670 : vector<2x8x1xf32> to vector<2x8x8xf32>
    %672 = arith.subf %668, %671 : vector<2x8x8xf32>
    %673 = math.exp %672 : vector<2x8x8xf32>
    %cst_289 = arith.constant dense<0.000000e+00> : vector<2x8xf32>
    %674 = vector.multi_reduction <add>, %673, %cst_289 [2] : vector<2x8x8xf32> to vector<2x8xf32>
    %675 = vector.shape_cast %674 : vector<2x8xf32> to vector<2x8x1xf32>
    %676 = tpu.reciprocal %675 : vector<2x8x1xf32> -> vector<2x8x1xf32>
    %677 = vector.broadcast %676 : vector<2x8x1xf32> to vector<2x8x8xf32>
    %678 = arith.mulf %673, %677 : vector<2x8x8xf32>
    "tpu.trace_start"() <{level = 10 : i32, message = "bqk,bkd->bqd"}> : () -> ()
    %cst_290 = arith.constant dense<0.000000e+00> : vector<2x8x8xf32>
    %679 = tpu.matmul %678, %661, %cst_290 {dimension_numbers = #tpu.dot_dimension_numbers<[2], [1], [1], [2], [0, 0, 0, 1, 1, 2], [0], [0]>} : vector<2x8x8xf32>, vector<2x8x8xf32>, vector<2x8x8xf32> -> vector<2x8x8xf32>
    "tpu.trace_stop"() : () -> ()
    %680 = vector.shape_cast %679 : vector<2x8x8xf32> to vector<16x8xf32>
    %681 = vector.extract_strided_slice %600 {offsets = [0, 24], sizes = [16, 8], strides = [1, 1]} : vector<16x32xf32> to vector<16x8xf32>
    %682 = vector.shape_cast %681 : vector<16x8xf32> to vector<2x8x8xf32>
    %683 = vector.extract_strided_slice %604 {offsets = [0, 24], sizes = [16, 8], strides = [1, 1]} : vector<16x32xf32> to vector<16x8xf32>
    %684 = vector.shape_cast %683 : vector<16x8xf32> to vector<2x8x8xf32>
    %685 = vector.extract_strided_slice %605 {offsets = [0, 24], sizes = [16, 8], strides = [1, 1]} : vector<16x32xf32> to vector<16x8xf32>
    %686 = vector.shape_cast %685 : vector<16x8xf32> to vector<2x8x8xf32>
    "tpu.trace_start"() <{level = 10 : i32, message = "bqd,bkd->bqk"}> : () -> ()
    %cst_291 = arith.constant dense<0.000000e+00> : vector<2x8x8xf32>
    %687 = tpu.matmul %682, %684, %cst_291 {dimension_numbers = #tpu.dot_dimension_numbers<[2], [2], [1], [1], [0, 0, 0, 1, 1, 1], [0], [0]>} : vector<2x8x8xf32>, vector<2x8x8xf32>, vector<2x8x8xf32> -> vector<2x8x8xf32>
    "tpu.trace_stop"() : () -> ()
    %cst_292 = arith.constant 0.353553385 : f32
    %688 = vector.broadcast %cst_292 : f32 to vector<2x8x8xf32>
    %689 = arith.mulf %687, %688 : vector<2x8x8xf32>
    %cst_293 = arith.constant 0.000000e+00 : f32
    %690 = vector.broadcast %cst_293 : f32 to vector<2x8x8xf32>
    %691 = arith.cmpf one, %4, %690 : vector<2x8x8xf32>
    %cst_294 = arith.constant -1.000000e+09 : f32
    %692 = vector.broadcast %cst_294 : f32 to vector<2x8x8xf32>
    %693 = arith.select %691, %689, %692 : vector<2x8x8xi1>, vector<2x8x8xf32>
    %cst_295 = arith.constant dense<0xFF800000> : vector<2x8xf32>
    %694 = vector.multi_reduction <maximumf>, %693, %cst_295 [2] : vector<2x8x8xf32> to vector<2x8xf32>
    %695 = vector.shape_cast %694 : vector<2x8xf32> to vector<2x8x1xf32>
    %696 = vector.broadcast %695 : vector<2x8x1xf32> to vector<2x8x8xf32>
    %697 = arith.subf %693, %696 : vector<2x8x8xf32>
    %698 = math.exp %697 : vector<2x8x8xf32>
    %cst_296 = arith.constant dense<0.000000e+00> : vector<2x8xf32>
    %699 = vector.multi_reduction <add>, %698, %cst_296 [2] : vector<2x8x8xf32> to vector<2x8xf32>
    %700 = vector.shape_cast %699 : vector<2x8xf32> to vector<2x8x1xf32>
    %701 = tpu.reciprocal %700 : vector<2x8x1xf32> -> vector<2x8x1xf32>
    %702 = vector.broadcast %701 : vector<2x8x1xf32> to vector<2x8x8xf32>
    %703 = arith.mulf %698, %702 : vector<2x8x8xf32>
    "tpu.trace_start"() <{level = 10 : i32, message = "bqk,bkd->bqd"}> : () -> ()
    %cst_297 = arith.constant dense<0.000000e+00> : vector<2x8x8xf32>
    %704 = tpu.matmul %703, %686, %cst_297 {dimension_numbers = #tpu.dot_dimension_numbers<[2], [1], [1], [2], [0, 0, 0, 1, 1, 2], [0], [0]>} : vector<2x8x8xf32>, vector<2x8x8xf32>, vector<2x8x8xf32> -> vector<2x8x8xf32>
    "tpu.trace_stop"() : () -> ()
    %705 = vector.shape_cast %704 : vector<2x8x8xf32> to vector<16x8xf32>
    %706 = tpu.concatenate %630, %655, %680, %705 in 1 : vector<16x8xf32>, vector<16x8xf32>, vector<16x8xf32>, vector<16x8xf32> -> vector<16x32xf32>
    %cst_298 = arith.constant dense<0.000000e+00> : vector<16x32xf32>
    %707 = tpu.matmul %706, %595, %cst_298 {dimension_numbers = #tpu.dot_dimension_numbers<[1], [0], [0], [1], [0, 0, 1, 1], [], []>} : vector<16x32xf32>, vector<32x32xf32>, vector<16x32xf32> -> vector<16x32xf32>
    %708 = vector.broadcast %597 : vector<1x32xf32> to vector<16x32xf32>
    %709 = arith.addf %707, %708 : vector<16x32xf32>
    %710 = arith.addf %558, %709 : vector<16x32xf32>
    %c0_299 = arith.constant 0 : index
    %c2 = arith.constant 2 : index
    %c0_300 = arith.constant 0 : index
    %c0_301 = arith.constant 0 : index
    %711 = vector.load %arg30[%c0_299, %c2, %c0_300, %c0_301] : memref<2x3x1x32xf32, #tpu.memory_space<vmem>>, vector<1x1x1x32xf32>
    %712 = vector.shape_cast %711 : vector<1x1x1x32xf32> to vector<1x32xf32>
    %c0_302 = arith.constant 0 : index
    %c2_303 = arith.constant 2 : index
    %c0_304 = arith.constant 0 : index
    %c0_305 = arith.constant 0 : index
    %713 = vector.load %arg31[%c0_302, %c2_303, %c0_304, %c0_305] : memref<2x3x1x32xf32, #tpu.memory_space<vmem>>, vector<1x1x1x32xf32>
    %714 = vector.shape_cast %713 : vector<1x1x1x32xf32> to vector<1x32xf32>
    %cst_306 = arith.constant dense<0.000000e+00> : vector<16xf32>
    %715 = vector.multi_reduction <add>, %710, %cst_306 [1] : vector<16x32xf32> to vector<16xf32>
    %716 = vector.shape_cast %715 : vector<16xf32> to vector<16x1xf32>
    %cst_307 = arith.constant 3.200000e+01 : f32
    %717 = vector.broadcast %cst_307 : f32 to vector<16x1xf32>
    %718 = arith.divf %716, %717 : vector<16x1xf32>
    %719 = vector.broadcast %718 : vector<16x1xf32> to vector<16x32xf32>
    %720 = arith.subf %710, %719 : vector<16x32xf32>
    %721 = arith.mulf %720, %720 : vector<16x32xf32>
    %cst_308 = arith.constant dense<0.000000e+00> : vector<16xf32>
    %722 = vector.multi_reduction <add>, %721, %cst_308 [1] : vector<16x32xf32> to vector<16xf32>
    %723 = vector.shape_cast %722 : vector<16xf32> to vector<16x1xf32>
    %cst_309 = arith.constant 0.0322580636 : f32
    %724 = vector.broadcast %cst_309 : f32 to vector<16x1xf32>
    %725 = arith.mulf %723, %724 : vector<16x1xf32>
    %726 = math.sqrt %725 : vector<16x1xf32>
    %727 = vector.broadcast %718 : vector<16x1xf32> to vector<16x32xf32>
    %728 = arith.subf %710, %727 : vector<16x32xf32>
    %729 = vector.broadcast %712 : vector<1x32xf32> to vector<16x32xf32>
    %730 = arith.mulf %729, %728 : vector<16x32xf32>
    %cst_310 = arith.constant 9.99999997E-7 : f32
    %731 = vector.broadcast %cst_310 : f32 to vector<16x1xf32>
    %732 = arith.addf %726, %731 : vector<16x1xf32>
    %733 = tpu.reciprocal %732 : vector<16x1xf32> -> vector<16x1xf32>
    %734 = vector.broadcast %733 : vector<16x1xf32> to vector<16x32xf32>
    %735 = arith.mulf %730, %734 : vector<16x32xf32>
    %736 = vector.broadcast %714 : vector<1x32xf32> to vector<16x32xf32>
    %737 = arith.addf %735, %736 : vector<16x32xf32>
    %c0_311 = arith.constant 0 : index
    %c0_312 = arith.constant 0 : index
    %c0_313 = arith.constant 0 : index
    %738 = vector.load %arg26[%c0_311, %c0_312, %c0_313] : memref<2x32x64xf32, #tpu.memory_space<vmem>>, vector<1x32x64xf32>
    %739 = vector.shape_cast %738 : vector<1x32x64xf32> to vector<32x64xf32>
    %c0_314 = arith.constant 0 : index
    %c0_315 = arith.constant 0 : index
    %c0_316 = arith.constant 0 : index
    %740 = vector.load %arg27[%c0_314, %c0_315, %c0_316] : memref<2x1x64xf32, #tpu.memory_space<vmem>>, vector<1x1x64xf32>
    %741 = vector.shape_cast %740 : vector<1x1x64xf32> to vector<1x64xf32>
    %c0_317 = arith.constant 0 : index
    %c0_318 = arith.constant 0 : index
    %c0_319 = arith.constant 0 : index
    %742 = vector.load %arg28[%c0_317, %c0_318, %c0_319] : memref<2x64x32xf32, #tpu.memory_space<vmem>>, vector<1x64x32xf32>
    %743 = vector.shape_cast %742 : vector<1x64x32xf32> to vector<64x32xf32>
    %c0_320 = arith.constant 0 : index
    %c0_321 = arith.constant 0 : index
    %c0_322 = arith.constant 0 : index
    %744 = vector.load %arg29[%c0_320, %c0_321, %c0_322] : memref<2x1x32xf32, #tpu.memory_space<vmem>>, vector<1x1x32xf32>
    %745 = vector.shape_cast %744 : vector<1x1x32xf32> to vector<1x32xf32>
    %cst_323 = arith.constant dense<0.000000e+00> : vector<16x64xf32>
    %746 = tpu.matmul %737, %739, %cst_323 {dimension_numbers = #tpu.dot_dimension_numbers<[1], [0], [0], [1], [0, 0, 1, 1], [], []>} : vector<16x32xf32>, vector<32x64xf32>, vector<16x64xf32> -> vector<16x64xf32>
    %747 = vector.broadcast %741 : vector<1x64xf32> to vector<16x64xf32>
    %748 = arith.addf %746, %747 : vector<16x64xf32>
    %cst_324 = arith.constant 0.000000e+00 : f32
    %749 = vector.broadcast %cst_324 : f32 to vector<16x64xf32>
    %750 = arith.maximumf %748, %749 : vector<16x64xf32>
    %cst_325 = arith.constant dense<0.000000e+00> : vector<16x32xf32>
    %751 = tpu.matmul %750, %743, %cst_325 {dimension_numbers = #tpu.dot_dimension_numbers<[1], [0], [0], [1], [0, 0, 1, 1], [], []>} : vector<16x64xf32>, vector<64x32xf32>, vector<16x32xf32> -> vector<16x32xf32>
    %752 = vector.broadcast %745 : vector<1x32xf32> to vector<16x32xf32>
    %753 = arith.addf %751, %752 : vector<16x32xf32>
    %754 = arith.addf %710, %753 : vector<16x32xf32>
    %c1_326 = arith.constant 1 : index
    %c0_327 = arith.constant 0 : index
    %c0_328 = arith.constant 0 : index
    %c0_329 = arith.constant 0 : index
    %755 = vector.load %arg30[%c1_326, %c0_327, %c0_328, %c0_329] : memref<2x3x1x32xf32, #tpu.memory_space<vmem>>, vector<1x1x1x32xf32>
    %756 = vector.shape_cast %755 : vector<1x1x1x32xf32> to vector<1x32xf32>
    %c1_330 = arith.constant 1 : index
    %c0_331 = arith.constant 0 : index
    %c0_332 = arith.constant 0 : index
    %c0_333 = arith.constant 0 : index
    %757 = vector.load %arg31[%c1_330, %c0_331, %c0_332, %c0_333] : memref<2x3x1x32xf32, #tpu.memory_space<vmem>>, vector<1x1x1x32xf32>
    %758 = vector.shape_cast %757 : vector<1x1x1x32xf32> to vector<1x32xf32>
    %cst_334 = arith.constant dense<0.000000e+00> : vector<16xf32>
    %759 = vector.multi_reduction <add>, %754, %cst_334 [1] : vector<16x32xf32> to vector<16xf32>
    %760 = vector.shape_cast %759 : vector<16xf32> to vector<16x1xf32>
    %cst_335 = arith.constant 3.200000e+01 : f32
    %761 = vector.broadcast %cst_335 : f32 to vector<16x1xf32>
    %762 = arith.divf %760, %761 : vector<16x1xf32>
    %763 = vector.broadcast %762 : vector<16x1xf32> to vector<16x32xf32>
    %764 = arith.subf %754, %763 : vector<16x32xf32>
    %765 = arith.mulf %764, %764 : vector<16x32xf32>
    %cst_336 = arith.constant dense<0.000000e+00> : vector<16xf32>
    %766 = vector.multi_reduction <add>, %765, %cst_336 [1] : vector<16x32xf32> to vector<16xf32>
    %767 = vector.shape_cast %766 : vector<16xf32> to vector<16x1xf32>
    %cst_337 = arith.constant 0.0322580636 : f32
    %768 = vector.broadcast %cst_337 : f32 to vector<16x1xf32>
    %769 = arith.mulf %767, %768 : vector<16x1xf32>
    %770 = math.sqrt %769 : vector<16x1xf32>
    %771 = vector.broadcast %762 : vector<16x1xf32> to vector<16x32xf32>
    %772 = arith.subf %754, %771 : vector<16x32xf32>
    %773 = vector.broadcast %756 : vector<1x32xf32> to vector<16x32xf32>
    %774 = arith.mulf %773, %772 : vector<16x32xf32>
    %cst_338 = arith.constant 9.99999997E-7 : f32
    %775 = vector.broadcast %cst_338 : f32 to vector<16x1xf32>
    %776 = arith.addf %770, %775 : vector<16x1xf32>
    %777 = tpu.reciprocal %776 : vector<16x1xf32> -> vector<16x1xf32>
    %778 = vector.broadcast %777 : vector<16x1xf32> to vector<16x32xf32>
    %779 = arith.mulf %774, %778 : vector<16x32xf32>
    %780 = vector.broadcast %758 : vector<1x32xf32> to vector<16x32xf32>
    %781 = arith.addf %779, %780 : vector<16x32xf32>
    %c1_339 = arith.constant 1 : index
    %c0_340 = arith.constant 0 : index
    %c0_341 = arith.constant 0 : index
    %782 = vector.load %arg16[%c1_339, %c0_340, %c0_341] : memref<2x32x96xf32, #tpu.memory_space<vmem>>, vector<1x32x96xf32>
    %783 = vector.shape_cast %782 : vector<1x32x96xf32> to vector<32x96xf32>
    %c1_342 = arith.constant 1 : index
    %c0_343 = arith.constant 0 : index
    %c0_344 = arith.constant 0 : index
    %784 = vector.load %arg17[%c1_342, %c0_343, %c0_344] : memref<2x1x96xf32, #tpu.memory_space<vmem>>, vector<1x1x96xf32>
    %785 = vector.shape_cast %784 : vector<1x1x96xf32> to vector<1x96xf32>
    %c1_345 = arith.constant 1 : index
    %c0_346 = arith.constant 0 : index
    %c0_347 = arith.constant 0 : index
    %786 = vector.load %arg18[%c1_345, %c0_346, %c0_347] : memref<2x32x32xf32, #tpu.memory_space<vmem>>, vector<1x32x32xf32>
    %787 = vector.shape_cast %786 : vector<1x32x32xf32> to vector<32x32xf32>
    %c1_348 = arith.constant 1 : index
    %c0_349 = arith.constant 0 : index
    %c0_350 = arith.constant 0 : index
    %788 = vector.load %arg19[%c1_348, %c0_349, %c0_350] : memref<2x1x32xf32, #tpu.memory_space<vmem>>, vector<1x1x32xf32>
    %789 = vector.shape_cast %788 : vector<1x1x32xf32> to vector<1x32xf32>
    %cst_351 = arith.constant dense<0.000000e+00> : vector<16x96xf32>
    %790 = tpu.matmul %781, %783, %cst_351 {dimension_numbers = #tpu.dot_dimension_numbers<[1], [0], [0], [1], [0, 0, 1, 1], [], []>} : vector<16x32xf32>, vector<32x96xf32>, vector<16x96xf32> -> vector<16x96xf32>
    %791 = vector.broadcast %785 : vector<1x96xf32> to vector<16x96xf32>
    %792 = arith.addf %790, %791 : vector<16x96xf32>
    %793 = vector.extract_strided_slice %792 {offsets = [0, 0], sizes = [16, 32], strides = [1, 1]} : vector<16x96xf32> to vector<16x32xf32>
    %794 = vector.extract_strided_slice %792 {offsets = [0, 32], sizes = [16, 32], strides = [1, 1]} : vector<16x96xf32> to vector<16x32xf32>
    %795 = vector.extract_strided_slice %792 {offsets = [0, 64], sizes = [16, 32], strides = [1, 1]} : vector<16x96xf32> to vector<16x32xf32>
    %796 = vector.extract_strided_slice %793 {offsets = [0, 0], sizes = [16, 8], strides = [1, 1]} : vector<16x32xf32> to vector<16x8xf32>
    %797 = vector.shape_cast %796 : vector<16x8xf32> to vector<2x8x8xf32>
    %798 = vector.extract_strided_slice %794 {offsets = [0, 0], sizes = [16, 8], strides = [1, 1]} : vector<16x32xf32> to vector<16x8xf32>
    %799 = vector.shape_cast %798 : vector<16x8xf32> to vector<2x8x8xf32>
    %800 = vector.extract_strided_slice %795 {offsets = [0, 0], sizes = [16, 8], strides = [1, 1]} : vector<16x32xf32> to vector<16x8xf32>
    %801 = vector.shape_cast %800 : vector<16x8xf32> to vector<2x8x8xf32>
    "tpu.trace_start"() <{level = 10 : i32, message = "bqd,bkd->bqk"}> : () -> ()
    %cst_352 = arith.constant dense<0.000000e+00> : vector<2x8x8xf32>
    %802 = tpu.matmul %797, %799, %cst_352 {dimension_numbers = #tpu.dot_dimension_numbers<[2], [2], [1], [1], [0, 0, 0, 1, 1, 1], [0], [0]>} : vector<2x8x8xf32>, vector<2x8x8xf32>, vector<2x8x8xf32> -> vector<2x8x8xf32>
    "tpu.trace_stop"() : () -> ()
    %cst_353 = arith.constant 0.353553385 : f32
    %803 = vector.broadcast %cst_353 : f32 to vector<2x8x8xf32>
    %804 = arith.mulf %802, %803 : vector<2x8x8xf32>
    %cst_354 = arith.constant 0.000000e+00 : f32
    %805 = vector.broadcast %cst_354 : f32 to vector<2x8x8xf32>
    %806 = arith.cmpf one, %5, %805 : vector<2x8x8xf32>
    %cst_355 = arith.constant -1.000000e+09 : f32
    %807 = vector.broadcast %cst_355 : f32 to vector<2x8x8xf32>
    %808 = arith.select %806, %804, %807 : vector<2x8x8xi1>, vector<2x8x8xf32>
    %cst_356 = arith.constant dense<0xFF800000> : vector<2x8xf32>
    %809 = vector.multi_reduction <maximumf>, %808, %cst_356 [2] : vector<2x8x8xf32> to vector<2x8xf32>
    %810 = vector.shape_cast %809 : vector<2x8xf32> to vector<2x8x1xf32>
    %811 = vector.broadcast %810 : vector<2x8x1xf32> to vector<2x8x8xf32>
    %812 = arith.subf %808, %811 : vector<2x8x8xf32>
    %813 = math.exp %812 : vector<2x8x8xf32>
    %cst_357 = arith.constant dense<0.000000e+00> : vector<2x8xf32>
    %814 = vector.multi_reduction <add>, %813, %cst_357 [2] : vector<2x8x8xf32> to vector<2x8xf32>
    %815 = vector.shape_cast %814 : vector<2x8xf32> to vector<2x8x1xf32>
    %816 = tpu.reciprocal %815 : vector<2x8x1xf32> -> vector<2x8x1xf32>
    %817 = vector.broadcast %816 : vector<2x8x1xf32> to vector<2x8x8xf32>
    %818 = arith.mulf %813, %817 : vector<2x8x8xf32>
    "tpu.trace_start"() <{level = 10 : i32, message = "bqk,bkd->bqd"}> : () -> ()
    %cst_358 = arith.constant dense<0.000000e+00> : vector<2x8x8xf32>
    %819 = tpu.matmul %818, %801, %cst_358 {dimension_numbers = #tpu.dot_dimension_numbers<[2], [1], [1], [2], [0, 0, 0, 1, 1, 2], [0], [0]>} : vector<2x8x8xf32>, vector<2x8x8xf32>, vector<2x8x8xf32> -> vector<2x8x8xf32>
    "tpu.trace_stop"() : () -> ()
    %820 = vector.shape_cast %819 : vector<2x8x8xf32> to vector<16x8xf32>
    %821 = vector.extract_strided_slice %793 {offsets = [0, 8], sizes = [16, 8], strides = [1, 1]} : vector<16x32xf32> to vector<16x8xf32>
    %822 = vector.shape_cast %821 : vector<16x8xf32> to vector<2x8x8xf32>
    %823 = vector.extract_strided_slice %794 {offsets = [0, 8], sizes = [16, 8], strides = [1, 1]} : vector<16x32xf32> to vector<16x8xf32>
    %824 = vector.shape_cast %823 : vector<16x8xf32> to vector<2x8x8xf32>
    %825 = vector.extract_strided_slice %795 {offsets = [0, 8], sizes = [16, 8], strides = [1, 1]} : vector<16x32xf32> to vector<16x8xf32>
    %826 = vector.shape_cast %825 : vector<16x8xf32> to vector<2x8x8xf32>
    "tpu.trace_start"() <{level = 10 : i32, message = "bqd,bkd->bqk"}> : () -> ()
    %cst_359 = arith.constant dense<0.000000e+00> : vector<2x8x8xf32>
    %827 = tpu.matmul %822, %824, %cst_359 {dimension_numbers = #tpu.dot_dimension_numbers<[2], [2], [1], [1], [0, 0, 0, 1, 1, 1], [0], [0]>} : vector<2x8x8xf32>, vector<2x8x8xf32>, vector<2x8x8xf32> -> vector<2x8x8xf32>
    "tpu.trace_stop"() : () -> ()
    %cst_360 = arith.constant 0.353553385 : f32
    %828 = vector.broadcast %cst_360 : f32 to vector<2x8x8xf32>
    %829 = arith.mulf %827, %828 : vector<2x8x8xf32>
    %cst_361 = arith.constant 0.000000e+00 : f32
    %830 = vector.broadcast %cst_361 : f32 to vector<2x8x8xf32>
    %831 = arith.cmpf one, %5, %830 : vector<2x8x8xf32>
    %cst_362 = arith.constant -1.000000e+09 : f32
    %832 = vector.broadcast %cst_362 : f32 to vector<2x8x8xf32>
    %833 = arith.select %831, %829, %832 : vector<2x8x8xi1>, vector<2x8x8xf32>
    %cst_363 = arith.constant dense<0xFF800000> : vector<2x8xf32>
    %834 = vector.multi_reduction <maximumf>, %833, %cst_363 [2] : vector<2x8x8xf32> to vector<2x8xf32>
    %835 = vector.shape_cast %834 : vector<2x8xf32> to vector<2x8x1xf32>
    %836 = vector.broadcast %835 : vector<2x8x1xf32> to vector<2x8x8xf32>
    %837 = arith.subf %833, %836 : vector<2x8x8xf32>
    %838 = math.exp %837 : vector<2x8x8xf32>
    %cst_364 = arith.constant dense<0.000000e+00> : vector<2x8xf32>
    %839 = vector.multi_reduction <add>, %838, %cst_364 [2] : vector<2x8x8xf32> to vector<2x8xf32>
    %840 = vector.shape_cast %839 : vector<2x8xf32> to vector<2x8x1xf32>
    %841 = tpu.reciprocal %840 : vector<2x8x1xf32> -> vector<2x8x1xf32>
    %842 = vector.broadcast %841 : vector<2x8x1xf32> to vector<2x8x8xf32>
    %843 = arith.mulf %838, %842 : vector<2x8x8xf32>
    "tpu.trace_start"() <{level = 10 : i32, message = "bqk,bkd->bqd"}> : () -> ()
    %cst_365 = arith.constant dense<0.000000e+00> : vector<2x8x8xf32>
    %844 = tpu.matmul %843, %826, %cst_365 {dimension_numbers = #tpu.dot_dimension_numbers<[2], [1], [1], [2], [0, 0, 0, 1, 1, 2], [0], [0]>} : vector<2x8x8xf32>, vector<2x8x8xf32>, vector<2x8x8xf32> -> vector<2x8x8xf32>
    "tpu.trace_stop"() : () -> ()
    %845 = vector.shape_cast %844 : vector<2x8x8xf32> to vector<16x8xf32>
    %846 = vector.extract_strided_slice %793 {offsets = [0, 16], sizes = [16, 8], strides = [1, 1]} : vector<16x32xf32> to vector<16x8xf32>
    %847 = vector.shape_cast %846 : vector<16x8xf32> to vector<2x8x8xf32>
    %848 = vector.extract_strided_slice %794 {offsets = [0, 16], sizes = [16, 8], strides = [1, 1]} : vector<16x32xf32> to vector<16x8xf32>
    %849 = vector.shape_cast %848 : vector<16x8xf32> to vector<2x8x8xf32>
    %850 = vector.extract_strided_slice %795 {offsets = [0, 16], sizes = [16, 8], strides = [1, 1]} : vector<16x32xf32> to vector<16x8xf32>
    %851 = vector.shape_cast %850 : vector<16x8xf32> to vector<2x8x8xf32>
    "tpu.trace_start"() <{level = 10 : i32, message = "bqd,bkd->bqk"}> : () -> ()
    %cst_366 = arith.constant dense<0.000000e+00> : vector<2x8x8xf32>
    %852 = tpu.matmul %847, %849, %cst_366 {dimension_numbers = #tpu.dot_dimension_numbers<[2], [2], [1], [1], [0, 0, 0, 1, 1, 1], [0], [0]>} : vector<2x8x8xf32>, vector<2x8x8xf32>, vector<2x8x8xf32> -> vector<2x8x8xf32>
    "tpu.trace_stop"() : () -> ()
    %cst_367 = arith.constant 0.353553385 : f32
    %853 = vector.broadcast %cst_367 : f32 to vector<2x8x8xf32>
    %854 = arith.mulf %852, %853 : vector<2x8x8xf32>
    %cst_368 = arith.constant 0.000000e+00 : f32
    %855 = vector.broadcast %cst_368 : f32 to vector<2x8x8xf32>
    %856 = arith.cmpf one, %5, %855 : vector<2x8x8xf32>
    %cst_369 = arith.constant -1.000000e+09 : f32
    %857 = vector.broadcast %cst_369 : f32 to vector<2x8x8xf32>
    %858 = arith.select %856, %854, %857 : vector<2x8x8xi1>, vector<2x8x8xf32>
    %cst_370 = arith.constant dense<0xFF800000> : vector<2x8xf32>
    %859 = vector.multi_reduction <maximumf>, %858, %cst_370 [2] : vector<2x8x8xf32> to vector<2x8xf32>
    %860 = vector.shape_cast %859 : vector<2x8xf32> to vector<2x8x1xf32>
    %861 = vector.broadcast %860 : vector<2x8x1xf32> to vector<2x8x8xf32>
    %862 = arith.subf %858, %861 : vector<2x8x8xf32>
    %863 = math.exp %862 : vector<2x8x8xf32>
    %cst_371 = arith.constant dense<0.000000e+00> : vector<2x8xf32>
    %864 = vector.multi_reduction <add>, %863, %cst_371 [2] : vector<2x8x8xf32> to vector<2x8xf32>
    %865 = vector.shape_cast %864 : vector<2x8xf32> to vector<2x8x1xf32>
    %866 = tpu.reciprocal %865 : vector<2x8x1xf32> -> vector<2x8x1xf32>
    %867 = vector.broadcast %866 : vector<2x8x1xf32> to vector<2x8x8xf32>
    %868 = arith.mulf %863, %867 : vector<2x8x8xf32>
    "tpu.trace_start"() <{level = 10 : i32, message = "bqk,bkd->bqd"}> : () -> ()
    %cst_372 = arith.constant dense<0.000000e+00> : vector<2x8x8xf32>
    %869 = tpu.matmul %868, %851, %cst_372 {dimension_numbers = #tpu.dot_dimension_numbers<[2], [1], [1], [2], [0, 0, 0, 1, 1, 2], [0], [0]>} : vector<2x8x8xf32>, vector<2x8x8xf32>, vector<2x8x8xf32> -> vector<2x8x8xf32>
    "tpu.trace_stop"() : () -> ()
    %870 = vector.shape_cast %869 : vector<2x8x8xf32> to vector<16x8xf32>
    %871 = vector.extract_strided_slice %793 {offsets = [0, 24], sizes = [16, 8], strides = [1, 1]} : vector<16x32xf32> to vector<16x8xf32>
    %872 = vector.shape_cast %871 : vector<16x8xf32> to vector<2x8x8xf32>
    %873 = vector.extract_strided_slice %794 {offsets = [0, 24], sizes = [16, 8], strides = [1, 1]} : vector<16x32xf32> to vector<16x8xf32>
    %874 = vector.shape_cast %873 : vector<16x8xf32> to vector<2x8x8xf32>
    %875 = vector.extract_strided_slice %795 {offsets = [0, 24], sizes = [16, 8], strides = [1, 1]} : vector<16x32xf32> to vector<16x8xf32>
    %876 = vector.shape_cast %875 : vector<16x8xf32> to vector<2x8x8xf32>
    "tpu.trace_start"() <{level = 10 : i32, message = "bqd,bkd->bqk"}> : () -> ()
    %cst_373 = arith.constant dense<0.000000e+00> : vector<2x8x8xf32>
    %877 = tpu.matmul %872, %874, %cst_373 {dimension_numbers = #tpu.dot_dimension_numbers<[2], [2], [1], [1], [0, 0, 0, 1, 1, 1], [0], [0]>} : vector<2x8x8xf32>, vector<2x8x8xf32>, vector<2x8x8xf32> -> vector<2x8x8xf32>
    "tpu.trace_stop"() : () -> ()
    %cst_374 = arith.constant 0.353553385 : f32
    %878 = vector.broadcast %cst_374 : f32 to vector<2x8x8xf32>
    %879 = arith.mulf %877, %878 : vector<2x8x8xf32>
    %cst_375 = arith.constant 0.000000e+00 : f32
    %880 = vector.broadcast %cst_375 : f32 to vector<2x8x8xf32>
    %881 = arith.cmpf one, %5, %880 : vector<2x8x8xf32>
    %cst_376 = arith.constant -1.000000e+09 : f32
    %882 = vector.broadcast %cst_376 : f32 to vector<2x8x8xf32>
    %883 = arith.select %881, %879, %882 : vector<2x8x8xi1>, vector<2x8x8xf32>
    %cst_377 = arith.constant dense<0xFF800000> : vector<2x8xf32>
    %884 = vector.multi_reduction <maximumf>, %883, %cst_377 [2] : vector<2x8x8xf32> to vector<2x8xf32>
    %885 = vector.shape_cast %884 : vector<2x8xf32> to vector<2x8x1xf32>
    %886 = vector.broadcast %885 : vector<2x8x1xf32> to vector<2x8x8xf32>
    %887 = arith.subf %883, %886 : vector<2x8x8xf32>
    %888 = math.exp %887 : vector<2x8x8xf32>
    %cst_378 = arith.constant dense<0.000000e+00> : vector<2x8xf32>
    %889 = vector.multi_reduction <add>, %888, %cst_378 [2] : vector<2x8x8xf32> to vector<2x8xf32>
    %890 = vector.shape_cast %889 : vector<2x8xf32> to vector<2x8x1xf32>
    %891 = tpu.reciprocal %890 : vector<2x8x1xf32> -> vector<2x8x1xf32>
    %892 = vector.broadcast %891 : vector<2x8x1xf32> to vector<2x8x8xf32>
    %893 = arith.mulf %888, %892 : vector<2x8x8xf32>
    "tpu.trace_start"() <{level = 10 : i32, message = "bqk,bkd->bqd"}> : () -> ()
    %cst_379 = arith.constant dense<0.000000e+00> : vector<2x8x8xf32>
    %894 = tpu.matmul %893, %876, %cst_379 {dimension_numbers = #tpu.dot_dimension_numbers<[2], [1], [1], [2], [0, 0, 0, 1, 1, 2], [0], [0]>} : vector<2x8x8xf32>, vector<2x8x8xf32>, vector<2x8x8xf32> -> vector<2x8x8xf32>
    "tpu.trace_stop"() : () -> ()
    %895 = vector.shape_cast %894 : vector<2x8x8xf32> to vector<16x8xf32>
    %896 = tpu.concatenate %820, %845, %870, %895 in 1 : vector<16x8xf32>, vector<16x8xf32>, vector<16x8xf32>, vector<16x8xf32> -> vector<16x32xf32>
    %cst_380 = arith.constant dense<0.000000e+00> : vector<16x32xf32>
    %897 = tpu.matmul %896, %787, %cst_380 {dimension_numbers = #tpu.dot_dimension_numbers<[1], [0], [0], [1], [0, 0, 1, 1], [], []>} : vector<16x32xf32>, vector<32x32xf32>, vector<16x32xf32> -> vector<16x32xf32>
    %898 = vector.broadcast %789 : vector<1x32xf32> to vector<16x32xf32>
    %899 = arith.addf %897, %898 : vector<16x32xf32>
    %900 = arith.addf %754, %899 : vector<16x32xf32>
    %c1_381 = arith.constant 1 : index
    %c1_382 = arith.constant 1 : index
    %c0_383 = arith.constant 0 : index
    %c0_384 = arith.constant 0 : index
    %901 = vector.load %arg30[%c1_381, %c1_382, %c0_383, %c0_384] : memref<2x3x1x32xf32, #tpu.memory_space<vmem>>, vector<1x1x1x32xf32>
    %902 = vector.shape_cast %901 : vector<1x1x1x32xf32> to vector<1x32xf32>
    %c1_385 = arith.constant 1 : index
    %c1_386 = arith.constant 1 : index
    %c0_387 = arith.constant 0 : index
    %c0_388 = arith.constant 0 : index
    %903 = vector.load %arg31[%c1_385, %c1_386, %c0_387, %c0_388] : memref<2x3x1x32xf32, #tpu.memory_space<vmem>>, vector<1x1x1x32xf32>
    %904 = vector.shape_cast %903 : vector<1x1x1x32xf32> to vector<1x32xf32>
    %cst_389 = arith.constant dense<0.000000e+00> : vector<16xf32>
    %905 = vector.multi_reduction <add>, %900, %cst_389 [1] : vector<16x32xf32> to vector<16xf32>
    %906 = vector.shape_cast %905 : vector<16xf32> to vector<16x1xf32>
    %cst_390 = arith.constant 3.200000e+01 : f32
    %907 = vector.broadcast %cst_390 : f32 to vector<16x1xf32>
    %908 = arith.divf %906, %907 : vector<16x1xf32>
    %909 = vector.broadcast %908 : vector<16x1xf32> to vector<16x32xf32>
    %910 = arith.subf %900, %909 : vector<16x32xf32>
    %911 = arith.mulf %910, %910 : vector<16x32xf32>
    %cst_391 = arith.constant dense<0.000000e+00> : vector<16xf32>
    %912 = vector.multi_reduction <add>, %911, %cst_391 [1] : vector<16x32xf32> to vector<16xf32>
    %913 = vector.shape_cast %912 : vector<16xf32> to vector<16x1xf32>
    %cst_392 = arith.constant 0.0322580636 : f32
    %914 = vector.broadcast %cst_392 : f32 to vector<16x1xf32>
    %915 = arith.mulf %913, %914 : vector<16x1xf32>
    %916 = math.sqrt %915 : vector<16x1xf32>
    %917 = vector.broadcast %908 : vector<16x1xf32> to vector<16x32xf32>
    %918 = arith.subf %900, %917 : vector<16x32xf32>
    %919 = vector.broadcast %902 : vector<1x32xf32> to vector<16x32xf32>
    %920 = arith.mulf %919, %918 : vector<16x32xf32>
    %cst_393 = arith.constant 9.99999997E-7 : f32
    %921 = vector.broadcast %cst_393 : f32 to vector<16x1xf32>
    %922 = arith.addf %916, %921 : vector<16x1xf32>
    %923 = tpu.reciprocal %922 : vector<16x1xf32> -> vector<16x1xf32>
    %924 = vector.broadcast %923 : vector<16x1xf32> to vector<16x32xf32>
    %925 = arith.mulf %920, %924 : vector<16x32xf32>
    %926 = vector.broadcast %904 : vector<1x32xf32> to vector<16x32xf32>
    %927 = arith.addf %925, %926 : vector<16x32xf32>
    %c1_394 = arith.constant 1 : index
    %c0_395 = arith.constant 0 : index
    %c0_396 = arith.constant 0 : index
    %928 = vector.load %arg20[%c1_394, %c0_395, %c0_396] : memref<2x32x32xf32, #tpu.memory_space<vmem>>, vector<1x32x32xf32>
    %929 = vector.shape_cast %928 : vector<1x32x32xf32> to vector<32x32xf32>
    %c1_397 = arith.constant 1 : index
    %c0_398 = arith.constant 0 : index
    %c0_399 = arith.constant 0 : index
    %930 = vector.load %arg21[%c1_397, %c0_398, %c0_399] : memref<2x1x32xf32, #tpu.memory_space<vmem>>, vector<1x1x32xf32>
    %931 = vector.shape_cast %930 : vector<1x1x32xf32> to vector<1x32xf32>
    %c1_400 = arith.constant 1 : index
    %c0_401 = arith.constant 0 : index
    %c0_402 = arith.constant 0 : index
    %932 = vector.load %arg22[%c1_400, %c0_401, %c0_402] : memref<2x32x64xf32, #tpu.memory_space<vmem>>, vector<1x32x64xf32>
    %933 = vector.shape_cast %932 : vector<1x32x64xf32> to vector<32x64xf32>
    %c1_403 = arith.constant 1 : index
    %c0_404 = arith.constant 0 : index
    %c0_405 = arith.constant 0 : index
    %934 = vector.load %arg23[%c1_403, %c0_404, %c0_405] : memref<2x1x64xf32, #tpu.memory_space<vmem>>, vector<1x1x64xf32>
    %935 = vector.shape_cast %934 : vector<1x1x64xf32> to vector<1x64xf32>
    %c1_406 = arith.constant 1 : index
    %c0_407 = arith.constant 0 : index
    %c0_408 = arith.constant 0 : index
    %936 = vector.load %arg24[%c1_406, %c0_407, %c0_408] : memref<2x32x32xf32, #tpu.memory_space<vmem>>, vector<1x32x32xf32>
    %937 = vector.shape_cast %936 : vector<1x32x32xf32> to vector<32x32xf32>
    %c1_409 = arith.constant 1 : index
    %c0_410 = arith.constant 0 : index
    %c0_411 = arith.constant 0 : index
    %938 = vector.load %arg25[%c1_409, %c0_410, %c0_411] : memref<2x1x32xf32, #tpu.memory_space<vmem>>, vector<1x1x32xf32>
    %939 = vector.shape_cast %938 : vector<1x1x32xf32> to vector<1x32xf32>
    %cst_412 = arith.constant dense<0.000000e+00> : vector<16x32xf32>
    %940 = tpu.matmul %927, %929, %cst_412 {dimension_numbers = #tpu.dot_dimension_numbers<[1], [0], [0], [1], [0, 0, 1, 1], [], []>} : vector<16x32xf32>, vector<32x32xf32>, vector<16x32xf32> -> vector<16x32xf32>
    %941 = vector.broadcast %931 : vector<1x32xf32> to vector<16x32xf32>
    %942 = arith.addf %940, %941 : vector<16x32xf32>
    %cst_413 = arith.constant dense<0.000000e+00> : vector<16x64xf32>
    %943 = tpu.matmul %411, %933, %cst_413 {dimension_numbers = #tpu.dot_dimension_numbers<[1], [0], [0], [1], [0, 0, 1, 1], [], []>} : vector<16x32xf32>, vector<32x64xf32>, vector<16x64xf32> -> vector<16x64xf32>
    %944 = vector.broadcast %935 : vector<1x64xf32> to vector<16x64xf32>
    %945 = arith.addf %943, %944 : vector<16x64xf32>
    %946 = vector.extract_strided_slice %945 {offsets = [0, 0], sizes = [16, 32], strides = [1, 1]} : vector<16x64xf32> to vector<16x32xf32>
    %947 = vector.extract_strided_slice %945 {offsets = [0, 32], sizes = [16, 32], strides = [1, 1]} : vector<16x64xf32> to vector<16x32xf32>
    %948 = vector.extract_strided_slice %942 {offsets = [0, 0], sizes = [16, 8], strides = [1, 1]} : vector<16x32xf32> to vector<16x8xf32>
    %949 = vector.shape_cast %948 : vector<16x8xf32> to vector<2x8x8xf32>
    %950 = vector.extract_strided_slice %946 {offsets = [0, 0], sizes = [16, 8], strides = [1, 1]} : vector<16x32xf32> to vector<16x8xf32>
    %951 = vector.shape_cast %950 : vector<16x8xf32> to vector<2x8x8xf32>
    %952 = vector.extract_strided_slice %947 {offsets = [0, 0], sizes = [16, 8], strides = [1, 1]} : vector<16x32xf32> to vector<16x8xf32>
    %953 = vector.shape_cast %952 : vector<16x8xf32> to vector<2x8x8xf32>
    "tpu.trace_start"() <{level = 10 : i32, message = "bqd,bkd->bqk"}> : () -> ()
    %cst_414 = arith.constant dense<0.000000e+00> : vector<2x8x8xf32>
    %954 = tpu.matmul %949, %951, %cst_414 {dimension_numbers = #tpu.dot_dimension_numbers<[2], [2], [1], [1], [0, 0, 0, 1, 1, 1], [0], [0]>} : vector<2x8x8xf32>, vector<2x8x8xf32>, vector<2x8x8xf32> -> vector<2x8x8xf32>
    "tpu.trace_stop"() : () -> ()
    %cst_415 = arith.constant 0.353553385 : f32
    %955 = vector.broadcast %cst_415 : f32 to vector<2x8x8xf32>
    %956 = arith.mulf %954, %955 : vector<2x8x8xf32>
    %cst_416 = arith.constant 0.000000e+00 : f32
    %957 = vector.broadcast %cst_416 : f32 to vector<2x8x8xf32>
    %958 = arith.cmpf one, %4, %957 : vector<2x8x8xf32>
    %cst_417 = arith.constant -1.000000e+09 : f32
    %959 = vector.broadcast %cst_417 : f32 to vector<2x8x8xf32>
    %960 = arith.select %958, %956, %959 : vector<2x8x8xi1>, vector<2x8x8xf32>
    %cst_418 = arith.constant dense<0xFF800000> : vector<2x8xf32>
    %961 = vector.multi_reduction <maximumf>, %960, %cst_418 [2] : vector<2x8x8xf32> to vector<2x8xf32>
    %962 = vector.shape_cast %961 : vector<2x8xf32> to vector<2x8x1xf32>
    %963 = vector.broadcast %962 : vector<2x8x1xf32> to vector<2x8x8xf32>
    %964 = arith.subf %960, %963 : vector<2x8x8xf32>
    %965 = math.exp %964 : vector<2x8x8xf32>
    %cst_419 = arith.constant dense<0.000000e+00> : vector<2x8xf32>
    %966 = vector.multi_reduction <add>, %965, %cst_419 [2] : vector<2x8x8xf32> to vector<2x8xf32>
    %967 = vector.shape_cast %966 : vector<2x8xf32> to vector<2x8x1xf32>
    %968 = tpu.reciprocal %967 : vector<2x8x1xf32> -> vector<2x8x1xf32>
    %969 = vector.broadcast %968 : vector<2x8x1xf32> to vector<2x8x8xf32>
    %970 = arith.mulf %965, %969 : vector<2x8x8xf32>
    "tpu.trace_start"() <{level = 10 : i32, message = "bqk,bkd->bqd"}> : () -> ()
    %cst_420 = arith.constant dense<0.000000e+00> : vector<2x8x8xf32>
    %971 = tpu.matmul %970, %953, %cst_420 {dimension_numbers = #tpu.dot_dimension_numbers<[2], [1], [1], [2], [0, 0, 0, 1, 1, 2], [0], [0]>} : vector<2x8x8xf32>, vector<2x8x8xf32>, vector<2x8x8xf32> -> vector<2x8x8xf32>
    "tpu.trace_stop"() : () -> ()
    %972 = vector.shape_cast %971 : vector<2x8x8xf32> to vector<16x8xf32>
    %973 = vector.extract_strided_slice %942 {offsets = [0, 8], sizes = [16, 8], strides = [1, 1]} : vector<16x32xf32> to vector<16x8xf32>
    %974 = vector.shape_cast %973 : vector<16x8xf32> to vector<2x8x8xf32>
    %975 = vector.extract_strided_slice %946 {offsets = [0, 8], sizes = [16, 8], strides = [1, 1]} : vector<16x32xf32> to vector<16x8xf32>
    %976 = vector.shape_cast %975 : vector<16x8xf32> to vector<2x8x8xf32>
    %977 = vector.extract_strided_slice %947 {offsets = [0, 8], sizes = [16, 8], strides = [1, 1]} : vector<16x32xf32> to vector<16x8xf32>
    %978 = vector.shape_cast %977 : vector<16x8xf32> to vector<2x8x8xf32>
    "tpu.trace_start"() <{level = 10 : i32, message = "bqd,bkd->bqk"}> : () -> ()
    %cst_421 = arith.constant dense<0.000000e+00> : vector<2x8x8xf32>
    %979 = tpu.matmul %974, %976, %cst_421 {dimension_numbers = #tpu.dot_dimension_numbers<[2], [2], [1], [1], [0, 0, 0, 1, 1, 1], [0], [0]>} : vector<2x8x8xf32>, vector<2x8x8xf32>, vector<2x8x8xf32> -> vector<2x8x8xf32>
    "tpu.trace_stop"() : () -> ()
    %cst_422 = arith.constant 0.353553385 : f32
    %980 = vector.broadcast %cst_422 : f32 to vector<2x8x8xf32>
    %981 = arith.mulf %979, %980 : vector<2x8x8xf32>
    %cst_423 = arith.constant 0.000000e+00 : f32
    %982 = vector.broadcast %cst_423 : f32 to vector<2x8x8xf32>
    %983 = arith.cmpf one, %4, %982 : vector<2x8x8xf32>
    %cst_424 = arith.constant -1.000000e+09 : f32
    %984 = vector.broadcast %cst_424 : f32 to vector<2x8x8xf32>
    %985 = arith.select %983, %981, %984 : vector<2x8x8xi1>, vector<2x8x8xf32>
    %cst_425 = arith.constant dense<0xFF800000> : vector<2x8xf32>
    %986 = vector.multi_reduction <maximumf>, %985, %cst_425 [2] : vector<2x8x8xf32> to vector<2x8xf32>
    %987 = vector.shape_cast %986 : vector<2x8xf32> to vector<2x8x1xf32>
    %988 = vector.broadcast %987 : vector<2x8x1xf32> to vector<2x8x8xf32>
    %989 = arith.subf %985, %988 : vector<2x8x8xf32>
    %990 = math.exp %989 : vector<2x8x8xf32>
    %cst_426 = arith.constant dense<0.000000e+00> : vector<2x8xf32>
    %991 = vector.multi_reduction <add>, %990, %cst_426 [2] : vector<2x8x8xf32> to vector<2x8xf32>
    %992 = vector.shape_cast %991 : vector<2x8xf32> to vector<2x8x1xf32>
    %993 = tpu.reciprocal %992 : vector<2x8x1xf32> -> vector<2x8x1xf32>
    %994 = vector.broadcast %993 : vector<2x8x1xf32> to vector<2x8x8xf32>
    %995 = arith.mulf %990, %994 : vector<2x8x8xf32>
    "tpu.trace_start"() <{level = 10 : i32, message = "bqk,bkd->bqd"}> : () -> ()
    %cst_427 = arith.constant dense<0.000000e+00> : vector<2x8x8xf32>
    %996 = tpu.matmul %995, %978, %cst_427 {dimension_numbers = #tpu.dot_dimension_numbers<[2], [1], [1], [2], [0, 0, 0, 1, 1, 2], [0], [0]>} : vector<2x8x8xf32>, vector<2x8x8xf32>, vector<2x8x8xf32> -> vector<2x8x8xf32>
    "tpu.trace_stop"() : () -> ()
    %997 = vector.shape_cast %996 : vector<2x8x8xf32> to vector<16x8xf32>
    %998 = vector.extract_strided_slice %942 {offsets = [0, 16], sizes = [16, 8], strides = [1, 1]} : vector<16x32xf32> to vector<16x8xf32>
    %999 = vector.shape_cast %998 : vector<16x8xf32> to vector<2x8x8xf32>
    %1000 = vector.extract_strided_slice %946 {offsets = [0, 16], sizes = [16, 8], strides = [1, 1]} : vector<16x32xf32> to vector<16x8xf32>
    %1001 = vector.shape_cast %1000 : vector<16x8xf32> to vector<2x8x8xf32>
    %1002 = vector.extract_strided_slice %947 {offsets = [0, 16], sizes = [16, 8], strides = [1, 1]} : vector<16x32xf32> to vector<16x8xf32>
    %1003 = vector.shape_cast %1002 : vector<16x8xf32> to vector<2x8x8xf32>
    "tpu.trace_start"() <{level = 10 : i32, message = "bqd,bkd->bqk"}> : () -> ()
    %cst_428 = arith.constant dense<0.000000e+00> : vector<2x8x8xf32>
    %1004 = tpu.matmul %999, %1001, %cst_428 {dimension_numbers = #tpu.dot_dimension_numbers<[2], [2], [1], [1], [0, 0, 0, 1, 1, 1], [0], [0]>} : vector<2x8x8xf32>, vector<2x8x8xf32>, vector<2x8x8xf32> -> vector<2x8x8xf32>
    "tpu.trace_stop"() : () -> ()
    %cst_429 = arith.constant 0.353553385 : f32
    %1005 = vector.broadcast %cst_429 : f32 to vector<2x8x8xf32>
    %1006 = arith.mulf %1004, %1005 : vector<2x8x8xf32>
    %cst_430 = arith.constant 0.000000e+00 : f32
    %1007 = vector.broadcast %cst_430 : f32 to vector<2x8x8xf32>
    %1008 = arith.cmpf one, %4, %1007 : vector<2x8x8xf32>
    %cst_431 = arith.constant -1.000000e+09 : f32
    %1009 = vector.broadcast %cst_431 : f32 to vector<2x8x8xf32>
    %1010 = arith.select %1008, %1006, %1009 : vector<2x8x8xi1>, vector<2x8x8xf32>
    %cst_432 = arith.constant dense<0xFF800000> : vector<2x8xf32>
    %1011 = vector.multi_reduction <maximumf>, %1010, %cst_432 [2] : vector<2x8x8xf32> to vector<2x8xf32>
    %1012 = vector.shape_cast %1011 : vector<2x8xf32> to vector<2x8x1xf32>
    %1013 = vector.broadcast %1012 : vector<2x8x1xf32> to vector<2x8x8xf32>
    %1014 = arith.subf %1010, %1013 : vector<2x8x8xf32>
    %1015 = math.exp %1014 : vector<2x8x8xf32>
    %cst_433 = arith.constant dense<0.000000e+00> : vector<2x8xf32>
    %1016 = vector.multi_reduction <add>, %1015, %cst_433 [2] : vector<2x8x8xf32> to vector<2x8xf32>
    %1017 = vector.shape_cast %1016 : vector<2x8xf32> to vector<2x8x1xf32>
    %1018 = tpu.reciprocal %1017 : vector<2x8x1xf32> -> vector<2x8x1xf32>
    %1019 = vector.broadcast %1018 : vector<2x8x1xf32> to vector<2x8x8xf32>
    %1020 = arith.mulf %1015, %1019 : vector<2x8x8xf32>
    "tpu.trace_start"() <{level = 10 : i32, message = "bqk,bkd->bqd"}> : () -> ()
    %cst_434 = arith.constant dense<0.000000e+00> : vector<2x8x8xf32>
    %1021 = tpu.matmul %1020, %1003, %cst_434 {dimension_numbers = #tpu.dot_dimension_numbers<[2], [1], [1], [2], [0, 0, 0, 1, 1, 2], [0], [0]>} : vector<2x8x8xf32>, vector<2x8x8xf32>, vector<2x8x8xf32> -> vector<2x8x8xf32>
    "tpu.trace_stop"() : () -> ()
    %1022 = vector.shape_cast %1021 : vector<2x8x8xf32> to vector<16x8xf32>
    %1023 = vector.extract_strided_slice %942 {offsets = [0, 24], sizes = [16, 8], strides = [1, 1]} : vector<16x32xf32> to vector<16x8xf32>
    %1024 = vector.shape_cast %1023 : vector<16x8xf32> to vector<2x8x8xf32>
    %1025 = vector.extract_strided_slice %946 {offsets = [0, 24], sizes = [16, 8], strides = [1, 1]} : vector<16x32xf32> to vector<16x8xf32>
    %1026 = vector.shape_cast %1025 : vector<16x8xf32> to vector<2x8x8xf32>
    %1027 = vector.extract_strided_slice %947 {offsets = [0, 24], sizes = [16, 8], strides = [1, 1]} : vector<16x32xf32> to vector<16x8xf32>
    %1028 = vector.shape_cast %1027 : vector<16x8xf32> to vector<2x8x8xf32>
    "tpu.trace_start"() <{level = 10 : i32, message = "bqd,bkd->bqk"}> : () -> ()
    %cst_435 = arith.constant dense<0.000000e+00> : vector<2x8x8xf32>
    %1029 = tpu.matmul %1024, %1026, %cst_435 {dimension_numbers = #tpu.dot_dimension_numbers<[2], [2], [1], [1], [0, 0, 0, 1, 1, 1], [0], [0]>} : vector<2x8x8xf32>, vector<2x8x8xf32>, vector<2x8x8xf32> -> vector<2x8x8xf32>
    "tpu.trace_stop"() : () -> ()
    %cst_436 = arith.constant 0.353553385 : f32
    %1030 = vector.broadcast %cst_436 : f32 to vector<2x8x8xf32>
    %1031 = arith.mulf %1029, %1030 : vector<2x8x8xf32>
    %cst_437 = arith.constant 0.000000e+00 : f32
    %1032 = vector.broadcast %cst_437 : f32 to vector<2x8x8xf32>
    %1033 = arith.cmpf one, %4, %1032 : vector<2x8x8xf32>
    %cst_438 = arith.constant -1.000000e+09 : f32
    %1034 = vector.broadcast %cst_438 : f32 to vector<2x8x8xf32>
    %1035 = arith.select %1033, %1031, %1034 : vector<2x8x8xi1>, vector<2x8x8xf32>
    %cst_439 = arith.constant dense<0xFF800000> : vector<2x8xf32>
    %1036 = vector.multi_reduction <maximumf>, %1035, %cst_439 [2] : vector<2x8x8xf32> to vector<2x8xf32>
    %1037 = vector.shape_cast %1036 : vector<2x8xf32> to vector<2x8x1xf32>
    %1038 = vector.broadcast %1037 : vector<2x8x1xf32> to vector<2x8x8xf32>
    %1039 = arith.subf %1035, %1038 : vector<2x8x8xf32>
    %1040 = math.exp %1039 : vector<2x8x8xf32>
    %cst_440 = arith.constant dense<0.000000e+00> : vector<2x8xf32>
    %1041 = vector.multi_reduction <add>, %1040, %cst_440 [2] : vector<2x8x8xf32> to vector<2x8xf32>
    %1042 = vector.shape_cast %1041 : vector<2x8xf32> to vector<2x8x1xf32>
    %1043 = tpu.reciprocal %1042 : vector<2x8x1xf32> -> vector<2x8x1xf32>
    %1044 = vector.broadcast %1043 : vector<2x8x1xf32> to vector<2x8x8xf32>
    %1045 = arith.mulf %1040, %1044 : vector<2x8x8xf32>
    "tpu.trace_start"() <{level = 10 : i32, message = "bqk,bkd->bqd"}> : () -> ()
    %cst_441 = arith.constant dense<0.000000e+00> : vector<2x8x8xf32>
    %1046 = tpu.matmul %1045, %1028, %cst_441 {dimension_numbers = #tpu.dot_dimension_numbers<[2], [1], [1], [2], [0, 0, 0, 1, 1, 2], [0], [0]>} : vector<2x8x8xf32>, vector<2x8x8xf32>, vector<2x8x8xf32> -> vector<2x8x8xf32>
    "tpu.trace_stop"() : () -> ()
    %1047 = vector.shape_cast %1046 : vector<2x8x8xf32> to vector<16x8xf32>
    %1048 = tpu.concatenate %972, %997, %1022, %1047 in 1 : vector<16x8xf32>, vector<16x8xf32>, vector<16x8xf32>, vector<16x8xf32> -> vector<16x32xf32>
    %cst_442 = arith.constant dense<0.000000e+00> : vector<16x32xf32>
    %1049 = tpu.matmul %1048, %937, %cst_442 {dimension_numbers = #tpu.dot_dimension_numbers<[1], [0], [0], [1], [0, 0, 1, 1], [], []>} : vector<16x32xf32>, vector<32x32xf32>, vector<16x32xf32> -> vector<16x32xf32>
    %1050 = vector.broadcast %939 : vector<1x32xf32> to vector<16x32xf32>
    %1051 = arith.addf %1049, %1050 : vector<16x32xf32>
    %1052 = arith.addf %900, %1051 : vector<16x32xf32>
    %c1_443 = arith.constant 1 : index
    %c2_444 = arith.constant 2 : index
    %c0_445 = arith.constant 0 : index
    %c0_446 = arith.constant 0 : index
    %1053 = vector.load %arg30[%c1_443, %c2_444, %c0_445, %c0_446] : memref<2x3x1x32xf32, #tpu.memory_space<vmem>>, vector<1x1x1x32xf32>
    %1054 = vector.shape_cast %1053 : vector<1x1x1x32xf32> to vector<1x32xf32>
    %c1_447 = arith.constant 1 : index
    %c2_448 = arith.constant 2 : index
    %c0_449 = arith.constant 0 : index
    %c0_450 = arith.constant 0 : index
    %1055 = vector.load %arg31[%c1_447, %c2_448, %c0_449, %c0_450] : memref<2x3x1x32xf32, #tpu.memory_space<vmem>>, vector<1x1x1x32xf32>
    %1056 = vector.shape_cast %1055 : vector<1x1x1x32xf32> to vector<1x32xf32>
    %cst_451 = arith.constant dense<0.000000e+00> : vector<16xf32>
    %1057 = vector.multi_reduction <add>, %1052, %cst_451 [1] : vector<16x32xf32> to vector<16xf32>
    %1058 = vector.shape_cast %1057 : vector<16xf32> to vector<16x1xf32>
    %cst_452 = arith.constant 3.200000e+01 : f32
    %1059 = vector.broadcast %cst_452 : f32 to vector<16x1xf32>
    %1060 = arith.divf %1058, %1059 : vector<16x1xf32>
    %1061 = vector.broadcast %1060 : vector<16x1xf32> to vector<16x32xf32>
    %1062 = arith.subf %1052, %1061 : vector<16x32xf32>
    %1063 = arith.mulf %1062, %1062 : vector<16x32xf32>
    %cst_453 = arith.constant dense<0.000000e+00> : vector<16xf32>
    %1064 = vector.multi_reduction <add>, %1063, %cst_453 [1] : vector<16x32xf32> to vector<16xf32>
    %1065 = vector.shape_cast %1064 : vector<16xf32> to vector<16x1xf32>
    %cst_454 = arith.constant 0.0322580636 : f32
    %1066 = vector.broadcast %cst_454 : f32 to vector<16x1xf32>
    %1067 = arith.mulf %1065, %1066 : vector<16x1xf32>
    %1068 = math.sqrt %1067 : vector<16x1xf32>
    %1069 = vector.broadcast %1060 : vector<16x1xf32> to vector<16x32xf32>
    %1070 = arith.subf %1052, %1069 : vector<16x32xf32>
    %1071 = vector.broadcast %1054 : vector<1x32xf32> to vector<16x32xf32>
    %1072 = arith.mulf %1071, %1070 : vector<16x32xf32>
    %cst_455 = arith.constant 9.99999997E-7 : f32
    %1073 = vector.broadcast %cst_455 : f32 to vector<16x1xf32>
    %1074 = arith.addf %1068, %1073 : vector<16x1xf32>
    %1075 = tpu.reciprocal %1074 : vector<16x1xf32> -> vector<16x1xf32>
    %1076 = vector.broadcast %1075 : vector<16x1xf32> to vector<16x32xf32>
    %1077 = arith.mulf %1072, %1076 : vector<16x32xf32>
    %1078 = vector.broadcast %1056 : vector<1x32xf32> to vector<16x32xf32>
    %1079 = arith.addf %1077, %1078 : vector<16x32xf32>
    %c1_456 = arith.constant 1 : index
    %c0_457 = arith.constant 0 : index
    %c0_458 = arith.constant 0 : index
    %1080 = vector.load %arg26[%c1_456, %c0_457, %c0_458] : memref<2x32x64xf32, #tpu.memory_space<vmem>>, vector<1x32x64xf32>
    %1081 = vector.shape_cast %1080 : vector<1x32x64xf32> to vector<32x64xf32>
    %c1_459 = arith.constant 1 : index
    %c0_460 = arith.constant 0 : index
    %c0_461 = arith.constant 0 : index
    %1082 = vector.load %arg27[%c1_459, %c0_460, %c0_461] : memref<2x1x64xf32, #tpu.memory_space<vmem>>, vector<1x1x64xf32>
    %1083 = vector.shape_cast %1082 : vector<1x1x64xf32> to vector<1x64xf32>
    %c1_462 = arith.constant 1 : index
    %c0_463 = arith.constant 0 : index
    %c0_464 = arith.constant 0 : index
    %1084 = vector.load %arg28[%c1_462, %c0_463, %c0_464] : memref<2x64x32xf32, #tpu.memory_space<vmem>>, vector<1x64x32xf32>
    %1085 = vector.shape_cast %1084 : vector<1x64x32xf32> to vector<64x32xf32>
    %c1_465 = arith.constant 1 : index
    %c0_466 = arith.constant 0 : index
    %c0_467 = arith.constant 0 : index
    %1086 = vector.load %arg29[%c1_465, %c0_466, %c0_467] : memref<2x1x32xf32, #tpu.memory_space<vmem>>, vector<1x1x32xf32>
    %1087 = vector.shape_cast %1086 : vector<1x1x32xf32> to vector<1x32xf32>
    %cst_468 = arith.constant dense<0.000000e+00> : vector<16x64xf32>
    %1088 = tpu.matmul %1079, %1081, %cst_468 {dimension_numbers = #tpu.dot_dimension_numbers<[1], [0], [0], [1], [0, 0, 1, 1], [], []>} : vector<16x32xf32>, vector<32x64xf32>, vector<16x64xf32> -> vector<16x64xf32>
    %1089 = vector.broadcast %1083 : vector<1x64xf32> to vector<16x64xf32>
    %1090 = arith.addf %1088, %1089 : vector<16x64xf32>
    %cst_469 = arith.constant 0.000000e+00 : f32
    %1091 = vector.broadcast %cst_469 : f32 to vector<16x64xf32>
    %1092 = arith.maximumf %1090, %1091 : vector<16x64xf32>
    %cst_470 = arith.constant dense<0.000000e+00> : vector<16x32xf32>
    %1093 = tpu.matmul %1092, %1085, %cst_470 {dimension_numbers = #tpu.dot_dimension_numbers<[1], [0], [0], [1], [0, 0, 1, 1], [], []>} : vector<16x64xf32>, vector<64x32xf32>, vector<16x32xf32> -> vector<16x32xf32>
    %1094 = vector.broadcast %1087 : vector<1x32xf32> to vector<16x32xf32>
    %1095 = arith.addf %1093, %1094 : vector<16x32xf32>
    %1096 = arith.addf %1052, %1095 : vector<16x32xf32>
    %c0_471 = arith.constant 0 : index
    %c0_472 = arith.constant 0 : index
    %1097 = vector.load %arg32[%c0_471, %c0_472] : memref<1x32xf32, #tpu.memory_space<vmem>>, vector<1x32xf32>
    %c0_473 = arith.constant 0 : index
    %c0_474 = arith.constant 0 : index
    %1098 = vector.load %arg33[%c0_473, %c0_474] : memref<1x32xf32, #tpu.memory_space<vmem>>, vector<1x32xf32>
    %cst_475 = arith.constant dense<0.000000e+00> : vector<16xf32>
    %1099 = vector.multi_reduction <add>, %1096, %cst_475 [1] : vector<16x32xf32> to vector<16xf32>
    %1100 = vector.shape_cast %1099 : vector<16xf32> to vector<16x1xf32>
    %cst_476 = arith.constant 3.200000e+01 : f32
    %1101 = vector.broadcast %cst_476 : f32 to vector<16x1xf32>
    %1102 = arith.divf %1100, %1101 : vector<16x1xf32>
    %1103 = vector.broadcast %1102 : vector<16x1xf32> to vector<16x32xf32>
    %1104 = arith.subf %1096, %1103 : vector<16x32xf32>
    %1105 = arith.mulf %1104, %1104 : vector<16x32xf32>
    %cst_477 = arith.constant dense<0.000000e+00> : vector<16xf32>
    %1106 = vector.multi_reduction <add>, %1105, %cst_477 [1] : vector<16x32xf32> to vector<16xf32>
    %1107 = vector.shape_cast %1106 : vector<16xf32> to vector<16x1xf32>
    %cst_478 = arith.constant 0.0322580636 : f32
    %1108 = vector.broadcast %cst_478 : f32 to vector<16x1xf32>
    %1109 = arith.mulf %1107, %1108 : vector<16x1xf32>
    %1110 = math.sqrt %1109 : vector<16x1xf32>
    %1111 = vector.broadcast %1102 : vector<16x1xf32> to vector<16x32xf32>
    %1112 = arith.subf %1096, %1111 : vector<16x32xf32>
    %1113 = vector.broadcast %1097 : vector<1x32xf32> to vector<16x32xf32>
    %1114 = arith.mulf %1113, %1112 : vector<16x32xf32>
    %cst_479 = arith.constant 9.99999997E-7 : f32
    %1115 = vector.broadcast %cst_479 : f32 to vector<16x1xf32>
    %1116 = arith.addf %1110, %1115 : vector<16x1xf32>
    %1117 = tpu.reciprocal %1116 : vector<16x1xf32> -> vector<16x1xf32>
    %1118 = vector.broadcast %1117 : vector<16x1xf32> to vector<16x32xf32>
    %1119 = arith.mulf %1114, %1118 : vector<16x32xf32>
    %1120 = vector.broadcast %1098 : vector<1x32xf32> to vector<16x32xf32>
    %1121 = arith.addf %1119, %1120 : vector<16x32xf32>
    %c0_480 = arith.constant 0 : index
    %c0_481 = arith.constant 0 : index
    %1122 = vector.load %arg34[%c0_480, %c0_481] : memref<32x16xf32, #tpu.memory_space<vmem>>, vector<32x16xf32>
    %c0_482 = arith.constant 0 : index
    %c0_483 = arith.constant 0 : index
    %1123 = vector.load %arg35[%c0_482, %c0_483] : memref<1x16xf32, #tpu.memory_space<vmem>>, vector<1x16xf32>
    %cst_484 = arith.constant dense<0.000000e+00> : vector<16x16xf32>
    %1124 = tpu.matmul %1121, %1122, %cst_484 {dimension_numbers = #tpu.dot_dimension_numbers<[1], [0], [0], [1], [0, 0, 1, 1], [], []>} : vector<16x32xf32>, vector<32x16xf32>, vector<16x16xf32> -> vector<16x16xf32>
    %1125 = vector.broadcast %1123 : vector<1x16xf32> to vector<16x16xf32>
    %1126 = arith.addf %1124, %1125 : vector<16x16xf32>
    %cst_485 = arith.constant dense<0xFF800000> : vector<16xf32>
    %1127 = vector.multi_reduction <maximumf>, %1126, %cst_485 [1] : vector<16x16xf32> to vector<16xf32>
    %1128 = vector.shape_cast %1127 : vector<16xf32> to vector<16x1xf32>
    %1129 = vector.broadcast %1128 : vector<16x1xf32> to vector<16x16xf32>
    %1130 = arith.subf %1126, %1129 : vector<16x16xf32>
    %1131 = math.exp %1130 : vector<16x16xf32>
    %cst_486 = arith.constant dense<0.000000e+00> : vector<16xf32>
    %1132 = vector.multi_reduction <add>, %1131, %cst_486 [1] : vector<16x16xf32> to vector<16xf32>
    %1133 = vector.shape_cast %1132 : vector<16xf32> to vector<16x1xf32>
    %1134 = math.log %1133 : vector<16x1xf32>
    %1135 = arith.addf %1134, %1128 : vector<16x1xf32>
    %1136 = vector.broadcast %1135 : vector<16x1xf32> to vector<16x16xf32>
    %1137 = arith.subf %1126, %1136 : vector<16x16xf32>
    %c0_487 = arith.constant 0 : index
    %c0_488 = arith.constant 0 : index
    %1138 = vector.load %arg36[%c0_487, %c0_488] : memref<16x16xf32, #tpu.memory_space<vmem>>, vector<16x16xf32>
    tpu.vector_store %arg36[%c0_487, %c0_488], %1137 {strides = array<i32>} : memref<16x16xf32, #tpu.memory_space<vmem>>, vector<16x16xf32>,
    return
  }
}

</mosaic_0001>

<llo_original>
// kernel: encoder_decoder_forward.1
$region0: #{encoder_decoder_forward.1}
  #allocation0 [shape = 'u32[]', space=smem, size = 0x4, offset = 0x4, fixed_abs, tag = 'smem constant byte address 0x4 - core index']
  #allocation1 [shape = 'u32[72,128]{1,0:T(1,128)}', space=vmem, size = 0x9000, scoped, tag = 'internal scratch']
  %s0 = inlined_call_operand.smem [shape: u32[37], index: -1, kind: input, shape index: {}]
  %s1 = sld [smem:[%s0]]
  %s2 = scalar_lea.smem %s0, 1
  %s3 = sld [smem:[%s2]]
  %s4 = scalar_lea.smem %s0, 2
  %s5 = sld [smem:[%s4]]
  %s6 = scalar_lea.smem %s0, 3
  %s7 = sld [smem:[%s6]]
  %s8 = scalar_lea.smem %s0, 4
  %s9 = sld [smem:[%s8]]
  %s10 = scalar_lea.smem %s0, 5
  %s11 = sld [smem:[%s10]]
  %s12 = scalar_lea.smem %s0, 6
  %s13 = sld [smem:[%s12]]
  %s14 = scalar_lea.smem %s0, 7
  %s15 = sld [smem:[%s14]]
  %s16 = scalar_lea.smem %s0, 8
  %s17 = sld [smem:[%s16]]
  %s18 = scalar_lea.smem %s0, 9
  %s19 = sld [smem:[%s18]]
  %s20 = scalar_lea.smem %s0, 10
  %s21 = sld [smem:[%s20]]
  %s22 = scalar_lea.smem %s0, 11
  %s23 = sld [smem:[%s22]]
  %s24 = scalar_lea.smem %s0, 12
  %s25 = sld [smem:[%s24]]
  %s26 = scalar_lea.smem %s0, 13
  %s27 = sld [smem:[%s26]]
  %s28 = scalar_lea.smem %s0, 14
  %s29 = sld [smem:[%s28]]
  %s30 = scalar_lea.smem %s0, 15
  %s31 = sld [smem:[%s30]]
  %s32 = scalar_lea.smem %s0, 16
  %s33 = sld [smem:[%s32]]
  %s34 = scalar_lea.smem %s0, 17
  %s35 = sld [smem:[%s34]]
  %s36 = scalar_lea.smem %s0, 18
  %s37 = sld [smem:[%s36]]
  %s38 = scalar_lea.smem %s0, 19
  %s39 = sld [smem:[%s38]]
  %s40 = scalar_lea.smem %s0, 20
  %s41 = sld [smem:[%s40]]
  %s42 = scalar_lea.smem %s0, 21
  %s43 = sld [smem:[%s42]]
  %s44 = scalar_lea.smem %s0, 22
  %s45 = sld [smem:[%s44]]
  %s46 = scalar_lea.smem %s0, 23
  %s47 = sld [smem:[%s46]]
  %s48 = scalar_lea.smem %s0, 24
  %s49 = sld [smem:[%s48]]
  %s50 = scalar_lea.smem %s0, 25
  %s51 = sld [smem:[%s50]]
  %s52 = scalar_lea.smem %s0, 26
  %s53 = sld [smem:[%s52]]
  %s54 = scalar_lea.smem %s0, 27
  %s55 = sld [smem:[%s54]]
  %s56 = scalar_lea.smem %s0, 28
  %s57 = sld [smem:[%s56]]
  %s58 = scalar_lea.smem %s0, 29
  %s59 = sld [smem:[%s58]]
  %s60 = scalar_lea.smem %s0, 30
  %s61 = sld [smem:[%s60]]
  %s62 = scalar_lea.smem %s0, 31
  %s63 = sld [smem:[%s62]]
  %s64 = scalar_lea.smem %s0, 32
  %s65 = sld [smem:[%s64]]
  %s66 = scalar_lea.smem %s0, 33
  %s67 = sld [smem:[%s66]]
  %s68 = scalar_lea.smem %s0, 34
  %s69 = sld [smem:[%s68]]
  %s70 = scalar_lea.smem %s0, 35
  %s71 = sld [smem:[%s70]]
  %s72 = scalar_lea.smem %s0, 36
  %s73 = sld [smem:[%s72]]
  %s74 = sld [smem:[#allocation0]]
  $region154: #{encoder_decoder_forward.1} parent=0
    _
  %s76 = ssub.s32 1, %s74
  %s77 = scalar_select 0, %s76, %s74
  $region1: #{encoder_decoder_forward.1} parent=0
    #allocation2 [shape = 'u8[8192]{0}', space=vmem, size = 0x2000, scoped, tag = 'output window, operand 0, single buffered']
    #allocation3 [shape = 's32[1]{0}', space=sflag, size = 0x4, scoped, tag = 'scoped memory for encoder_decoder_forward.1']
    %78 = vsyncpa [#allocation3], 0
    // Predicated region
    $region2: #{encoder_decoder_forward.1} parent=1 // pred_check
      _
    $region3: #{encoder_decoder_forward.1} parent=1 // pred_check_branch
      %80 = sbr.rel (0) target = $region5
    $region4: #{encoder_decoder_forward.1} parent=1 // pred_region
      _
    $region5: #{encoder_decoder_forward.1} parent=1 // pred_fallthru
      _
    // Predicated region
    $region6: #{encoder_decoder_forward.1} parent=1 // pred_check
      _
    $region7: #{encoder_decoder_forward.1} parent=1 // pred_check_branch
      %82 = sbr.rel (0) target = $region9
    $region8: #{encoder_decoder_forward.1} parent=1 // pred_region
      _
    $region9: #{encoder_decoder_forward.1} parent=1 // pred_fallthru
      _
    // Predicated region
    $region10: #{encoder_decoder_forward.1} parent=1 // pred_check
      _
    $region11: #{encoder_decoder_forward.1} parent=1 // pred_check_branch
      %84 = sbr.rel (0) target = $region13
    $region12: #{encoder_decoder_forward.1} parent=1 // pred_region
      _
    $region13: #{encoder_decoder_forward.1} parent=1 // pred_fallthru
      _
    // Predicated region
    $region14: #{encoder_decoder_forward.1} parent=1 // pred_check
      _
    $region15: #{encoder_decoder_forward.1} parent=1 // pred_check_branch
      %86 = sbr.rel (0) target = $region17
    $region16: #{encoder_decoder_forward.1} parent=1 // pred_region
      _
    $region17: #{encoder_decoder_forward.1} parent=1 // pred_fallthru
      _
    // Predicated region
    $region18: #{encoder_decoder_forward.1} parent=1 // pred_check
      _
    $region19: #{encoder_decoder_forward.1} parent=1 // pred_check_branch
      %88 = sbr.rel (0) target = $region21
    $region20: #{encoder_decoder_forward.1} parent=1 // pred_region
      _
    $region21: #{encoder_decoder_forward.1} parent=1 // pred_fallthru
      _
    // Predicated region
    $region22: #{encoder_decoder_forward.1} parent=1 // pred_check
      _
    $region23: #{encoder_decoder_forward.1} parent=1 // pred_check_branch
      %90 = sbr.rel (0) target = $region25
    $region24: #{encoder_decoder_forward.1} parent=1 // pred_region
      _
    $region25: #{encoder_decoder_forward.1} parent=1 // pred_fallthru
      _
    // Predicated region
    $region26: #{encoder_decoder_forward.1} parent=1 // pred_check
      _
    $region27: #{encoder_decoder_forward.1} parent=1 // pred_check_branch
      %92 = sbr.rel (0) target = $region29
    $region28: #{encoder_decoder_forward.1} parent=1 // pred_region
      _
    $region29: #{encoder_decoder_forward.1} parent=1 // pred_fallthru
      _
    // Predicated region
    $region30: #{encoder_decoder_forward.1} parent=1 // pred_check
      _
    $region31: #{encoder_decoder_forward.1} parent=1 // pred_check_branch
      %94 = sbr.rel (0) target = $region33
    $region32: #{encoder_decoder_forward.1} parent=1 // pred_region
      _
    $region33: #{encoder_decoder_forward.1} parent=1 // pred_fallthru
      _
    // Predicated region
    $region34: #{encoder_decoder_forward.1} parent=1 // pred_check
      _
    $region35: #{encoder_decoder_forward.1} parent=1 // pred_check_branch
      %96 = sbr.rel (0) target = $region37
    $region36: #{encoder_decoder_forward.1} parent=1 // pred_region
      _
    $region37: #{encoder_decoder_forward.1} parent=1 // pred_fallthru
      _
    // Predicated region
    $region38: #{encoder_decoder_forward.1} parent=1 // pred_check
      _
    $region39: #{encoder_decoder_forward.1} parent=1 // pred_check_branch
      %98 = sbr.rel (0) target = $region41
    $region40: #{encoder_decoder_forward.1} parent=1 // pred_region
      _
    $region41: #{encoder_decoder_forward.1} parent=1 // pred_fallthru
      _
    // Predicated region
    $region42: #{encoder_decoder_forward.1} parent=1 // pred_check
      _
    $region43: #{encoder_decoder_forward.1} parent=1 // pred_check_branch
      %100 = sbr.rel (0) target = $region45
    $region44: #{encoder_decoder_forward.1} parent=1 // pred_region
      _
    $region45: #{encoder_decoder_forward.1} parent=1 // pred_fallthru
      _
    // Predicated region
    $region46: #{encoder_decoder_forward.1} parent=1 // pred_check
      _
    $region47: #{encoder_decoder_forward.1} parent=1 // pred_check_branch
      %102 = sbr.rel (0) target = $region49
    $region48: #{encoder_decoder_forward.1} parent=1 // pred_region
      _
    $region49: #{encoder_decoder_forward.1} parent=1 // pred_fallthru
      _
    // Predicated region
    $region50: #{encoder_decoder_forward.1} parent=1 // pred_check
      _
    $region51: #{encoder_decoder_forward.1} parent=1 // pred_check_branch
      %104 = sbr.rel (0) target = $region53
    $region52: #{encoder_decoder_forward.1} parent=1 // pred_region
      _
    $region53: #{encoder_decoder_forward.1} parent=1 // pred_fallthru
      _
    // Predicated region
    $region54: #{encoder_decoder_forward.1} parent=1 // pred_check
      _
    $region55: #{encoder_decoder_forward.1} parent=1 // pred_check_branch
      %106 = sbr.rel (0) target = $region57
    $region56: #{encoder_decoder_forward.1} parent=1 // pred_region
      _
    $region57: #{encoder_decoder_forward.1} parent=1 // pred_fallthru
      _
    // Predicated region
    $region58: #{encoder_decoder_forward.1} parent=1 // pred_check
      _
    $region59: #{encoder_decoder_forward.1} parent=1 // pred_check_branch
      %108 = sbr.rel (0) target = $region61
    $region60: #{encoder_decoder_forward.1} parent=1 // pred_region
      _
    $region61: #{encoder_decoder_forward.1} parent=1 // pred_fallthru
      _
    // Predicated region
    $region62: #{encoder_decoder_forward.1} parent=1 // pred_check
      _
    $region63: #{encoder_decoder_forward.1} parent=1 // pred_check_branch
      %110 = sbr.rel (0) target = $region65
    $region64: #{encoder_decoder_forward.1} parent=1 // pred_region
      _
    $region65: #{encoder_decoder_forward.1} parent=1 // pred_fallthru
      _
    // Predicated region
    $region66: #{encoder_decoder_forward.1} parent=1 // pred_check
      _
    $region67: #{encoder_decoder_forward.1} parent=1 // pred_check_branch
      %112 = sbr.rel (0) target = $region69
    $region68: #{encoder_decoder_forward.1} parent=1 // pred_region
      _
    $region69: #{encoder_decoder_forward.1} parent=1 // pred_fallthru
      _
    // Predicated region
    $region70: #{encoder_decoder_forward.1} parent=1 // pred_check
      _
    $region71: #{encoder_decoder_forward.1} parent=1 // pred_check_branch
      %114 = sbr.rel (0) target = $region73
    $region72: #{encoder_decoder_forward.1} parent=1 // pred_region
      _
    $region73: #{encoder_decoder_forward.1} parent=1 // pred_fallthru
      _
    // Predicated region
    $region74: #{encoder_decoder_forward.1} parent=1 // pred_check
      _
    $region75: #{encoder_decoder_forward.1} parent=1 // pred_check_branch
      %116 = sbr.rel (0) target = $region77
    $region76: #{encoder_decoder_forward.1} parent=1 // pred_region
      _
    $region77: #{encoder_decoder_forward.1} parent=1 // pred_fallthru
      _
    // Predicated region
    $region78: #{encoder_decoder_forward.1} parent=1 // pred_check
      _
    $region79: #{encoder_decoder_forward.1} parent=1 // pred_check_branch
      %118 = sbr.rel (0) target = $region81
    $region80: #{encoder_decoder_forward.1} parent=1 // pred_region
      _
    $region81: #{encoder_decoder_forward.1} parent=1 // pred_fallthru
      _
    // Predicated region
    $region82: #{encoder_decoder_forward.1} parent=1 // pred_check
      _
    $region83: #{encoder_decoder_forward.1} parent=1 // pred_check_branch
      %120 = sbr.rel (0) target = $region85
    $region84: #{encoder_decoder_forward.1} parent=1 // pred_region
      _
    $region85: #{encoder_decoder_forward.1} parent=1 // pred_fallthru
      _
    // Predicated region
    $region86: #{encoder_decoder_forward.1} parent=1 // pred_check
      _
    $region87: #{encoder_decoder_forward.1} parent=1 // pred_check_branch
      %122 = sbr.rel (0) target = $region89
    $region88: #{encoder_decoder_forward.1} parent=1 // pred_region
      _
    $region89: #{encoder_decoder_forward.1} parent=1 // pred_fallthru
      _
    // Predicated region
    $region90: #{encoder_decoder_forward.1} parent=1 // pred_check
      _
    $region91: #{encoder_decoder_forward.1} parent=1 // pred_check_branch
      %124 = sbr.rel (0) target = $region93
    $region92: #{encoder_decoder_forward.1} parent=1 // pred_region
      _
    $region93: #{encoder_decoder_forward.1} parent=1 // pred_fallthru
      _
    // Predicated region
    $region94: #{encoder_decoder_forward.1} parent=1 // pred_check
      _
    $region95: #{encoder_decoder_forward.1} parent=1 // pred_check_branch
      %126 = sbr.rel (0) target = $region97
    $region96: #{encoder_decoder_forward.1} parent=1 // pred_region
      _
    $region97: #{encoder_decoder_forward.1} parent=1 // pred_fallthru
      _
    // Predicated region
    $region98: #{encoder_decoder_forward.1} parent=1 // pred_check
      _
    $region99: #{encoder_decoder_forward.1} parent=1 // pred_check_branch
      %128 = sbr.rel (0) target = $region101
    $region100: #{encoder_decoder_forward.1} parent=1 // pred_region
      _
    $region101: #{encoder_decoder_forward.1} parent=1 // pred_fallthru
      _
    // Predicated region
    $region102: #{encoder_decoder_forward.1} parent=1 // pred_check
      _
    $region103: #{encoder_decoder_forward.1} parent=1 // pred_check_branch
      %130 = sbr.rel (0) target = $region105
    $region104: #{encoder_decoder_forward.1} parent=1 // pred_region
      _
    $region105: #{encoder_decoder_forward.1} parent=1 // pred_fallthru
      _
    // Predicated region
    $region106: #{encoder_decoder_forward.1} parent=1 // pred_check
      _
    $region107: #{encoder_decoder_forward.1} parent=1 // pred_check_branch
      %132 = sbr.rel (0) target = $region109
    $region108: #{encoder_decoder_forward.1} parent=1 // pred_region
      _
    $region109: #{encoder_decoder_forward.1} parent=1 // pred_fallthru
      _
    // Predicated region
    $region110: #{encoder_decoder_forward.1} parent=1 // pred_check
      _
    $region111: #{encoder_decoder_forward.1} parent=1 // pred_check_branch
      %134 = sbr.rel (0) target = $region113
    $region112: #{encoder_decoder_forward.1} parent=1 // pred_region
      _
    $region113: #{encoder_decoder_forward.1} parent=1 // pred_fallthru
      _
    // Predicated region
    $region114: #{encoder_decoder_forward.1} parent=1 // pred_check
      _
    $region115: #{encoder_decoder_forward.1} parent=1 // pred_check_branch
      %136 = sbr.rel (0) target = $region117
    $region116: #{encoder_decoder_forward.1} parent=1 // pred_region
      _
    $region117: #{encoder_decoder_forward.1} parent=1 // pred_fallthru
      _
    // Predicated region
    $region118: #{encoder_decoder_forward.1} parent=1 // pred_check
      _
    $region119: #{encoder_decoder_forward.1} parent=1 // pred_check_branch
      %138 = sbr.rel (0) target = $region121
    $region120: #{encoder_decoder_forward.1} parent=1 // pred_region
      _
    $region121: #{encoder_decoder_forward.1} parent=1 // pred_fallthru
      _
    // Predicated region
    $region122: #{encoder_decoder_forward.1} parent=1 // pred_check
      _
    $region123: #{encoder_decoder_forward.1} parent=1 // pred_check_branch
      %140 = sbr.rel (0) target = $region125
    $region124: #{encoder_decoder_forward.1} parent=1 // pred_region
      _
    $region125: #{encoder_decoder_forward.1} parent=1 // pred_fallthru
      _
    // Predicated region
    $region126: #{encoder_decoder_forward.1} parent=1 // pred_check
      _
    $region127: #{encoder_decoder_forward.1} parent=1 // pred_check_branch
      %142 = sbr.rel (0) target = $region129
    $region128: #{encoder_decoder_forward.1} parent=1 // pred_region
      _
    $region129: #{encoder_decoder_forward.1} parent=1 // pred_fallthru
      _
    // Predicated region
    $region130: #{encoder_decoder_forward.1} parent=1 // pred_check
      _
    $region131: #{encoder_decoder_forward.1} parent=1 // pred_check_branch
      %144 = sbr.rel (0) target = $region133
    $region132: #{encoder_decoder_forward.1} parent=1 // pred_region
      _
    $region133: #{encoder_decoder_forward.1} parent=1 // pred_fallthru
      _
    // Predicated region
    $region134: #{encoder_decoder_forward.1} parent=1 // pred_check
      _
    $region135: #{encoder_decoder_forward.1} parent=1 // pred_check_branch
      %146 = sbr.rel (0) target = $region137
    $region136: #{encoder_decoder_forward.1} parent=1 // pred_region
      _
    $region137: #{encoder_decoder_forward.1} parent=1 // pred_fallthru
      _
    // Predicated region
    $region138: #{encoder_decoder_forward.1} parent=1 // pred_check
      _
    $region139: #{encoder_decoder_forward.1} parent=1 // pred_check_branch
      %148 = sbr.rel (0) target = $region141
    $region140: #{encoder_decoder_forward.1} parent=1 // pred_region
      _
    $region141: #{encoder_decoder_forward.1} parent=1 // pred_fallthru
      _
    // Predicated region
    $region142: #{encoder_decoder_forward.1} parent=1 // pred_check
      _
    $region143: #{encoder_decoder_forward.1} parent=1 // pred_check_branch
      %150 = sbr.rel (0) target = $region145
    $region144: #{encoder_decoder_forward.1} parent=1 // pred_region
      _
    $region145: #{encoder_decoder_forward.1} parent=1 // pred_fallthru
      _
    %v151 = vld [vmem:[%s5] sm:$0x1]
    %v152 = vld [vmem:[%s5 + $0x1] sm:$0x1]
    %v155 = vperm.slane %v151, 0
    %v156 = vperm.slane %v152, 0
    %v159 = vld [vmem:[%s7] sm:$0xff]
    %v160 = vld [vmem:[%s7 + $0x8] sm:$0xff]
    %v161 = vld [vmem:[%s1] sm:$0xff]
    %v162 = vld [vmem:[%s1 + $0x8] sm:$0xff]
    %v163 = vld [vmem:[%s25] sm:$0x1]
    %v164 = vld [vmem:[%s27] sm:$0x1]
    %vm165 = vcmask 261120
    %v166 = vsel %vm165, %v161, 0.0
    %167 = vadd.xlane.f32.xlu0 %v166
    %v168 = vpop.xlane.xlu0 %167
    %v169 = vsel %vm165, %v162, 0.0
    %170 = vadd.xlane.f32.xlu0 %v169
    %v171 = vpop.xlane.xlu0 %170
    %v172 = vrcp.pop 32.0
    %v173 = vmul.f32 32.0, %v172
    %v174 = vsub.f32 1.0, %v173
    %v175 = vmul.f32 %v172, %v174
    %v176 = vadd.f32 %v172, %v175
    %vm177 = vweird.f32 %v172
    %v178 = vsel %vm177, %v172, %v176
    %v179 = vmul.f32 %v168, %v178
    %v180 = vmul.f32 %v171, %v178
    %v181 = vsub.f32 %v161, %v179
    %v182 = vsub.f32 %v162, %v180
    %v183 = vmul.f32 %v181, %v181
    %v184 = vmul.f32 %v182, %v182
    %v185 = vsel %vm165, %v183, 0.0
    %186 = vadd.xlane.f32.xlu0 %v185
    %v187 = vpop.xlane.xlu0 %186
    %v188 = vsel %vm165, %v184, 0.0
    %189 = vadd.xlane.f32.xlu0 %v188
    %v190 = vpop.xlane.xlu0 %189
    %v191 = vmul.f32 %v187, 0.032258064
    %v192 = vmul.f32 %v190, 0.032258064
    %v193 = vrsqrt.pop %v191
    %v194 = vmul.f32 %v193, %v191
    %v195 = vmul.f32 %v194, %v193
    %v196 = vmul.f32 0.5, %v195
    %v197 = vsub.f32 1.5, %v196
    %v198 = vmul.f32 %v193, %v197
    %v199 = vmul.f32 %v191, %v198
    %vm200 = vcmp.eq.f32.partialorder %v191, inf
    %v201 = vsel %vm200, %v191, %v199
    %vm202 = vcmp.eq.f32.partialorder %v191, 0.0
    %v203 = vand.u32 %v191, 2147483648
    %v204 = vsel %vm202, %v203, %v201
    %v205 = vrsqrt.pop %v192
    %v206 = vmul.f32 %v205, %v192
    %v207 = vmul.f32 %v206, %v205
    %v208 = vmul.f32 0.5, %v207
    %v209 = vsub.f32 1.5, %v208
    %v210 = vmul.f32 %v205, %v209
    %v211 = vmul.f32 %v192, %v210
    %vm212 = vcmp.eq.f32.partialorder %v192, inf
    %v213 = vsel %vm212, %v192, %v211
    %vm214 = vcmp.eq.f32.partialorder %v192, 0.0
    %v215 = vand.u32 %v192, 2147483648
    %v216 = vsel %vm214, %v215, %v213
    %v218 = vperm.slane %v163, 0
    %v220 = vmul.f32 %v218, %v181
    %v221 = vmul.f32 %v218, %v182
    %v222 = vadd.f32 %v204, 1e-06
    %v223 = vadd.f32 %v216, 1e-06
    %v224 = vrcp.pop %v222
    %v225 = vmul.f32 %v222, %v224
    %v226 = vsub.f32 1.0, %v225
    %v227 = vmul.f32 %v224, %v226
    %v228 = vadd.f32 %v224, %v227
    %vm229 = vweird.f32 %v222
    %vm230 = vweird.f32 %v224
    %vm231 = vmor %vm229, %vm230
    %v232 = vsel %vm231, %v224, %v228
    %v233 = vand.u32 2147483647, %v222
    %vm234 = vcmp.eq.f32.partialorder %v233, 8.507059e+37
    %v235 = vand.u32 %v222, 2147483648
    %v236 = vor.u32 1.1754944e-38, %v235
    %v237 = vsel %vm234, %v236, %v232
    %v238 = vrcp.pop %v223
    %v239 = vmul.f32 %v223, %v238
    %v240 = vsub.f32 1.0, %v239
    %v241 = vmul.f32 %v238, %v240
    %v242 = vadd.f32 %v238, %v241
    %vm243 = vweird.f32 %v223
    %vm244 = vweird.f32 %v238
    %vm245 = vmor %vm243, %vm244
    %v246 = vsel %vm245, %v238, %v242
    %v247 = vand.u32 2147483647, %v223
    %vm248 = vcmp.eq.f32.partialorder %v247, 8.507059e+37
    %v249 = vand.u32 %v223, 2147483648
    %v250 = vor.u32 1.1754944e-38, %v249
    %v251 = vsel %vm248, %v250, %v246
    %v252 = vmul.f32 %v220, %v237
    %v253 = vmul.f32 %v221, %v251
    %v255 = vperm.slane %v164, 0
    %v257 = vadd.f32 %v252, %v255
    %v258 = vadd.f32 %v253, %v255
    %v259 = vld [vmem:[%s9] sm:$0xff]
    %v260 = vld [vmem:[%s9 + $0x8] sm:$0xff]
    %v261 = vld [vmem:[%s9 + $0x10] sm:$0xff]
    %v262 = vld [vmem:[%s9 + $0x18] sm:$0xff]
    %v263 = vld [vmem:[%s11] sm:$0x1]
    %v264 = vld [vmem:[%s13] sm:$0xff]
    %v265 = vld [vmem:[%s13 + $0x8] sm:$0xff]
    %v266 = vld [vmem:[%s13 + $0x10] sm:$0xff]
    %v267 = vld [vmem:[%s13 + $0x18] sm:$0xff]
    %v268 = vld [vmem:[%s15] sm:$0x1]
    %v270 = vperm.slane %v263, 0
    %v273 = vsel %vm165, %v257, 0
    %v276 = vsel %vm165, %v258, 0
    %278 = vmatpush.msra.mxu0 0.0
    %279 = vmatpush.msra.mxu0 0.0
    %280 = vmatpush.msra.mxu0 0.0
    %281 = vmatpush.msra.mxu0 0.0
    %282 = vmatpush.msra.mxu0 0.0
    %283 = vmatpush.msra.mxu0 0.0
    %284 = vmatpush.msra.mxu0 0.0
    %285 = vmatpush.msra.mxu0 0.0
    %286 = vmatpush.msra.mxu0 0.0
    %287 = vmatpush.msra.mxu0 0.0
    %288 = vmatpush.msra.mxu0 0.0
    %289 = vmatpush.msra.mxu0 0.0
    %290 = vmatpush.msra.mxu0 %v262
    %291 = vmatpush.msra.mxu0 %v261
    %292 = vmatpush.msra.mxu0 %v260
    %293 = vmatpush.msra.mxu0 %v259
    %294 = vmatmul.f32.gmra.mxu0 %v273
    %v295 = vpop.f32.mrf.mxu0
    %v296 = vadd.f32 %v270, %v295
    %297 = vmatmul.f32.gmra.mxu0 %v276
    %v298 = vpop.f32.mrf.mxu0
    %v299 = vadd.f32 %v270, %v298
    %300 = vdwg.mxu0
    %302 = vrot.lane.b32.xlu0 %v296, 96
    %v303 = vpop.permute.xlu0 %302
    %vm304 = vcmask 64512
    %v305 = vsel %vm304, %v296, 0
    %v307 = vsel %vm304, %v303, 0
    %309 = vmatpush.xpose.msra.mxu0 0.0
    %310 = vmatpush.xpose.msra.mxu0 0.0
    %311 = vmatpush.xpose.msra.mxu0 0.0
    %312 = vmatpush.xpose.msra.mxu0 0.0
    %313 = vmatpush.xpose.msra.mxu0 0.0
    %314 = vmatpush.xpose.msra.mxu0 0.0
    %315 = vmatpush.xpose.msra.mxu0 0.0
    %316 = vmatpush.xpose.msra.mxu0 0.0
    %317 = vmatpush.xpose.msra.mxu0 0.0
    %318 = vmatpush.xpose.msra.mxu0 0.0
    %319 = vmatpush.xpose.msra.mxu0 0.0
    %320 = vmatpush.xpose.msra.mxu0 0.0
    %321 = vmatpush.xpose.msra.mxu0 0.0
    %322 = vmatpush.xpose.msra.mxu0 0.0
    %323 = vmatpush.xpose.msra.mxu0 0.0
    %324 = vmatpush.xpose.msra.mxu0 %v307
    %325 = vmatmul.f32.gmra.mxu0 %v305
    %v326 = vpop.f32.mrf.mxu0
    %v327 = vadd.f32 0.0, %v326
    %328 = vdwg.mxu0
    %330 = vrot.lane.b32.xlu0 %v299, 96
    %v331 = vpop.permute.xlu0 %330
    %v332 = vsel %vm304, %v299, 0
    %v334 = vsel %vm304, %v331, 0
    %336 = vmatpush.xpose.msra.mxu0 0.0
    %337 = vmatpush.xpose.msra.mxu0 0.0
    %338 = vmatpush.xpose.msra.mxu0 0.0
    %339 = vmatpush.xpose.msra.mxu0 0.0
    %340 = vmatpush.xpose.msra.mxu0 0.0
    %341 = vmatpush.xpose.msra.mxu0 0.0
    %342 = vmatpush.xpose.msra.mxu0 0.0
    %343 = vmatpush.xpose.msra.mxu0 0.0
    %344 = vmatpush.xpose.msra.mxu0 0.0
    %345 = vmatpush.xpose.msra.mxu0 0.0
    %346 = vmatpush.xpose.msra.mxu0 0.0
    %347 = vmatpush.xpose.msra.mxu0 0.0
    %348 = vmatpush.xpose.msra.mxu0 0.0
    %349 = vmatpush.xpose.msra.mxu0 0.0
    %350 = vmatpush.xpose.msra.mxu0 0.0
    %351 = vmatpush.xpose.msra.mxu0 %v334
    %352 = vmatmul.f32.gmra.mxu0 %v332
    %v353 = vpop.f32.mrf.mxu0
    %v354 = vadd.f32 0.0, %v353
    %355 = vdwg.mxu0
    %v356 = vmul.f32 %v327, 0.35355338
    %v357 = vmul.f32 %v354, 0.35355338
    %vm358 = vcmp.ne.f32.partialorder %v155, 0.0
    %vm359 = vcmp.ne.f32.partialorder %v156, 0.0
    %v360 = vsel %vm358, %v356, -1e+09
    %v361 = vsel %vm359, %v357, -1e+09
    %v362 = vsel %vm304, %v360, -inf
    %363 = vmax.xlane.f32.xlu0 %v362
    %v364 = vpop.xlane.xlu0 %363
    %v365 = vsel %vm304, %v361, -inf
    %366 = vmax.xlane.f32.xlu0 %v365
    %v367 = vpop.xlane.xlu0 %366
    %v368 = vsub.f32 %v360, %v364
    %v369 = vsub.f32 %v361, %v367
    %v370 = vmul.f32 %v368, 1.442695
    %v371 = vpow.pop %v370
    %v372 = vmul.f32 %v369, 1.442695
    %v373 = vpow.pop %v372
    %v374 = vsel %vm304, %v371, 0.0
    %375 = vadd.xlane.f32.xlu0 %v374
    %v376 = vpop.xlane.xlu0 %375
    %v377 = vsel %vm304, %v373, 0.0
    %378 = vadd.xlane.f32.xlu0 %v377
    %v379 = vpop.xlane.xlu0 %378
    %v380 = vrcp.pop %v376
    %v381 = vmul.f32 %v376, %v380
    %v382 = vsub.f32 1.0, %v381
    %v383 = vmul.f32 %v380, %v382
    %v384 = vadd.f32 %v380, %v383
    %vm385 = vweird.f32 %v376
    %vm386 = vweird.f32 %v380
    %vm387 = vmor %vm385, %vm386
    %v388 = vsel %vm387, %v380, %v384
    %v389 = vand.u32 2147483647, %v376
    %vm390 = vcmp.eq.f32.partialorder %v389, 8.507059e+37
    %v391 = vand.u32 %v376, 2147483648
    %v392 = vor.u32 1.1754944e-38, %v391
    %v393 = vsel %vm390, %v392, %v388
    %v394 = vrcp.pop %v379
    %v395 = vmul.f32 %v379, %v394
    %v396 = vsub.f32 1.0, %v395
    %v397 = vmul.f32 %v394, %v396
    %v398 = vadd.f32 %v394, %v397
    %vm399 = vweird.f32 %v379
    %vm400 = vweird.f32 %v394
    %vm401 = vmor %vm399, %vm400
    %v402 = vsel %vm401, %v394, %v398
    %v403 = vand.u32 2147483647, %v379
    %vm404 = vcmp.eq.f32.partialorder %v403, 8.507059e+37
    %v405 = vand.u32 %v379, 2147483648
    %v406 = vor.u32 1.1754944e-38, %v405
    %v407 = vsel %vm404, %v406, %v402
    %v408 = vmul.f32 %v371, %v393
    %v409 = vmul.f32 %v373, %v407
    %410 = vrot.lane.b32.xlu0 %v296, 64
    %v411 = vpop.permute.xlu0 %410
    %v414 = vsel %vm304, %v408, 0
    %416 = vmatpush.msra.mxu0 0.0
    %417 = vmatpush.msra.mxu0 0.0
    %418 = vmatpush.msra.mxu0 0.0
    %419 = vmatpush.msra.mxu0 0.0
    %420 = vmatpush.msra.mxu0 0.0
    %421 = vmatpush.msra.mxu0 0.0
    %422 = vmatpush.msra.mxu0 0.0
    %423 = vmatpush.msra.mxu0 0.0
    %424 = vmatpush.msra.mxu0 0.0
    %425 = vmatpush.msra.mxu0 0.0
    %426 = vmatpush.msra.mxu0 0.0
    %427 = vmatpush.msra.mxu0 0.0
    %428 = vmatpush.msra.mxu0 0.0
    %429 = vmatpush.msra.mxu0 0.0
    %430 = vmatpush.msra.mxu0 0.0
    %431 = vmatpush.msra.mxu0 %v411
    %432 = vmatmul.f32.gmra.mxu0 %v414
    %v433 = vpop.f32.mrf.mxu0
    %v434 = vadd.f32 0.0, %v433
    %435 = vdwg.mxu0
    %436 = vrot.lane.b32.xlu0 %v299, 64
    %v437 = vpop.permute.xlu0 %436
    %v440 = vsel %vm304, %v409, 0
    %442 = vmatpush.msra.mxu0 0.0
    %443 = vmatpush.msra.mxu0 0.0
    %444 = vmatpush.msra.mxu0 0.0
    %445 = vmatpush.msra.mxu0 0.0
    %446 = vmatpush.msra.mxu0 0.0
    %447 = vmatpush.msra.mxu0 0.0
    %448 = vmatpush.msra.mxu0 0.0
    %449 = vmatpush.msra.mxu0 0.0
    %450 = vmatpush.msra.mxu0 0.0
    %451 = vmatpush.msra.mxu0 0.0
    %452 = vmatpush.msra.mxu0 0.0
    %453 = vmatpush.msra.mxu0 0.0
    %454 = vmatpush.msra.mxu0 0.0
    %455 = vmatpush.msra.mxu0 0.0
    %456 = vmatpush.msra.mxu0 0.0
    %457 = vmatpush.msra.mxu0 %v437
    %458 = vmatmul.f32.gmra.mxu0 %v440
    %v459 = vpop.f32.mrf.mxu0
    %v460 = vadd.f32 0.0, %v459
    %461 = vdwg.mxu0
    %462 = vrot.lane.b32.xlu0 %v296, 120
    %v463 = vpop.permute.xlu0 %462
    %464 = vrot.lane.b32.xlu0 %v296, 88
    %v465 = vpop.permute.xlu0 %464
    %v466 = vsel %vm304, %v463, 0
    %v468 = vsel %vm304, %v465, 0
    %470 = vmatpush.xpose.msra.mxu0 0.0
    %471 = vmatpush.xpose.msra.mxu0 0.0
    %472 = vmatpush.xpose.msra.mxu0 0.0
    %473 = vmatpush.xpose.msra.mxu0 0.0
    %474 = vmatpush.xpose.msra.mxu0 0.0
    %475 = vmatpush.xpose.msra.mxu0 0.0
    %476 = vmatpush.xpose.msra.mxu0 0.0
    %477 = vmatpush.xpose.msra.mxu0 0.0
    %478 = vmatpush.xpose.msra.mxu0 0.0
    %479 = vmatpush.xpose.msra.mxu0 0.0
    %480 = vmatpush.xpose.msra.mxu0 0.0
    %481 = vmatpush.xpose.msra.mxu0 0.0
    %482 = vmatpush.xpose.msra.mxu0 0.0
    %483 = vmatpush.xpose.msra.mxu0 0.0
    %484 = vmatpush.xpose.msra.mxu0 0.0
    %485 = vmatpush.xpose.msra.mxu0 %v468
    %486 = vmatmul.f32.gmra.mxu0 %v466
    %v487 = vpop.f32.mrf.mxu0
    %v488 = vadd.f32 0.0, %v487
    %489 = vdwg.mxu0
    %490 = vrot.lane.b32.xlu0 %v299, 120
    %v491 = vpop.permute.xlu0 %490
    %492 = vrot.lane.b32.xlu0 %v299, 88
    %v493 = vpop.permute.xlu0 %492
    %v494 = vsel %vm304, %v491, 0
    %v496 = vsel %vm304, %v493, 0
    %498 = vmatpush.xpose.msra.mxu0 0.0
    %499 = vmatpush.xpose.msra.mxu0 0.0
    %500 = vmatpush.xpose.msra.mxu0 0.0
    %501 = vmatpush.xpose.msra.mxu0 0.0
    %502 = vmatpush.xpose.msra.mxu0 0.0
    %503 = vmatpush.xpose.msra.mxu0 0.0
    %504 = vmatpush.xpose.msra.mxu0 0.0
    %505 = vmatpush.xpose.msra.mxu0 0.0
    %506 = vmatpush.xpose.msra.mxu0 0.0
    %507 = vmatpush.xpose.msra.mxu0 0.0
    %508 = vmatpush.xpose.msra.mxu0 0.0
    %509 = vmatpush.xpose.msra.mxu0 0.0
    %510 = vmatpush.xpose.msra.mxu0 0.0
    %511 = vmatpush.xpose.msra.mxu0 0.0
    %512 = vmatpush.xpose.msra.mxu0 0.0
    %513 = vmatpush.xpose.msra.mxu0 %v496
    %514 = vmatmul.f32.gmra.mxu0 %v494
    %v515 = vpop.f32.mrf.mxu0
    %v516 = vadd.f32 0.0, %v515
    %517 = vdwg.mxu0
    %v518 = vmul.f32 %v488, 0.35355338
    %v519 = vmul.f32 %v516, 0.35355338
    %v520 = vsel %vm358, %v518, -1e+09
    %v521 = vsel %vm359, %v519, -1e+09
    %v522 = vsel %vm304, %v520, -inf
    %523 = vmax.xlane.f32.xlu0 %v522
    %v524 = vpop.xlane.xlu0 %523
    %v525 = vsel %vm304, %v521, -inf
    %526 = vmax.xlane.f32.xlu0 %v525
    %v527 = vpop.xlane.xlu0 %526
    %v528 = vsub.f32 %v520, %v524
    %v529 = vsub.f32 %v521, %v527
    %v530 = vmul.f32 %v528, 1.442695
    %v531 = vpow.pop %v530
    %v532 = vmul.f32 %v529, 1.442695
    %v533 = vpow.pop %v532
    %v534 = vsel %vm304, %v531, 0.0
    %535 = vadd.xlane.f32.xlu0 %v534
    %v536 = vpop.xlane.xlu0 %535
    %v537 = vsel %vm304, %v533, 0.0
    %538 = vadd.xlane.f32.xlu0 %v537
    %v539 = vpop.xlane.xlu0 %538
    %v540 = vrcp.pop %v536
    %v541 = vmul.f32 %v536, %v540
    %v542 = vsub.f32 1.0, %v541
    %v543 = vmul.f32 %v540, %v542
    %v544 = vadd.f32 %v540, %v543
    %vm545 = vweird.f32 %v536
    %vm546 = vweird.f32 %v540
    %vm547 = vmor %vm545, %vm546
    %v548 = vsel %vm547, %v540, %v544
    %v549 = vand.u32 2147483647, %v536
    %vm550 = vcmp.eq.f32.partialorder %v549, 8.507059e+37
    %v551 = vand.u32 %v536, 2147483648
    %v552 = vor.u32 1.1754944e-38, %v551
    %v553 = vsel %vm550, %v552, %v548
    %v554 = vrcp.pop %v539
    %v555 = vmul.f32 %v539, %v554
    %v556 = vsub.f32 1.0, %v555
    %v557 = vmul.f32 %v554, %v556
    %v558 = vadd.f32 %v554, %v557
    %vm559 = vweird.f32 %v539
    %vm560 = vweird.f32 %v554
    %vm561 = vmor %vm559, %vm560
    %v562 = vsel %vm561, %v554, %v558
    %v563 = vand.u32 2147483647, %v539
    %vm564 = vcmp.eq.f32.partialorder %v563, 8.507059e+37
    %v565 = vand.u32 %v539, 2147483648
    %v566 = vor.u32 1.1754944e-38, %v565
    %v567 = vsel %vm564, %v566, %v562
    %v568 = vmul.f32 %v531, %v553
    %v569 = vmul.f32 %v533, %v567
    %570 = vrot.lane.b32.xlu0 %v296, 56
    %v571 = vpop.permute.xlu0 %570
    %v574 = vsel %vm304, %v568, 0
    %576 = vmatpush.msra.mxu0 0.0
    %577 = vmatpush.msra.mxu0 0.0
    %578 = vmatpush.msra.mxu0 0.0
    %579 = vmatpush.msra.mxu0 0.0
    %580 = vmatpush.msra.mxu0 0.0
    %581 = vmatpush.msra.mxu0 0.0
    %582 = vmatpush.msra.mxu0 0.0
    %583 = vmatpush.msra.mxu0 0.0
    %584 = vmatpush.msra.mxu0 0.0
    %585 = vmatpush.msra.mxu0 0.0
    %586 = vmatpush.msra.mxu0 0.0
    %587 = vmatpush.msra.mxu0 0.0
    %588 = vmatpush.msra.mxu0 0.0
    %589 = vmatpush.msra.mxu0 0.0
    %590 = vmatpush.msra.mxu0 0.0
    %591 = vmatpush.msra.mxu0 %v571
    %592 = vmatmul.f32.gmra.mxu0 %v574
    %v593 = vpop.f32.mrf.mxu0
    %v594 = vadd.f32 0.0, %v593
    %595 = vdwg.mxu0
    %596 = vrot.lane.b32.xlu0 %v299, 56
    %v597 = vpop.permute.xlu0 %596
    %v600 = vsel %vm304, %v569, 0
    %602 = vmatpush.msra.mxu0 0.0
    %603 = vmatpush.msra.mxu0 0.0
    %604 = vmatpush.msra.mxu0 0.0
    %605 = vmatpush.msra.mxu0 0.0
    %606 = vmatpush.msra.mxu0 0.0
    %607 = vmatpush.msra.mxu0 0.0
    %608 = vmatpush.msra.mxu0 0.0
    %609 = vmatpush.msra.mxu0 0.0
    %610 = vmatpush.msra.mxu0 0.0
    %611 = vmatpush.msra.mxu0 0.0
    %612 = vmatpush.msra.mxu0 0.0
    %613 = vmatpush.msra.mxu0 0.0
    %614 = vmatpush.msra.mxu0 0.0
    %615 = vmatpush.msra.mxu0 0.0
    %616 = vmatpush.msra.mxu0 0.0
    %617 = vmatpush.msra.mxu0 %v597
    %618 = vmatmul.f32.gmra.mxu0 %v600
    %v619 = vpop.f32.mrf.mxu0
    %v620 = vadd.f32 0.0, %v619
    %621 = vdwg.mxu0
    %622 = vrot.lane.b32.xlu0 %v296, 112
    %v623 = vpop.permute.xlu0 %622
    %624 = vrot.lane.b32.xlu0 %v296, 80
    %v625 = vpop.permute.xlu0 %624
    %v626 = vsel %vm304, %v623, 0
    %v628 = vsel %vm304, %v625, 0
    %630 = vmatpush.xpose.msra.mxu0 0.0
    %631 = vmatpush.xpose.msra.mxu0 0.0
    %632 = vmatpush.xpose.msra.mxu0 0.0
    %633 = vmatpush.xpose.msra.mxu0 0.0
    %634 = vmatpush.xpose.msra.mxu0 0.0
    %635 = vmatpush.xpose.msra.mxu0 0.0
    %636 = vmatpush.xpose.msra.mxu0 0.0
    %637 = vmatpush.xpose.msra.mxu0 0.0
    %638 = vmatpush.xpose.msra.mxu0 0.0
    %639 = vmatpush.xpose.msra.mxu0 0.0
    %640 = vmatpush.xpose.msra.mxu0 0.0
    %641 = vmatpush.xpose.msra.mxu0 0.0
    %642 = vmatpush.xpose.msra.mxu0 0.0
    %643 = vmatpush.xpose.msra.mxu0 0.0
    %644 = vmatpush.xpose.msra.mxu0 0.0
    %645 = vmatpush.xpose.msra.mxu0 %v628
    %646 = vmatmul.f32.gmra.mxu0 %v626
    %v647 = vpop.f32.mrf.mxu0
    %v648 = vadd.f32 0.0, %v647
    %649 = vdwg.mxu0
    %650 = vrot.lane.b32.xlu0 %v299, 112
    %v651 = vpop.permute.xlu0 %650
    %652 = vrot.lane.b32.xlu0 %v299, 80
    %v653 = vpop.permute.xlu0 %652
    %v654 = vsel %vm304, %v651, 0
    %v656 = vsel %vm304, %v653, 0
    %658 = vmatpush.xpose.msra.mxu0 0.0
    %659 = vmatpush.xpose.msra.mxu0 0.0
    %660 = vmatpush.xpose.msra.mxu0 0.0
    %661 = vmatpush.xpose.msra.mxu0 0.0
    %662 = vmatpush.xpose.msra.mxu0 0.0
    %663 = vmatpush.xpose.msra.mxu0 0.0
    %664 = vmatpush.xpose.msra.mxu0 0.0
    %665 = vmatpush.xpose.msra.mxu0 0.0
    %666 = vmatpush.xpose.msra.mxu0 0.0
    %667 = vmatpush.xpose.msra.mxu0 0.0
    %668 = vmatpush.xpose.msra.mxu0 0.0
    %669 = vmatpush.xpose.msra.mxu0 0.0
    %670 = vmatpush.xpose.msra.mxu0 0.0
    %671 = vmatpush.xpose.msra.mxu0 0.0
    %672 = vmatpush.xpose.msra.mxu0 0.0
    %673 = vmatpush.xpose.msra.mxu0 %v656
    %674 = vmatmul.f32.gmra.mxu0 %v654
    %v675 = vpop.f32.mrf.mxu0
    %v676 = vadd.f32 0.0, %v675
    %677 = vdwg.mxu0
    %v678 = vmul.f32 %v648, 0.35355338
    %v679 = vmul.f32 %v676, 0.35355338
    %v680 = vsel %vm358, %v678, -1e+09
    %v681 = vsel %vm359, %v679, -1e+09
    %v682 = vsel %vm304, %v680, -inf
    %683 = vmax.xlane.f32.xlu0 %v682
    %v684 = vpop.xlane.xlu0 %683
    %v685 = vsel %vm304, %v681, -inf
    %686 = vmax.xlane.f32.xlu0 %v685
    %v687 = vpop.xlane.xlu0 %686
    %v688 = vsub.f32 %v680, %v684
    %v689 = vsub.f32 %v681, %v687
    %v690 = vmul.f32 %v688, 1.442695
    %v691 = vpow.pop %v690
    %v692 = vmul.f32 %v689, 1.442695
    %v693 = vpow.pop %v692
    %v694 = vsel %vm304, %v691, 0.0
    %695 = vadd.xlane.f32.xlu0 %v694
    %v696 = vpop.xlane.xlu0 %695
    %v697 = vsel %vm304, %v693, 0.0
    %698 = vadd.xlane.f32.xlu0 %v697
    %v699 = vpop.xlane.xlu0 %698
    %v700 = vrcp.pop %v696
    %v701 = vmul.f32 %v696, %v700
    %v702 = vsub.f32 1.0, %v701
    %v703 = vmul.f32 %v700, %v702
    %v704 = vadd.f32 %v700, %v703
    %vm705 = vweird.f32 %v696
    %vm706 = vweird.f32 %v700
    %vm707 = vmor %vm705, %vm706
    %v708 = vsel %vm707, %v700, %v704
    %v709 = vand.u32 2147483647, %v696
    %vm710 = vcmp.eq.f32.partialorder %v709, 8.507059e+37
    %v711 = vand.u32 %v696, 2147483648
    %v712 = vor.u32 1.1754944e-38, %v711
    %v713 = vsel %vm710, %v712, %v708
    %v714 = vrcp.pop %v699
    %v715 = vmul.f32 %v699, %v714
    %v716 = vsub.f32 1.0, %v715
    %v717 = vmul.f32 %v714, %v716
    %v718 = vadd.f32 %v714, %v717
    %vm719 = vweird.f32 %v699
    %vm720 = vweird.f32 %v714
    %vm721 = vmor %vm719, %vm720
    %v722 = vsel %vm721, %v714, %v718
    %v723 = vand.u32 2147483647, %v699
    %vm724 = vcmp.eq.f32.partialorder %v723, 8.507059e+37
    %v725 = vand.u32 %v699, 2147483648
    %v726 = vor.u32 1.1754944e-38, %v725
    %v727 = vsel %vm724, %v726, %v722
    %v728 = vmul.f32 %v691, %v713
    %v729 = vmul.f32 %v693, %v727
    %730 = vrot.lane.b32.xlu0 %v296, 48
    %v731 = vpop.permute.xlu0 %730
    %v734 = vsel %vm304, %v728, 0
    %736 = vmatpush.msra.mxu0 0.0
    %737 = vmatpush.msra.mxu0 0.0
    %738 = vmatpush.msra.mxu0 0.0
    %739 = vmatpush.msra.mxu0 0.0
    %740 = vmatpush.msra.mxu0 0.0
    %741 = vmatpush.msra.mxu0 0.0
    %742 = vmatpush.msra.mxu0 0.0
    %743 = vmatpush.msra.mxu0 0.0
    %744 = vmatpush.msra.mxu0 0.0
    %745 = vmatpush.msra.mxu0 0.0
    %746 = vmatpush.msra.mxu0 0.0
    %747 = vmatpush.msra.mxu0 0.0
    %748 = vmatpush.msra.mxu0 0.0
    %749 = vmatpush.msra.mxu0 0.0
    %750 = vmatpush.msra.mxu0 0.0
    %751 = vmatpush.msra.mxu0 %v731
    %752 = vmatmul.f32.gmra.mxu0 %v734
    %v753 = vpop.f32.mrf.mxu0
    %v754 = vadd.f32 0.0, %v753
    %755 = vdwg.mxu0
    %756 = vrot.lane.b32.xlu0 %v299, 48
    %v757 = vpop.permute.xlu0 %756
    %v760 = vsel %vm304, %v729, 0
    %762 = vmatpush.msra.mxu0 0.0
    %763 = vmatpush.msra.mxu0 0.0
    %764 = vmatpush.msra.mxu0 0.0
    %765 = vmatpush.msra.mxu0 0.0
    %766 = vmatpush.msra.mxu0 0.0
    %767 = vmatpush.msra.mxu0 0.0
    %768 = vmatpush.msra.mxu0 0.0
    %769 = vmatpush.msra.mxu0 0.0
    %770 = vmatpush.msra.mxu0 0.0
    %771 = vmatpush.msra.mxu0 0.0
    %772 = vmatpush.msra.mxu0 0.0
    %773 = vmatpush.msra.mxu0 0.0
    %774 = vmatpush.msra.mxu0 0.0
    %775 = vmatpush.msra.mxu0 0.0
    %776 = vmatpush.msra.mxu0 0.0
    %777 = vmatpush.msra.mxu0 %v757
    %778 = vmatmul.f32.gmra.mxu0 %v760
    %v779 = vpop.f32.mrf.mxu0
    %v780 = vadd.f32 0.0, %v779
    %781 = vdwg.mxu0
    %782 = vrot.lane.b32.xlu0 %v296, 104
    %v783 = vpop.permute.xlu0 %782
    %784 = vrot.lane.b32.xlu0 %v296, 72
    %v785 = vpop.permute.xlu0 %784
    %v786 = vsel %vm304, %v783, 0
    %v788 = vsel %vm304, %v785, 0
    %790 = vmatpush.xpose.msra.mxu0 0.0
    %791 = vmatpush.xpose.msra.mxu0 0.0
    %792 = vmatpush.xpose.msra.mxu0 0.0
    %793 = vmatpush.xpose.msra.mxu0 0.0
    %794 = vmatpush.xpose.msra.mxu0 0.0
    %795 = vmatpush.xpose.msra.mxu0 0.0
    %796 = vmatpush.xpose.msra.mxu0 0.0
    %797 = vmatpush.xpose.msra.mxu0 0.0
    %798 = vmatpush.xpose.msra.mxu0 0.0
    %799 = vmatpush.xpose.msra.mxu0 0.0
    %800 = vmatpush.xpose.msra.mxu0 0.0
    %801 = vmatpush.xpose.msra.mxu0 0.0
    %802 = vmatpush.xpose.msra.mxu0 0.0
    %803 = vmatpush.xpose.msra.mxu0 0.0
    %804 = vmatpush.xpose.msra.mxu0 0.0
    %805 = vmatpush.xpose.msra.mxu0 %v788
    %806 = vmatmul.f32.gmra.mxu0 %v786
    %v807 = vpop.f32.mrf.mxu0
    %v808 = vadd.f32 0.0, %v807
    %809 = vdwg.mxu0
    %810 = vrot.lane.b32.xlu0 %v299, 104
    %v811 = vpop.permute.xlu0 %810
    %812 = vrot.lane.b32.xlu0 %v299, 72
    %v813 = vpop.permute.xlu0 %812
    %v814 = vsel %vm304, %v811, 0
    %v816 = vsel %vm304, %v813, 0
    %818 = vmatpush.xpose.msra.mxu0 0.0
    %819 = vmatpush.xpose.msra.mxu0 0.0
    %820 = vmatpush.xpose.msra.mxu0 0.0
    %821 = vmatpush.xpose.msra.mxu0 0.0
    %822 = vmatpush.xpose.msra.mxu0 0.0
    %823 = vmatpush.xpose.msra.mxu0 0.0
    %824 = vmatpush.xpose.msra.mxu0 0.0
    %825 = vmatpush.xpose.msra.mxu0 0.0
    %826 = vmatpush.xpose.msra.mxu0 0.0
    %827 = vmatpush.xpose.msra.mxu0 0.0
    %828 = vmatpush.xpose.msra.mxu0 0.0
    %829 = vmatpush.xpose.msra.mxu0 0.0
    %830 = vmatpush.xpose.msra.mxu0 0.0
    %831 = vmatpush.xpose.msra.mxu0 0.0
    %832 = vmatpush.xpose.msra.mxu0 0.0
    %833 = vmatpush.xpose.msra.mxu0 %v816
    %834 = vmatmul.f32.gmra.mxu0 %v814
    %v835 = vpop.f32.mrf.mxu0
    %v836 = vadd.f32 0.0, %v835
    %837 = vdwg.mxu0
    %v838 = vmul.f32 %v808, 0.35355338
    %v839 = vmul.f32 %v836, 0.35355338
    %v840 = vsel %vm358, %v838, -1e+09
    %v841 = vsel %vm359, %v839, -1e+09
    %v842 = vsel %vm304, %v840, -inf
    %843 = vmax.xlane.f32.xlu0 %v842
    %v844 = vpop.xlane.xlu0 %843
    %v845 = vsel %vm304, %v841, -inf
    %846 = vmax.xlane.f32.xlu0 %v845
    %v847 = vpop.xlane.xlu0 %846
    %v848 = vsub.f32 %v840, %v844
    %v849 = vsub.f32 %v841, %v847
    %v850 = vmul.f32 %v848, 1.442695
    %v851 = vpow.pop %v850
    %v852 = vmul.f32 %v849, 1.442695
    %v853 = vpow.pop %v852
    %v854 = vsel %vm304, %v851, 0.0
    %855 = vadd.xlane.f32.xlu0 %v854
    %v856 = vpop.xlane.xlu0 %855
    %v857 = vsel %vm304, %v853, 0.0
    %858 = vadd.xlane.f32.xlu0 %v857
    %v859 = vpop.xlane.xlu0 %858
    %v860 = vrcp.pop %v856
    %v861 = vmul.f32 %v856, %v860
    %v862 = vsub.f32 1.0, %v861
    %v863 = vmul.f32 %v860, %v862
    %v864 = vadd.f32 %v860, %v863
    %vm865 = vweird.f32 %v856
    %vm866 = vweird.f32 %v860
    %vm867 = vmor %vm865, %vm866
    %v868 = vsel %vm867, %v860, %v864
    %v869 = vand.u32 2147483647, %v856
    %vm870 = vcmp.eq.f32.partialorder %v869, 8.507059e+37
    %v871 = vand.u32 %v856, 2147483648
    %v872 = vor.u32 1.1754944e-38, %v871
    %v873 = vsel %vm870, %v872, %v868
    %v874 = vrcp.pop %v859
    %v875 = vmul.f32 %v859, %v874
    %v876 = vsub.f32 1.0, %v875
    %v877 = vmul.f32 %v874, %v876
    %v878 = vadd.f32 %v874, %v877
    %vm879 = vweird.f32 %v859
    %vm880 = vweird.f32 %v874
    %vm881 = vmor %vm879, %vm880
    %v882 = vsel %vm881, %v874, %v878
    %v883 = vand.u32 2147483647, %v859
    %vm884 = vcmp.eq.f32.partialorder %v883, 8.507059e+37
    %v885 = vand.u32 %v859, 2147483648
    %v886 = vor.u32 1.1754944e-38, %v885
    %v887 = vsel %vm884, %v886, %v882
    %v888 = vmul.f32 %v851, %v873
    %v889 = vmul.f32 %v853, %v887
    %890 = vrot.lane.b32.xlu0 %v296, 40
    %v891 = vpop.permute.xlu0 %890
    %v894 = vsel %vm304, %v888, 0
    %896 = vmatpush.msra.mxu0 0.0
    %897 = vmatpush.msra.mxu0 0.0
    %898 = vmatpush.msra.mxu0 0.0
    %899 = vmatpush.msra.mxu0 0.0
    %900 = vmatpush.msra.mxu0 0.0
    %901 = vmatpush.msra.mxu0 0.0
    %902 = vmatpush.msra.mxu0 0.0
    %903 = vmatpush.msra.mxu0 0.0
    %904 = vmatpush.msra.mxu0 0.0
    %905 = vmatpush.msra.mxu0 0.0
    %906 = vmatpush.msra.mxu0 0.0
    %907 = vmatpush.msra.mxu0 0.0
    %908 = vmatpush.msra.mxu0 0.0
    %909 = vmatpush.msra.mxu0 0.0
    %910 = vmatpush.msra.mxu0 0.0
    %911 = vmatpush.msra.mxu0 %v891
    %912 = vmatmul.f32.gmra.mxu0 %v894
    %v913 = vpop.f32.mrf.mxu0
    %v914 = vadd.f32 0.0, %v913
    %915 = vdwg.mxu0
    %916 = vrot.lane.b32.xlu0 %v299, 40
    %v917 = vpop.permute.xlu0 %916
    %v920 = vsel %vm304, %v889, 0
    %922 = vmatpush.msra.mxu0 0.0
    %923 = vmatpush.msra.mxu0 0.0
    %924 = vmatpush.msra.mxu0 0.0
    %925 = vmatpush.msra.mxu0 0.0
    %926 = vmatpush.msra.mxu0 0.0
    %927 = vmatpush.msra.mxu0 0.0
    %928 = vmatpush.msra.mxu0 0.0
    %929 = vmatpush.msra.mxu0 0.0
    %930 = vmatpush.msra.mxu0 0.0
    %931 = vmatpush.msra.mxu0 0.0
    %932 = vmatpush.msra.mxu0 0.0
    %933 = vmatpush.msra.mxu0 0.0
    %934 = vmatpush.msra.mxu0 0.0
    %935 = vmatpush.msra.mxu0 0.0
    %936 = vmatpush.msra.mxu0 0.0
    %937 = vmatpush.msra.mxu0 %v917
    %938 = vmatmul.f32.gmra.mxu0 %v920
    %v939 = vpop.f32.mrf.mxu0
    %v940 = vadd.f32 0.0, %v939
    %941 = vdwg.mxu0
    %944 = vrot.lane.b32.xlu0 %v594, 8
    %v945 = vpop.permute.xlu0 %944
    %946 = vrot.lane.b32.xlu0 %v620, 8
    %v947 = vpop.permute.xlu0 %946
    %952 = vrot.lane.b32.xlu0 %v754, 16
    %v953 = vpop.permute.xlu0 %952
    %954 = vrot.lane.b32.xlu0 %v780, 16
    %v955 = vpop.permute.xlu0 %954
    %960 = vrot.lane.b32.xlu0 %v914, 24
    %v961 = vpop.permute.xlu0 %960
    %962 = vrot.lane.b32.xlu0 %v940, 24
    %v963 = vpop.permute.xlu0 %962
    %v966 = vsel %vm304, %v434, %v945
    %v967 = vsel %vm304, %v460, %v947
    %vm968 = vcmask 130048
    %v969 = vsel %vm968, %v966, %v953
    %v970 = vsel %vm968, %v967, %v955
    %vm971 = vcmask 195584
    %v972 = vsel %vm971, %v969, %v961
    %v973 = vsel %vm971, %v970, %v963
    %v975 = vperm.slane %v268, 0
    %v978 = vsel %vm165, %v972, 0
    %v981 = vsel %vm165, %v973, 0
    %983 = vmatpush.msra.mxu0 0.0
    %984 = vmatpush.msra.mxu0 0.0
    %985 = vmatpush.msra.mxu0 0.0
    %986 = vmatpush.msra.mxu0 0.0
    %987 = vmatpush.msra.mxu0 0.0
    %988 = vmatpush.msra.mxu0 0.0
    %989 = vmatpush.msra.mxu0 0.0
    %990 = vmatpush.msra.mxu0 0.0
    %991 = vmatpush.msra.mxu0 0.0
    %992 = vmatpush.msra.mxu0 0.0
    %993 = vmatpush.msra.mxu0 0.0
    %994 = vmatpush.msra.mxu0 0.0
    %995 = vmatpush.msra.mxu0 %v267
    %996 = vmatpush.msra.mxu0 %v266
    %997 = vmatpush.msra.mxu0 %v265
    %998 = vmatpush.msra.mxu0 %v264
    %999 = vmatmul.f32.gmra.mxu0 %v978
    %v1000 = vpop.f32.mrf.mxu0
    %v1001 = vadd.f32 %v975, %v1000
    %1002 = vmatmul.f32.gmra.mxu0 %v981
    %v1003 = vpop.f32.mrf.mxu0
    %v1004 = vadd.f32 %v975, %v1003
    %1005 = vdwg.mxu0
    %v1006 = vadd.f32 %v161, %v1001
    %v1007 = vadd.f32 %v162, %v1004
    %s1008 = scalar_lea.vmem %s25, 1
    %v1009 = vld [vmem:[%s1008] sm:$0x1]
    %s1010 = scalar_lea.vmem %s27, 1
    %v1011 = vld [vmem:[%s1010] sm:$0x1]
    %v1012 = vsel %vm165, %v1006, 0.0
    %1013 = vadd.xlane.f32.xlu0 %v1012
    %v1014 = vpop.xlane.xlu0 %1013
    %v1015 = vsel %vm165, %v1007, 0.0
    %1016 = vadd.xlane.f32.xlu0 %v1015
    %v1017 = vpop.xlane.xlu0 %1016
    %v1018 = vmul.f32 %v1014, %v178
    %v1019 = vmul.f32 %v1017, %v178
    %v1020 = vsub.f32 %v1006, %v1018
    %v1021 = vsub.f32 %v1007, %v1019
    %v1022 = vmul.f32 %v1020, %v1020
    %v1023 = vmul.f32 %v1021, %v1021
    %v1024 = vsel %vm165, %v1022, 0.0
    %1025 = vadd.xlane.f32.xlu0 %v1024
    %v1026 = vpop.xlane.xlu0 %1025
    %v1027 = vsel %vm165, %v1023, 0.0
    %1028 = vadd.xlane.f32.xlu0 %v1027
    %v1029 = vpop.xlane.xlu0 %1028
    %v1030 = vmul.f32 %v1026, 0.032258064
    %v1031 = vmul.f32 %v1029, 0.032258064
    %v1032 = vrsqrt.pop %v1030
    %v1033 = vmul.f32 %v1032, %v1030
    %v1034 = vmul.f32 %v1033, %v1032
    %v1035 = vmul.f32 0.5, %v1034
    %v1036 = vsub.f32 1.5, %v1035
    %v1037 = vmul.f32 %v1032, %v1036
    %v1038 = vmul.f32 %v1030, %v1037
    %vm1039 = vcmp.eq.f32.partialorder %v1030, inf
    %v1040 = vsel %vm1039, %v1030, %v1038
    %vm1041 = vcmp.eq.f32.partialorder %v1030, 0.0
    %v1042 = vand.u32 %v1030, 2147483648
    %v1043 = vsel %vm1041, %v1042, %v1040
    %v1044 = vrsqrt.pop %v1031
    %v1045 = vmul.f32 %v1044, %v1031
    %v1046 = vmul.f32 %v1045, %v1044
    %v1047 = vmul.f32 0.5, %v1046
    %v1048 = vsub.f32 1.5, %v1047
    %v1049 = vmul.f32 %v1044, %v1048
    %v1050 = vmul.f32 %v1031, %v1049
    %vm1051 = vcmp.eq.f32.partialorder %v1031, inf
    %v1052 = vsel %vm1051, %v1031, %v1050
    %vm1053 = vcmp.eq.f32.partialorder %v1031, 0.0
    %v1054 = vand.u32 %v1031, 2147483648
    %v1055 = vsel %vm1053, %v1054, %v1052
    %v1057 = vperm.slane %v1009, 0
    %v1059 = vmul.f32 %v1057, %v1020
    %v1060 = vmul.f32 %v1057, %v1021
    %v1061 = vadd.f32 %v1043, 1e-06
    %v1062 = vadd.f32 %v1055, 1e-06
    %v1063 = vrcp.pop %v1061
    %v1064 = vmul.f32 %v1061, %v1063
    %v1065 = vsub.f32 1.0, %v1064
    %v1066 = vmul.f32 %v1063, %v1065
    %v1067 = vadd.f32 %v1063, %v1066
    %vm1068 = vweird.f32 %v1061
    %vm1069 = vweird.f32 %v1063
    %vm1070 = vmor %vm1068, %vm1069
    %v1071 = vsel %vm1070, %v1063, %v1067
    %v1072 = vand.u32 2147483647, %v1061
    %vm1073 = vcmp.eq.f32.partialorder %v1072, 8.507059e+37
    %v1074 = vand.u32 %v1061, 2147483648
    %v1075 = vor.u32 1.1754944e-38, %v1074
    %v1076 = vsel %vm1073, %v1075, %v1071
    %v1077 = vrcp.pop %v1062
    %v1078 = vmul.f32 %v1062, %v1077
    %v1079 = vsub.f32 1.0, %v1078
    %v1080 = vmul.f32 %v1077, %v1079
    %v1081 = vadd.f32 %v1077, %v1080
    %vm1082 = vweird.f32 %v1062
    %vm1083 = vweird.f32 %v1077
    %vm1084 = vmor %vm1082, %vm1083
    %v1085 = vsel %vm1084, %v1077, %v1081
    %v1086 = vand.u32 2147483647, %v1062
    %vm1087 = vcmp.eq.f32.partialorder %v1086, 8.507059e+37
    %v1088 = vand.u32 %v1062, 2147483648
    %v1089 = vor.u32 1.1754944e-38, %v1088
    %v1090 = vsel %vm1087, %v1089, %v1085
    %v1091 = vmul.f32 %v1059, %v1076
    %v1092 = vmul.f32 %v1060, %v1090
    %v1094 = vperm.slane %v1011, 0
    %v1096 = vadd.f32 %v1091, %v1094
    %v1097 = vadd.f32 %v1092, %v1094
    %v1098 = vld [vmem:[%s17] sm:$0xff]
    %v1099 = vld [vmem:[%s17 + $0x8] sm:$0xff]
    %v1100 = vld [vmem:[%s17 + $0x10] sm:$0xff]
    %v1101 = vld [vmem:[%s17 + $0x18] sm:$0xff]
    %v1102 = vld [vmem:[%s19] sm:$0x1]
    %v1103 = vld [vmem:[%s21] sm:$0xff]
    %v1104 = vld [vmem:[%s21 + $0x8] sm:$0xff]
    %v1105 = vld [vmem:[%s21 + $0x10] sm:$0xff]
    %v1106 = vld [vmem:[%s21 + $0x18] sm:$0xff]
    %v1107 = vld [vmem:[%s21 + $0x20] sm:$0xff]
    %v1108 = vld [vmem:[%s21 + $0x28] sm:$0xff]
    %v1109 = vld [vmem:[%s21 + $0x30] sm:$0xff]
    %v1110 = vld [vmem:[%s21 + $0x38] sm:$0xff]
    %v1111 = vld [vmem:[%s23] sm:$0x1]
    %v1113 = vperm.slane %v1102, 0
    %v1116 = vsel %vm165, %v1096, 0
    %v1119 = vsel %vm165, %v1097, 0
    %1121 = vmatpush.msra.mxu0 0.0
    %1122 = vmatpush.msra.mxu0 0.0
    %1123 = vmatpush.msra.mxu0 0.0
    %1124 = vmatpush.msra.mxu0 0.0
    %1125 = vmatpush.msra.mxu0 0.0
    %1126 = vmatpush.msra.mxu0 0.0
    %1127 = vmatpush.msra.mxu0 0.0
    %1128 = vmatpush.msra.mxu0 0.0
    %1129 = vmatpush.msra.mxu0 0.0
    %1130 = vmatpush.msra.mxu0 0.0
    %1131 = vmatpush.msra.mxu0 0.0
    %1132 = vmatpush.msra.mxu0 0.0
    %1133 = vmatpush.msra.mxu0 %v1101
    %1134 = vmatpush.msra.mxu0 %v1100
    %1135 = vmatpush.msra.mxu0 %v1099
    %1136 = vmatpush.msra.mxu0 %v1098
    %1137 = vmatmul.f32.gmra.mxu0 %v1116
    %v1138 = vpop.f32.mrf.mxu0
    %v1139 = vadd.f32 %v1113, %v1138
    %1140 = vmatmul.f32.gmra.mxu0 %v1119
    %v1141 = vpop.f32.mrf.mxu0
    %v1142 = vadd.f32 %v1113, %v1141
    %1143 = vdwg.mxu0
    %v1144 = vmax.f32 %v1139, 0.0
    %v1145 = vmax.f32 %v1142, 0.0
    %v1147 = vperm.slane %v1111, 0
    %vm1149 = vcmask 523264
    %v1151 = vsel %vm1149, %v1144, 0
    %v1154 = vsel %vm1149, %v1145, 0
    %1156 = vmatpush.msra.mxu0 0.0
    %1157 = vmatpush.msra.mxu0 0.0
    %1158 = vmatpush.msra.mxu0 0.0
    %1159 = vmatpush.msra.mxu0 0.0
    %1160 = vmatpush.msra.mxu0 0.0
    %1161 = vmatpush.msra.mxu0 0.0
    %1162 = vmatpush.msra.mxu0 0.0
    %1163 = vmatpush.msra.mxu0 0.0
    %1164 = vmatpush.msra.mxu0 %v1110
    %1165 = vmatpush.msra.mxu0 %v1109
    %1166 = vmatpush.msra.mxu0 %v1108
    %1167 = vmatpush.msra.mxu0 %v1107
    %1168 = vmatpush.msra.mxu0 %v1106
    %1169 = vmatpush.msra.mxu0 %v1105
    %1170 = vmatpush.msra.mxu0 %v1104
    %1171 = vmatpush.msra.mxu0 %v1103
    %1172 = vmatmul.f32.gmra.mxu0 %v1151
    %v1173 = vpop.f32.mrf.mxu0
    %v1174 = vadd.f32 %v1147, %v1173
    %1175 = vmatmul.f32.gmra.mxu0 %v1154
    %v1176 = vpop.f32.mrf.mxu0
    %v1177 = vadd.f32 %v1147, %v1176
    %1178 = vdwg.mxu0
    %v1179 = vadd.f32 %v1006, %v1174
    %v1180 = vadd.f32 %v1007, %v1177
    %s1181 = scalar_lea.vmem %s25, 2
    %v1182 = vld [vmem:[%s1181] sm:$0x1]
    %s1183 = scalar_lea.vmem %s27, 2
    %v1184 = vld [vmem:[%s1183] sm:$0x1]
    %v1185 = vsel %vm165, %v1179, 0.0
    %1186 = vadd.xlane.f32.xlu0 %v1185
    %v1187 = vpop.xlane.xlu0 %1186
    %v1188 = vsel %vm165, %v1180, 0.0
    %1189 = vadd.xlane.f32.xlu0 %v1188
    %v1190 = vpop.xlane.xlu0 %1189
    %v1191 = vmul.f32 %v1187, %v178
    %v1192 = vmul.f32 %v1190, %v178
    %v1193 = vsub.f32 %v1179, %v1191
    %v1194 = vsub.f32 %v1180, %v1192
    %v1195 = vmul.f32 %v1193, %v1193
    %v1196 = vmul.f32 %v1194, %v1194
    %v1197 = vsel %vm165, %v1195, 0.0
    %1198 = vadd.xlane.f32.xlu0 %v1197
    %v1199 = vpop.xlane.xlu0 %1198
    %v1200 = vsel %vm165, %v1196, 0.0
    %1201 = vadd.xlane.f32.xlu0 %v1200
    %v1202 = vpop.xlane.xlu0 %1201
    %v1203 = vmul.f32 %v1199, 0.032258064
    %v1204 = vmul.f32 %v1202, 0.032258064
    %v1205 = vrsqrt.pop %v1203
    %v1206 = vmul.f32 %v1205, %v1203
    %v1207 = vmul.f32 %v1206, %v1205
    %v1208 = vmul.f32 0.5, %v1207
    %v1209 = vsub.f32 1.5, %v1208
    %v1210 = vmul.f32 %v1205, %v1209
    %v1211 = vmul.f32 %v1203, %v1210
    %vm1212 = vcmp.eq.f32.partialorder %v1203, inf
    %v1213 = vsel %vm1212, %v1203, %v1211
    %vm1214 = vcmp.eq.f32.partialorder %v1203, 0.0
    %v1215 = vand.u32 %v1203, 2147483648
    %v1216 = vsel %vm1214, %v1215, %v1213
    %v1217 = vrsqrt.pop %v1204
    %v1218 = vmul.f32 %v1217, %v1204
    %v1219 = vmul.f32 %v1218, %v1217
    %v1220 = vmul.f32 0.5, %v1219
    %v1221 = vsub.f32 1.5, %v1220
    %v1222 = vmul.f32 %v1217, %v1221
    %v1223 = vmul.f32 %v1204, %v1222
    %vm1224 = vcmp.eq.f32.partialorder %v1204, inf
    %v1225 = vsel %vm1224, %v1204, %v1223
    %vm1226 = vcmp.eq.f32.partialorder %v1204, 0.0
    %v1227 = vand.u32 %v1204, 2147483648
    %v1228 = vsel %vm1226, %v1227, %v1225
    %v1230 = vperm.slane %v1182, 0
    %v1232 = vmul.f32 %v1230, %v1193
    %v1233 = vmul.f32 %v1230, %v1194
    %v1234 = vadd.f32 %v1216, 1e-06
    %v1235 = vadd.f32 %v1228, 1e-06
    %v1236 = vrcp.pop %v1234
    %v1237 = vmul.f32 %v1234, %v1236
    %v1238 = vsub.f32 1.0, %v1237
    %v1239 = vmul.f32 %v1236, %v1238
    %v1240 = vadd.f32 %v1236, %v1239
    %vm1241 = vweird.f32 %v1234
    %vm1242 = vweird.f32 %v1236
    %vm1243 = vmor %vm1241, %vm1242
    %v1244 = vsel %vm1243, %v1236, %v1240
    %v1245 = vand.u32 2147483647, %v1234
    %vm1246 = vcmp.eq.f32.partialorder %v1245, 8.507059e+37
    %v1247 = vand.u32 %v1234, 2147483648
    %v1248 = vor.u32 1.1754944e-38, %v1247
    %v1249 = vsel %vm1246, %v1248, %v1244
    %v1250 = vrcp.pop %v1235
    %v1251 = vmul.f32 %v1235, %v1250
    %v1252 = vsub.f32 1.0, %v1251
    %v1253 = vmul.f32 %v1250, %v1252
    %v1254 = vadd.f32 %v1250, %v1253
    %vm1255 = vweird.f32 %v1235
    %vm1256 = vweird.f32 %v1250
    %vm1257 = vmor %vm1255, %vm1256
    %v1258 = vsel %vm1257, %v1250, %v1254
    %v1259 = vand.u32 2147483647, %v1235
    %vm1260 = vcmp.eq.f32.partialorder %v1259, 8.507059e+37
    %v1261 = vand.u32 %v1235, 2147483648
    %v1262 = vor.u32 1.1754944e-38, %v1261
    %v1263 = vsel %vm1260, %v1262, %v1258
    %v1264 = vmul.f32 %v1232, %v1249
    %v1265 = vmul.f32 %v1233, %v1263
    %v1267 = vperm.slane %v1184, 0
    %v1269 = vadd.f32 %v1264, %v1267
    %v1270 = vadd.f32 %v1265, %v1267
    %s1271 = scalar_lea.vmem %s9, 32
    %v1272 = vld [vmem:[%s1271] sm:$0xff]
    %v1273 = vld [vmem:[%s1271 + $0x8] sm:$0xff]
    %v1274 = vld [vmem:[%s1271 + $0x10] sm:$0xff]
    %v1275 = vld [vmem:[%s1271 + $0x18] sm:$0xff]
    %s1276 = scalar_lea.vmem %s11, 1
    %v1277 = vld [vmem:[%s1276] sm:$0x1]
    %s1278 = scalar_lea.vmem %s13, 32
    %v1279 = vld [vmem:[%s1278] sm:$0xff]
    %v1280 = vld [vmem:[%s1278 + $0x8] sm:$0xff]
    %v1281 = vld [vmem:[%s1278 + $0x10] sm:$0xff]
    %v1282 = vld [vmem:[%s1278 + $0x18] sm:$0xff]
    %s1283 = scalar_lea.vmem %s15, 1
    %v1284 = vld [vmem:[%s1283] sm:$0x1]
    %v1286 = vperm.slane %v1277, 0
    %v1289 = vsel %vm165, %v1269, 0
    %v1292 = vsel %vm165, %v1270, 0
    %1294 = vmatpush.msra.mxu0 0.0
    %1295 = vmatpush.msra.mxu0 0.0
    %1296 = vmatpush.msra.mxu0 0.0
    %1297 = vmatpush.msra.mxu0 0.0
    %1298 = vmatpush.msra.mxu0 0.0
    %1299 = vmatpush.msra.mxu0 0.0
    %1300 = vmatpush.msra.mxu0 0.0
    %1301 = vmatpush.msra.mxu0 0.0
    %1302 = vmatpush.msra.mxu0 0.0
    %1303 = vmatpush.msra.mxu0 0.0
    %1304 = vmatpush.msra.mxu0 0.0
    %1305 = vmatpush.msra.mxu0 0.0
    %1306 = vmatpush.msra.mxu0 %v1275
    %1307 = vmatpush.msra.mxu0 %v1274
    %1308 = vmatpush.msra.mxu0 %v1273
    %1309 = vmatpush.msra.mxu0 %v1272
    %1310 = vmatmul.f32.gmra.mxu0 %v1289
    %v1311 = vpop.f32.mrf.mxu0
    %v1312 = vadd.f32 %v1286, %v1311
    %1313 = vmatmul.f32.gmra.mxu0 %v1292
    %v1314 = vpop.f32.mrf.mxu0
    %v1315 = vadd.f32 %v1286, %v1314
    %1316 = vdwg.mxu0
    %1318 = vrot.lane.b32.xlu0 %v1312, 96
    %v1319 = vpop.permute.xlu0 %1318
    %v1320 = vsel %vm304, %v1312, 0
    %v1322 = vsel %vm304, %v1319, 0
    %1324 = vmatpush.xpose.msra.mxu0 0.0
    %1325 = vmatpush.xpose.msra.mxu0 0.0
    %1326 = vmatpush.xpose.msra.mxu0 0.0
    %1327 = vmatpush.xpose.msra.mxu0 0.0
    %1328 = vmatpush.xpose.msra.mxu0 0.0
    %1329 = vmatpush.xpose.msra.mxu0 0.0
    %1330 = vmatpush.xpose.msra.mxu0 0.0
    %1331 = vmatpush.xpose.msra.mxu0 0.0
    %1332 = vmatpush.xpose.msra.mxu0 0.0
    %1333 = vmatpush.xpose.msra.mxu0 0.0
    %1334 = vmatpush.xpose.msra.mxu0 0.0
    %1335 = vmatpush.xpose.msra.mxu0 0.0
    %1336 = vmatpush.xpose.msra.mxu0 0.0
    %1337 = vmatpush.xpose.msra.mxu0 0.0
    %1338 = vmatpush.xpose.msra.mxu0 0.0
    %1339 = vmatpush.xpose.msra.mxu0 %v1322
    %1340 = vmatmul.f32.gmra.mxu0 %v1320
    %v1341 = vpop.f32.mrf.mxu0
    %v1342 = vadd.f32 0.0, %v1341
    %1343 = vdwg.mxu0
    %1345 = vrot.lane.b32.xlu0 %v1315, 96
    %v1346 = vpop.permute.xlu0 %1345
    %v1347 = vsel %vm304, %v1315, 0
    %v1349 = vsel %vm304, %v1346, 0
    %1351 = vmatpush.xpose.msra.mxu0 0.0
    %1352 = vmatpush.xpose.msra.mxu0 0.0
    %1353 = vmatpush.xpose.msra.mxu0 0.0
    %1354 = vmatpush.xpose.msra.mxu0 0.0
    %1355 = vmatpush.xpose.msra.mxu0 0.0
    %1356 = vmatpush.xpose.msra.mxu0 0.0
    %1357 = vmatpush.xpose.msra.mxu0 0.0
    %1358 = vmatpush.xpose.msra.mxu0 0.0
    %1359 = vmatpush.xpose.msra.mxu0 0.0
    %1360 = vmatpush.xpose.msra.mxu0 0.0
    %1361 = vmatpush.xpose.msra.mxu0 0.0
    %1362 = vmatpush.xpose.msra.mxu0 0.0
    %1363 = vmatpush.xpose.msra.mxu0 0.0
    %1364 = vmatpush.xpose.msra.mxu0 0.0
    %1365 = vmatpush.xpose.msra.mxu0 0.0
    %1366 = vmatpush.xpose.msra.mxu0 %v1349
    %1367 = vmatmul.f32.gmra.mxu0 %v1347
    %v1368 = vpop.f32.mrf.mxu0
    %v1369 = vadd.f32 0.0, %v1368
    %1370 = vdwg.mxu0
    %v1371 = vmul.f32 %v1342, 0.35355338
    %v1372 = vmul.f32 %v1369, 0.35355338
    %v1373 = vsel %vm358, %v1371, -1e+09
    %v1374 = vsel %vm359, %v1372, -1e+09
    %v1375 = vsel %vm304, %v1373, -inf
    %1376 = vmax.xlane.f32.xlu0 %v1375
    %v1377 = vpop.xlane.xlu0 %1376
    %v1378 = vsel %vm304, %v1374, -inf
    %1379 = vmax.xlane.f32.xlu0 %v1378
    %v1380 = vpop.xlane.xlu0 %1379
    %v1381 = vsub.f32 %v1373, %v1377
    %v1382 = vsub.f32 %v1374, %v1380
    %v1383 = vmul.f32 %v1381, 1.442695
    %v1384 = vpow.pop %v1383
    %v1385 = vmul.f32 %v1382, 1.442695
    %v1386 = vpow.pop %v1385
    %v1387 = vsel %vm304, %v1384, 0.0
    %1388 = vadd.xlane.f32.xlu0 %v1387
    %v1389 = vpop.xlane.xlu0 %1388
    %v1390 = vsel %vm304, %v1386, 0.0
    %1391 = vadd.xlane.f32.xlu0 %v1390
    %v1392 = vpop.xlane.xlu0 %1391
    %v1393 = vrcp.pop %v1389
    %v1394 = vmul.f32 %v1389, %v1393
    %v1395 = vsub.f32 1.0, %v1394
    %v1396 = vmul.f32 %v1393, %v1395
    %v1397 = vadd.f32 %v1393, %v1396
    %vm1398 = vweird.f32 %v1389
    %vm1399 = vweird.f32 %v1393
    %vm1400 = vmor %vm1398, %vm1399
    %v1401 = vsel %vm1400, %v1393, %v1397
    %v1402 = vand.u32 2147483647, %v1389
    %vm1403 = vcmp.eq.f32.partialorder %v1402, 8.507059e+37
    %v1404 = vand.u32 %v1389, 2147483648
    %v1405 = vor.u32 1.1754944e-38, %v1404
    %v1406 = vsel %vm1403, %v1405, %v1401
    %v1407 = vrcp.pop %v1392
    %v1408 = vmul.f32 %v1392, %v1407
    %v1409 = vsub.f32 1.0, %v1408
    %v1410 = vmul.f32 %v1407, %v1409
    %v1411 = vadd.f32 %v1407, %v1410
    %vm1412 = vweird.f32 %v1392
    %vm1413 = vweird.f32 %v1407
    %vm1414 = vmor %vm1412, %vm1413
    %v1415 = vsel %vm1414, %v1407, %v1411
    %v1416 = vand.u32 2147483647, %v1392
    %vm1417 = vcmp.eq.f32.partialorder %v1416, 8.507059e+37
    %v1418 = vand.u32 %v1392, 2147483648
    %v1419 = vor.u32 1.1754944e-38, %v1418
    %v1420 = vsel %vm1417, %v1419, %v1415
    %v1421 = vmul.f32 %v1384, %v1406
    %v1422 = vmul.f32 %v1386, %v1420
    %1423 = vrot.lane.b32.xlu0 %v1312, 64
    %v1424 = vpop.permute.xlu0 %1423
    %v1427 = vsel %vm304, %v1421, 0
    %1429 = vmatpush.msra.mxu0 0.0
    %1430 = vmatpush.msra.mxu0 0.0
    %1431 = vmatpush.msra.mxu0 0.0
    %1432 = vmatpush.msra.mxu0 0.0
    %1433 = vmatpush.msra.mxu0 0.0
    %1434 = vmatpush.msra.mxu0 0.0
    %1435 = vmatpush.msra.mxu0 0.0
    %1436 = vmatpush.msra.mxu0 0.0
    %1437 = vmatpush.msra.mxu0 0.0
    %1438 = vmatpush.msra.mxu0 0.0
    %1439 = vmatpush.msra.mxu0 0.0
    %1440 = vmatpush.msra.mxu0 0.0
    %1441 = vmatpush.msra.mxu0 0.0
    %1442 = vmatpush.msra.mxu0 0.0
    %1443 = vmatpush.msra.mxu0 0.0
    %1444 = vmatpush.msra.mxu0 %v1424
    %1445 = vmatmul.f32.gmra.mxu0 %v1427
    %v1446 = vpop.f32.mrf.mxu0
    %v1447 = vadd.f32 0.0, %v1446
    %1448 = vdwg.mxu0
    %1449 = vrot.lane.b32.xlu0 %v1315, 64
    %v1450 = vpop.permute.xlu0 %1449
    %v1453 = vsel %vm304, %v1422, 0
    %1455 = vmatpush.msra.mxu0 0.0
    %1456 = vmatpush.msra.mxu0 0.0
    %1457 = vmatpush.msra.mxu0 0.0
    %1458 = vmatpush.msra.mxu0 0.0
    %1459 = vmatpush.msra.mxu0 0.0
    %1460 = vmatpush.msra.mxu0 0.0
    %1461 = vmatpush.msra.mxu0 0.0
    %1462 = vmatpush.msra.mxu0 0.0
    %1463 = vmatpush.msra.mxu0 0.0
    %1464 = vmatpush.msra.mxu0 0.0
    %1465 = vmatpush.msra.mxu0 0.0
    %1466 = vmatpush.msra.mxu0 0.0
    %1467 = vmatpush.msra.mxu0 0.0
    %1468 = vmatpush.msra.mxu0 0.0
    %1469 = vmatpush.msra.mxu0 0.0
    %1470 = vmatpush.msra.mxu0 %v1450
    %1471 = vmatmul.f32.gmra.mxu0 %v1453
    %v1472 = vpop.f32.mrf.mxu0
    %v1473 = vadd.f32 0.0, %v1472
    %1474 = vdwg.mxu0
    %1475 = vrot.lane.b32.xlu0 %v1312, 120
    %v1476 = vpop.permute.xlu0 %1475
    %1477 = vrot.lane.b32.xlu0 %v1312, 88
    %v1478 = vpop.permute.xlu0 %1477
    %v1479 = vsel %vm304, %v1476, 0
    %v1481 = vsel %vm304, %v1478, 0
    %1483 = vmatpush.xpose.msra.mxu0 0.0
    %1484 = vmatpush.xpose.msra.mxu0 0.0
    %1485 = vmatpush.xpose.msra.mxu0 0.0
    %1486 = vmatpush.xpose.msra.mxu0 0.0
    %1487 = vmatpush.xpose.msra.mxu0 0.0
    %1488 = vmatpush.xpose.msra.mxu0 0.0
    %1489 = vmatpush.xpose.msra.mxu0 0.0
    %1490 = vmatpush.xpose.msra.mxu0 0.0
    %1491 = vmatpush.xpose.msra.mxu0 0.0
    %1492 = vmatpush.xpose.msra.mxu0 0.0
    %1493 = vmatpush.xpose.msra.mxu0 0.0
    %1494 = vmatpush.xpose.msra.mxu0 0.0
    %1495 = vmatpush.xpose.msra.mxu0 0.0
    %1496 = vmatpush.xpose.msra.mxu0 0.0
    %1497 = vmatpush.xpose.msra.mxu0 0.0
    %1498 = vmatpush.xpose.msra.mxu0 %v1481
    %1499 = vmatmul.f32.gmra.mxu0 %v1479
    %v1500 = vpop.f32.mrf.mxu0
    %v1501 = vadd.f32 0.0, %v1500
    %1502 = vdwg.mxu0
    %1503 = vrot.lane.b32.xlu0 %v1315, 120
    %v1504 = vpop.permute.xlu0 %1503
    %1505 = vrot.lane.b32.xlu0 %v1315, 88
    %v1506 = vpop.permute.xlu0 %1505
    %v1507 = vsel %vm304, %v1504, 0
    %v1509 = vsel %vm304, %v1506, 0
    %1511 = vmatpush.xpose.msra.mxu0 0.0
    %1512 = vmatpush.xpose.msra.mxu0 0.0
    %1513 = vmatpush.xpose.msra.mxu0 0.0
    %1514 = vmatpush.xpose.msra.mxu0 0.0
    %1515 = vmatpush.xpose.msra.mxu0 0.0
    %1516 = vmatpush.xpose.msra.mxu0 0.0
    %1517 = vmatpush.xpose.msra.mxu0 0.0
    %1518 = vmatpush.xpose.msra.mxu0 0.0
    %1519 = vmatpush.xpose.msra.mxu0 0.0
    %1520 = vmatpush.xpose.msra.mxu0 0.0
    %1521 = vmatpush.xpose.msra.mxu0 0.0
    %1522 = vmatpush.xpose.msra.mxu0 0.0
    %1523 = vmatpush.xpose.msra.mxu0 0.0
    %1524 = vmatpush.xpose.msra.mxu0 0.0
    %1525 = vmatpush.xpose.msra.mxu0 0.0
    %1526 = vmatpush.xpose.msra.mxu0 %v1509
    %1527 = vmatmul.f32.gmra.mxu0 %v1507
    %v1528 = vpop.f32.mrf.mxu0
    %v1529 = vadd.f32 0.0, %v1528
    %1530 = vdwg.mxu0
    %v1531 = vmul.f32 %v1501, 0.35355338
    %v1532 = vmul.f32 %v1529, 0.35355338
    %v1533 = vsel %vm358, %v1531, -1e+09
    %v1534 = vsel %vm359, %v1532, -1e+09
    %v1535 = vsel %vm304, %v1533, -inf
    %1536 = vmax.xlane.f32.xlu0 %v1535
    %v1537 = vpop.xlane.xlu0 %1536
    %v1538 = vsel %vm304, %v1534, -inf
    %1539 = vmax.xlane.f32.xlu0 %v1538
    %v1540 = vpop.xlane.xlu0 %1539
    %v1541 = vsub.f32 %v1533, %v1537
    %v1542 = vsub.f32 %v1534, %v1540
    %v1543 = vmul.f32 %v1541, 1.442695
    %v1544 = vpow.pop %v1543
    %v1545 = vmul.f32 %v1542, 1.442695
    %v1546 = vpow.pop %v1545
    %v1547 = vsel %vm304, %v1544, 0.0
    %1548 = vadd.xlane.f32.xlu0 %v1547
    %v1549 = vpop.xlane.xlu0 %1548
    %v1550 = vsel %vm304, %v1546, 0.0
    %1551 = vadd.xlane.f32.xlu0 %v1550
    %v1552 = vpop.xlane.xlu0 %1551
    %v1553 = vrcp.pop %v1549
    %v1554 = vmul.f32 %v1549, %v1553
    %v1555 = vsub.f32 1.0, %v1554
    %v1556 = vmul.f32 %v1553, %v1555
    %v1557 = vadd.f32 %v1553, %v1556
    %vm1558 = vweird.f32 %v1549
    %vm1559 = vweird.f32 %v1553
    %vm1560 = vmor %vm1558, %vm1559
    %v1561 = vsel %vm1560, %v1553, %v1557
    %v1562 = vand.u32 2147483647, %v1549
    %vm1563 = vcmp.eq.f32.partialorder %v1562, 8.507059e+37
    %v1564 = vand.u32 %v1549, 2147483648
    %v1565 = vor.u32 1.1754944e-38, %v1564
    %v1566 = vsel %vm1563, %v1565, %v1561
    %v1567 = vrcp.pop %v1552
    %v1568 = vmul.f32 %v1552, %v1567
    %v1569 = vsub.f32 1.0, %v1568
    %v1570 = vmul.f32 %v1567, %v1569
    %v1571 = vadd.f32 %v1567, %v1570
    %vm1572 = vweird.f32 %v1552
    %vm1573 = vweird.f32 %v1567
    %vm1574 = vmor %vm1572, %vm1573
    %v1575 = vsel %vm1574, %v1567, %v1571
    %v1576 = vand.u32 2147483647, %v1552
    %vm1577 = vcmp.eq.f32.partialorder %v1576, 8.507059e+37
    %v1578 = vand.u32 %v1552, 2147483648
    %v1579 = vor.u32 1.1754944e-38, %v1578
    %v1580 = vsel %vm1577, %v1579, %v1575
    %v1581 = vmul.f32 %v1544, %v1566
    %v1582 = vmul.f32 %v1546, %v1580
    %1583 = vrot.lane.b32.xlu0 %v1312, 56
    %v1584 = vpop.permute.xlu0 %1583
    %v1587 = vsel %vm304, %v1581, 0
    %1589 = vmatpush.msra.mxu0 0.0
    %1590 = vmatpush.msra.mxu0 0.0
    %1591 = vmatpush.msra.mxu0 0.0
    %1592 = vmatpush.msra.mxu0 0.0
    %1593 = vmatpush.msra.mxu0 0.0
    %1594 = vmatpush.msra.mxu0 0.0
    %1595 = vmatpush.msra.mxu0 0.0
    %1596 = vmatpush.msra.mxu0 0.0
    %1597 = vmatpush.msra.mxu0 0.0
    %1598 = vmatpush.msra.mxu0 0.0
    %1599 = vmatpush.msra.mxu0 0.0
    %1600 = vmatpush.msra.mxu0 0.0
    %1601 = vmatpush.msra.mxu0 0.0
    %1602 = vmatpush.msra.mxu0 0.0
    %1603 = vmatpush.msra.mxu0 0.0
    %1604 = vmatpush.msra.mxu0 %v1584
    %1605 = vmatmul.f32.gmra.mxu0 %v1587
    %v1606 = vpop.f32.mrf.mxu0
    %v1607 = vadd.f32 0.0, %v1606
    %1608 = vdwg.mxu0
    %1609 = vrot.lane.b32.xlu0 %v1315, 56
    %v1610 = vpop.permute.xlu0 %1609
    %v1613 = vsel %vm304, %v1582, 0
    %1615 = vmatpush.msra.mxu0 0.0
    %1616 = vmatpush.msra.mxu0 0.0
    %1617 = vmatpush.msra.mxu0 0.0
    %1618 = vmatpush.msra.mxu0 0.0
    %1619 = vmatpush.msra.mxu0 0.0
    %1620 = vmatpush.msra.mxu0 0.0
    %1621 = vmatpush.msra.mxu0 0.0
    %1622 = vmatpush.msra.mxu0 0.0
    %1623 = vmatpush.msra.mxu0 0.0
    %1624 = vmatpush.msra.mxu0 0.0
    %1625 = vmatpush.msra.mxu0 0.0
    %1626 = vmatpush.msra.mxu0 0.0
    %1627 = vmatpush.msra.mxu0 0.0
    %1628 = vmatpush.msra.mxu0 0.0
    %1629 = vmatpush.msra.mxu0 0.0
    %1630 = vmatpush.msra.mxu0 %v1610
    %1631 = vmatmul.f32.gmra.mxu0 %v1613
    %v1632 = vpop.f32.mrf.mxu0
    %v1633 = vadd.f32 0.0, %v1632
    %1634 = vdwg.mxu0
    %1635 = vrot.lane.b32.xlu0 %v1312, 112
    %v1636 = vpop.permute.xlu0 %1635
    %1637 = vrot.lane.b32.xlu0 %v1312, 80
    %v1638 = vpop.permute.xlu0 %1637
    %v1639 = vsel %vm304, %v1636, 0
    %v1641 = vsel %vm304, %v1638, 0
    %1643 = vmatpush.xpose.msra.mxu0 0.0
    %1644 = vmatpush.xpose.msra.mxu0 0.0
    %1645 = vmatpush.xpose.msra.mxu0 0.0
    %1646 = vmatpush.xpose.msra.mxu0 0.0
    %1647 = vmatpush.xpose.msra.mxu0 0.0
    %1648 = vmatpush.xpose.msra.mxu0 0.0
    %1649 = vmatpush.xpose.msra.mxu0 0.0
    %1650 = vmatpush.xpose.msra.mxu0 0.0
    %1651 = vmatpush.xpose.msra.mxu0 0.0
    %1652 = vmatpush.xpose.msra.mxu0 0.0
    %1653 = vmatpush.xpose.msra.mxu0 0.0
    %1654 = vmatpush.xpose.msra.mxu0 0.0
    %1655 = vmatpush.xpose.msra.mxu0 0.0
    %1656 = vmatpush.xpose.msra.mxu0 0.0
    %1657 = vmatpush.xpose.msra.mxu0 0.0
    %1658 = vmatpush.xpose.msra.mxu0 %v1641
    %1659 = vmatmul.f32.gmra.mxu0 %v1639
    %v1660 = vpop.f32.mrf.mxu0
    %v1661 = vadd.f32 0.0, %v1660
    %1662 = vdwg.mxu0
    %1663 = vrot.lane.b32.xlu0 %v1315, 112
    %v1664 = vpop.permute.xlu0 %1663
    %1665 = vrot.lane.b32.xlu0 %v1315, 80
    %v1666 = vpop.permute.xlu0 %1665
    %v1667 = vsel %vm304, %v1664, 0
    %v1669 = vsel %vm304, %v1666, 0
    %1671 = vmatpush.xpose.msra.mxu0 0.0
    %1672 = vmatpush.xpose.msra.mxu0 0.0
    %1673 = vmatpush.xpose.msra.mxu0 0.0
    %1674 = vmatpush.xpose.msra.mxu0 0.0
    %1675 = vmatpush.xpose.msra.mxu0 0.0
    %1676 = vmatpush.xpose.msra.mxu0 0.0
    %1677 = vmatpush.xpose.msra.mxu0 0.0
    %1678 = vmatpush.xpose.msra.mxu0 0.0
    %1679 = vmatpush.xpose.msra.mxu0 0.0
    %1680 = vmatpush.xpose.msra.mxu0 0.0
    %1681 = vmatpush.xpose.msra.mxu0 0.0
    %1682 = vmatpush.xpose.msra.mxu0 0.0
    %1683 = vmatpush.xpose.msra.mxu0 0.0
    %1684 = vmatpush.xpose.msra.mxu0 0.0
    %1685 = vmatpush.xpose.msra.mxu0 0.0
    %1686 = vmatpush.xpose.msra.mxu0 %v1669
    %1687 = vmatmul.f32.gmra.mxu0 %v1667
    %v1688 = vpop.f32.mrf.mxu0
    %v1689 = vadd.f32 0.0, %v1688
    %1690 = vdwg.mxu0
    %v1691 = vmul.f32 %v1661, 0.35355338
    %v1692 = vmul.f32 %v1689, 0.35355338
    %v1693 = vsel %vm358, %v1691, -1e+09
    %v1694 = vsel %vm359, %v1692, -1e+09
    %v1695 = vsel %vm304, %v1693, -inf
    %1696 = vmax.xlane.f32.xlu0 %v1695
    %v1697 = vpop.xlane.xlu0 %1696
    %v1698 = vsel %vm304, %v1694, -inf
    %1699 = vmax.xlane.f32.xlu0 %v1698
    %v1700 = vpop.xlane.xlu0 %1699
    %v1701 = vsub.f32 %v1693, %v1697
    %v1702 = vsub.f32 %v1694, %v1700
    %v1703 = vmul.f32 %v1701, 1.442695
    %v1704 = vpow.pop %v1703
    %v1705 = vmul.f32 %v1702, 1.442695
    %v1706 = vpow.pop %v1705
    %v1707 = vsel %vm304, %v1704, 0.0
    %1708 = vadd.xlane.f32.xlu0 %v1707
    %v1709 = vpop.xlane.xlu0 %1708
    %v1710 = vsel %vm304, %v1706, 0.0
    %1711 = vadd.xlane.f32.xlu0 %v1710
    %v1712 = vpop.xlane.xlu0 %1711
    %v1713 = vrcp.pop %v1709
    %v1714 = vmul.f32 %v1709, %v1713
    %v1715 = vsub.f32 1.0, %v1714
    %v1716 = vmul.f32 %v1713, %v1715
    %v1717 = vadd.f32 %v1713, %v1716
    %vm1718 = vweird.f32 %v1709
    %vm1719 = vweird.f32 %v1713
    %vm1720 = vmor %vm1718, %vm1719
    %v1721 = vsel %vm1720, %v1713, %v1717
    %v1722 = vand.u32 2147483647, %v1709
    %vm1723 = vcmp.eq.f32.partialorder %v1722, 8.507059e+37
    %v1724 = vand.u32 %v1709, 2147483648
    %v1725 = vor.u32 1.1754944e-38, %v1724
    %v1726 = vsel %vm1723, %v1725, %v1721
    %v1727 = vrcp.pop %v1712
    %v1728 = vmul.f32 %v1712, %v1727
    %v1729 = vsub.f32 1.0, %v1728
    %v1730 = vmul.f32 %v1727, %v1729
    %v1731 = vadd.f32 %v1727, %v1730
    %vm1732 = vweird.f32 %v1712
    %vm1733 = vweird.f32 %v1727
    %vm1734 = vmor %vm1732, %vm1733
    %v1735 = vsel %vm1734, %v1727, %v1731
    %v1736 = vand.u32 2147483647, %v1712
    %vm1737 = vcmp.eq.f32.partialorder %v1736, 8.507059e+37
    %v1738 = vand.u32 %v1712, 2147483648
    %v1739 = vor.u32 1.1754944e-38, %v1738
    %v1740 = vsel %vm1737, %v1739, %v1735
    %v1741 = vmul.f32 %v1704, %v1726
    %v1742 = vmul.f32 %v1706, %v1740
    %1743 = vrot.lane.b32.xlu0 %v1312, 48
    %v1744 = vpop.permute.xlu0 %1743
    %v1747 = vsel %vm304, %v1741, 0
    %1749 = vmatpush.msra.mxu0 0.0
    %1750 = vmatpush.msra.mxu0 0.0
    %1751 = vmatpush.msra.mxu0 0.0
    %1752 = vmatpush.msra.mxu0 0.0
    %1753 = vmatpush.msra.mxu0 0.0
    %1754 = vmatpush.msra.mxu0 0.0
    %1755 = vmatpush.msra.mxu0 0.0
    %1756 = vmatpush.msra.mxu0 0.0
    %1757 = vmatpush.msra.mxu0 0.0
    %1758 = vmatpush.msra.mxu0 0.0
    %1759 = vmatpush.msra.mxu0 0.0
    %1760 = vmatpush.msra.mxu0 0.0
    %1761 = vmatpush.msra.mxu0 0.0
    %1762 = vmatpush.msra.mxu0 0.0
    %1763 = vmatpush.msra.mxu0 0.0
    %1764 = vmatpush.msra.mxu0 %v1744
    %1765 = vmatmul.f32.gmra.mxu0 %v1747
    %v1766 = vpop.f32.mrf.mxu0
    %v1767 = vadd.f32 0.0, %v1766
    %1768 = vdwg.mxu0
    %1769 = vrot.lane.b32.xlu0 %v1315, 48
    %v1770 = vpop.permute.xlu0 %1769
    %v1773 = vsel %vm304, %v1742, 0
    %1775 = vmatpush.msra.mxu0 0.0
    %1776 = vmatpush.msra.mxu0 0.0
    %1777 = vmatpush.msra.mxu0 0.0
    %1778 = vmatpush.msra.mxu0 0.0
    %1779 = vmatpush.msra.mxu0 0.0
    %1780 = vmatpush.msra.mxu0 0.0
    %1781 = vmatpush.msra.mxu0 0.0
    %1782 = vmatpush.msra.mxu0 0.0
    %1783 = vmatpush.msra.mxu0 0.0
    %1784 = vmatpush.msra.mxu0 0.0
    %1785 = vmatpush.msra.mxu0 0.0
    %1786 = vmatpush.msra.mxu0 0.0
    %1787 = vmatpush.msra.mxu0 0.0
    %1788 = vmatpush.msra.mxu0 0.0
    %1789 = vmatpush.msra.mxu0 0.0
    %1790 = vmatpush.msra.mxu0 %v1770
    %1791 = vmatmul.f32.gmra.mxu0 %v1773
    %v1792 = vpop.f32.mrf.mxu0
    %v1793 = vadd.f32 0.0, %v1792
    %1794 = vdwg.mxu0
    %1795 = vrot.lane.b32.xlu0 %v1312, 104
    %v1796 = vpop.permute.xlu0 %1795
    %1797 = vrot.lane.b32.xlu0 %v1312, 72
    %v1798 = vpop.permute.xlu0 %1797
    %v1799 = vsel %vm304, %v1796, 0
    %v1801 = vsel %vm304, %v1798, 0
    %1803 = vmatpush.xpose.msra.mxu0 0.0
    %1804 = vmatpush.xpose.msra.mxu0 0.0
    %1805 = vmatpush.xpose.msra.mxu0 0.0
    %1806 = vmatpush.xpose.msra.mxu0 0.0
    %1807 = vmatpush.xpose.msra.mxu0 0.0
    %1808 = vmatpush.xpose.msra.mxu0 0.0
    %1809 = vmatpush.xpose.msra.mxu0 0.0
    %1810 = vmatpush.xpose.msra.mxu0 0.0
    %1811 = vmatpush.xpose.msra.mxu0 0.0
    %1812 = vmatpush.xpose.msra.mxu0 0.0
    %1813 = vmatpush.xpose.msra.mxu0 0.0
    %1814 = vmatpush.xpose.msra.mxu0 0.0
    %1815 = vmatpush.xpose.msra.mxu0 0.0
    %1816 = vmatpush.xpose.msra.mxu0 0.0
    %1817 = vmatpush.xpose.msra.mxu0 0.0
    %1818 = vmatpush.xpose.msra.mxu0 %v1801
    %1819 = vmatmul.f32.gmra.mxu0 %v1799
    %v1820 = vpop.f32.mrf.mxu0
    %v1821 = vadd.f32 0.0, %v1820
    %1822 = vdwg.mxu0
    %1823 = vrot.lane.b32.xlu0 %v1315, 104
    %v1824 = vpop.permute.xlu0 %1823
    %1825 = vrot.lane.b32.xlu0 %v1315, 72
    %v1826 = vpop.permute.xlu0 %1825
    %v1827 = vsel %vm304, %v1824, 0
    %v1829 = vsel %vm304, %v1826, 0
    %1831 = vmatpush.xpose.msra.mxu0 0.0
    %1832 = vmatpush.xpose.msra.mxu0 0.0
    %1833 = vmatpush.xpose.msra.mxu0 0.0
    %1834 = vmatpush.xpose.msra.mxu0 0.0
    %1835 = vmatpush.xpose.msra.mxu0 0.0
    %1836 = vmatpush.xpose.msra.mxu0 0.0
    %1837 = vmatpush.xpose.msra.mxu0 0.0
    %1838 = vmatpush.xpose.msra.mxu0 0.0
    %1839 = vmatpush.xpose.msra.mxu0 0.0
    %1840 = vmatpush.xpose.msra.mxu0 0.0
    %1841 = vmatpush.xpose.msra.mxu0 0.0
    %1842 = vmatpush.xpose.msra.mxu0 0.0
    %1843 = vmatpush.xpose.msra.mxu0 0.0
    %1844 = vmatpush.xpose.msra.mxu0 0.0
    %1845 = vmatpush.xpose.msra.mxu0 0.0
    %1846 = vmatpush.xpose.msra.mxu0 %v1829
    %1847 = vmatmul.f32.gmra.mxu0 %v1827
    %v1848 = vpop.f32.mrf.mxu0
    %v1849 = vadd.f32 0.0, %v1848
    %1850 = vdwg.mxu0
    %v1851 = vmul.f32 %v1821, 0.35355338
    %v1852 = vmul.f32 %v1849, 0.35355338
    %v1853 = vsel %vm358, %v1851, -1e+09
    %v1854 = vsel %vm359, %v1852, -1e+09
    %v1855 = vsel %vm304, %v1853, -inf
    %1856 = vmax.xlane.f32.xlu0 %v1855
    %v1857 = vpop.xlane.xlu0 %1856
    %v1858 = vsel %vm304, %v1854, -inf
    %1859 = vmax.xlane.f32.xlu0 %v1858
    %v1860 = vpop.xlane.xlu0 %1859
    %v1861 = vsub.f32 %v1853, %v1857
    %v1862 = vsub.f32 %v1854, %v1860
    %v1863 = vmul.f32 %v1861, 1.442695
    %v1864 = vpow.pop %v1863
    %v1865 = vmul.f32 %v1862, 1.442695
    %v1866 = vpow.pop %v1865
    %v1867 = vsel %vm304, %v1864, 0.0
    %1868 = vadd.xlane.f32.xlu0 %v1867
    %v1869 = vpop.xlane.xlu0 %1868
    %v1870 = vsel %vm304, %v1866, 0.0
    %1871 = vadd.xlane.f32.xlu0 %v1870
    %v1872 = vpop.xlane.xlu0 %1871
    %v1873 = vrcp.pop %v1869
    %v1874 = vmul.f32 %v1869, %v1873
    %v1875 = vsub.f32 1.0, %v1874
    %v1876 = vmul.f32 %v1873, %v1875
    %v1877 = vadd.f32 %v1873, %v1876
    %vm1878 = vweird.f32 %v1869
    %vm1879 = vweird.f32 %v1873
    %vm1880 = vmor %vm1878, %vm1879
    %v1881 = vsel %vm1880, %v1873, %v1877
    %v1882 = vand.u32 2147483647, %v1869
    %vm1883 = vcmp.eq.f32.partialorder %v1882, 8.507059e+37
    %v1884 = vand.u32 %v1869, 2147483648
    %v1885 = vor.u32 1.1754944e-38, %v1884
    %v1886 = vsel %vm1883, %v1885, %v1881
    %v1887 = vrcp.pop %v1872
    %v1888 = vmul.f32 %v1872, %v1887
    %v1889 = vsub.f32 1.0, %v1888
    %v1890 = vmul.f32 %v1887, %v1889
    %v1891 = vadd.f32 %v1887, %v1890
    %vm1892 = vweird.f32 %v1872
    %vm1893 = vweird.f32 %v1887
    %vm1894 = vmor %vm1892, %vm1893
    %v1895 = vsel %vm1894, %v1887, %v1891
    %v1896 = vand.u32 2147483647, %v1872
    %vm1897 = vcmp.eq.f32.partialorder %v1896, 8.507059e+37
    %v1898 = vand.u32 %v1872, 2147483648
    %v1899 = vor.u32 1.1754944e-38, %v1898
    %v1900 = vsel %vm1897, %v1899, %v1895
    %v1901 = vmul.f32 %v1864, %v1886
    %v1902 = vmul.f32 %v1866, %v1900
    %1903 = vrot.lane.b32.xlu0 %v1312, 40
    %v1904 = vpop.permute.xlu0 %1903
    %v1907 = vsel %vm304, %v1901, 0
    %1909 = vmatpush.msra.mxu0 0.0
    %1910 = vmatpush.msra.mxu0 0.0
    %1911 = vmatpush.msra.mxu0 0.0
    %1912 = vmatpush.msra.mxu0 0.0
    %1913 = vmatpush.msra.mxu0 0.0
    %1914 = vmatpush.msra.mxu0 0.0
    %1915 = vmatpush.msra.mxu0 0.0
    %1916 = vmatpush.msra.mxu0 0.0
    %1917 = vmatpush.msra.mxu0 0.0
    %1918 = vmatpush.msra.mxu0 0.0
    %1919 = vmatpush.msra.mxu0 0.0
    %1920 = vmatpush.msra.mxu0 0.0
    %1921 = vmatpush.msra.mxu0 0.0
    %1922 = vmatpush.msra.mxu0 0.0
    %1923 = vmatpush.msra.mxu0 0.0
    %1924 = vmatpush.msra.mxu0 %v1904
    %1925 = vmatmul.f32.gmra.mxu0 %v1907
    %v1926 = vpop.f32.mrf.mxu0
    %v1927 = vadd.f32 0.0, %v1926
    %1928 = vdwg.mxu0
    %1929 = vrot.lane.b32.xlu0 %v1315, 40
    %v1930 = vpop.permute.xlu0 %1929
    %v1933 = vsel %vm304, %v1902, 0
    %1935 = vmatpush.msra.mxu0 0.0
    %1936 = vmatpush.msra.mxu0 0.0
    %1937 = vmatpush.msra.mxu0 0.0
    %1938 = vmatpush.msra.mxu0 0.0
    %1939 = vmatpush.msra.mxu0 0.0
    %1940 = vmatpush.msra.mxu0 0.0
    %1941 = vmatpush.msra.mxu0 0.0
    %1942 = vmatpush.msra.mxu0 0.0
    %1943 = vmatpush.msra.mxu0 0.0
    %1944 = vmatpush.msra.mxu0 0.0
    %1945 = vmatpush.msra.mxu0 0.0
    %1946 = vmatpush.msra.mxu0 0.0
    %1947 = vmatpush.msra.mxu0 0.0
    %1948 = vmatpush.msra.mxu0 0.0
    %1949 = vmatpush.msra.mxu0 0.0
    %1950 = vmatpush.msra.mxu0 %v1930
    %1951 = vmatmul.f32.gmra.mxu0 %v1933
    %v1952 = vpop.f32.mrf.mxu0
    %v1953 = vadd.f32 0.0, %v1952
    %1954 = vdwg.mxu0
    %1957 = vrot.lane.b32.xlu0 %v1607, 8
    %v1958 = vpop.permute.xlu0 %1957
    %1959 = vrot.lane.b32.xlu0 %v1633, 8
    %v1960 = vpop.permute.xlu0 %1959
    %1965 = vrot.lane.b32.xlu0 %v1767, 16
    %v1966 = vpop.permute.xlu0 %1965
    %1967 = vrot.lane.b32.xlu0 %v1793, 16
    %v1968 = vpop.permute.xlu0 %1967
    %1973 = vrot.lane.b32.xlu0 %v1927, 24
    %v1974 = vpop.permute.xlu0 %1973
    %1975 = vrot.lane.b32.xlu0 %v1953, 24
    %v1976 = vpop.permute.xlu0 %1975
    %v1979 = vsel %vm304, %v1447, %v1958
    %v1980 = vsel %vm304, %v1473, %v1960
    %v1981 = vsel %vm968, %v1979, %v1966
    %v1982 = vsel %vm968, %v1980, %v1968
    %v1983 = vsel %vm971, %v1981, %v1974
    %v1984 = vsel %vm971, %v1982, %v1976
    %v1986 = vperm.slane %v1284, 0
    %v1989 = vsel %vm165, %v1983, 0
    %v1992 = vsel %vm165, %v1984, 0
    %1994 = vmatpush.msra.mxu0 0.0
    %1995 = vmatpush.msra.mxu0 0.0
    %1996 = vmatpush.msra.mxu0 0.0
    %1997 = vmatpush.msra.mxu0 0.0
    %1998 = vmatpush.msra.mxu0 0.0
    %1999 = vmatpush.msra.mxu0 0.0
    %2000 = vmatpush.msra.mxu0 0.0
    %2001 = vmatpush.msra.mxu0 0.0
    %2002 = vmatpush.msra.mxu0 0.0
    %2003 = vmatpush.msra.mxu0 0.0
    %2004 = vmatpush.msra.mxu0 0.0
    %2005 = vmatpush.msra.mxu0 0.0
    %2006 = vmatpush.msra.mxu0 %v1282
    %2007 = vmatpush.msra.mxu0 %v1281
    %2008 = vmatpush.msra.mxu0 %v1280
    %2009 = vmatpush.msra.mxu0 %v1279
    %2010 = vmatmul.f32.gmra.mxu0 %v1989
    %v2011 = vpop.f32.mrf.mxu0
    %v2012 = vadd.f32 %v1986, %v2011
    %2013 = vmatmul.f32.gmra.mxu0 %v1992
    %v2014 = vpop.f32.mrf.mxu0
    %v2015 = vadd.f32 %v1986, %v2014
    %2016 = vdwg.mxu0
    %v2017 = vadd.f32 %v1179, %v2012
    %v2018 = vadd.f32 %v1180, %v2015
    %s2019 = scalar_lea.vmem %s25, 3
    %v2020 = vld [vmem:[%s2019] sm:$0x1]
    %s2021 = scalar_lea.vmem %s27, 3
    %v2022 = vld [vmem:[%s2021] sm:$0x1]
    %v2023 = vsel %vm165, %v2017, 0.0
    %2024 = vadd.xlane.f32.xlu0 %v2023
    %v2025 = vpop.xlane.xlu0 %2024
    %v2026 = vsel %vm165, %v2018, 0.0
    %2027 = vadd.xlane.f32.xlu0 %v2026
    %v2028 = vpop.xlane.xlu0 %2027
    %v2029 = vmul.f32 %v2025, %v178
    %v2030 = vmul.f32 %v2028, %v178
    %v2031 = vsub.f32 %v2017, %v2029
    %v2032 = vsub.f32 %v2018, %v2030
    %v2033 = vmul.f32 %v2031, %v2031
    %v2034 = vmul.f32 %v2032, %v2032
    %v2035 = vsel %vm165, %v2033, 0.0
    %2036 = vadd.xlane.f32.xlu0 %v2035
    %v2037 = vpop.xlane.xlu0 %2036
    %v2038 = vsel %vm165, %v2034, 0.0
    %2039 = vadd.xlane.f32.xlu0 %v2038
    %v2040 = vpop.xlane.xlu0 %2039
    %v2041 = vmul.f32 %v2037, 0.032258064
    %v2042 = vmul.f32 %v2040, 0.032258064
    %v2043 = vrsqrt.pop %v2041
    %v2044 = vmul.f32 %v2043, %v2041
    %v2045 = vmul.f32 %v2044, %v2043
    %v2046 = vmul.f32 0.5, %v2045
    %v2047 = vsub.f32 1.5, %v2046
    %v2048 = vmul.f32 %v2043, %v2047
    %v2049 = vmul.f32 %v2041, %v2048
    %vm2050 = vcmp.eq.f32.partialorder %v2041, inf
    %v2051 = vsel %vm2050, %v2041, %v2049
    %vm2052 = vcmp.eq.f32.partialorder %v2041, 0.0
    %v2053 = vand.u32 %v2041, 2147483648
    %v2054 = vsel %vm2052, %v2053, %v2051
    %v2055 = vrsqrt.pop %v2042
    %v2056 = vmul.f32 %v2055, %v2042
    %v2057 = vmul.f32 %v2056, %v2055
    %v2058 = vmul.f32 0.5, %v2057
    %v2059 = vsub.f32 1.5, %v2058
    %v2060 = vmul.f32 %v2055, %v2059
    %v2061 = vmul.f32 %v2042, %v2060
    %vm2062 = vcmp.eq.f32.partialorder %v2042, inf
    %v2063 = vsel %vm2062, %v2042, %v2061
    %vm2064 = vcmp.eq.f32.partialorder %v2042, 0.0
    %v2065 = vand.u32 %v2042, 2147483648
    %v2066 = vsel %vm2064, %v2065, %v2063
    %v2068 = vperm.slane %v2020, 0
    %v2070 = vmul.f32 %v2068, %v2031
    %v2071 = vmul.f32 %v2068, %v2032
    %v2072 = vadd.f32 %v2054, 1e-06
    %v2073 = vadd.f32 %v2066, 1e-06
    %v2074 = vrcp.pop %v2072
    %v2075 = vmul.f32 %v2072, %v2074
    %v2076 = vsub.f32 1.0, %v2075
    %v2077 = vmul.f32 %v2074, %v2076
    %v2078 = vadd.f32 %v2074, %v2077
    %vm2079 = vweird.f32 %v2072
    %vm2080 = vweird.f32 %v2074
    %vm2081 = vmor %vm2079, %vm2080
    %v2082 = vsel %vm2081, %v2074, %v2078
    %v2083 = vand.u32 2147483647, %v2072
    %vm2084 = vcmp.eq.f32.partialorder %v2083, 8.507059e+37
    %v2085 = vand.u32 %v2072, 2147483648
    %v2086 = vor.u32 1.1754944e-38, %v2085
    %v2087 = vsel %vm2084, %v2086, %v2082
    %v2088 = vrcp.pop %v2073
    %v2089 = vmul.f32 %v2073, %v2088
    %v2090 = vsub.f32 1.0, %v2089
    %v2091 = vmul.f32 %v2088, %v2090
    %v2092 = vadd.f32 %v2088, %v2091
    %vm2093 = vweird.f32 %v2073
    %vm2094 = vweird.f32 %v2088
    %vm2095 = vmor %vm2093, %vm2094
    %v2096 = vsel %vm2095, %v2088, %v2092
    %v2097 = vand.u32 2147483647, %v2073
    %vm2098 = vcmp.eq.f32.partialorder %v2097, 8.507059e+37
    %v2099 = vand.u32 %v2073, 2147483648
    %v2100 = vor.u32 1.1754944e-38, %v2099
    %v2101 = vsel %vm2098, %v2100, %v2096
    %v2102 = vmul.f32 %v2070, %v2087
    %v2103 = vmul.f32 %v2071, %v2101
    %v2105 = vperm.slane %v2022, 0
    %v2107 = vadd.f32 %v2102, %v2105
    %v2108 = vadd.f32 %v2103, %v2105
    %s2109 = scalar_lea.vmem %s17, 32
    %v2110 = vld [vmem:[%s2109] sm:$0xff]
    %v2111 = vld [vmem:[%s2109 + $0x8] sm:$0xff]
    %v2112 = vld [vmem:[%s2109 + $0x10] sm:$0xff]
    %v2113 = vld [vmem:[%s2109 + $0x18] sm:$0xff]
    %s2114 = scalar_lea.vmem %s19, 1
    %v2115 = vld [vmem:[%s2114] sm:$0x1]
    %s2116 = scalar_lea.vmem %s21, 64
    %v2117 = vld [vmem:[%s2116] sm:$0xff]
    %v2118 = vld [vmem:[%s2116 + $0x8] sm:$0xff]
    %v2119 = vld [vmem:[%s2116 + $0x10] sm:$0xff]
    %v2120 = vld [vmem:[%s2116 + $0x18] sm:$0xff]
    %v2121 = vld [vmem:[%s2116 + $0x20] sm:$0xff]
    %v2122 = vld [vmem:[%s2116 + $0x28] sm:$0xff]
    %v2123 = vld [vmem:[%s2116 + $0x30] sm:$0xff]
    %v2124 = vld [vmem:[%s2116 + $0x38] sm:$0xff]
    %s2125 = scalar_lea.vmem %s23, 1
    %v2126 = vld [vmem:[%s2125] sm:$0x1]
    %v2128 = vperm.slane %v2115, 0
    %v2131 = vsel %vm165, %v2107, 0
    %v2134 = vsel %vm165, %v2108, 0
    %2136 = vmatpush.msra.mxu0 0.0
    %2137 = vmatpush.msra.mxu0 0.0
    %2138 = vmatpush.msra.mxu0 0.0
    %2139 = vmatpush.msra.mxu0 0.0
    %2140 = vmatpush.msra.mxu0 0.0
    %2141 = vmatpush.msra.mxu0 0.0
    %2142 = vmatpush.msra.mxu0 0.0
    %2143 = vmatpush.msra.mxu0 0.0
    %2144 = vmatpush.msra.mxu0 0.0
    %2145 = vmatpush.msra.mxu0 0.0
    %2146 = vmatpush.msra.mxu0 0.0
    %2147 = vmatpush.msra.mxu0 0.0
    %2148 = vmatpush.msra.mxu0 %v2113
    %2149 = vmatpush.msra.mxu0 %v2112
    %2150 = vmatpush.msra.mxu0 %v2111
    %2151 = vmatpush.msra.mxu0 %v2110
    %2152 = vmatmul.f32.gmra.mxu0 %v2131
    %v2153 = vpop.f32.mrf.mxu0
    %v2154 = vadd.f32 %v2128, %v2153
    %2155 = vmatmul.f32.gmra.mxu0 %v2134
    %v2156 = vpop.f32.mrf.mxu0
    %v2157 = vadd.f32 %v2128, %v2156
    %2158 = vdwg.mxu0
    %v2159 = vmax.f32 %v2154, 0.0
    %v2160 = vmax.f32 %v2157, 0.0
    %v2162 = vperm.slane %v2126, 0
    %v2165 = vsel %vm1149, %v2159, 0
    %v2168 = vsel %vm1149, %v2160, 0
    %2170 = vmatpush.msra.mxu0 0.0
    %2171 = vmatpush.msra.mxu0 0.0
    %2172 = vmatpush.msra.mxu0 0.0
    %2173 = vmatpush.msra.mxu0 0.0
    %2174 = vmatpush.msra.mxu0 0.0
    %2175 = vmatpush.msra.mxu0 0.0
    %2176 = vmatpush.msra.mxu0 0.0
    %2177 = vmatpush.msra.mxu0 0.0
    %2178 = vmatpush.msra.mxu0 %v2124
    %2179 = vmatpush.msra.mxu0 %v2123
    %2180 = vmatpush.msra.mxu0 %v2122
    %2181 = vmatpush.msra.mxu0 %v2121
    %2182 = vmatpush.msra.mxu0 %v2120
    %2183 = vmatpush.msra.mxu0 %v2119
    %2184 = vmatpush.msra.mxu0 %v2118
    %2185 = vmatpush.msra.mxu0 %v2117
    %2186 = vmatmul.f32.gmra.mxu0 %v2165
    %v2187 = vpop.f32.mrf.mxu0
    %v2188 = vadd.f32 %v2162, %v2187
    %2189 = vmatmul.f32.gmra.mxu0 %v2168
    %v2190 = vpop.f32.mrf.mxu0
    %v2191 = vadd.f32 %v2162, %v2190
    %2192 = vdwg.mxu0
    %v2193 = vadd.f32 %v2017, %v2188
    %v2194 = vadd.f32 %v2018, %v2191
    %v2195 = vld [vmem:[%s29] sm:$0x1]
    %v2196 = vld [vmem:[%s31] sm:$0x1]
    %v2197 = vsel %vm165, %v2193, 0.0
    %2198 = vadd.xlane.f32.xlu0 %v2197
    %v2199 = vpop.xlane.xlu0 %2198
    %v2200 = vsel %vm165, %v2194, 0.0
    %2201 = vadd.xlane.f32.xlu0 %v2200
    %v2202 = vpop.xlane.xlu0 %2201
    %v2203 = vmul.f32 %v2199, %v178
    %v2204 = vmul.f32 %v2202, %v178
    %v2205 = vsub.f32 %v2193, %v2203
    %v2206 = vsub.f32 %v2194, %v2204
    %v2207 = vmul.f32 %v2205, %v2205
    %v2208 = vmul.f32 %v2206, %v2206
    %v2209 = vsel %vm165, %v2207, 0.0
    %2210 = vadd.xlane.f32.xlu0 %v2209
    %v2211 = vpop.xlane.xlu0 %2210
    %v2212 = vsel %vm165, %v2208, 0.0
    %2213 = vadd.xlane.f32.xlu0 %v2212
    %v2214 = vpop.xlane.xlu0 %2213
    %v2215 = vmul.f32 %v2211, 0.032258064
    %v2216 = vmul.f32 %v2214, 0.032258064
    %v2217 = vrsqrt.pop %v2215
    %v2218 = vmul.f32 %v2217, %v2215
    %v2219 = vmul.f32 %v2218, %v2217
    %v2220 = vmul.f32 0.5, %v2219
    %v2221 = vsub.f32 1.5, %v2220
    %v2222 = vmul.f32 %v2217, %v2221
    %v2223 = vmul.f32 %v2215, %v2222
    %vm2224 = vcmp.eq.f32.partialorder %v2215, inf
    %v2225 = vsel %vm2224, %v2215, %v2223
    %vm2226 = vcmp.eq.f32.partialorder %v2215, 0.0
    %v2227 = vand.u32 %v2215, 2147483648
    %v2228 = vsel %vm2226, %v2227, %v2225
    %v2229 = vrsqrt.pop %v2216
    %v2230 = vmul.f32 %v2229, %v2216
    %v2231 = vmul.f32 %v2230, %v2229
    %v2232 = vmul.f32 0.5, %v2231
    %v2233 = vsub.f32 1.5, %v2232
    %v2234 = vmul.f32 %v2229, %v2233
    %v2235 = vmul.f32 %v2216, %v2234
    %vm2236 = vcmp.eq.f32.partialorder %v2216, inf
    %v2237 = vsel %vm2236, %v2216, %v2235
    %vm2238 = vcmp.eq.f32.partialorder %v2216, 0.0
    %v2239 = vand.u32 %v2216, 2147483648
    %v2240 = vsel %vm2238, %v2239, %v2237
    %v2242 = vperm.slane %v2195, 0
    %v2244 = vmul.f32 %v2242, %v2205
    %v2245 = vmul.f32 %v2242, %v2206
    %v2246 = vadd.f32 %v2228, 1e-06
    %v2247 = vadd.f32 %v2240, 1e-06
    %v2248 = vrcp.pop %v2246
    %v2249 = vmul.f32 %v2246, %v2248
    %v2250 = vsub.f32 1.0, %v2249
    %v2251 = vmul.f32 %v2248, %v2250
    %v2252 = vadd.f32 %v2248, %v2251
    %vm2253 = vweird.f32 %v2246
    %vm2254 = vweird.f32 %v2248
    %vm2255 = vmor %vm2253, %vm2254
    %v2256 = vsel %vm2255, %v2248, %v2252
    %v2257 = vand.u32 2147483647, %v2246
    %vm2258 = vcmp.eq.f32.partialorder %v2257, 8.507059e+37
    %v2259 = vand.u32 %v2246, 2147483648
    %v2260 = vor.u32 1.1754944e-38, %v2259
    %v2261 = vsel %vm2258, %v2260, %v2256
    %v2262 = vrcp.pop %v2247
    %v2263 = vmul.f32 %v2247, %v2262
    %v2264 = vsub.f32 1.0, %v2263
    %v2265 = vmul.f32 %v2262, %v2264
    %v2266 = vadd.f32 %v2262, %v2265
    %vm2267 = vweird.f32 %v2247
    %vm2268 = vweird.f32 %v2262
    %vm2269 = vmor %vm2267, %vm2268
    %v2270 = vsel %vm2269, %v2262, %v2266
    %v2271 = vand.u32 2147483647, %v2247
    %vm2272 = vcmp.eq.f32.partialorder %v2271, 8.507059e+37
    %v2273 = vand.u32 %v2247, 2147483648
    %v2274 = vor.u32 1.1754944e-38, %v2273
    %v2275 = vsel %vm2272, %v2274, %v2270
    %v2276 = vmul.f32 %v2244, %v2261
    %v2277 = vmul.f32 %v2245, %v2275
    %v2279 = vperm.slane %v2196, 0
    %v2281 = vadd.f32 %v2276, %v2279
    %v2282 = vadd.f32 %v2277, %v2279
    %v2283 = vld [vmem:[%s3] sm:$0xff]
    %v2284 = vld [vmem:[%s3 + $0x8] sm:$0xff]
    %v2285 = vld [vmem:[%s61] sm:$0x1]
    %v2286 = vld [vmem:[%s63] sm:$0x1]
    %v2287 = vsel %vm165, %v2283, 0.0
    %2288 = vadd.xlane.f32.xlu0 %v2287
    %v2289 = vpop.xlane.xlu0 %2288
    %v2290 = vsel %vm165, %v2284, 0.0
    %2291 = vadd.xlane.f32.xlu0 %v2290
    %v2292 = vpop.xlane.xlu0 %2291
    %v2293 = vmul.f32 %v2289, %v178
    %v2294 = vmul.f32 %v2292, %v178
    %v2295 = vsub.f32 %v2283, %v2293
    %v2296 = vsub.f32 %v2284, %v2294
    %v2297 = vmul.f32 %v2295, %v2295
    %v2298 = vmul.f32 %v2296, %v2296
    %v2299 = vsel %vm165, %v2297, 0.0
    %2300 = vadd.xlane.f32.xlu0 %v2299
    %v2301 = vpop.xlane.xlu0 %2300
    %v2302 = vsel %vm165, %v2298, 0.0
    %2303 = vadd.xlane.f32.xlu0 %v2302
    %v2304 = vpop.xlane.xlu0 %2303
    %v2305 = vmul.f32 %v2301, 0.032258064
    %v2306 = vmul.f32 %v2304, 0.032258064
    %v2307 = vrsqrt.pop %v2305
    %v2308 = vmul.f32 %v2307, %v2305
    %v2309 = vmul.f32 %v2308, %v2307
    %v2310 = vmul.f32 0.5, %v2309
    %v2311 = vsub.f32 1.5, %v2310
    %v2312 = vmul.f32 %v2307, %v2311
    %v2313 = vmul.f32 %v2305, %v2312
    %vm2314 = vcmp.eq.f32.partialorder %v2305, inf
    %v2315 = vsel %vm2314, %v2305, %v2313
    %vm2316 = vcmp.eq.f32.partialorder %v2305, 0.0
    %v2317 = vand.u32 %v2305, 2147483648
    %v2318 = vsel %vm2316, %v2317, %v2315
    %v2319 = vrsqrt.pop %v2306
    %v2320 = vmul.f32 %v2319, %v2306
    %v2321 = vmul.f32 %v2320, %v2319
    %v2322 = vmul.f32 0.5, %v2321
    %v2323 = vsub.f32 1.5, %v2322
    %v2324 = vmul.f32 %v2319, %v2323
    %v2325 = vmul.f32 %v2306, %v2324
    %vm2326 = vcmp.eq.f32.partialorder %v2306, inf
    %v2327 = vsel %vm2326, %v2306, %v2325
    %vm2328 = vcmp.eq.f32.partialorder %v2306, 0.0
    %v2329 = vand.u32 %v2306, 2147483648
    %v2330 = vsel %vm2328, %v2329, %v2327
    %v2332 = vperm.slane %v2285, 0
    %v2334 = vmul.f32 %v2332, %v2295
    %v2335 = vmul.f32 %v2332, %v2296
    %v2336 = vadd.f32 %v2318, 1e-06
    %v2337 = vadd.f32 %v2330, 1e-06
    %v2338 = vrcp.pop %v2336
    %v2339 = vmul.f32 %v2336, %v2338
    %v2340 = vsub.f32 1.0, %v2339
    %v2341 = vmul.f32 %v2338, %v2340
    %v2342 = vadd.f32 %v2338, %v2341
    %vm2343 = vweird.f32 %v2336
    %vm2344 = vweird.f32 %v2338
    %vm2345 = vmor %vm2343, %vm2344
    %v2346 = vsel %vm2345, %v2338, %v2342
    %v2347 = vand.u32 2147483647, %v2336
    %vm2348 = vcmp.eq.f32.partialorder %v2347, 8.507059e+37
    %v2349 = vand.u32 %v2336, 2147483648
    %v2350 = vor.u32 1.1754944e-38, %v2349
    %v2351 = vsel %vm2348, %v2350, %v2346
    %v2352 = vrcp.pop %v2337
    %v2353 = vmul.f32 %v2337, %v2352
    %v2354 = vsub.f32 1.0, %v2353
    %v2355 = vmul.f32 %v2352, %v2354
    %v2356 = vadd.f32 %v2352, %v2355
    %vm2357 = vweird.f32 %v2337
    %vm2358 = vweird.f32 %v2352
    %vm2359 = vmor %vm2357, %vm2358
    %v2360 = vsel %vm2359, %v2352, %v2356
    %v2361 = vand.u32 2147483647, %v2337
    %vm2362 = vcmp.eq.f32.partialorder %v2361, 8.507059e+37
    %v2363 = vand.u32 %v2337, 2147483648
    %v2364 = vor.u32 1.1754944e-38, %v2363
    %v2365 = vsel %vm2362, %v2364, %v2360
    %v2366 = vmul.f32 %v2334, %v2351
    %v2367 = vmul.f32 %v2335, %v2365
    %v2369 = vperm.slane %v2286, 0
    %v2371 = vadd.f32 %v2366, %v2369
    %v2372 = vadd.f32 %v2367, %v2369
    %v2373 = vld [vmem:[%s33] sm:$0xff]
    %v2374 = vld [vmem:[%s33 + $0x8] sm:$0xff]
    %v2375 = vld [vmem:[%s33 + $0x10] sm:$0xff]
    %v2376 = vld [vmem:[%s33 + $0x18] sm:$0xff]
    %v2377 = vld [vmem:[%s35] sm:$0x1]
    %v2378 = vld [vmem:[%s37] sm:$0xff]
    %v2379 = vld [vmem:[%s37 + $0x8] sm:$0xff]
    %v2380 = vld [vmem:[%s37 + $0x10] sm:$0xff]
    %v2381 = vld [vmem:[%s37 + $0x18] sm:$0xff]
    %v2382 = vld [vmem:[%s39] sm:$0x1]
    %v2384 = vperm.slane %v2377, 0
    %v2387 = vsel %vm165, %v2371, 0
    %v2390 = vsel %vm165, %v2372, 0
    %2392 = vmatpush.msra.mxu0 0.0
    %2393 = vmatpush.msra.mxu0 0.0
    %2394 = vmatpush.msra.mxu0 0.0
    %2395 = vmatpush.msra.mxu0 0.0
    %2396 = vmatpush.msra.mxu0 0.0
    %2397 = vmatpush.msra.mxu0 0.0
    %2398 = vmatpush.msra.mxu0 0.0
    %2399 = vmatpush.msra.mxu0 0.0
    %2400 = vmatpush.msra.mxu0 0.0
    %2401 = vmatpush.msra.mxu0 0.0
    %2402 = vmatpush.msra.mxu0 0.0
    %2403 = vmatpush.msra.mxu0 0.0
    %2404 = vmatpush.msra.mxu0 %v2376
    %2405 = vmatpush.msra.mxu0 %v2375
    %2406 = vmatpush.msra.mxu0 %v2374
    %2407 = vmatpush.msra.mxu0 %v2373
    %2408 = vmatmul.f32.gmra.mxu0 %v2387
    %v2409 = vpop.f32.mrf.mxu0
    %v2410 = vadd.f32 %v2384, %v2409
    %2411 = vmatmul.f32.gmra.mxu0 %v2390
    %v2412 = vpop.f32.mrf.mxu0
    %v2413 = vadd.f32 %v2384, %v2412
    %2414 = vdwg.mxu0
    %2416 = vrot.lane.b32.xlu0 %v2410, 96
    %v2417 = vpop.permute.xlu0 %2416
    %v2418 = vsel %vm304, %v2410, 0
    %v2420 = vsel %vm304, %v2417, 0
    %2422 = vmatpush.xpose.msra.mxu0 0.0
    %2423 = vmatpush.xpose.msra.mxu0 0.0
    %2424 = vmatpush.xpose.msra.mxu0 0.0
    %2425 = vmatpush.xpose.msra.mxu0 0.0
    %2426 = vmatpush.xpose.msra.mxu0 0.0
    %2427 = vmatpush.xpose.msra.mxu0 0.0
    %2428 = vmatpush.xpose.msra.mxu0 0.0
    %2429 = vmatpush.xpose.msra.mxu0 0.0
    %2430 = vmatpush.xpose.msra.mxu0 0.0
    %2431 = vmatpush.xpose.msra.mxu0 0.0
    %2432 = vmatpush.xpose.msra.mxu0 0.0
    %2433 = vmatpush.xpose.msra.mxu0 0.0
    %2434 = vmatpush.xpose.msra.mxu0 0.0
    %2435 = vmatpush.xpose.msra.mxu0 0.0
    %2436 = vmatpush.xpose.msra.mxu0 0.0
    %2437 = vmatpush.xpose.msra.mxu0 %v2420
    %2438 = vmatmul.f32.gmra.mxu0 %v2418
    %v2439 = vpop.f32.mrf.mxu0
    %v2440 = vadd.f32 0.0, %v2439
    %2441 = vdwg.mxu0
    %2443 = vrot.lane.b32.xlu0 %v2413, 96
    %v2444 = vpop.permute.xlu0 %2443
    %v2445 = vsel %vm304, %v2413, 0
    %v2447 = vsel %vm304, %v2444, 0
    %2449 = vmatpush.xpose.msra.mxu0 0.0
    %2450 = vmatpush.xpose.msra.mxu0 0.0
    %2451 = vmatpush.xpose.msra.mxu0 0.0
    %2452 = vmatpush.xpose.msra.mxu0 0.0
    %2453 = vmatpush.xpose.msra.mxu0 0.0
    %2454 = vmatpush.xpose.msra.mxu0 0.0
    %2455 = vmatpush.xpose.msra.mxu0 0.0
    %2456 = vmatpush.xpose.msra.mxu0 0.0
    %2457 = vmatpush.xpose.msra.mxu0 0.0
    %2458 = vmatpush.xpose.msra.mxu0 0.0
    %2459 = vmatpush.xpose.msra.mxu0 0.0
    %2460 = vmatpush.xpose.msra.mxu0 0.0
    %2461 = vmatpush.xpose.msra.mxu0 0.0
    %2462 = vmatpush.xpose.msra.mxu0 0.0
    %2463 = vmatpush.xpose.msra.mxu0 0.0
    %2464 = vmatpush.xpose.msra.mxu0 %v2447
    %2465 = vmatmul.f32.gmra.mxu0 %v2445
    %v2466 = vpop.f32.mrf.mxu0
    %v2467 = vadd.f32 0.0, %v2466
    %2468 = vdwg.mxu0
    %v2469 = vmul.f32 %v2440, 0.35355338
    %v2470 = vmul.f32 %v2467, 0.35355338
    %vm2471 = vcmp.ne.f32.partialorder %v159, 0.0
    %vm2472 = vcmp.ne.f32.partialorder %v160, 0.0
    %v2473 = vsel %vm2471, %v2469, -1e+09
    %v2474 = vsel %vm2472, %v2470, -1e+09
    %v2475 = vsel %vm304, %v2473, -inf
    %2476 = vmax.xlane.f32.xlu0 %v2475
    %v2477 = vpop.xlane.xlu0 %2476
    %v2478 = vsel %vm304, %v2474, -inf
    %2479 = vmax.xlane.f32.xlu0 %v2478
    %v2480 = vpop.xlane.xlu0 %2479
    %v2481 = vsub.f32 %v2473, %v2477
    %v2482 = vsub.f32 %v2474, %v2480
    %v2483 = vmul.f32 %v2481, 1.442695
    %v2484 = vpow.pop %v2483
    %v2485 = vmul.f32 %v2482, 1.442695
    %v2486 = vpow.pop %v2485
    %v2487 = vsel %vm304, %v2484, 0.0
    %2488 = vadd.xlane.f32.xlu0 %v2487
    %v2489 = vpop.xlane.xlu0 %2488
    %v2490 = vsel %vm304, %v2486, 0.0
    %2491 = vadd.xlane.f32.xlu0 %v2490
    %v2492 = vpop.xlane.xlu0 %2491
    %v2493 = vrcp.pop %v2489
    %v2494 = vmul.f32 %v2489, %v2493
    %v2495 = vsub.f32 1.0, %v2494
    %v2496 = vmul.f32 %v2493, %v2495
    %v2497 = vadd.f32 %v2493, %v2496
    %vm2498 = vweird.f32 %v2489
    %vm2499 = vweird.f32 %v2493
    %vm2500 = vmor %vm2498, %vm2499
    %v2501 = vsel %vm2500, %v2493, %v2497
    %v2502 = vand.u32 2147483647, %v2489
    %vm2503 = vcmp.eq.f32.partialorder %v2502, 8.507059e+37
    %v2504 = vand.u32 %v2489, 2147483648
    %v2505 = vor.u32 1.1754944e-38, %v2504
    %v2506 = vsel %vm2503, %v2505, %v2501
    %v2507 = vrcp.pop %v2492
    %v2508 = vmul.f32 %v2492, %v2507
    %v2509 = vsub.f32 1.0, %v2508
    %v2510 = vmul.f32 %v2507, %v2509
    %v2511 = vadd.f32 %v2507, %v2510
    %vm2512 = vweird.f32 %v2492
    %vm2513 = vweird.f32 %v2507
    %vm2514 = vmor %vm2512, %vm2513
    %v2515 = vsel %vm2514, %v2507, %v2511
    %v2516 = vand.u32 2147483647, %v2492
    %vm2517 = vcmp.eq.f32.partialorder %v2516, 8.507059e+37
    %v2518 = vand.u32 %v2492, 2147483648
    %v2519 = vor.u32 1.1754944e-38, %v2518
    %v2520 = vsel %vm2517, %v2519, %v2515
    %v2521 = vmul.f32 %v2484, %v2506
    %v2522 = vmul.f32 %v2486, %v2520
    %2523 = vrot.lane.b32.xlu0 %v2410, 64
    %v2524 = vpop.permute.xlu0 %2523
    %v2527 = vsel %vm304, %v2521, 0
    %2529 = vmatpush.msra.mxu0 0.0
    %2530 = vmatpush.msra.mxu0 0.0
    %2531 = vmatpush.msra.mxu0 0.0
    %2532 = vmatpush.msra.mxu0 0.0
    %2533 = vmatpush.msra.mxu0 0.0
    %2534 = vmatpush.msra.mxu0 0.0
    %2535 = vmatpush.msra.mxu0 0.0
    %2536 = vmatpush.msra.mxu0 0.0
    %2537 = vmatpush.msra.mxu0 0.0
    %2538 = vmatpush.msra.mxu0 0.0
    %2539 = vmatpush.msra.mxu0 0.0
    %2540 = vmatpush.msra.mxu0 0.0
    %2541 = vmatpush.msra.mxu0 0.0
    %2542 = vmatpush.msra.mxu0 0.0
    %2543 = vmatpush.msra.mxu0 0.0
    %2544 = vmatpush.msra.mxu0 %v2524
    %2545 = vmatmul.f32.gmra.mxu0 %v2527
    %v2546 = vpop.f32.mrf.mxu0
    %v2547 = vadd.f32 0.0, %v2546
    %2548 = vdwg.mxu0
    %2549 = vrot.lane.b32.xlu0 %v2413, 64
    %v2550 = vpop.permute.xlu0 %2549
    %v2553 = vsel %vm304, %v2522, 0
    %2555 = vmatpush.msra.mxu0 0.0
    %2556 = vmatpush.msra.mxu0 0.0
    %2557 = vmatpush.msra.mxu0 0.0
    %2558 = vmatpush.msra.mxu0 0.0
    %2559 = vmatpush.msra.mxu0 0.0
    %2560 = vmatpush.msra.mxu0 0.0
    %2561 = vmatpush.msra.mxu0 0.0
    %2562 = vmatpush.msra.mxu0 0.0
    %2563 = vmatpush.msra.mxu0 0.0
    %2564 = vmatpush.msra.mxu0 0.0
    %2565 = vmatpush.msra.mxu0 0.0
    %2566 = vmatpush.msra.mxu0 0.0
    %2567 = vmatpush.msra.mxu0 0.0
    %2568 = vmatpush.msra.mxu0 0.0
    %2569 = vmatpush.msra.mxu0 0.0
    %2570 = vmatpush.msra.mxu0 %v2550
    %2571 = vmatmul.f32.gmra.mxu0 %v2553
    %v2572 = vpop.f32.mrf.mxu0
    %v2573 = vadd.f32 0.0, %v2572
    %2574 = vdwg.mxu0
    %2575 = vrot.lane.b32.xlu0 %v2410, 120
    %v2576 = vpop.permute.xlu0 %2575
    %2577 = vrot.lane.b32.xlu0 %v2410, 88
    %v2578 = vpop.permute.xlu0 %2577
    %v2579 = vsel %vm304, %v2576, 0
    %v2581 = vsel %vm304, %v2578, 0
    %2583 = vmatpush.xpose.msra.mxu0 0.0
    %2584 = vmatpush.xpose.msra.mxu0 0.0
    %2585 = vmatpush.xpose.msra.mxu0 0.0
    %2586 = vmatpush.xpose.msra.mxu0 0.0
    %2587 = vmatpush.xpose.msra.mxu0 0.0
    %2588 = vmatpush.xpose.msra.mxu0 0.0
    %2589 = vmatpush.xpose.msra.mxu0 0.0
    %2590 = vmatpush.xpose.msra.mxu0 0.0
    %2591 = vmatpush.xpose.msra.mxu0 0.0
    %2592 = vmatpush.xpose.msra.mxu0 0.0
    %2593 = vmatpush.xpose.msra.mxu0 0.0
    %2594 = vmatpush.xpose.msra.mxu0 0.0
    %2595 = vmatpush.xpose.msra.mxu0 0.0
    %2596 = vmatpush.xpose.msra.mxu0 0.0
    %2597 = vmatpush.xpose.msra.mxu0 0.0
    %2598 = vmatpush.xpose.msra.mxu0 %v2581
    %2599 = vmatmul.f32.gmra.mxu0 %v2579
    %v2600 = vpop.f32.mrf.mxu0
    %v2601 = vadd.f32 0.0, %v2600
    %2602 = vdwg.mxu0
    %2603 = vrot.lane.b32.xlu0 %v2413, 120
    %v2604 = vpop.permute.xlu0 %2603
    %2605 = vrot.lane.b32.xlu0 %v2413, 88
    %v2606 = vpop.permute.xlu0 %2605
    %v2607 = vsel %vm304, %v2604, 0
    %v2609 = vsel %vm304, %v2606, 0
    %2611 = vmatpush.xpose.msra.mxu0 0.0
    %2612 = vmatpush.xpose.msra.mxu0 0.0
    %2613 = vmatpush.xpose.msra.mxu0 0.0
    %2614 = vmatpush.xpose.msra.mxu0 0.0
    %2615 = vmatpush.xpose.msra.mxu0 0.0
    %2616 = vmatpush.xpose.msra.mxu0 0.0
    %2617 = vmatpush.xpose.msra.mxu0 0.0
    %2618 = vmatpush.xpose.msra.mxu0 0.0
    %2619 = vmatpush.xpose.msra.mxu0 0.0
    %2620 = vmatpush.xpose.msra.mxu0 0.0
    %2621 = vmatpush.xpose.msra.mxu0 0.0
    %2622 = vmatpush.xpose.msra.mxu0 0.0
    %2623 = vmatpush.xpose.msra.mxu0 0.0
    %2624 = vmatpush.xpose.msra.mxu0 0.0
    %2625 = vmatpush.xpose.msra.mxu0 0.0
    %2626 = vmatpush.xpose.msra.mxu0 %v2609
    %2627 = vmatmul.f32.gmra.mxu0 %v2607
    %v2628 = vpop.f32.mrf.mxu0
    %v2629 = vadd.f32 0.0, %v2628
    %2630 = vdwg.mxu0
    %v2631 = vmul.f32 %v2601, 0.35355338
    %v2632 = vmul.f32 %v2629, 0.35355338
    %v2633 = vsel %vm2471, %v2631, -1e+09
    %v2634 = vsel %vm2472, %v2632, -1e+09
    %v2635 = vsel %vm304, %v2633, -inf
    %2636 = vmax.xlane.f32.xlu0 %v2635
    %v2637 = vpop.xlane.xlu0 %2636
    %v2638 = vsel %vm304, %v2634, -inf
    %2639 = vmax.xlane.f32.xlu0 %v2638
    %v2640 = vpop.xlane.xlu0 %2639
    %v2641 = vsub.f32 %v2633, %v2637
    %v2642 = vsub.f32 %v2634, %v2640
    %v2643 = vmul.f32 %v2641, 1.442695
    %v2644 = vpow.pop %v2643
    %v2645 = vmul.f32 %v2642, 1.442695
    %v2646 = vpow.pop %v2645
    %v2647 = vsel %vm304, %v2644, 0.0
    %2648 = vadd.xlane.f32.xlu0 %v2647
    %v2649 = vpop.xlane.xlu0 %2648
    %v2650 = vsel %vm304, %v2646, 0.0
    %2651 = vadd.xlane.f32.xlu0 %v2650
    %v2652 = vpop.xlane.xlu0 %2651
    %v2653 = vrcp.pop %v2649
    %v2654 = vmul.f32 %v2649, %v2653
    %v2655 = vsub.f32 1.0, %v2654
    %v2656 = vmul.f32 %v2653, %v2655
    %v2657 = vadd.f32 %v2653, %v2656
    %vm2658 = vweird.f32 %v2649
    %vm2659 = vweird.f32 %v2653
    %vm2660 = vmor %vm2658, %vm2659
    %v2661 = vsel %vm2660, %v2653, %v2657
    %v2662 = vand.u32 2147483647, %v2649
    %vm2663 = vcmp.eq.f32.partialorder %v2662, 8.507059e+37
    %v2664 = vand.u32 %v2649, 2147483648
    %v2665 = vor.u32 1.1754944e-38, %v2664
    %v2666 = vsel %vm2663, %v2665, %v2661
    %v2667 = vrcp.pop %v2652
    %v2668 = vmul.f32 %v2652, %v2667
    %v2669 = vsub.f32 1.0, %v2668
    %v2670 = vmul.f32 %v2667, %v2669
    %v2671 = vadd.f32 %v2667, %v2670
    %vm2672 = vweird.f32 %v2652
    %vm2673 = vweird.f32 %v2667
    %vm2674 = vmor %vm2672, %vm2673
    %v2675 = vsel %vm2674, %v2667, %v2671
    %v2676 = vand.u32 2147483647, %v2652
    %vm2677 = vcmp.eq.f32.partialorder %v2676, 8.507059e+37
    %v2678 = vand.u32 %v2652, 2147483648
    %v2679 = vor.u32 1.1754944e-38, %v2678
    %v2680 = vsel %vm2677, %v2679, %v2675
    %v2681 = vmul.f32 %v2644, %v2666
    %v2682 = vmul.f32 %v2646, %v2680
    %2683 = vrot.lane.b32.xlu0 %v2410, 56
    %v2684 = vpop.permute.xlu0 %2683
    %v2687 = vsel %vm304, %v2681, 0
    %2689 = vmatpush.msra.mxu0 0.0
    %2690 = vmatpush.msra.mxu0 0.0
    %2691 = vmatpush.msra.mxu0 0.0
    %2692 = vmatpush.msra.mxu0 0.0
    %2693 = vmatpush.msra.mxu0 0.0
    %2694 = vmatpush.msra.mxu0 0.0
    %2695 = vmatpush.msra.mxu0 0.0
    %2696 = vmatpush.msra.mxu0 0.0
    %2697 = vmatpush.msra.mxu0 0.0
    %2698 = vmatpush.msra.mxu0 0.0
    %2699 = vmatpush.msra.mxu0 0.0
    %2700 = vmatpush.msra.mxu0 0.0
    %2701 = vmatpush.msra.mxu0 0.0
    %2702 = vmatpush.msra.mxu0 0.0
    %2703 = vmatpush.msra.mxu0 0.0
    %2704 = vmatpush.msra.mxu0 %v2684
    %2705 = vmatmul.f32.gmra.mxu0 %v2687
    %v2706 = vpop.f32.mrf.mxu0
    %v2707 = vadd.f32 0.0, %v2706
    %2708 = vdwg.mxu0
    %2709 = vrot.lane.b32.xlu0 %v2413, 56
    %v2710 = vpop.permute.xlu0 %2709
    %v2713 = vsel %vm304, %v2682, 0
    %2715 = vmatpush.msra.mxu0 0.0
    %2716 = vmatpush.msra.mxu0 0.0
    %2717 = vmatpush.msra.mxu0 0.0
    %2718 = vmatpush.msra.mxu0 0.0
    %2719 = vmatpush.msra.mxu0 0.0
    %2720 = vmatpush.msra.mxu0 0.0
    %2721 = vmatpush.msra.mxu0 0.0
    %2722 = vmatpush.msra.mxu0 0.0
    %2723 = vmatpush.msra.mxu0 0.0
    %2724 = vmatpush.msra.mxu0 0.0
    %2725 = vmatpush.msra.mxu0 0.0
    %2726 = vmatpush.msra.mxu0 0.0
    %2727 = vmatpush.msra.mxu0 0.0
    %2728 = vmatpush.msra.mxu0 0.0
    %2729 = vmatpush.msra.mxu0 0.0
    %2730 = vmatpush.msra.mxu0 %v2710
    %2731 = vmatmul.f32.gmra.mxu0 %v2713
    %v2732 = vpop.f32.mrf.mxu0
    %v2733 = vadd.f32 0.0, %v2732
    %2734 = vdwg.mxu0
    %2735 = vrot.lane.b32.xlu0 %v2410, 112
    %v2736 = vpop.permute.xlu0 %2735
    %2737 = vrot.lane.b32.xlu0 %v2410, 80
    %v2738 = vpop.permute.xlu0 %2737
    %v2739 = vsel %vm304, %v2736, 0
    %v2741 = vsel %vm304, %v2738, 0
    %2743 = vmatpush.xpose.msra.mxu0 0.0
    %2744 = vmatpush.xpose.msra.mxu0 0.0
    %2745 = vmatpush.xpose.msra.mxu0 0.0
    %2746 = vmatpush.xpose.msra.mxu0 0.0
    %2747 = vmatpush.xpose.msra.mxu0 0.0
    %2748 = vmatpush.xpose.msra.mxu0 0.0
    %2749 = vmatpush.xpose.msra.mxu0 0.0
    %2750 = vmatpush.xpose.msra.mxu0 0.0
    %2751 = vmatpush.xpose.msra.mxu0 0.0
    %2752 = vmatpush.xpose.msra.mxu0 0.0
    %2753 = vmatpush.xpose.msra.mxu0 0.0
    %2754 = vmatpush.xpose.msra.mxu0 0.0
    %2755 = vmatpush.xpose.msra.mxu0 0.0
    %2756 = vmatpush.xpose.msra.mxu0 0.0
    %2757 = vmatpush.xpose.msra.mxu0 0.0
    %2758 = vmatpush.xpose.msra.mxu0 %v2741
    %2759 = vmatmul.f32.gmra.mxu0 %v2739
    %v2760 = vpop.f32.mrf.mxu0
    %v2761 = vadd.f32 0.0, %v2760
    %2762 = vdwg.mxu0
    %2763 = vrot.lane.b32.xlu0 %v2413, 112
    %v2764 = vpop.permute.xlu0 %2763
    %2765 = vrot.lane.b32.xlu0 %v2413, 80
    %v2766 = vpop.permute.xlu0 %2765
    %v2767 = vsel %vm304, %v2764, 0
    %v2769 = vsel %vm304, %v2766, 0
    %2771 = vmatpush.xpose.msra.mxu0 0.0
    %2772 = vmatpush.xpose.msra.mxu0 0.0
    %2773 = vmatpush.xpose.msra.mxu0 0.0
    %2774 = vmatpush.xpose.msra.mxu0 0.0
    %2775 = vmatpush.xpose.msra.mxu0 0.0
    %2776 = vmatpush.xpose.msra.mxu0 0.0
    %2777 = vmatpush.xpose.msra.mxu0 0.0
    %2778 = vmatpush.xpose.msra.mxu0 0.0
    %2779 = vmatpush.xpose.msra.mxu0 0.0
    %2780 = vmatpush.xpose.msra.mxu0 0.0
    %2781 = vmatpush.xpose.msra.mxu0 0.0
    %2782 = vmatpush.xpose.msra.mxu0 0.0
    %2783 = vmatpush.xpose.msra.mxu0 0.0
    %2784 = vmatpush.xpose.msra.mxu0 0.0
    %2785 = vmatpush.xpose.msra.mxu0 0.0
    %2786 = vmatpush.xpose.msra.mxu0 %v2769
    %2787 = vmatmul.f32.gmra.mxu0 %v2767
    %v2788 = vpop.f32.mrf.mxu0
    %v2789 = vadd.f32 0.0, %v2788
    %2790 = vdwg.mxu0
    %v2791 = vmul.f32 %v2761, 0.35355338
    %v2792 = vmul.f32 %v2789, 0.35355338
    %v2793 = vsel %vm2471, %v2791, -1e+09
    %v2794 = vsel %vm2472, %v2792, -1e+09
    %v2795 = vsel %vm304, %v2793, -inf
    %2796 = vmax.xlane.f32.xlu0 %v2795
    %v2797 = vpop.xlane.xlu0 %2796
    %v2798 = vsel %vm304, %v2794, -inf
    %2799 = vmax.xlane.f32.xlu0 %v2798
    %v2800 = vpop.xlane.xlu0 %2799
    %v2801 = vsub.f32 %v2793, %v2797
    %v2802 = vsub.f32 %v2794, %v2800
    %v2803 = vmul.f32 %v2801, 1.442695
    %v2804 = vpow.pop %v2803
    %v2805 = vmul.f32 %v2802, 1.442695
    %v2806 = vpow.pop %v2805
    %v2807 = vsel %vm304, %v2804, 0.0
    %2808 = vadd.xlane.f32.xlu0 %v2807
    %v2809 = vpop.xlane.xlu0 %2808
    %v2810 = vsel %vm304, %v2806, 0.0
    %2811 = vadd.xlane.f32.xlu0 %v2810
    %v2812 = vpop.xlane.xlu0 %2811
    %v2813 = vrcp.pop %v2809
    %v2814 = vmul.f32 %v2809, %v2813
    %v2815 = vsub.f32 1.0, %v2814
    %v2816 = vmul.f32 %v2813, %v2815
    %v2817 = vadd.f32 %v2813, %v2816
    %vm2818 = vweird.f32 %v2809
    %vm2819 = vweird.f32 %v2813
    %vm2820 = vmor %vm2818, %vm2819
    %v2821 = vsel %vm2820, %v2813, %v2817
    %v2822 = vand.u32 2147483647, %v2809
    %vm2823 = vcmp.eq.f32.partialorder %v2822, 8.507059e+37
    %v2824 = vand.u32 %v2809, 2147483648
    %v2825 = vor.u32 1.1754944e-38, %v2824
    %v2826 = vsel %vm2823, %v2825, %v2821
    %v2827 = vrcp.pop %v2812
    %v2828 = vmul.f32 %v2812, %v2827
    %v2829 = vsub.f32 1.0, %v2828
    %v2830 = vmul.f32 %v2827, %v2829
    %v2831 = vadd.f32 %v2827, %v2830
    %vm2832 = vweird.f32 %v2812
    %vm2833 = vweird.f32 %v2827
    %vm2834 = vmor %vm2832, %vm2833
    %v2835 = vsel %vm2834, %v2827, %v2831
    %v2836 = vand.u32 2147483647, %v2812
    %vm2837 = vcmp.eq.f32.partialorder %v2836, 8.507059e+37
    %v2838 = vand.u32 %v2812, 2147483648
    %v2839 = vor.u32 1.1754944e-38, %v2838
    %v2840 = vsel %vm2837, %v2839, %v2835
    %v2841 = vmul.f32 %v2804, %v2826
    %v2842 = vmul.f32 %v2806, %v2840
    %2843 = vrot.lane.b32.xlu0 %v2410, 48
    %v2844 = vpop.permute.xlu0 %2843
    %v2847 = vsel %vm304, %v2841, 0
    %2849 = vmatpush.msra.mxu0 0.0
    %2850 = vmatpush.msra.mxu0 0.0
    %2851 = vmatpush.msra.mxu0 0.0
    %2852 = vmatpush.msra.mxu0 0.0
    %2853 = vmatpush.msra.mxu0 0.0
    %2854 = vmatpush.msra.mxu0 0.0
    %2855 = vmatpush.msra.mxu0 0.0
    %2856 = vmatpush.msra.mxu0 0.0
    %2857 = vmatpush.msra.mxu0 0.0
    %2858 = vmatpush.msra.mxu0 0.0
    %2859 = vmatpush.msra.mxu0 0.0
    %2860 = vmatpush.msra.mxu0 0.0
    %2861 = vmatpush.msra.mxu0 0.0
    %2862 = vmatpush.msra.mxu0 0.0
    %2863 = vmatpush.msra.mxu0 0.0
    %2864 = vmatpush.msra.mxu0 %v2844
    %2865 = vmatmul.f32.gmra.mxu0 %v2847
    %v2866 = vpop.f32.mrf.mxu0
    %v2867 = vadd.f32 0.0, %v2866
    %2868 = vdwg.mxu0
    %2869 = vrot.lane.b32.xlu0 %v2413, 48
    %v2870 = vpop.permute.xlu0 %2869
    %v2873 = vsel %vm304, %v2842, 0
    %2875 = vmatpush.msra.mxu0 0.0
    %2876 = vmatpush.msra.mxu0 0.0
    %2877 = vmatpush.msra.mxu0 0.0
    %2878 = vmatpush.msra.mxu0 0.0
    %2879 = vmatpush.msra.mxu0 0.0
    %2880 = vmatpush.msra.mxu0 0.0
    %2881 = vmatpush.msra.mxu0 0.0
    %2882 = vmatpush.msra.mxu0 0.0
    %2883 = vmatpush.msra.mxu0 0.0
    %2884 = vmatpush.msra.mxu0 0.0
    %2885 = vmatpush.msra.mxu0 0.0
    %2886 = vmatpush.msra.mxu0 0.0
    %2887 = vmatpush.msra.mxu0 0.0
    %2888 = vmatpush.msra.mxu0 0.0
    %2889 = vmatpush.msra.mxu0 0.0
    %2890 = vmatpush.msra.mxu0 %v2870
    %2891 = vmatmul.f32.gmra.mxu0 %v2873
    %v2892 = vpop.f32.mrf.mxu0
    %v2893 = vadd.f32 0.0, %v2892
    %2894 = vdwg.mxu0
    %2895 = vrot.lane.b32.xlu0 %v2410, 104
    %v2896 = vpop.permute.xlu0 %2895
    %2897 = vrot.lane.b32.xlu0 %v2410, 72
    %v2898 = vpop.permute.xlu0 %2897
    %v2899 = vsel %vm304, %v2896, 0
    %v2901 = vsel %vm304, %v2898, 0
    %2903 = vmatpush.xpose.msra.mxu0 0.0
    %2904 = vmatpush.xpose.msra.mxu0 0.0
    %2905 = vmatpush.xpose.msra.mxu0 0.0
    %2906 = vmatpush.xpose.msra.mxu0 0.0
    %2907 = vmatpush.xpose.msra.mxu0 0.0
    %2908 = vmatpush.xpose.msra.mxu0 0.0
    %2909 = vmatpush.xpose.msra.mxu0 0.0
    %2910 = vmatpush.xpose.msra.mxu0 0.0
    %2911 = vmatpush.xpose.msra.mxu0 0.0
    %2912 = vmatpush.xpose.msra.mxu0 0.0
    %2913 = vmatpush.xpose.msra.mxu0 0.0
    %2914 = vmatpush.xpose.msra.mxu0 0.0
    %2915 = vmatpush.xpose.msra.mxu0 0.0
    %2916 = vmatpush.xpose.msra.mxu0 0.0
    %2917 = vmatpush.xpose.msra.mxu0 0.0
    %2918 = vmatpush.xpose.msra.mxu0 %v2901
    %2919 = vmatmul.f32.gmra.mxu0 %v2899
    %v2920 = vpop.f32.mrf.mxu0
    %v2921 = vadd.f32 0.0, %v2920
    %2922 = vdwg.mxu0
    %2923 = vrot.lane.b32.xlu0 %v2413, 104
    %v2924 = vpop.permute.xlu0 %2923
    %2925 = vrot.lane.b32.xlu0 %v2413, 72
    %v2926 = vpop.permute.xlu0 %2925
    %v2927 = vsel %vm304, %v2924, 0
    %v2929 = vsel %vm304, %v2926, 0
    %2931 = vmatpush.xpose.msra.mxu0 0.0
    %2932 = vmatpush.xpose.msra.mxu0 0.0
    %2933 = vmatpush.xpose.msra.mxu0 0.0
    %2934 = vmatpush.xpose.msra.mxu0 0.0
    %2935 = vmatpush.xpose.msra.mxu0 0.0
    %2936 = vmatpush.xpose.msra.mxu0 0.0
    %2937 = vmatpush.xpose.msra.mxu0 0.0
    %2938 = vmatpush.xpose.msra.mxu0 0.0
    %2939 = vmatpush.xpose.msra.mxu0 0.0
    %2940 = vmatpush.xpose.msra.mxu0 0.0
    %2941 = vmatpush.xpose.msra.mxu0 0.0
    %2942 = vmatpush.xpose.msra.mxu0 0.0
    %2943 = vmatpush.xpose.msra.mxu0 0.0
    %2944 = vmatpush.xpose.msra.mxu0 0.0
    %2945 = vmatpush.xpose.msra.mxu0 0.0
    %2946 = vmatpush.xpose.msra.mxu0 %v2929
    %2947 = vmatmul.f32.gmra.mxu0 %v2927
    %v2948 = vpop.f32.mrf.mxu0
    %v2949 = vadd.f32 0.0, %v2948
    %2950 = vdwg.mxu0
    %v2951 = vmul.f32 %v2921, 0.35355338
    %v2952 = vmul.f32 %v2949, 0.35355338
    %v2953 = vsel %vm2471, %v2951, -1e+09
    %v2954 = vsel %vm2472, %v2952, -1e+09
    %v2955 = vsel %vm304, %v2953, -inf
    %2956 = vmax.xlane.f32.xlu0 %v2955
    %v2957 = vpop.xlane.xlu0 %2956
    %v2958 = vsel %vm304, %v2954, -inf
    %2959 = vmax.xlane.f32.xlu0 %v2958
    %v2960 = vpop.xlane.xlu0 %2959
    %v2961 = vsub.f32 %v2953, %v2957
    %v2962 = vsub.f32 %v2954, %v2960
    %v2963 = vmul.f32 %v2961, 1.442695
    %v2964 = vpow.pop %v2963
    %v2965 = vmul.f32 %v2962, 1.442695
    %v2966 = vpow.pop %v2965
    %v2967 = vsel %vm304, %v2964, 0.0
    %2968 = vadd.xlane.f32.xlu0 %v2967
    %v2969 = vpop.xlane.xlu0 %2968
    %v2970 = vsel %vm304, %v2966, 0.0
    %2971 = vadd.xlane.f32.xlu0 %v2970
    %v2972 = vpop.xlane.xlu0 %2971
    %v2973 = vrcp.pop %v2969
    %v2974 = vmul.f32 %v2969, %v2973
    %v2975 = vsub.f32 1.0, %v2974
    %v2976 = vmul.f32 %v2973, %v2975
    %v2977 = vadd.f32 %v2973, %v2976
    %vm2978 = vweird.f32 %v2969
    %vm2979 = vweird.f32 %v2973
    %vm2980 = vmor %vm2978, %vm2979
    %v2981 = vsel %vm2980, %v2973, %v2977
    %v2982 = vand.u32 2147483647, %v2969
    %vm2983 = vcmp.eq.f32.partialorder %v2982, 8.507059e+37
    %v2984 = vand.u32 %v2969, 2147483648
    %v2985 = vor.u32 1.1754944e-38, %v2984
    %v2986 = vsel %vm2983, %v2985, %v2981
    %v2987 = vrcp.pop %v2972
    %v2988 = vmul.f32 %v2972, %v2987
    %v2989 = vsub.f32 1.0, %v2988
    %v2990 = vmul.f32 %v2987, %v2989
    %v2991 = vadd.f32 %v2987, %v2990
    %vm2992 = vweird.f32 %v2972
    %vm2993 = vweird.f32 %v2987
    %vm2994 = vmor %vm2992, %vm2993
    %v2995 = vsel %vm2994, %v2987, %v2991
    %v2996 = vand.u32 2147483647, %v2972
    %vm2997 = vcmp.eq.f32.partialorder %v2996, 8.507059e+37
    %v2998 = vand.u32 %v2972, 2147483648
    %v2999 = vor.u32 1.1754944e-38, %v2998
    %v3000 = vsel %vm2997, %v2999, %v2995
    %v3001 = vmul.f32 %v2964, %v2986
    %v3002 = vmul.f32 %v2966, %v3000
    %3003 = vrot.lane.b32.xlu0 %v2410, 40
    %v3004 = vpop.permute.xlu0 %3003
    %v3007 = vsel %vm304, %v3001, 0
    %3009 = vmatpush.msra.mxu0 0.0
    %3010 = vmatpush.msra.mxu0 0.0
    %3011 = vmatpush.msra.mxu0 0.0
    %3012 = vmatpush.msra.mxu0 0.0
    %3013 = vmatpush.msra.mxu0 0.0
    %3014 = vmatpush.msra.mxu0 0.0
    %3015 = vmatpush.msra.mxu0 0.0
    %3016 = vmatpush.msra.mxu0 0.0
    %3017 = vmatpush.msra.mxu0 0.0
    %3018 = vmatpush.msra.mxu0 0.0
    %3019 = vmatpush.msra.mxu0 0.0
    %3020 = vmatpush.msra.mxu0 0.0
    %3021 = vmatpush.msra.mxu0 0.0
    %3022 = vmatpush.msra.mxu0 0.0
    %3023 = vmatpush.msra.mxu0 0.0
    %3024 = vmatpush.msra.mxu0 %v3004
    %3025 = vmatmul.f32.gmra.mxu0 %v3007
    %v3026 = vpop.f32.mrf.mxu0
    %v3027 = vadd.f32 0.0, %v3026
    %3028 = vdwg.mxu0
    %3029 = vrot.lane.b32.xlu0 %v2413, 40
    %v3030 = vpop.permute.xlu0 %3029
    %v3033 = vsel %vm304, %v3002, 0
    %3035 = vmatpush.msra.mxu0 0.0
    %3036 = vmatpush.msra.mxu0 0.0
    %3037 = vmatpush.msra.mxu0 0.0
    %3038 = vmatpush.msra.mxu0 0.0
    %3039 = vmatpush.msra.mxu0 0.0
    %3040 = vmatpush.msra.mxu0 0.0
    %3041 = vmatpush.msra.mxu0 0.0
    %3042 = vmatpush.msra.mxu0 0.0
    %3043 = vmatpush.msra.mxu0 0.0
    %3044 = vmatpush.msra.mxu0 0.0
    %3045 = vmatpush.msra.mxu0 0.0
    %3046 = vmatpush.msra.mxu0 0.0
    %3047 = vmatpush.msra.mxu0 0.0
    %3048 = vmatpush.msra.mxu0 0.0
    %3049 = vmatpush.msra.mxu0 0.0
    %3050 = vmatpush.msra.mxu0 %v3030
    %3051 = vmatmul.f32.gmra.mxu0 %v3033
    %v3052 = vpop.f32.mrf.mxu0
    %v3053 = vadd.f32 0.0, %v3052
    %3054 = vdwg.mxu0
    %3057 = vrot.lane.b32.xlu0 %v2707, 8
    %v3058 = vpop.permute.xlu0 %3057
    %3059 = vrot.lane.b32.xlu0 %v2733, 8
    %v3060 = vpop.permute.xlu0 %3059
    %3065 = vrot.lane.b32.xlu0 %v2867, 16
    %v3066 = vpop.permute.xlu0 %3065
    %3067 = vrot.lane.b32.xlu0 %v2893, 16
    %v3068 = vpop.permute.xlu0 %3067
    %3073 = vrot.lane.b32.xlu0 %v3027, 24
    %v3074 = vpop.permute.xlu0 %3073
    %3075 = vrot.lane.b32.xlu0 %v3053, 24
    %v3076 = vpop.permute.xlu0 %3075
    %v3079 = vsel %vm304, %v2547, %v3058
    %v3080 = vsel %vm304, %v2573, %v3060
    %v3081 = vsel %vm968, %v3079, %v3066
    %v3082 = vsel %vm968, %v3080, %v3068
    %v3083 = vsel %vm971, %v3081, %v3074
    %v3084 = vsel %vm971, %v3082, %v3076
    %v3086 = vperm.slane %v2382, 0
    %v3089 = vsel %vm165, %v3083, 0
    %v3092 = vsel %vm165, %v3084, 0
    %3094 = vmatpush.msra.mxu0 0.0
    %3095 = vmatpush.msra.mxu0 0.0
    %3096 = vmatpush.msra.mxu0 0.0
    %3097 = vmatpush.msra.mxu0 0.0
    %3098 = vmatpush.msra.mxu0 0.0
    %3099 = vmatpush.msra.mxu0 0.0
    %3100 = vmatpush.msra.mxu0 0.0
    %3101 = vmatpush.msra.mxu0 0.0
    %3102 = vmatpush.msra.mxu0 0.0
    %3103 = vmatpush.msra.mxu0 0.0
    %3104 = vmatpush.msra.mxu0 0.0
    %3105 = vmatpush.msra.mxu0 0.0
    %3106 = vmatpush.msra.mxu0 %v2381
    %3107 = vmatpush.msra.mxu0 %v2380
    %3108 = vmatpush.msra.mxu0 %v2379
    %3109 = vmatpush.msra.mxu0 %v2378
    %3110 = vmatmul.f32.gmra.mxu0 %v3089
    %v3111 = vpop.f32.mrf.mxu0
    %v3112 = vadd.f32 %v3086, %v3111
    %3113 = vmatmul.f32.gmra.mxu0 %v3092
    %v3114 = vpop.f32.mrf.mxu0
    %v3115 = vadd.f32 %v3086, %v3114
    %3116 = vdwg.mxu0
    %v3117 = vadd.f32 %v2283, %v3112
    %v3118 = vadd.f32 %v2284, %v3115
    %s3119 = scalar_lea.vmem %s61, 1
    %v3120 = vld [vmem:[%s3119] sm:$0x1]
    %s3121 = scalar_lea.vmem %s63, 1
    %v3122 = vld [vmem:[%s3121] sm:$0x1]
    %v3123 = vsel %vm165, %v3117, 0.0
    %3124 = vadd.xlane.f32.xlu0 %v3123
    %v3125 = vpop.xlane.xlu0 %3124
    %v3126 = vsel %vm165, %v3118, 0.0
    %3127 = vadd.xlane.f32.xlu0 %v3126
    %v3128 = vpop.xlane.xlu0 %3127
    %v3129 = vmul.f32 %v3125, %v178
    %v3130 = vmul.f32 %v3128, %v178
    %v3131 = vsub.f32 %v3117, %v3129
    %v3132 = vsub.f32 %v3118, %v3130
    %v3133 = vmul.f32 %v3131, %v3131
    %v3134 = vmul.f32 %v3132, %v3132
    %v3135 = vsel %vm165, %v3133, 0.0
    %3136 = vadd.xlane.f32.xlu0 %v3135
    %v3137 = vpop.xlane.xlu0 %3136
    %v3138 = vsel %vm165, %v3134, 0.0
    %3139 = vadd.xlane.f32.xlu0 %v3138
    %v3140 = vpop.xlane.xlu0 %3139
    %v3141 = vmul.f32 %v3137, 0.032258064
    %v3142 = vmul.f32 %v3140, 0.032258064
    %v3143 = vrsqrt.pop %v3141
    %v3144 = vmul.f32 %v3143, %v3141
    %v3145 = vmul.f32 %v3144, %v3143
    %v3146 = vmul.f32 0.5, %v3145
    %v3147 = vsub.f32 1.5, %v3146
    %v3148 = vmul.f32 %v3143, %v3147
    %v3149 = vmul.f32 %v3141, %v3148
    %vm3150 = vcmp.eq.f32.partialorder %v3141, inf
    %v3151 = vsel %vm3150, %v3141, %v3149
    %vm3152 = vcmp.eq.f32.partialorder %v3141, 0.0
    %v3153 = vand.u32 %v3141, 2147483648
    %v3154 = vsel %vm3152, %v3153, %v3151
    %v3155 = vrsqrt.pop %v3142
    %v3156 = vmul.f32 %v3155, %v3142
    %v3157 = vmul.f32 %v3156, %v3155
    %v3158 = vmul.f32 0.5, %v3157
    %v3159 = vsub.f32 1.5, %v3158
    %v3160 = vmul.f32 %v3155, %v3159
    %v3161 = vmul.f32 %v3142, %v3160
    %vm3162 = vcmp.eq.f32.partialorder %v3142, inf
    %v3163 = vsel %vm3162, %v3142, %v3161
    %vm3164 = vcmp.eq.f32.partialorder %v3142, 0.0
    %v3165 = vand.u32 %v3142, 2147483648
    %v3166 = vsel %vm3164, %v3165, %v3163
    %v3168 = vperm.slane %v3120, 0
    %v3170 = vmul.f32 %v3168, %v3131
    %v3171 = vmul.f32 %v3168, %v3132
    %v3172 = vadd.f32 %v3154, 1e-06
    %v3173 = vadd.f32 %v3166, 1e-06
    %v3174 = vrcp.pop %v3172
    %v3175 = vmul.f32 %v3172, %v3174
    %v3176 = vsub.f32 1.0, %v3175
    %v3177 = vmul.f32 %v3174, %v3176
    %v3178 = vadd.f32 %v3174, %v3177
    %vm3179 = vweird.f32 %v3172
    %vm3180 = vweird.f32 %v3174
    %vm3181 = vmor %vm3179, %vm3180
    %v3182 = vsel %vm3181, %v3174, %v3178
    %v3183 = vand.u32 2147483647, %v3172
    %vm3184 = vcmp.eq.f32.partialorder %v3183, 8.507059e+37
    %v3185 = vand.u32 %v3172, 2147483648
    %v3186 = vor.u32 1.1754944e-38, %v3185
    %v3187 = vsel %vm3184, %v3186, %v3182
    %v3188 = vrcp.pop %v3173
    %v3189 = vmul.f32 %v3173, %v3188
    %v3190 = vsub.f32 1.0, %v3189
    %v3191 = vmul.f32 %v3188, %v3190
    %v3192 = vadd.f32 %v3188, %v3191
    %vm3193 = vweird.f32 %v3173
    %vm3194 = vweird.f32 %v3188
    %vm3195 = vmor %vm3193, %vm3194
    %v3196 = vsel %vm3195, %v3188, %v3192
    %v3197 = vand.u32 2147483647, %v3173
    %vm3198 = vcmp.eq.f32.partialorder %v3197, 8.507059e+37
    %v3199 = vand.u32 %v3173, 2147483648
    %v3200 = vor.u32 1.1754944e-38, %v3199
    %v3201 = vsel %vm3198, %v3200, %v3196
    %v3202 = vmul.f32 %v3170, %v3187
    %v3203 = vmul.f32 %v3171, %v3201
    %v3205 = vperm.slane %v3122, 0
    %v3207 = vadd.f32 %v3202, %v3205
    %v3208 = vadd.f32 %v3203, %v3205
    %v3209 = vld [vmem:[%s41] sm:$0xff]
    %v3210 = vld [vmem:[%s41 + $0x8] sm:$0xff]
    %v3211 = vld [vmem:[%s41 + $0x10] sm:$0xff]
    %v3212 = vld [vmem:[%s41 + $0x18] sm:$0xff]
    %v3213 = vld [vmem:[%s43] sm:$0x1]
    %v3214 = vld [vmem:[%s45] sm:$0xff]
    %v3215 = vld [vmem:[%s45 + $0x8] sm:$0xff]
    %v3216 = vld [vmem:[%s45 + $0x10] sm:$0xff]
    %v3217 = vld [vmem:[%s45 + $0x18] sm:$0xff]
    %v3218 = vld [vmem:[%s47] sm:$0x1]
    %v3219 = vld [vmem:[%s49] sm:$0xff]
    %v3220 = vld [vmem:[%s49 + $0x8] sm:$0xff]
    %v3221 = vld [vmem:[%s49 + $0x10] sm:$0xff]
    %v3222 = vld [vmem:[%s49 + $0x18] sm:$0xff]
    %v3223 = vld [vmem:[%s51] sm:$0x1]
    %v3225 = vperm.slane %v3213, 0
    %v3228 = vsel %vm165, %v3207, 0
    %v3231 = vsel %vm165, %v3208, 0
    %3233 = vmatpush.msra.mxu0 0.0
    %3234 = vmatpush.msra.mxu0 0.0
    %3235 = vmatpush.msra.mxu0 0.0
    %3236 = vmatpush.msra.mxu0 0.0
    %3237 = vmatpush.msra.mxu0 0.0
    %3238 = vmatpush.msra.mxu0 0.0
    %3239 = vmatpush.msra.mxu0 0.0
    %3240 = vmatpush.msra.mxu0 0.0
    %3241 = vmatpush.msra.mxu0 0.0
    %3242 = vmatpush.msra.mxu0 0.0
    %3243 = vmatpush.msra.mxu0 0.0
    %3244 = vmatpush.msra.mxu0 0.0
    %3245 = vmatpush.msra.mxu0 %v3212
    %3246 = vmatpush.msra.mxu0 %v3211
    %3247 = vmatpush.msra.mxu0 %v3210
    %3248 = vmatpush.msra.mxu0 %v3209
    %3249 = vmatmul.f32.gmra.mxu0 %v3228
    %v3250 = vpop.f32.mrf.mxu0
    %v3251 = vadd.f32 %v3225, %v3250
    %3252 = vmatmul.f32.gmra.mxu0 %v3231
    %v3253 = vpop.f32.mrf.mxu0
    %v3254 = vadd.f32 %v3225, %v3253
    %3255 = vdwg.mxu0
    %v3257 = vperm.slane %v3218, 0
    %v3260 = vsel %vm165, %v2281, 0
    %v3263 = vsel %vm165, %v2282, 0
    %3265 = vmatpush.msra.mxu0 0.0
    %3266 = vmatpush.msra.mxu0 0.0
    %3267 = vmatpush.msra.mxu0 0.0
    %3268 = vmatpush.msra.mxu0 0.0
    %3269 = vmatpush.msra.mxu0 0.0
    %3270 = vmatpush.msra.mxu0 0.0
    %3271 = vmatpush.msra.mxu0 0.0
    %3272 = vmatpush.msra.mxu0 0.0
    %3273 = vmatpush.msra.mxu0 0.0
    %3274 = vmatpush.msra.mxu0 0.0
    %3275 = vmatpush.msra.mxu0 0.0
    %3276 = vmatpush.msra.mxu0 0.0
    %3277 = vmatpush.msra.mxu0 %v3217
    %3278 = vmatpush.msra.mxu0 %v3216
    %3279 = vmatpush.msra.mxu0 %v3215
    %3280 = vmatpush.msra.mxu0 %v3214
    %3281 = vmatmul.f32.gmra.mxu0 %v3260
    %v3282 = vpop.f32.mrf.mxu0
    %v3283 = vadd.f32 %v3257, %v3282
    %3284 = vmatmul.f32.gmra.mxu0 %v3263
    %v3285 = vpop.f32.mrf.mxu0
    %v3286 = vadd.f32 %v3257, %v3285
    %3287 = vdwg.mxu0
    %v3289 = vsel %vm304, %v3251, 0
    %v3292 = vsel %vm304, %v3283, 0
    %3294 = vmatpush.xpose.msra.mxu0 0.0
    %3295 = vmatpush.xpose.msra.mxu0 0.0
    %3296 = vmatpush.xpose.msra.mxu0 0.0
    %3297 = vmatpush.xpose.msra.mxu0 0.0
    %3298 = vmatpush.xpose.msra.mxu0 0.0
    %3299 = vmatpush.xpose.msra.mxu0 0.0
    %3300 = vmatpush.xpose.msra.mxu0 0.0
    %3301 = vmatpush.xpose.msra.mxu0 0.0
    %3302 = vmatpush.xpose.msra.mxu0 0.0
    %3303 = vmatpush.xpose.msra.mxu0 0.0
    %3304 = vmatpush.xpose.msra.mxu0 0.0
    %3305 = vmatpush.xpose.msra.mxu0 0.0
    %3306 = vmatpush.xpose.msra.mxu0 0.0
    %3307 = vmatpush.xpose.msra.mxu0 0.0
    %3308 = vmatpush.xpose.msra.mxu0 0.0
    %3309 = vmatpush.xpose.msra.mxu0 %v3292
    %3310 = vmatmul.f32.gmra.mxu0 %v3289
    %v3311 = vpop.f32.mrf.mxu0
    %v3312 = vadd.f32 0.0, %v3311
    %3313 = vdwg.mxu0
    %v3315 = vsel %vm304, %v3254, 0
    %v3318 = vsel %vm304, %v3286, 0
    %3320 = vmatpush.xpose.msra.mxu0 0.0
    %3321 = vmatpush.xpose.msra.mxu0 0.0
    %3322 = vmatpush.xpose.msra.mxu0 0.0
    %3323 = vmatpush.xpose.msra.mxu0 0.0
    %3324 = vmatpush.xpose.msra.mxu0 0.0
    %3325 = vmatpush.xpose.msra.mxu0 0.0
    %3326 = vmatpush.xpose.msra.mxu0 0.0
    %3327 = vmatpush.xpose.msra.mxu0 0.0
    %3328 = vmatpush.xpose.msra.mxu0 0.0
    %3329 = vmatpush.xpose.msra.mxu0 0.0
    %3330 = vmatpush.xpose.msra.mxu0 0.0
    %3331 = vmatpush.xpose.msra.mxu0 0.0
    %3332 = vmatpush.xpose.msra.mxu0 0.0
    %3333 = vmatpush.xpose.msra.mxu0 0.0
    %3334 = vmatpush.xpose.msra.mxu0 0.0
    %3335 = vmatpush.xpose.msra.mxu0 %v3318
    %3336 = vmatmul.f32.gmra.mxu0 %v3315
    %v3337 = vpop.f32.mrf.mxu0
    %v3338 = vadd.f32 0.0, %v3337
    %3339 = vdwg.mxu0
    %v3340 = vmul.f32 %v3312, 0.35355338
    %v3341 = vmul.f32 %v3338, 0.35355338
    %v3342 = vsel %vm358, %v3340, -1e+09
    %v3343 = vsel %vm359, %v3341, -1e+09
    %v3344 = vsel %vm304, %v3342, -inf
    %3345 = vmax.xlane.f32.xlu0 %v3344
    %v3346 = vpop.xlane.xlu0 %3345
    %v3347 = vsel %vm304, %v3343, -inf
    %3348 = vmax.xlane.f32.xlu0 %v3347
    %v3349 = vpop.xlane.xlu0 %3348
    %v3350 = vsub.f32 %v3342, %v3346
    %v3351 = vsub.f32 %v3343, %v3349
    %v3352 = vmul.f32 %v3350, 1.442695
    %v3353 = vpow.pop %v3352
    %v3354 = vmul.f32 %v3351, 1.442695
    %v3355 = vpow.pop %v3354
    %v3356 = vsel %vm304, %v3353, 0.0
    %3357 = vadd.xlane.f32.xlu0 %v3356
    %v3358 = vpop.xlane.xlu0 %3357
    %v3359 = vsel %vm304, %v3355, 0.0
    %3360 = vadd.xlane.f32.xlu0 %v3359
    %v3361 = vpop.xlane.xlu0 %3360
    %v3362 = vrcp.pop %v3358
    %v3363 = vmul.f32 %v3358, %v3362
    %v3364 = vsub.f32 1.0, %v3363
    %v3365 = vmul.f32 %v3362, %v3364
    %v3366 = vadd.f32 %v3362, %v3365
    %vm3367 = vweird.f32 %v3358
    %vm3368 = vweird.f32 %v3362
    %vm3369 = vmor %vm3367, %vm3368
    %v3370 = vsel %vm3369, %v3362, %v3366
    %v3371 = vand.u32 2147483647, %v3358
    %vm3372 = vcmp.eq.f32.partialorder %v3371, 8.507059e+37
    %v3373 = vand.u32 %v3358, 2147483648
    %v3374 = vor.u32 1.1754944e-38, %v3373
    %v3375 = vsel %vm3372, %v3374, %v3370
    %v3376 = vrcp.pop %v3361
    %v3377 = vmul.f32 %v3361, %v3376
    %v3378 = vsub.f32 1.0, %v3377
    %v3379 = vmul.f32 %v3376, %v3378
    %v3380 = vadd.f32 %v3376, %v3379
    %vm3381 = vweird.f32 %v3361
    %vm3382 = vweird.f32 %v3376
    %vm3383 = vmor %vm3381, %vm3382
    %v3384 = vsel %vm3383, %v3376, %v3380
    %v3385 = vand.u32 2147483647, %v3361
    %vm3386 = vcmp.eq.f32.partialorder %v3385, 8.507059e+37
    %v3387 = vand.u32 %v3361, 2147483648
    %v3388 = vor.u32 1.1754944e-38, %v3387
    %v3389 = vsel %vm3386, %v3388, %v3384
    %v3390 = vmul.f32 %v3353, %v3375
    %v3391 = vmul.f32 %v3355, %v3389
    %3392 = vrot.lane.b32.xlu0 %v3283, 96
    %v3393 = vpop.permute.xlu0 %3392
    %v3396 = vsel %vm304, %v3390, 0
    %3398 = vmatpush.msra.mxu0 0.0
    %3399 = vmatpush.msra.mxu0 0.0
    %3400 = vmatpush.msra.mxu0 0.0
    %3401 = vmatpush.msra.mxu0 0.0
    %3402 = vmatpush.msra.mxu0 0.0
    %3403 = vmatpush.msra.mxu0 0.0
    %3404 = vmatpush.msra.mxu0 0.0
    %3405 = vmatpush.msra.mxu0 0.0
    %3406 = vmatpush.msra.mxu0 0.0
    %3407 = vmatpush.msra.mxu0 0.0
    %3408 = vmatpush.msra.mxu0 0.0
    %3409 = vmatpush.msra.mxu0 0.0
    %3410 = vmatpush.msra.mxu0 0.0
    %3411 = vmatpush.msra.mxu0 0.0
    %3412 = vmatpush.msra.mxu0 0.0
    %3413 = vmatpush.msra.mxu0 %v3393
    %3414 = vmatmul.f32.gmra.mxu0 %v3396
    %v3415 = vpop.f32.mrf.mxu0
    %v3416 = vadd.f32 0.0, %v3415
    %3417 = vdwg.mxu0
    %3418 = vrot.lane.b32.xlu0 %v3286, 96
    %v3419 = vpop.permute.xlu0 %3418
    %v3422 = vsel %vm304, %v3391, 0
    %3424 = vmatpush.msra.mxu0 0.0
    %3425 = vmatpush.msra.mxu0 0.0
    %3426 = vmatpush.msra.mxu0 0.0
    %3427 = vmatpush.msra.mxu0 0.0
    %3428 = vmatpush.msra.mxu0 0.0
    %3429 = vmatpush.msra.mxu0 0.0
    %3430 = vmatpush.msra.mxu0 0.0
    %3431 = vmatpush.msra.mxu0 0.0
    %3432 = vmatpush.msra.mxu0 0.0
    %3433 = vmatpush.msra.mxu0 0.0
    %3434 = vmatpush.msra.mxu0 0.0
    %3435 = vmatpush.msra.mxu0 0.0
    %3436 = vmatpush.msra.mxu0 0.0
    %3437 = vmatpush.msra.mxu0 0.0
    %3438 = vmatpush.msra.mxu0 0.0
    %3439 = vmatpush.msra.mxu0 %v3419
    %3440 = vmatmul.f32.gmra.mxu0 %v3422
    %v3441 = vpop.f32.mrf.mxu0
    %v3442 = vadd.f32 0.0, %v3441
    %3443 = vdwg.mxu0
    %3444 = vrot.lane.b32.xlu0 %v3251, 120
    %v3445 = vpop.permute.xlu0 %3444
    %3446 = vrot.lane.b32.xlu0 %v3283, 120
    %v3447 = vpop.permute.xlu0 %3446
    %v3448 = vsel %vm304, %v3445, 0
    %v3450 = vsel %vm304, %v3447, 0
    %3452 = vmatpush.xpose.msra.mxu0 0.0
    %3453 = vmatpush.xpose.msra.mxu0 0.0
    %3454 = vmatpush.xpose.msra.mxu0 0.0
    %3455 = vmatpush.xpose.msra.mxu0 0.0
    %3456 = vmatpush.xpose.msra.mxu0 0.0
    %3457 = vmatpush.xpose.msra.mxu0 0.0
    %3458 = vmatpush.xpose.msra.mxu0 0.0
    %3459 = vmatpush.xpose.msra.mxu0 0.0
    %3460 = vmatpush.xpose.msra.mxu0 0.0
    %3461 = vmatpush.xpose.msra.mxu0 0.0
    %3462 = vmatpush.xpose.msra.mxu0 0.0
    %3463 = vmatpush.xpose.msra.mxu0 0.0
    %3464 = vmatpush.xpose.msra.mxu0 0.0
    %3465 = vmatpush.xpose.msra.mxu0 0.0
    %3466 = vmatpush.xpose.msra.mxu0 0.0
    %3467 = vmatpush.xpose.msra.mxu0 %v3450
    %3468 = vmatmul.f32.gmra.mxu0 %v3448
    %v3469 = vpop.f32.mrf.mxu0
    %v3470 = vadd.f32 0.0, %v3469
    %3471 = vdwg.mxu0
    %3472 = vrot.lane.b32.xlu0 %v3254, 120
    %v3473 = vpop.permute.xlu0 %3472
    %3474 = vrot.lane.b32.xlu0 %v3286, 120
    %v3475 = vpop.permute.xlu0 %3474
    %v3476 = vsel %vm304, %v3473, 0
    %v3478 = vsel %vm304, %v3475, 0
    %3480 = vmatpush.xpose.msra.mxu0 0.0
    %3481 = vmatpush.xpose.msra.mxu0 0.0
    %3482 = vmatpush.xpose.msra.mxu0 0.0
    %3483 = vmatpush.xpose.msra.mxu0 0.0
    %3484 = vmatpush.xpose.msra.mxu0 0.0
    %3485 = vmatpush.xpose.msra.mxu0 0.0
    %3486 = vmatpush.xpose.msra.mxu0 0.0
    %3487 = vmatpush.xpose.msra.mxu0 0.0
    %3488 = vmatpush.xpose.msra.mxu0 0.0
    %3489 = vmatpush.xpose.msra.mxu0 0.0
    %3490 = vmatpush.xpose.msra.mxu0 0.0
    %3491 = vmatpush.xpose.msra.mxu0 0.0
    %3492 = vmatpush.xpose.msra.mxu0 0.0
    %3493 = vmatpush.xpose.msra.mxu0 0.0
    %3494 = vmatpush.xpose.msra.mxu0 0.0
    %3495 = vmatpush.xpose.msra.mxu0 %v3478
    %3496 = vmatmul.f32.gmra.mxu0 %v3476
    %v3497 = vpop.f32.mrf.mxu0
    %v3498 = vadd.f32 0.0, %v3497
    %3499 = vdwg.mxu0
    %v3500 = vmul.f32 %v3470, 0.35355338
    %v3501 = vmul.f32 %v3498, 0.35355338
    %v3502 = vsel %vm358, %v3500, -1e+09
    %v3503 = vsel %vm359, %v3501, -1e+09
    %v3504 = vsel %vm304, %v3502, -inf
    %3505 = vmax.xlane.f32.xlu0 %v3504
    %v3506 = vpop.xlane.xlu0 %3505
    %v3507 = vsel %vm304, %v3503, -inf
    %3508 = vmax.xlane.f32.xlu0 %v3507
    %v3509 = vpop.xlane.xlu0 %3508
    %v3510 = vsub.f32 %v3502, %v3506
    %v3511 = vsub.f32 %v3503, %v3509
    %v3512 = vmul.f32 %v3510, 1.442695
    %v3513 = vpow.pop %v3512
    %v3514 = vmul.f32 %v3511, 1.442695
    %v3515 = vpow.pop %v3514
    %v3516 = vsel %vm304, %v3513, 0.0
    %3517 = vadd.xlane.f32.xlu0 %v3516
    %v3518 = vpop.xlane.xlu0 %3517
    %v3519 = vsel %vm304, %v3515, 0.0
    %3520 = vadd.xlane.f32.xlu0 %v3519
    %v3521 = vpop.xlane.xlu0 %3520
    %v3522 = vrcp.pop %v3518
    %v3523 = vmul.f32 %v3518, %v3522
    %v3524 = vsub.f32 1.0, %v3523
    %v3525 = vmul.f32 %v3522, %v3524
    %v3526 = vadd.f32 %v3522, %v3525
    %vm3527 = vweird.f32 %v3518
    %vm3528 = vweird.f32 %v3522
    %vm3529 = vmor %vm3527, %vm3528
    %v3530 = vsel %vm3529, %v3522, %v3526
    %v3531 = vand.u32 2147483647, %v3518
    %vm3532 = vcmp.eq.f32.partialorder %v3531, 8.507059e+37
    %v3533 = vand.u32 %v3518, 2147483648
    %v3534 = vor.u32 1.1754944e-38, %v3533
    %v3535 = vsel %vm3532, %v3534, %v3530
    %v3536 = vrcp.pop %v3521
    %v3537 = vmul.f32 %v3521, %v3536
    %v3538 = vsub.f32 1.0, %v3537
    %v3539 = vmul.f32 %v3536, %v3538
    %v3540 = vadd.f32 %v3536, %v3539
    %vm3541 = vweird.f32 %v3521
    %vm3542 = vweird.f32 %v3536
    %vm3543 = vmor %vm3541, %vm3542
    %v3544 = vsel %vm3543, %v3536, %v3540
    %v3545 = vand.u32 2147483647, %v3521
    %vm3546 = vcmp.eq.f32.partialorder %v3545, 8.507059e+37
    %v3547 = vand.u32 %v3521, 2147483648
    %v3548 = vor.u32 1.1754944e-38, %v3547
    %v3549 = vsel %vm3546, %v3548, %v3544
    %v3550 = vmul.f32 %v3513, %v3535
    %v3551 = vmul.f32 %v3515, %v3549
    %3552 = vrot.lane.b32.xlu0 %v3283, 88
    %v3553 = vpop.permute.xlu0 %3552
    %v3556 = vsel %vm304, %v3550, 0
    %3558 = vmatpush.msra.mxu0 0.0
    %3559 = vmatpush.msra.mxu0 0.0
    %3560 = vmatpush.msra.mxu0 0.0
    %3561 = vmatpush.msra.mxu0 0.0
    %3562 = vmatpush.msra.mxu0 0.0
    %3563 = vmatpush.msra.mxu0 0.0
    %3564 = vmatpush.msra.mxu0 0.0
    %3565 = vmatpush.msra.mxu0 0.0
    %3566 = vmatpush.msra.mxu0 0.0
    %3567 = vmatpush.msra.mxu0 0.0
    %3568 = vmatpush.msra.mxu0 0.0
    %3569 = vmatpush.msra.mxu0 0.0
    %3570 = vmatpush.msra.mxu0 0.0
    %3571 = vmatpush.msra.mxu0 0.0
    %3572 = vmatpush.msra.mxu0 0.0
    %3573 = vmatpush.msra.mxu0 %v3553
    %3574 = vmatmul.f32.gmra.mxu0 %v3556
    %v3575 = vpop.f32.mrf.mxu0
    %v3576 = vadd.f32 0.0, %v3575
    %3577 = vdwg.mxu0
    %3578 = vrot.lane.b32.xlu0 %v3286, 88
    %v3579 = vpop.permute.xlu0 %3578
    %v3582 = vsel %vm304, %v3551, 0
    %3584 = vmatpush.msra.mxu0 0.0
    %3585 = vmatpush.msra.mxu0 0.0
    %3586 = vmatpush.msra.mxu0 0.0
    %3587 = vmatpush.msra.mxu0 0.0
    %3588 = vmatpush.msra.mxu0 0.0
    %3589 = vmatpush.msra.mxu0 0.0
    %3590 = vmatpush.msra.mxu0 0.0
    %3591 = vmatpush.msra.mxu0 0.0
    %3592 = vmatpush.msra.mxu0 0.0
    %3593 = vmatpush.msra.mxu0 0.0
    %3594 = vmatpush.msra.mxu0 0.0
    %3595 = vmatpush.msra.mxu0 0.0
    %3596 = vmatpush.msra.mxu0 0.0
    %3597 = vmatpush.msra.mxu0 0.0
    %3598 = vmatpush.msra.mxu0 0.0
    %3599 = vmatpush.msra.mxu0 %v3579
    %3600 = vmatmul.f32.gmra.mxu0 %v3582
    %v3601 = vpop.f32.mrf.mxu0
    %v3602 = vadd.f32 0.0, %v3601
    %3603 = vdwg.mxu0
    %3604 = vrot.lane.b32.xlu0 %v3251, 112
    %v3605 = vpop.permute.xlu0 %3604
    %3606 = vrot.lane.b32.xlu0 %v3283, 112
    %v3607 = vpop.permute.xlu0 %3606
    %v3608 = vsel %vm304, %v3605, 0
    %v3610 = vsel %vm304, %v3607, 0
    %3612 = vmatpush.xpose.msra.mxu0 0.0
    %3613 = vmatpush.xpose.msra.mxu0 0.0
    %3614 = vmatpush.xpose.msra.mxu0 0.0
    %3615 = vmatpush.xpose.msra.mxu0 0.0
    %3616 = vmatpush.xpose.msra.mxu0 0.0
    %3617 = vmatpush.xpose.msra.mxu0 0.0
    %3618 = vmatpush.xpose.msra.mxu0 0.0
    %3619 = vmatpush.xpose.msra.mxu0 0.0
    %3620 = vmatpush.xpose.msra.mxu0 0.0
    %3621 = vmatpush.xpose.msra.mxu0 0.0
    %3622 = vmatpush.xpose.msra.mxu0 0.0
    %3623 = vmatpush.xpose.msra.mxu0 0.0
    %3624 = vmatpush.xpose.msra.mxu0 0.0
    %3625 = vmatpush.xpose.msra.mxu0 0.0
    %3626 = vmatpush.xpose.msra.mxu0 0.0
    %3627 = vmatpush.xpose.msra.mxu0 %v3610
    %3628 = vmatmul.f32.gmra.mxu0 %v3608
    %v3629 = vpop.f32.mrf.mxu0
    %v3630 = vadd.f32 0.0, %v3629
    %3631 = vdwg.mxu0
    %3632 = vrot.lane.b32.xlu0 %v3254, 112
    %v3633 = vpop.permute.xlu0 %3632
    %3634 = vrot.lane.b32.xlu0 %v3286, 112
    %v3635 = vpop.permute.xlu0 %3634
    %v3636 = vsel %vm304, %v3633, 0
    %v3638 = vsel %vm304, %v3635, 0
    %3640 = vmatpush.xpose.msra.mxu0 0.0
    %3641 = vmatpush.xpose.msra.mxu0 0.0
    %3642 = vmatpush.xpose.msra.mxu0 0.0
    %3643 = vmatpush.xpose.msra.mxu0 0.0
    %3644 = vmatpush.xpose.msra.mxu0 0.0
    %3645 = vmatpush.xpose.msra.mxu0 0.0
    %3646 = vmatpush.xpose.msra.mxu0 0.0
    %3647 = vmatpush.xpose.msra.mxu0 0.0
    %3648 = vmatpush.xpose.msra.mxu0 0.0
    %3649 = vmatpush.xpose.msra.mxu0 0.0
    %3650 = vmatpush.xpose.msra.mxu0 0.0
    %3651 = vmatpush.xpose.msra.mxu0 0.0
    %3652 = vmatpush.xpose.msra.mxu0 0.0
    %3653 = vmatpush.xpose.msra.mxu0 0.0
    %3654 = vmatpush.xpose.msra.mxu0 0.0
    %3655 = vmatpush.xpose.msra.mxu0 %v3638
    %3656 = vmatmul.f32.gmra.mxu0 %v3636
    %v3657 = vpop.f32.mrf.mxu0
    %v3658 = vadd.f32 0.0, %v3657
    %3659 = vdwg.mxu0
    %v3660 = vmul.f32 %v3630, 0.35355338
    %v3661 = vmul.f32 %v3658, 0.35355338
    %v3662 = vsel %vm358, %v3660, -1e+09
    %v3663 = vsel %vm359, %v3661, -1e+09
    %v3664 = vsel %vm304, %v3662, -inf
    %3665 = vmax.xlane.f32.xlu0 %v3664
    %v3666 = vpop.xlane.xlu0 %3665
    %v3667 = vsel %vm304, %v3663, -inf
    %3668 = vmax.xlane.f32.xlu0 %v3667
    %v3669 = vpop.xlane.xlu0 %3668
    %v3670 = vsub.f32 %v3662, %v3666
    %v3671 = vsub.f32 %v3663, %v3669
    %v3672 = vmul.f32 %v3670, 1.442695
    %v3673 = vpow.pop %v3672
    %v3674 = vmul.f32 %v3671, 1.442695
    %v3675 = vpow.pop %v3674
    %v3676 = vsel %vm304, %v3673, 0.0
    %3677 = vadd.xlane.f32.xlu0 %v3676
    %v3678 = vpop.xlane.xlu0 %3677
    %v3679 = vsel %vm304, %v3675, 0.0
    %3680 = vadd.xlane.f32.xlu0 %v3679
    %v3681 = vpop.xlane.xlu0 %3680
    %v3682 = vrcp.pop %v3678
    %v3683 = vmul.f32 %v3678, %v3682
    %v3684 = vsub.f32 1.0, %v3683
    %v3685 = vmul.f32 %v3682, %v3684
    %v3686 = vadd.f32 %v3682, %v3685
    %vm3687 = vweird.f32 %v3678
    %vm3688 = vweird.f32 %v3682
    %vm3689 = vmor %vm3687, %vm3688
    %v3690 = vsel %vm3689, %v3682, %v3686
    %v3691 = vand.u32 2147483647, %v3678
    %vm3692 = vcmp.eq.f32.partialorder %v3691, 8.507059e+37
    %v3693 = vand.u32 %v3678, 2147483648
    %v3694 = vor.u32 1.1754944e-38, %v3693
    %v3695 = vsel %vm3692, %v3694, %v3690
    %v3696 = vrcp.pop %v3681
    %v3697 = vmul.f32 %v3681, %v3696
    %v3698 = vsub.f32 1.0, %v3697
    %v3699 = vmul.f32 %v3696, %v3698
    %v3700 = vadd.f32 %v3696, %v3699
    %vm3701 = vweird.f32 %v3681
    %vm3702 = vweird.f32 %v3696
    %vm3703 = vmor %vm3701, %vm3702
    %v3704 = vsel %vm3703, %v3696, %v3700
    %v3705 = vand.u32 2147483647, %v3681
    %vm3706 = vcmp.eq.f32.partialorder %v3705, 8.507059e+37
    %v3707 = vand.u32 %v3681, 2147483648
    %v3708 = vor.u32 1.1754944e-38, %v3707
    %v3709 = vsel %vm3706, %v3708, %v3704
    %v3710 = vmul.f32 %v3673, %v3695
    %v3711 = vmul.f32 %v3675, %v3709
    %3712 = vrot.lane.b32.xlu0 %v3283, 80
    %v3713 = vpop.permute.xlu0 %3712
    %v3716 = vsel %vm304, %v3710, 0
    %3718 = vmatpush.msra.mxu0 0.0
    %3719 = vmatpush.msra.mxu0 0.0
    %3720 = vmatpush.msra.mxu0 0.0
    %3721 = vmatpush.msra.mxu0 0.0
    %3722 = vmatpush.msra.mxu0 0.0
    %3723 = vmatpush.msra.mxu0 0.0
    %3724 = vmatpush.msra.mxu0 0.0
    %3725 = vmatpush.msra.mxu0 0.0
    %3726 = vmatpush.msra.mxu0 0.0
    %3727 = vmatpush.msra.mxu0 0.0
    %3728 = vmatpush.msra.mxu0 0.0
    %3729 = vmatpush.msra.mxu0 0.0
    %3730 = vmatpush.msra.mxu0 0.0
    %3731 = vmatpush.msra.mxu0 0.0
    %3732 = vmatpush.msra.mxu0 0.0
    %3733 = vmatpush.msra.mxu0 %v3713
    %3734 = vmatmul.f32.gmra.mxu0 %v3716
    %v3735 = vpop.f32.mrf.mxu0
    %v3736 = vadd.f32 0.0, %v3735
    %3737 = vdwg.mxu0
    %3738 = vrot.lane.b32.xlu0 %v3286, 80
    %v3739 = vpop.permute.xlu0 %3738
    %v3742 = vsel %vm304, %v3711, 0
    %3744 = vmatpush.msra.mxu0 0.0
    %3745 = vmatpush.msra.mxu0 0.0
    %3746 = vmatpush.msra.mxu0 0.0
    %3747 = vmatpush.msra.mxu0 0.0
    %3748 = vmatpush.msra.mxu0 0.0
    %3749 = vmatpush.msra.mxu0 0.0
    %3750 = vmatpush.msra.mxu0 0.0
    %3751 = vmatpush.msra.mxu0 0.0
    %3752 = vmatpush.msra.mxu0 0.0
    %3753 = vmatpush.msra.mxu0 0.0
    %3754 = vmatpush.msra.mxu0 0.0
    %3755 = vmatpush.msra.mxu0 0.0
    %3756 = vmatpush.msra.mxu0 0.0
    %3757 = vmatpush.msra.mxu0 0.0
    %3758 = vmatpush.msra.mxu0 0.0
    %3759 = vmatpush.msra.mxu0 %v3739
    %3760 = vmatmul.f32.gmra.mxu0 %v3742
    %v3761 = vpop.f32.mrf.mxu0
    %v3762 = vadd.f32 0.0, %v3761
    %3763 = vdwg.mxu0
    %3764 = vrot.lane.b32.xlu0 %v3251, 104
    %v3765 = vpop.permute.xlu0 %3764
    %3766 = vrot.lane.b32.xlu0 %v3283, 104
    %v3767 = vpop.permute.xlu0 %3766
    %v3768 = vsel %vm304, %v3765, 0
    %v3770 = vsel %vm304, %v3767, 0
    %3772 = vmatpush.xpose.msra.mxu0 0.0
    %3773 = vmatpush.xpose.msra.mxu0 0.0
    %3774 = vmatpush.xpose.msra.mxu0 0.0
    %3775 = vmatpush.xpose.msra.mxu0 0.0
    %3776 = vmatpush.xpose.msra.mxu0 0.0
    %3777 = vmatpush.xpose.msra.mxu0 0.0
    %3778 = vmatpush.xpose.msra.mxu0 0.0
    %3779 = vmatpush.xpose.msra.mxu0 0.0
    %3780 = vmatpush.xpose.msra.mxu0 0.0
    %3781 = vmatpush.xpose.msra.mxu0 0.0
    %3782 = vmatpush.xpose.msra.mxu0 0.0
    %3783 = vmatpush.xpose.msra.mxu0 0.0
    %3784 = vmatpush.xpose.msra.mxu0 0.0
    %3785 = vmatpush.xpose.msra.mxu0 0.0
    %3786 = vmatpush.xpose.msra.mxu0 0.0
    %3787 = vmatpush.xpose.msra.mxu0 %v3770
    %3788 = vmatmul.f32.gmra.mxu0 %v3768
    %v3789 = vpop.f32.mrf.mxu0
    %v3790 = vadd.f32 0.0, %v3789
    %3791 = vdwg.mxu0
    %3792 = vrot.lane.b32.xlu0 %v3254, 104
    %v3793 = vpop.permute.xlu0 %3792
    %3794 = vrot.lane.b32.xlu0 %v3286, 104
    %v3795 = vpop.permute.xlu0 %3794
    %v3796 = vsel %vm304, %v3793, 0
    %v3798 = vsel %vm304, %v3795, 0
    %3800 = vmatpush.xpose.msra.mxu0 0.0
    %3801 = vmatpush.xpose.msra.mxu0 0.0
    %3802 = vmatpush.xpose.msra.mxu0 0.0
    %3803 = vmatpush.xpose.msra.mxu0 0.0
    %3804 = vmatpush.xpose.msra.mxu0 0.0
    %3805 = vmatpush.xpose.msra.mxu0 0.0
    %3806 = vmatpush.xpose.msra.mxu0 0.0
    %3807 = vmatpush.xpose.msra.mxu0 0.0
    %3808 = vmatpush.xpose.msra.mxu0 0.0
    %3809 = vmatpush.xpose.msra.mxu0 0.0
    %3810 = vmatpush.xpose.msra.mxu0 0.0
    %3811 = vmatpush.xpose.msra.mxu0 0.0
    %3812 = vmatpush.xpose.msra.mxu0 0.0
    %3813 = vmatpush.xpose.msra.mxu0 0.0
    %3814 = vmatpush.xpose.msra.mxu0 0.0
    %3815 = vmatpush.xpose.msra.mxu0 %v3798
    %3816 = vmatmul.f32.gmra.mxu0 %v3796
    %v3817 = vpop.f32.mrf.mxu0
    %v3818 = vadd.f32 0.0, %v3817
    %3819 = vdwg.mxu0
    %v3820 = vmul.f32 %v3790, 0.35355338
    %v3821 = vmul.f32 %v3818, 0.35355338
    %v3822 = vsel %vm358, %v3820, -1e+09
    %v3823 = vsel %vm359, %v3821, -1e+09
    %v3824 = vsel %vm304, %v3822, -inf
    %3825 = vmax.xlane.f32.xlu0 %v3824
    %v3826 = vpop.xlane.xlu0 %3825
    %v3827 = vsel %vm304, %v3823, -inf
    %3828 = vmax.xlane.f32.xlu0 %v3827
    %v3829 = vpop.xlane.xlu0 %3828
    %v3830 = vsub.f32 %v3822, %v3826
    %v3831 = vsub.f32 %v3823, %v3829
    %v3832 = vmul.f32 %v3830, 1.442695
    %v3833 = vpow.pop %v3832
    %v3834 = vmul.f32 %v3831, 1.442695
    %v3835 = vpow.pop %v3834
    %v3836 = vsel %vm304, %v3833, 0.0
    %3837 = vadd.xlane.f32.xlu0 %v3836
    %v3838 = vpop.xlane.xlu0 %3837
    %v3839 = vsel %vm304, %v3835, 0.0
    %3840 = vadd.xlane.f32.xlu0 %v3839
    %v3841 = vpop.xlane.xlu0 %3840
    %v3842 = vrcp.pop %v3838
    %v3843 = vmul.f32 %v3838, %v3842
    %v3844 = vsub.f32 1.0, %v3843
    %v3845 = vmul.f32 %v3842, %v3844
    %v3846 = vadd.f32 %v3842, %v3845
    %vm3847 = vweird.f32 %v3838
    %vm3848 = vweird.f32 %v3842
    %vm3849 = vmor %vm3847, %vm3848
    %v3850 = vsel %vm3849, %v3842, %v3846
    %v3851 = vand.u32 2147483647, %v3838
    %vm3852 = vcmp.eq.f32.partialorder %v3851, 8.507059e+37
    %v3853 = vand.u32 %v3838, 2147483648
    %v3854 = vor.u32 1.1754944e-38, %v3853
    %v3855 = vsel %vm3852, %v3854, %v3850
    %v3856 = vrcp.pop %v3841
    %v3857 = vmul.f32 %v3841, %v3856
    %v3858 = vsub.f32 1.0, %v3857
    %v3859 = vmul.f32 %v3856, %v3858
    %v3860 = vadd.f32 %v3856, %v3859
    %vm3861 = vweird.f32 %v3841
    %vm3862 = vweird.f32 %v3856
    %vm3863 = vmor %vm3861, %vm3862
    %v3864 = vsel %vm3863, %v3856, %v3860
    %v3865 = vand.u32 2147483647, %v3841
    %vm3866 = vcmp.eq.f32.partialorder %v3865, 8.507059e+37
    %v3867 = vand.u32 %v3841, 2147483648
    %v3868 = vor.u32 1.1754944e-38, %v3867
    %v3869 = vsel %vm3866, %v3868, %v3864
    %v3870 = vmul.f32 %v3833, %v3855
    %v3871 = vmul.f32 %v3835, %v3869
    %3872 = vrot.lane.b32.xlu0 %v3283, 72
    %v3873 = vpop.permute.xlu0 %3872
    %v3876 = vsel %vm304, %v3870, 0
    %3878 = vmatpush.msra.mxu0 0.0
    %3879 = vmatpush.msra.mxu0 0.0
    %3880 = vmatpush.msra.mxu0 0.0
    %3881 = vmatpush.msra.mxu0 0.0
    %3882 = vmatpush.msra.mxu0 0.0
    %3883 = vmatpush.msra.mxu0 0.0
    %3884 = vmatpush.msra.mxu0 0.0
    %3885 = vmatpush.msra.mxu0 0.0
    %3886 = vmatpush.msra.mxu0 0.0
    %3887 = vmatpush.msra.mxu0 0.0
    %3888 = vmatpush.msra.mxu0 0.0
    %3889 = vmatpush.msra.mxu0 0.0
    %3890 = vmatpush.msra.mxu0 0.0
    %3891 = vmatpush.msra.mxu0 0.0
    %3892 = vmatpush.msra.mxu0 0.0
    %3893 = vmatpush.msra.mxu0 %v3873
    %3894 = vmatmul.f32.gmra.mxu0 %v3876
    %v3895 = vpop.f32.mrf.mxu0
    %v3896 = vadd.f32 0.0, %v3895
    %3897 = vdwg.mxu0
    %3898 = vrot.lane.b32.xlu0 %v3286, 72
    %v3899 = vpop.permute.xlu0 %3898
    %v3902 = vsel %vm304, %v3871, 0
    %3904 = vmatpush.msra.mxu0 0.0
    %3905 = vmatpush.msra.mxu0 0.0
    %3906 = vmatpush.msra.mxu0 0.0
    %3907 = vmatpush.msra.mxu0 0.0
    %3908 = vmatpush.msra.mxu0 0.0
    %3909 = vmatpush.msra.mxu0 0.0
    %3910 = vmatpush.msra.mxu0 0.0
    %3911 = vmatpush.msra.mxu0 0.0
    %3912 = vmatpush.msra.mxu0 0.0
    %3913 = vmatpush.msra.mxu0 0.0
    %3914 = vmatpush.msra.mxu0 0.0
    %3915 = vmatpush.msra.mxu0 0.0
    %3916 = vmatpush.msra.mxu0 0.0
    %3917 = vmatpush.msra.mxu0 0.0
    %3918 = vmatpush.msra.mxu0 0.0
    %3919 = vmatpush.msra.mxu0 %v3899
    %3920 = vmatmul.f32.gmra.mxu0 %v3902
    %v3921 = vpop.f32.mrf.mxu0
    %v3922 = vadd.f32 0.0, %v3921
    %3923 = vdwg.mxu0
    %3926 = vrot.lane.b32.xlu0 %v3576, 8
    %v3927 = vpop.permute.xlu0 %3926
    %3928 = vrot.lane.b32.xlu0 %v3602, 8
    %v3929 = vpop.permute.xlu0 %3928
    %3934 = vrot.lane.b32.xlu0 %v3736, 16
    %v3935 = vpop.permute.xlu0 %3934
    %3936 = vrot.lane.b32.xlu0 %v3762, 16
    %v3937 = vpop.permute.xlu0 %3936
    %3942 = vrot.lane.b32.xlu0 %v3896, 24
    %v3943 = vpop.permute.xlu0 %3942
    %3944 = vrot.lane.b32.xlu0 %v3922, 24
    %v3945 = vpop.permute.xlu0 %3944
    %v3948 = vsel %vm304, %v3416, %v3927
    %v3949 = vsel %vm304, %v3442, %v3929
    %v3950 = vsel %vm968, %v3948, %v3935
    %v3951 = vsel %vm968, %v3949, %v3937
    %v3952 = vsel %vm971, %v3950, %v3943
    %v3953 = vsel %vm971, %v3951, %v3945
    %v3955 = vperm.slane %v3223, 0
    %v3958 = vsel %vm165, %v3952, 0
    %v3961 = vsel %vm165, %v3953, 0
    %3963 = vmatpush.msra.mxu0 0.0
    %3964 = vmatpush.msra.mxu0 0.0
    %3965 = vmatpush.msra.mxu0 0.0
    %3966 = vmatpush.msra.mxu0 0.0
    %3967 = vmatpush.msra.mxu0 0.0
    %3968 = vmatpush.msra.mxu0 0.0
    %3969 = vmatpush.msra.mxu0 0.0
    %3970 = vmatpush.msra.mxu0 0.0
    %3971 = vmatpush.msra.mxu0 0.0
    %3972 = vmatpush.msra.mxu0 0.0
    %3973 = vmatpush.msra.mxu0 0.0
    %3974 = vmatpush.msra.mxu0 0.0
    %3975 = vmatpush.msra.mxu0 %v3222
    %3976 = vmatpush.msra.mxu0 %v3221
    %3977 = vmatpush.msra.mxu0 %v3220
    %3978 = vmatpush.msra.mxu0 %v3219
    %3979 = vmatmul.f32.gmra.mxu0 %v3958
    %v3980 = vpop.f32.mrf.mxu0
    %v3981 = vadd.f32 %v3955, %v3980
    %3982 = vmatmul.f32.gmra.mxu0 %v3961
    %v3983 = vpop.f32.mrf.mxu0
    %v3984 = vadd.f32 %v3955, %v3983
    %3985 = vdwg.mxu0
    %v3986 = vadd.f32 %v3117, %v3981
    %v3987 = vadd.f32 %v3118, %v3984
    %s3988 = scalar_lea.vmem %s61, 2
    %v3989 = vld [vmem:[%s3988] sm:$0x1]
    %s3990 = scalar_lea.vmem %s63, 2
    %v3991 = vld [vmem:[%s3990] sm:$0x1]
    %v3992 = vsel %vm165, %v3986, 0.0
    %3993 = vadd.xlane.f32.xlu0 %v3992
    %v3994 = vpop.xlane.xlu0 %3993
    %v3995 = vsel %vm165, %v3987, 0.0
    %3996 = vadd.xlane.f32.xlu0 %v3995
    %v3997 = vpop.xlane.xlu0 %3996
    %v3998 = vmul.f32 %v3994, %v178
    %v3999 = vmul.f32 %v3997, %v178
    %v4000 = vsub.f32 %v3986, %v3998
    %v4001 = vsub.f32 %v3987, %v3999
    %v4002 = vmul.f32 %v4000, %v4000
    %v4003 = vmul.f32 %v4001, %v4001
    %v4004 = vsel %vm165, %v4002, 0.0
    %4005 = vadd.xlane.f32.xlu0 %v4004
    %v4006 = vpop.xlane.xlu0 %4005
    %v4007 = vsel %vm165, %v4003, 0.0
    %4008 = vadd.xlane.f32.xlu0 %v4007
    %v4009 = vpop.xlane.xlu0 %4008
    %v4010 = vmul.f32 %v4006, 0.032258064
    %v4011 = vmul.f32 %v4009, 0.032258064
    %v4012 = vrsqrt.pop %v4010
    %v4013 = vmul.f32 %v4012, %v4010
    %v4014 = vmul.f32 %v4013, %v4012
    %v4015 = vmul.f32 0.5, %v4014
    %v4016 = vsub.f32 1.5, %v4015
    %v4017 = vmul.f32 %v4012, %v4016
    %v4018 = vmul.f32 %v4010, %v4017
    %vm4019 = vcmp.eq.f32.partialorder %v4010, inf
    %v4020 = vsel %vm4019, %v4010, %v4018
    %vm4021 = vcmp.eq.f32.partialorder %v4010, 0.0
    %v4022 = vand.u32 %v4010, 2147483648
    %v4023 = vsel %vm4021, %v4022, %v4020
    %v4024 = vrsqrt.pop %v4011
    %v4025 = vmul.f32 %v4024, %v4011
    %v4026 = vmul.f32 %v4025, %v4024
    %v4027 = vmul.f32 0.5, %v4026
    %v4028 = vsub.f32 1.5, %v4027
    %v4029 = vmul.f32 %v4024, %v4028
    %v4030 = vmul.f32 %v4011, %v4029
    %vm4031 = vcmp.eq.f32.partialorder %v4011, inf
    %v4032 = vsel %vm4031, %v4011, %v4030
    %vm4033 = vcmp.eq.f32.partialorder %v4011, 0.0
    %v4034 = vand.u32 %v4011, 2147483648
    %v4035 = vsel %vm4033, %v4034, %v4032
    %v4037 = vperm.slane %v3989, 0
    %v4039 = vmul.f32 %v4037, %v4000
    %v4040 = vmul.f32 %v4037, %v4001
    %v4041 = vadd.f32 %v4023, 1e-06
    %v4042 = vadd.f32 %v4035, 1e-06
    %v4043 = vrcp.pop %v4041
    %v4044 = vmul.f32 %v4041, %v4043
    %v4045 = vsub.f32 1.0, %v4044
    %v4046 = vmul.f32 %v4043, %v4045
    %v4047 = vadd.f32 %v4043, %v4046
    %vm4048 = vweird.f32 %v4041
    %vm4049 = vweird.f32 %v4043
    %vm4050 = vmor %vm4048, %vm4049
    %v4051 = vsel %vm4050, %v4043, %v4047
    %v4052 = vand.u32 2147483647, %v4041
    %vm4053 = vcmp.eq.f32.partialorder %v4052, 8.507059e+37
    %v4054 = vand.u32 %v4041, 2147483648
    %v4055 = vor.u32 1.1754944e-38, %v4054
    %v4056 = vsel %vm4053, %v4055, %v4051
    %v4057 = vrcp.pop %v4042
    %v4058 = vmul.f32 %v4042, %v4057
    %v4059 = vsub.f32 1.0, %v4058
    %v4060 = vmul.f32 %v4057, %v4059
    %v4061 = vadd.f32 %v4057, %v4060
    %vm4062 = vweird.f32 %v4042
    %vm4063 = vweird.f32 %v4057
    %vm4064 = vmor %vm4062, %vm4063
    %v4065 = vsel %vm4064, %v4057, %v4061
    %v4066 = vand.u32 2147483647, %v4042
    %vm4067 = vcmp.eq.f32.partialorder %v4066, 8.507059e+37
    %v4068 = vand.u32 %v4042, 2147483648
    %v4069 = vor.u32 1.1754944e-38, %v4068
    %v4070 = vsel %vm4067, %v4069, %v4065
    %v4071 = vmul.f32 %v4039, %v4056
    %v4072 = vmul.f32 %v4040, %v4070
    %v4074 = vperm.slane %v3991, 0
    %v4076 = vadd.f32 %v4071, %v4074
    %v4077 = vadd.f32 %v4072, %v4074
    %v4078 = vld [vmem:[%s53] sm:$0xff]
    %v4079 = vld [vmem:[%s53 + $0x8] sm:$0xff]
    %v4080 = vld [vmem:[%s53 + $0x10] sm:$0xff]
    %v4081 = vld [vmem:[%s53 + $0x18] sm:$0xff]
    %v4082 = vld [vmem:[%s55] sm:$0x1]
    %v4083 = vld [vmem:[%s57] sm:$0xff]
    %v4084 = vld [vmem:[%s57 + $0x8] sm:$0xff]
    %v4085 = vld [vmem:[%s57 + $0x10] sm:$0xff]
    %v4086 = vld [vmem:[%s57 + $0x18] sm:$0xff]
    %v4087 = vld [vmem:[%s57 + $0x20] sm:$0xff]
    %v4088 = vld [vmem:[%s57 + $0x28] sm:$0xff]
    %v4089 = vld [vmem:[%s57 + $0x30] sm:$0xff]
    %v4090 = vld [vmem:[%s57 + $0x38] sm:$0xff]
    %v4091 = vld [vmem:[%s59] sm:$0x1]
    %v4093 = vperm.slane %v4082, 0
    %v4096 = vsel %vm165, %v4076, 0
    %v4099 = vsel %vm165, %v4077, 0
    %4101 = vmatpush.msra.mxu0 0.0
    %4102 = vmatpush.msra.mxu0 0.0
    %4103 = vmatpush.msra.mxu0 0.0
    %4104 = vmatpush.msra.mxu0 0.0
    %4105 = vmatpush.msra.mxu0 0.0
    %4106 = vmatpush.msra.mxu0 0.0
    %4107 = vmatpush.msra.mxu0 0.0
    %4108 = vmatpush.msra.mxu0 0.0
    %4109 = vmatpush.msra.mxu0 0.0
    %4110 = vmatpush.msra.mxu0 0.0
    %4111 = vmatpush.msra.mxu0 0.0
    %4112 = vmatpush.msra.mxu0 0.0
    %4113 = vmatpush.msra.mxu0 %v4081
    %4114 = vmatpush.msra.mxu0 %v4080
    %4115 = vmatpush.msra.mxu0 %v4079
    %4116 = vmatpush.msra.mxu0 %v4078
    %4117 = vmatmul.f32.gmra.mxu0 %v4096
    %v4118 = vpop.f32.mrf.mxu0
    %v4119 = vadd.f32 %v4093, %v4118
    %4120 = vmatmul.f32.gmra.mxu0 %v4099
    %v4121 = vpop.f32.mrf.mxu0
    %v4122 = vadd.f32 %v4093, %v4121
    %4123 = vdwg.mxu0
    %v4124 = vmax.f32 %v4119, 0.0
    %v4125 = vmax.f32 %v4122, 0.0
    %v4127 = vperm.slane %v4091, 0
    %v4130 = vsel %vm1149, %v4124, 0
    %v4133 = vsel %vm1149, %v4125, 0
    %4135 = vmatpush.msra.mxu0 0.0
    %4136 = vmatpush.msra.mxu0 0.0
    %4137 = vmatpush.msra.mxu0 0.0
    %4138 = vmatpush.msra.mxu0 0.0
    %4139 = vmatpush.msra.mxu0 0.0
    %4140 = vmatpush.msra.mxu0 0.0
    %4141 = vmatpush.msra.mxu0 0.0
    %4142 = vmatpush.msra.mxu0 0.0
    %4143 = vmatpush.msra.mxu0 %v4090
    %4144 = vmatpush.msra.mxu0 %v4089
    %4145 = vmatpush.msra.mxu0 %v4088
    %4146 = vmatpush.msra.mxu0 %v4087
    %4147 = vmatpush.msra.mxu0 %v4086
    %4148 = vmatpush.msra.mxu0 %v4085
    %4149 = vmatpush.msra.mxu0 %v4084
    %4150 = vmatpush.msra.mxu0 %v4083
    %4151 = vmatmul.f32.gmra.mxu0 %v4130
    %v4152 = vpop.f32.mrf.mxu0
    %v4153 = vadd.f32 %v4127, %v4152
    %4154 = vmatmul.f32.gmra.mxu0 %v4133
    %v4155 = vpop.f32.mrf.mxu0
    %v4156 = vadd.f32 %v4127, %v4155
    %4157 = vdwg.mxu0
    %v4158 = vadd.f32 %v3986, %v4153
    %v4159 = vadd.f32 %v3987, %v4156
    %s4160 = scalar_lea.vmem %s61, 3
    %v4161 = vld [vmem:[%s4160] sm:$0x1]
    %s4162 = scalar_lea.vmem %s63, 3
    %v4163 = vld [vmem:[%s4162] sm:$0x1]
    %v4164 = vsel %vm165, %v4158, 0.0
    %4165 = vadd.xlane.f32.xlu0 %v4164
    %v4166 = vpop.xlane.xlu0 %4165
    %v4167 = vsel %vm165, %v4159, 0.0
    %4168 = vadd.xlane.f32.xlu0 %v4167
    %v4169 = vpop.xlane.xlu0 %4168
    %v4170 = vmul.f32 %v4166, %v178
    %v4171 = vmul.f32 %v4169, %v178
    %v4172 = vsub.f32 %v4158, %v4170
    %v4173 = vsub.f32 %v4159, %v4171
    %v4174 = vmul.f32 %v4172, %v4172
    %v4175 = vmul.f32 %v4173, %v4173
    %v4176 = vsel %vm165, %v4174, 0.0
    %4177 = vadd.xlane.f32.xlu0 %v4176
    %v4178 = vpop.xlane.xlu0 %4177
    %v4179 = vsel %vm165, %v4175, 0.0
    %4180 = vadd.xlane.f32.xlu0 %v4179
    %v4181 = vpop.xlane.xlu0 %4180
    %v4182 = vmul.f32 %v4178, 0.032258064
    %v4183 = vmul.f32 %v4181, 0.032258064
    %v4184 = vrsqrt.pop %v4182
    %v4185 = vmul.f32 %v4184, %v4182
    %v4186 = vmul.f32 %v4185, %v4184
    %v4187 = vmul.f32 0.5, %v4186
    %v4188 = vsub.f32 1.5, %v4187
    %v4189 = vmul.f32 %v4184, %v4188
    %v4190 = vmul.f32 %v4182, %v4189
    %vm4191 = vcmp.eq.f32.partialorder %v4182, inf
    %v4192 = vsel %vm4191, %v4182, %v4190
    %vm4193 = vcmp.eq.f32.partialorder %v4182, 0.0
    %v4194 = vand.u32 %v4182, 2147483648
    %v4195 = vsel %vm4193, %v4194, %v4192
    %v4196 = vrsqrt.pop %v4183
    %v4197 = vmul.f32 %v4196, %v4183
    %v4198 = vmul.f32 %v4197, %v4196
    %v4199 = vmul.f32 0.5, %v4198
    %v4200 = vsub.f32 1.5, %v4199
    %v4201 = vmul.f32 %v4196, %v4200
    %v4202 = vmul.f32 %v4183, %v4201
    %vm4203 = vcmp.eq.f32.partialorder %v4183, inf
    %v4204 = vsel %vm4203, %v4183, %v4202
    %vm4205 = vcmp.eq.f32.partialorder %v4183, 0.0
    %v4206 = vand.u32 %v4183, 2147483648
    %v4207 = vsel %vm4205, %v4206, %v4204
    %v4209 = vperm.slane %v4161, 0
    %v4211 = vmul.f32 %v4209, %v4172
    %v4212 = vmul.f32 %v4209, %v4173
    %v4213 = vadd.f32 %v4195, 1e-06
    %v4214 = vadd.f32 %v4207, 1e-06
    %v4215 = vrcp.pop %v4213
    %v4216 = vmul.f32 %v4213, %v4215
    %v4217 = vsub.f32 1.0, %v4216
    %v4218 = vmul.f32 %v4215, %v4217
    %v4219 = vadd.f32 %v4215, %v4218
    %vm4220 = vweird.f32 %v4213
    %vm4221 = vweird.f32 %v4215
    %vm4222 = vmor %vm4220, %vm4221
    %v4223 = vsel %vm4222, %v4215, %v4219
    %v4224 = vand.u32 2147483647, %v4213
    %vm4225 = vcmp.eq.f32.partialorder %v4224, 8.507059e+37
    %v4226 = vand.u32 %v4213, 2147483648
    %v4227 = vor.u32 1.1754944e-38, %v4226
    %v4228 = vsel %vm4225, %v4227, %v4223
    %v4229 = vrcp.pop %v4214
    %v4230 = vmul.f32 %v4214, %v4229
    %v4231 = vsub.f32 1.0, %v4230
    %v4232 = vmul.f32 %v4229, %v4231
    %v4233 = vadd.f32 %v4229, %v4232
    %vm4234 = vweird.f32 %v4214
    %vm4235 = vweird.f32 %v4229
    %vm4236 = vmor %vm4234, %vm4235
    %v4237 = vsel %vm4236, %v4229, %v4233
    %v4238 = vand.u32 2147483647, %v4214
    %vm4239 = vcmp.eq.f32.partialorder %v4238, 8.507059e+37
    %v4240 = vand.u32 %v4214, 2147483648
    %v4241 = vor.u32 1.1754944e-38, %v4240
    %v4242 = vsel %vm4239, %v4241, %v4237
    %v4243 = vmul.f32 %v4211, %v4228
    %v4244 = vmul.f32 %v4212, %v4242
    %v4246 = vperm.slane %v4163, 0
    %v4248 = vadd.f32 %v4243, %v4246
    %v4249 = vadd.f32 %v4244, %v4246
    %s4250 = scalar_lea.vmem %s33, 32
    %v4251 = vld [vmem:[%s4250] sm:$0xff]
    %v4252 = vld [vmem:[%s4250 + $0x8] sm:$0xff]
    %v4253 = vld [vmem:[%s4250 + $0x10] sm:$0xff]
    %v4254 = vld [vmem:[%s4250 + $0x18] sm:$0xff]
    %s4255 = scalar_lea.vmem %s35, 1
    %v4256 = vld [vmem:[%s4255] sm:$0x1]
    %s4257 = scalar_lea.vmem %s37, 32
    %v4258 = vld [vmem:[%s4257] sm:$0xff]
    %v4259 = vld [vmem:[%s4257 + $0x8] sm:$0xff]
    %v4260 = vld [vmem:[%s4257 + $0x10] sm:$0xff]
    %v4261 = vld [vmem:[%s4257 + $0x18] sm:$0xff]
    %s4262 = scalar_lea.vmem %s39, 1
    %v4263 = vld [vmem:[%s4262] sm:$0x1]
    %v4265 = vperm.slane %v4256, 0
    %v4268 = vsel %vm165, %v4248, 0
    %v4271 = vsel %vm165, %v4249, 0
    %4273 = vmatpush.msra.mxu0 0.0
    %4274 = vmatpush.msra.mxu0 0.0
    %4275 = vmatpush.msra.mxu0 0.0
    %4276 = vmatpush.msra.mxu0 0.0
    %4277 = vmatpush.msra.mxu0 0.0
    %4278 = vmatpush.msra.mxu0 0.0
    %4279 = vmatpush.msra.mxu0 0.0
    %4280 = vmatpush.msra.mxu0 0.0
    %4281 = vmatpush.msra.mxu0 0.0
    %4282 = vmatpush.msra.mxu0 0.0
    %4283 = vmatpush.msra.mxu0 0.0
    %4284 = vmatpush.msra.mxu0 0.0
    %4285 = vmatpush.msra.mxu0 %v4254
    %4286 = vmatpush.msra.mxu0 %v4253
    %4287 = vmatpush.msra.mxu0 %v4252
    %4288 = vmatpush.msra.mxu0 %v4251
    %4289 = vmatmul.f32.gmra.mxu0 %v4268
    %v4290 = vpop.f32.mrf.mxu0
    %v4291 = vadd.f32 %v4265, %v4290
    %4292 = vmatmul.f32.gmra.mxu0 %v4271
    %v4293 = vpop.f32.mrf.mxu0
    %v4294 = vadd.f32 %v4265, %v4293
    %4295 = vdwg.mxu0
    %4297 = vrot.lane.b32.xlu0 %v4291, 96
    %v4298 = vpop.permute.xlu0 %4297
    %v4299 = vsel %vm304, %v4291, 0
    %v4301 = vsel %vm304, %v4298, 0
    %4303 = vmatpush.xpose.msra.mxu0 0.0
    %4304 = vmatpush.xpose.msra.mxu0 0.0
    %4305 = vmatpush.xpose.msra.mxu0 0.0
    %4306 = vmatpush.xpose.msra.mxu0 0.0
    %4307 = vmatpush.xpose.msra.mxu0 0.0
    %4308 = vmatpush.xpose.msra.mxu0 0.0
    %4309 = vmatpush.xpose.msra.mxu0 0.0
    %4310 = vmatpush.xpose.msra.mxu0 0.0
    %4311 = vmatpush.xpose.msra.mxu0 0.0
    %4312 = vmatpush.xpose.msra.mxu0 0.0
    %4313 = vmatpush.xpose.msra.mxu0 0.0
    %4314 = vmatpush.xpose.msra.mxu0 0.0
    %4315 = vmatpush.xpose.msra.mxu0 0.0
    %4316 = vmatpush.xpose.msra.mxu0 0.0
    %4317 = vmatpush.xpose.msra.mxu0 0.0
    %4318 = vmatpush.xpose.msra.mxu0 %v4301
    %4319 = vmatmul.f32.gmra.mxu0 %v4299
    %v4320 = vpop.f32.mrf.mxu0
    %v4321 = vadd.f32 0.0, %v4320
    %4322 = vdwg.mxu0
    %4324 = vrot.lane.b32.xlu0 %v4294, 96
    %v4325 = vpop.permute.xlu0 %4324
    %v4326 = vsel %vm304, %v4294, 0
    %v4328 = vsel %vm304, %v4325, 0
    %4330 = vmatpush.xpose.msra.mxu0 0.0
    %4331 = vmatpush.xpose.msra.mxu0 0.0
    %4332 = vmatpush.xpose.msra.mxu0 0.0
    %4333 = vmatpush.xpose.msra.mxu0 0.0
    %4334 = vmatpush.xpose.msra.mxu0 0.0
    %4335 = vmatpush.xpose.msra.mxu0 0.0
    %4336 = vmatpush.xpose.msra.mxu0 0.0
    %4337 = vmatpush.xpose.msra.mxu0 0.0
    %4338 = vmatpush.xpose.msra.mxu0 0.0
    %4339 = vmatpush.xpose.msra.mxu0 0.0
    %4340 = vmatpush.xpose.msra.mxu0 0.0
    %4341 = vmatpush.xpose.msra.mxu0 0.0
    %4342 = vmatpush.xpose.msra.mxu0 0.0
    %4343 = vmatpush.xpose.msra.mxu0 0.0
    %4344 = vmatpush.xpose.msra.mxu0 0.0
    %4345 = vmatpush.xpose.msra.mxu0 %v4328
    %4346 = vmatmul.f32.gmra.mxu0 %v4326
    %v4347 = vpop.f32.mrf.mxu0
    %v4348 = vadd.f32 0.0, %v4347
    %4349 = vdwg.mxu0
    %v4350 = vmul.f32 %v4321, 0.35355338
    %v4351 = vmul.f32 %v4348, 0.35355338
    %v4352 = vsel %vm2471, %v4350, -1e+09
    %v4353 = vsel %vm2472, %v4351, -1e+09
    %v4354 = vsel %vm304, %v4352, -inf
    %4355 = vmax.xlane.f32.xlu0 %v4354
    %v4356 = vpop.xlane.xlu0 %4355
    %v4357 = vsel %vm304, %v4353, -inf
    %4358 = vmax.xlane.f32.xlu0 %v4357
    %v4359 = vpop.xlane.xlu0 %4358
    %v4360 = vsub.f32 %v4352, %v4356
    %v4361 = vsub.f32 %v4353, %v4359
    %v4362 = vmul.f32 %v4360, 1.442695
    %v4363 = vpow.pop %v4362
    %v4364 = vmul.f32 %v4361, 1.442695
    %v4365 = vpow.pop %v4364
    %v4366 = vsel %vm304, %v4363, 0.0
    %4367 = vadd.xlane.f32.xlu0 %v4366
    %v4368 = vpop.xlane.xlu0 %4367
    %v4369 = vsel %vm304, %v4365, 0.0
    %4370 = vadd.xlane.f32.xlu0 %v4369
    %v4371 = vpop.xlane.xlu0 %4370
    %v4372 = vrcp.pop %v4368
    %v4373 = vmul.f32 %v4368, %v4372
    %v4374 = vsub.f32 1.0, %v4373
    %v4375 = vmul.f32 %v4372, %v4374
    %v4376 = vadd.f32 %v4372, %v4375
    %vm4377 = vweird.f32 %v4368
    %vm4378 = vweird.f32 %v4372
    %vm4379 = vmor %vm4377, %vm4378
    %v4380 = vsel %vm4379, %v4372, %v4376
    %v4381 = vand.u32 2147483647, %v4368
    %vm4382 = vcmp.eq.f32.partialorder %v4381, 8.507059e+37
    %v4383 = vand.u32 %v4368, 2147483648
    %v4384 = vor.u32 1.1754944e-38, %v4383
    %v4385 = vsel %vm4382, %v4384, %v4380
    %v4386 = vrcp.pop %v4371
    %v4387 = vmul.f32 %v4371, %v4386
    %v4388 = vsub.f32 1.0, %v4387
    %v4389 = vmul.f32 %v4386, %v4388
    %v4390 = vadd.f32 %v4386, %v4389
    %vm4391 = vweird.f32 %v4371
    %vm4392 = vweird.f32 %v4386
    %vm4393 = vmor %vm4391, %vm4392
    %v4394 = vsel %vm4393, %v4386, %v4390
    %v4395 = vand.u32 2147483647, %v4371
    %vm4396 = vcmp.eq.f32.partialorder %v4395, 8.507059e+37
    %v4397 = vand.u32 %v4371, 2147483648
    %v4398 = vor.u32 1.1754944e-38, %v4397
    %v4399 = vsel %vm4396, %v4398, %v4394
    %v4400 = vmul.f32 %v4363, %v4385
    %v4401 = vmul.f32 %v4365, %v4399
    %4402 = vrot.lane.b32.xlu0 %v4291, 64
    %v4403 = vpop.permute.xlu0 %4402
    %v4406 = vsel %vm304, %v4400, 0
    %4408 = vmatpush.msra.mxu0 0.0
    %4409 = vmatpush.msra.mxu0 0.0
    %4410 = vmatpush.msra.mxu0 0.0
    %4411 = vmatpush.msra.mxu0 0.0
    %4412 = vmatpush.msra.mxu0 0.0
    %4413 = vmatpush.msra.mxu0 0.0
    %4414 = vmatpush.msra.mxu0 0.0
    %4415 = vmatpush.msra.mxu0 0.0
    %4416 = vmatpush.msra.mxu0 0.0
    %4417 = vmatpush.msra.mxu0 0.0
    %4418 = vmatpush.msra.mxu0 0.0
    %4419 = vmatpush.msra.mxu0 0.0
    %4420 = vmatpush.msra.mxu0 0.0
    %4421 = vmatpush.msra.mxu0 0.0
    %4422 = vmatpush.msra.mxu0 0.0
    %4423 = vmatpush.msra.mxu0 %v4403
    %4424 = vmatmul.f32.gmra.mxu0 %v4406
    %v4425 = vpop.f32.mrf.mxu0
    %v4426 = vadd.f32 0.0, %v4425
    %4427 = vdwg.mxu0
    %4428 = vrot.lane.b32.xlu0 %v4294, 64
    %v4429 = vpop.permute.xlu0 %4428
    %v4432 = vsel %vm304, %v4401, 0
    %4434 = vmatpush.msra.mxu0 0.0
    %4435 = vmatpush.msra.mxu0 0.0
    %4436 = vmatpush.msra.mxu0 0.0
    %4437 = vmatpush.msra.mxu0 0.0
    %4438 = vmatpush.msra.mxu0 0.0
    %4439 = vmatpush.msra.mxu0 0.0
    %4440 = vmatpush.msra.mxu0 0.0
    %4441 = vmatpush.msra.mxu0 0.0
    %4442 = vmatpush.msra.mxu0 0.0
    %4443 = vmatpush.msra.mxu0 0.0
    %4444 = vmatpush.msra.mxu0 0.0
    %4445 = vmatpush.msra.mxu0 0.0
    %4446 = vmatpush.msra.mxu0 0.0
    %4447 = vmatpush.msra.mxu0 0.0
    %4448 = vmatpush.msra.mxu0 0.0
    %4449 = vmatpush.msra.mxu0 %v4429
    %4450 = vmatmul.f32.gmra.mxu0 %v4432
    %v4451 = vpop.f32.mrf.mxu0
    %v4452 = vadd.f32 0.0, %v4451
    %4453 = vdwg.mxu0
    %4454 = vrot.lane.b32.xlu0 %v4291, 120
    %v4455 = vpop.permute.xlu0 %4454
    %4456 = vrot.lane.b32.xlu0 %v4291, 88
    %v4457 = vpop.permute.xlu0 %4456
    %v4458 = vsel %vm304, %v4455, 0
    %v4460 = vsel %vm304, %v4457, 0
    %4462 = vmatpush.xpose.msra.mxu0 0.0
    %4463 = vmatpush.xpose.msra.mxu0 0.0
    %4464 = vmatpush.xpose.msra.mxu0 0.0
    %4465 = vmatpush.xpose.msra.mxu0 0.0
    %4466 = vmatpush.xpose.msra.mxu0 0.0
    %4467 = vmatpush.xpose.msra.mxu0 0.0
    %4468 = vmatpush.xpose.msra.mxu0 0.0
    %4469 = vmatpush.xpose.msra.mxu0 0.0
    %4470 = vmatpush.xpose.msra.mxu0 0.0
    %4471 = vmatpush.xpose.msra.mxu0 0.0
    %4472 = vmatpush.xpose.msra.mxu0 0.0
    %4473 = vmatpush.xpose.msra.mxu0 0.0
    %4474 = vmatpush.xpose.msra.mxu0 0.0
    %4475 = vmatpush.xpose.msra.mxu0 0.0
    %4476 = vmatpush.xpose.msra.mxu0 0.0
    %4477 = vmatpush.xpose.msra.mxu0 %v4460
    %4478 = vmatmul.f32.gmra.mxu0 %v4458
    %v4479 = vpop.f32.mrf.mxu0
    %v4480 = vadd.f32 0.0, %v4479
    %4481 = vdwg.mxu0
    %4482 = vrot.lane.b32.xlu0 %v4294, 120
    %v4483 = vpop.permute.xlu0 %4482
    %4484 = vrot.lane.b32.xlu0 %v4294, 88
    %v4485 = vpop.permute.xlu0 %4484
    %v4486 = vsel %vm304, %v4483, 0
    %v4488 = vsel %vm304, %v4485, 0
    %4490 = vmatpush.xpose.msra.mxu0 0.0
    %4491 = vmatpush.xpose.msra.mxu0 0.0
    %4492 = vmatpush.xpose.msra.mxu0 0.0
    %4493 = vmatpush.xpose.msra.mxu0 0.0
    %4494 = vmatpush.xpose.msra.mxu0 0.0
    %4495 = vmatpush.xpose.msra.mxu0 0.0
    %4496 = vmatpush.xpose.msra.mxu0 0.0
    %4497 = vmatpush.xpose.msra.mxu0 0.0
    %4498 = vmatpush.xpose.msra.mxu0 0.0
    %4499 = vmatpush.xpose.msra.mxu0 0.0
    %4500 = vmatpush.xpose.msra.mxu0 0.0
    %4501 = vmatpush.xpose.msra.mxu0 0.0
    %4502 = vmatpush.xpose.msra.mxu0 0.0
    %4503 = vmatpush.xpose.msra.mxu0 0.0
    %4504 = vmatpush.xpose.msra.mxu0 0.0
    %4505 = vmatpush.xpose.msra.mxu0 %v4488
    %4506 = vmatmul.f32.gmra.mxu0 %v4486
    %v4507 = vpop.f32.mrf.mxu0
    %v4508 = vadd.f32 0.0, %v4507
    %4509 = vdwg.mxu0
    %v4510 = vmul.f32 %v4480, 0.35355338
    %v4511 = vmul.f32 %v4508, 0.35355338
    %v4512 = vsel %vm2471, %v4510, -1e+09
    %v4513 = vsel %vm2472, %v4511, -1e+09
    %v4514 = vsel %vm304, %v4512, -inf
    %4515 = vmax.xlane.f32.xlu0 %v4514
    %v4516 = vpop.xlane.xlu0 %4515
    %v4517 = vsel %vm304, %v4513, -inf
    %4518 = vmax.xlane.f32.xlu0 %v4517
    %v4519 = vpop.xlane.xlu0 %4518
    %v4520 = vsub.f32 %v4512, %v4516
    %v4521 = vsub.f32 %v4513, %v4519
    %v4522 = vmul.f32 %v4520, 1.442695
    %v4523 = vpow.pop %v4522
    %v4524 = vmul.f32 %v4521, 1.442695
    %v4525 = vpow.pop %v4524
    %v4526 = vsel %vm304, %v4523, 0.0
    %4527 = vadd.xlane.f32.xlu0 %v4526
    %v4528 = vpop.xlane.xlu0 %4527
    %v4529 = vsel %vm304, %v4525, 0.0
    %4530 = vadd.xlane.f32.xlu0 %v4529
    %v4531 = vpop.xlane.xlu0 %4530
    %v4532 = vrcp.pop %v4528
    %v4533 = vmul.f32 %v4528, %v4532
    %v4534 = vsub.f32 1.0, %v4533
    %v4535 = vmul.f32 %v4532, %v4534
    %v4536 = vadd.f32 %v4532, %v4535
    %vm4537 = vweird.f32 %v4528
    %vm4538 = vweird.f32 %v4532
    %vm4539 = vmor %vm4537, %vm4538
    %v4540 = vsel %vm4539, %v4532, %v4536
    %v4541 = vand.u32 2147483647, %v4528
    %vm4542 = vcmp.eq.f32.partialorder %v4541, 8.507059e+37
    %v4543 = vand.u32 %v4528, 2147483648
    %v4544 = vor.u32 1.1754944e-38, %v4543
    %v4545 = vsel %vm4542, %v4544, %v4540
    %v4546 = vrcp.pop %v4531
    %v4547 = vmul.f32 %v4531, %v4546
    %v4548 = vsub.f32 1.0, %v4547
    %v4549 = vmul.f32 %v4546, %v4548
    %v4550 = vadd.f32 %v4546, %v4549
    %vm4551 = vweird.f32 %v4531
    %vm4552 = vweird.f32 %v4546
    %vm4553 = vmor %vm4551, %vm4552
    %v4554 = vsel %vm4553, %v4546, %v4550
    %v4555 = vand.u32 2147483647, %v4531
    %vm4556 = vcmp.eq.f32.partialorder %v4555, 8.507059e+37
    %v4557 = vand.u32 %v4531, 2147483648
    %v4558 = vor.u32 1.1754944e-38, %v4557
    %v4559 = vsel %vm4556, %v4558, %v4554
    %v4560 = vmul.f32 %v4523, %v4545
    %v4561 = vmul.f32 %v4525, %v4559
    %4562 = vrot.lane.b32.xlu0 %v4291, 56
    %v4563 = vpop.permute.xlu0 %4562
    %v4566 = vsel %vm304, %v4560, 0
    %4568 = vmatpush.msra.mxu0 0.0
    %4569 = vmatpush.msra.mxu0 0.0
    %4570 = vmatpush.msra.mxu0 0.0
    %4571 = vmatpush.msra.mxu0 0.0
    %4572 = vmatpush.msra.mxu0 0.0
    %4573 = vmatpush.msra.mxu0 0.0
    %4574 = vmatpush.msra.mxu0 0.0
    %4575 = vmatpush.msra.mxu0 0.0
    %4576 = vmatpush.msra.mxu0 0.0
    %4577 = vmatpush.msra.mxu0 0.0
    %4578 = vmatpush.msra.mxu0 0.0
    %4579 = vmatpush.msra.mxu0 0.0
    %4580 = vmatpush.msra.mxu0 0.0
    %4581 = vmatpush.msra.mxu0 0.0
    %4582 = vmatpush.msra.mxu0 0.0
    %4583 = vmatpush.msra.mxu0 %v4563
    %4584 = vmatmul.f32.gmra.mxu0 %v4566
    %v4585 = vpop.f32.mrf.mxu0
    %v4586 = vadd.f32 0.0, %v4585
    %4587 = vdwg.mxu0
    %4588 = vrot.lane.b32.xlu0 %v4294, 56
    %v4589 = vpop.permute.xlu0 %4588
    %v4592 = vsel %vm304, %v4561, 0
    %4594 = vmatpush.msra.mxu0 0.0
    %4595 = vmatpush.msra.mxu0 0.0
    %4596 = vmatpush.msra.mxu0 0.0
    %4597 = vmatpush.msra.mxu0 0.0
    %4598 = vmatpush.msra.mxu0 0.0
    %4599 = vmatpush.msra.mxu0 0.0
    %4600 = vmatpush.msra.mxu0 0.0
    %4601 = vmatpush.msra.mxu0 0.0
    %4602 = vmatpush.msra.mxu0 0.0
    %4603 = vmatpush.msra.mxu0 0.0
    %4604 = vmatpush.msra.mxu0 0.0
    %4605 = vmatpush.msra.mxu0 0.0
    %4606 = vmatpush.msra.mxu0 0.0
    %4607 = vmatpush.msra.mxu0 0.0
    %4608 = vmatpush.msra.mxu0 0.0
    %4609 = vmatpush.msra.mxu0 %v4589
    %4610 = vmatmul.f32.gmra.mxu0 %v4592
    %v4611 = vpop.f32.mrf.mxu0
    %v4612 = vadd.f32 0.0, %v4611
    %4613 = vdwg.mxu0
    %4614 = vrot.lane.b32.xlu0 %v4291, 112
    %v4615 = vpop.permute.xlu0 %4614
    %4616 = vrot.lane.b32.xlu0 %v4291, 80
    %v4617 = vpop.permute.xlu0 %4616
    %v4618 = vsel %vm304, %v4615, 0
    %v4620 = vsel %vm304, %v4617, 0
    %4622 = vmatpush.xpose.msra.mxu0 0.0
    %4623 = vmatpush.xpose.msra.mxu0 0.0
    %4624 = vmatpush.xpose.msra.mxu0 0.0
    %4625 = vmatpush.xpose.msra.mxu0 0.0
    %4626 = vmatpush.xpose.msra.mxu0 0.0
    %4627 = vmatpush.xpose.msra.mxu0 0.0
    %4628 = vmatpush.xpose.msra.mxu0 0.0
    %4629 = vmatpush.xpose.msra.mxu0 0.0
    %4630 = vmatpush.xpose.msra.mxu0 0.0
    %4631 = vmatpush.xpose.msra.mxu0 0.0
    %4632 = vmatpush.xpose.msra.mxu0 0.0
    %4633 = vmatpush.xpose.msra.mxu0 0.0
    %4634 = vmatpush.xpose.msra.mxu0 0.0
    %4635 = vmatpush.xpose.msra.mxu0 0.0
    %4636 = vmatpush.xpose.msra.mxu0 0.0
    %4637 = vmatpush.xpose.msra.mxu0 %v4620
    %4638 = vmatmul.f32.gmra.mxu0 %v4618
    %v4639 = vpop.f32.mrf.mxu0
    %v4640 = vadd.f32 0.0, %v4639
    %4641 = vdwg.mxu0
    %4642 = vrot.lane.b32.xlu0 %v4294, 112
    %v4643 = vpop.permute.xlu0 %4642
    %4644 = vrot.lane.b32.xlu0 %v4294, 80
    %v4645 = vpop.permute.xlu0 %4644
    %v4646 = vsel %vm304, %v4643, 0
    %v4648 = vsel %vm304, %v4645, 0
    %4650 = vmatpush.xpose.msra.mxu0 0.0
    %4651 = vmatpush.xpose.msra.mxu0 0.0
    %4652 = vmatpush.xpose.msra.mxu0 0.0
    %4653 = vmatpush.xpose.msra.mxu0 0.0
    %4654 = vmatpush.xpose.msra.mxu0 0.0
    %4655 = vmatpush.xpose.msra.mxu0 0.0
    %4656 = vmatpush.xpose.msra.mxu0 0.0
    %4657 = vmatpush.xpose.msra.mxu0 0.0
    %4658 = vmatpush.xpose.msra.mxu0 0.0
    %4659 = vmatpush.xpose.msra.mxu0 0.0
    %4660 = vmatpush.xpose.msra.mxu0 0.0
    %4661 = vmatpush.xpose.msra.mxu0 0.0
    %4662 = vmatpush.xpose.msra.mxu0 0.0
    %4663 = vmatpush.xpose.msra.mxu0 0.0
    %4664 = vmatpush.xpose.msra.mxu0 0.0
    %4665 = vmatpush.xpose.msra.mxu0 %v4648
    %4666 = vmatmul.f32.gmra.mxu0 %v4646
    %v4667 = vpop.f32.mrf.mxu0
    %v4668 = vadd.f32 0.0, %v4667
    %4669 = vdwg.mxu0
    %v4670 = vmul.f32 %v4640, 0.35355338
    %v4671 = vmul.f32 %v4668, 0.35355338
    %v4672 = vsel %vm2471, %v4670, -1e+09
    %v4673 = vsel %vm2472, %v4671, -1e+09
    %v4674 = vsel %vm304, %v4672, -inf
    %4675 = vmax.xlane.f32.xlu0 %v4674
    %v4676 = vpop.xlane.xlu0 %4675
    %v4677 = vsel %vm304, %v4673, -inf
    %4678 = vmax.xlane.f32.xlu0 %v4677
    %v4679 = vpop.xlane.xlu0 %4678
    %v4680 = vsub.f32 %v4672, %v4676
    %v4681 = vsub.f32 %v4673, %v4679
    %v4682 = vmul.f32 %v4680, 1.442695
    %v4683 = vpow.pop %v4682
    %v4684 = vmul.f32 %v4681, 1.442695
    %v4685 = vpow.pop %v4684
    %v4686 = vsel %vm304, %v4683, 0.0
    %4687 = vadd.xlane.f32.xlu0 %v4686
    %v4688 = vpop.xlane.xlu0 %4687
    %v4689 = vsel %vm304, %v4685, 0.0
    %4690 = vadd.xlane.f32.xlu0 %v4689
    %v4691 = vpop.xlane.xlu0 %4690
    %v4692 = vrcp.pop %v4688
    %v4693 = vmul.f32 %v4688, %v4692
    %v4694 = vsub.f32 1.0, %v4693
    %v4695 = vmul.f32 %v4692, %v4694
    %v4696 = vadd.f32 %v4692, %v4695
    %vm4697 = vweird.f32 %v4688
    %vm4698 = vweird.f32 %v4692
    %vm4699 = vmor %vm4697, %vm4698
    %v4700 = vsel %vm4699, %v4692, %v4696
    %v4701 = vand.u32 2147483647, %v4688
    %vm4702 = vcmp.eq.f32.partialorder %v4701, 8.507059e+37
    %v4703 = vand.u32 %v4688, 2147483648
    %v4704 = vor.u32 1.1754944e-38, %v4703
    %v4705 = vsel %vm4702, %v4704, %v4700
    %v4706 = vrcp.pop %v4691
    %v4707 = vmul.f32 %v4691, %v4706
    %v4708 = vsub.f32 1.0, %v4707
    %v4709 = vmul.f32 %v4706, %v4708
    %v4710 = vadd.f32 %v4706, %v4709
    %vm4711 = vweird.f32 %v4691
    %vm4712 = vweird.f32 %v4706
    %vm4713 = vmor %vm4711, %vm4712
    %v4714 = vsel %vm4713, %v4706, %v4710
    %v4715 = vand.u32 2147483647, %v4691
    %vm4716 = vcmp.eq.f32.partialorder %v4715, 8.507059e+37
    %v4717 = vand.u32 %v4691, 2147483648
    %v4718 = vor.u32 1.1754944e-38, %v4717
    %v4719 = vsel %vm4716, %v4718, %v4714
    %v4720 = vmul.f32 %v4683, %v4705
    %v4721 = vmul.f32 %v4685, %v4719
    %4722 = vrot.lane.b32.xlu0 %v4291, 48
    %v4723 = vpop.permute.xlu0 %4722
    %v4726 = vsel %vm304, %v4720, 0
    %4728 = vmatpush.msra.mxu0 0.0
    %4729 = vmatpush.msra.mxu0 0.0
    %4730 = vmatpush.msra.mxu0 0.0
    %4731 = vmatpush.msra.mxu0 0.0
    %4732 = vmatpush.msra.mxu0 0.0
    %4733 = vmatpush.msra.mxu0 0.0
    %4734 = vmatpush.msra.mxu0 0.0
    %4735 = vmatpush.msra.mxu0 0.0
    %4736 = vmatpush.msra.mxu0 0.0
    %4737 = vmatpush.msra.mxu0 0.0
    %4738 = vmatpush.msra.mxu0 0.0
    %4739 = vmatpush.msra.mxu0 0.0
    %4740 = vmatpush.msra.mxu0 0.0
    %4741 = vmatpush.msra.mxu0 0.0
    %4742 = vmatpush.msra.mxu0 0.0
    %4743 = vmatpush.msra.mxu0 %v4723
    %4744 = vmatmul.f32.gmra.mxu0 %v4726
    %v4745 = vpop.f32.mrf.mxu0
    %v4746 = vadd.f32 0.0, %v4745
    %4747 = vdwg.mxu0
    %4748 = vrot.lane.b32.xlu0 %v4294, 48
    %v4749 = vpop.permute.xlu0 %4748
    %v4752 = vsel %vm304, %v4721, 0
    %4754 = vmatpush.msra.mxu0 0.0
    %4755 = vmatpush.msra.mxu0 0.0
    %4756 = vmatpush.msra.mxu0 0.0
    %4757 = vmatpush.msra.mxu0 0.0
    %4758 = vmatpush.msra.mxu0 0.0
    %4759 = vmatpush.msra.mxu0 0.0
    %4760 = vmatpush.msra.mxu0 0.0
    %4761 = vmatpush.msra.mxu0 0.0
    %4762 = vmatpush.msra.mxu0 0.0
    %4763 = vmatpush.msra.mxu0 0.0
    %4764 = vmatpush.msra.mxu0 0.0
    %4765 = vmatpush.msra.mxu0 0.0
    %4766 = vmatpush.msra.mxu0 0.0
    %4767 = vmatpush.msra.mxu0 0.0
    %4768 = vmatpush.msra.mxu0 0.0
    %4769 = vmatpush.msra.mxu0 %v4749
    %4770 = vmatmul.f32.gmra.mxu0 %v4752
    %v4771 = vpop.f32.mrf.mxu0
    %v4772 = vadd.f32 0.0, %v4771
    %4773 = vdwg.mxu0
    %4774 = vrot.lane.b32.xlu0 %v4291, 104
    %v4775 = vpop.permute.xlu0 %4774
    %4776 = vrot.lane.b32.xlu0 %v4291, 72
    %v4777 = vpop.permute.xlu0 %4776
    %v4778 = vsel %vm304, %v4775, 0
    %v4780 = vsel %vm304, %v4777, 0
    %4782 = vmatpush.xpose.msra.mxu0 0.0
    %4783 = vmatpush.xpose.msra.mxu0 0.0
    %4784 = vmatpush.xpose.msra.mxu0 0.0
    %4785 = vmatpush.xpose.msra.mxu0 0.0
    %4786 = vmatpush.xpose.msra.mxu0 0.0
    %4787 = vmatpush.xpose.msra.mxu0 0.0
    %4788 = vmatpush.xpose.msra.mxu0 0.0
    %4789 = vmatpush.xpose.msra.mxu0 0.0
    %4790 = vmatpush.xpose.msra.mxu0 0.0
    %4791 = vmatpush.xpose.msra.mxu0 0.0
    %4792 = vmatpush.xpose.msra.mxu0 0.0
    %4793 = vmatpush.xpose.msra.mxu0 0.0
    %4794 = vmatpush.xpose.msra.mxu0 0.0
    %4795 = vmatpush.xpose.msra.mxu0 0.0
    %4796 = vmatpush.xpose.msra.mxu0 0.0
    %4797 = vmatpush.xpose.msra.mxu0 %v4780
    %4798 = vmatmul.f32.gmra.mxu0 %v4778
    %v4799 = vpop.f32.mrf.mxu0
    %v4800 = vadd.f32 0.0, %v4799
    %4801 = vdwg.mxu0
    %4802 = vrot.lane.b32.xlu0 %v4294, 104
    %v4803 = vpop.permute.xlu0 %4802
    %4804 = vrot.lane.b32.xlu0 %v4294, 72
    %v4805 = vpop.permute.xlu0 %4804
    %v4806 = vsel %vm304, %v4803, 0
    %v4808 = vsel %vm304, %v4805, 0
    %4810 = vmatpush.xpose.msra.mxu0 0.0
    %4811 = vmatpush.xpose.msra.mxu0 0.0
    %4812 = vmatpush.xpose.msra.mxu0 0.0
    %4813 = vmatpush.xpose.msra.mxu0 0.0
    %4814 = vmatpush.xpose.msra.mxu0 0.0
    %4815 = vmatpush.xpose.msra.mxu0 0.0
    %4816 = vmatpush.xpose.msra.mxu0 0.0
    %4817 = vmatpush.xpose.msra.mxu0 0.0
    %4818 = vmatpush.xpose.msra.mxu0 0.0
    %4819 = vmatpush.xpose.msra.mxu0 0.0
    %4820 = vmatpush.xpose.msra.mxu0 0.0
    %4821 = vmatpush.xpose.msra.mxu0 0.0
    %4822 = vmatpush.xpose.msra.mxu0 0.0
    %4823 = vmatpush.xpose.msra.mxu0 0.0
    %4824 = vmatpush.xpose.msra.mxu0 0.0
    %4825 = vmatpush.xpose.msra.mxu0 %v4808
    %4826 = vmatmul.f32.gmra.mxu0 %v4806
    %v4827 = vpop.f32.mrf.mxu0
    %v4828 = vadd.f32 0.0, %v4827
    %4829 = vdwg.mxu0
    %v4830 = vmul.f32 %v4800, 0.35355338
    %v4831 = vmul.f32 %v4828, 0.35355338
    %v4832 = vsel %vm2471, %v4830, -1e+09
    %v4833 = vsel %vm2472, %v4831, -1e+09
    %v4834 = vsel %vm304, %v4832, -inf
    %4835 = vmax.xlane.f32.xlu0 %v4834
    %v4836 = vpop.xlane.xlu0 %4835
    %v4837 = vsel %vm304, %v4833, -inf
    %4838 = vmax.xlane.f32.xlu0 %v4837
    %v4839 = vpop.xlane.xlu0 %4838
    %v4840 = vsub.f32 %v4832, %v4836
    %v4841 = vsub.f32 %v4833, %v4839
    %v4842 = vmul.f32 %v4840, 1.442695
    %v4843 = vpow.pop %v4842
    %v4844 = vmul.f32 %v4841, 1.442695
    %v4845 = vpow.pop %v4844
    %v4846 = vsel %vm304, %v4843, 0.0
    %4847 = vadd.xlane.f32.xlu0 %v4846
    %v4848 = vpop.xlane.xlu0 %4847
    %v4849 = vsel %vm304, %v4845, 0.0
    %4850 = vadd.xlane.f32.xlu0 %v4849
    %v4851 = vpop.xlane.xlu0 %4850
    %v4852 = vrcp.pop %v4848
    %v4853 = vmul.f32 %v4848, %v4852
    %v4854 = vsub.f32 1.0, %v4853
    %v4855 = vmul.f32 %v4852, %v4854
    %v4856 = vadd.f32 %v4852, %v4855
    %vm4857 = vweird.f32 %v4848
    %vm4858 = vweird.f32 %v4852
    %vm4859 = vmor %vm4857, %vm4858
    %v4860 = vsel %vm4859, %v4852, %v4856
    %v4861 = vand.u32 2147483647, %v4848
    %vm4862 = vcmp.eq.f32.partialorder %v4861, 8.507059e+37
    %v4863 = vand.u32 %v4848, 2147483648
    %v4864 = vor.u32 1.1754944e-38, %v4863
    %v4865 = vsel %vm4862, %v4864, %v4860
    %v4866 = vrcp.pop %v4851
    %v4867 = vmul.f32 %v4851, %v4866
    %v4868 = vsub.f32 1.0, %v4867
    %v4869 = vmul.f32 %v4866, %v4868
    %v4870 = vadd.f32 %v4866, %v4869
    %vm4871 = vweird.f32 %v4851
    %vm4872 = vweird.f32 %v4866
    %vm4873 = vmor %vm4871, %vm4872
    %v4874 = vsel %vm4873, %v4866, %v4870
    %v4875 = vand.u32 2147483647, %v4851
    %vm4876 = vcmp.eq.f32.partialorder %v4875, 8.507059e+37
    %v4877 = vand.u32 %v4851, 2147483648
    %v4878 = vor.u32 1.1754944e-38, %v4877
    %v4879 = vsel %vm4876, %v4878, %v4874
    %v4880 = vmul.f32 %v4843, %v4865
    %v4881 = vmul.f32 %v4845, %v4879
    %4882 = vrot.lane.b32.xlu0 %v4291, 40
    %v4883 = vpop.permute.xlu0 %4882
    %v4886 = vsel %vm304, %v4880, 0
    %4888 = vmatpush.msra.mxu0 0.0
    %4889 = vmatpush.msra.mxu0 0.0
    %4890 = vmatpush.msra.mxu0 0.0
    %4891 = vmatpush.msra.mxu0 0.0
    %4892 = vmatpush.msra.mxu0 0.0
    %4893 = vmatpush.msra.mxu0 0.0
    %4894 = vmatpush.msra.mxu0 0.0
    %4895 = vmatpush.msra.mxu0 0.0
    %4896 = vmatpush.msra.mxu0 0.0
    %4897 = vmatpush.msra.mxu0 0.0
    %4898 = vmatpush.msra.mxu0 0.0
    %4899 = vmatpush.msra.mxu0 0.0
    %4900 = vmatpush.msra.mxu0 0.0
    %4901 = vmatpush.msra.mxu0 0.0
    %4902 = vmatpush.msra.mxu0 0.0
    %4903 = vmatpush.msra.mxu0 %v4883
    %4904 = vmatmul.f32.gmra.mxu0 %v4886
    %v4905 = vpop.f32.mrf.mxu0
    %v4906 = vadd.f32 0.0, %v4905
    %4907 = vdwg.mxu0
    %4908 = vrot.lane.b32.xlu0 %v4294, 40
    %v4909 = vpop.permute.xlu0 %4908
    %v4912 = vsel %vm304, %v4881, 0
    %4914 = vmatpush.msra.mxu0 0.0
    %4915 = vmatpush.msra.mxu0 0.0
    %4916 = vmatpush.msra.mxu0 0.0
    %4917 = vmatpush.msra.mxu0 0.0
    %4918 = vmatpush.msra.mxu0 0.0
    %4919 = vmatpush.msra.mxu0 0.0
    %4920 = vmatpush.msra.mxu0 0.0
    %4921 = vmatpush.msra.mxu0 0.0
    %4922 = vmatpush.msra.mxu0 0.0
    %4923 = vmatpush.msra.mxu0 0.0
    %4924 = vmatpush.msra.mxu0 0.0
    %4925 = vmatpush.msra.mxu0 0.0
    %4926 = vmatpush.msra.mxu0 0.0
    %4927 = vmatpush.msra.mxu0 0.0
    %4928 = vmatpush.msra.mxu0 0.0
    %4929 = vmatpush.msra.mxu0 %v4909
    %4930 = vmatmul.f32.gmra.mxu0 %v4912
    %v4931 = vpop.f32.mrf.mxu0
    %v4932 = vadd.f32 0.0, %v4931
    %4933 = vdwg.mxu0
    %4936 = vrot.lane.b32.xlu0 %v4586, 8
    %v4937 = vpop.permute.xlu0 %4936
    %4938 = vrot.lane.b32.xlu0 %v4612, 8
    %v4939 = vpop.permute.xlu0 %4938
    %4944 = vrot.lane.b32.xlu0 %v4746, 16
    %v4945 = vpop.permute.xlu0 %4944
    %4946 = vrot.lane.b32.xlu0 %v4772, 16
    %v4947 = vpop.permute.xlu0 %4946
    %4952 = vrot.lane.b32.xlu0 %v4906, 24
    %v4953 = vpop.permute.xlu0 %4952
    %4954 = vrot.lane.b32.xlu0 %v4932, 24
    %v4955 = vpop.permute.xlu0 %4954
    %v4958 = vsel %vm304, %v4426, %v4937
    %v4959 = vsel %vm304, %v4452, %v4939
    %v4960 = vsel %vm968, %v4958, %v4945
    %v4961 = vsel %vm968, %v4959, %v4947
    %v4962 = vsel %vm971, %v4960, %v4953
    %v4963 = vsel %vm971, %v4961, %v4955
    %v4965 = vperm.slane %v4263, 0
    %v4968 = vsel %vm165, %v4962, 0
    %v4971 = vsel %vm165, %v4963, 0
    %4973 = vmatpush.msra.mxu0 0.0
    %4974 = vmatpush.msra.mxu0 0.0
    %4975 = vmatpush.msra.mxu0 0.0
    %4976 = vmatpush.msra.mxu0 0.0
    %4977 = vmatpush.msra.mxu0 0.0
    %4978 = vmatpush.msra.mxu0 0.0
    %4979 = vmatpush.msra.mxu0 0.0
    %4980 = vmatpush.msra.mxu0 0.0
    %4981 = vmatpush.msra.mxu0 0.0
    %4982 = vmatpush.msra.mxu0 0.0
    %4983 = vmatpush.msra.mxu0 0.0
    %4984 = vmatpush.msra.mxu0 0.0
    %4985 = vmatpush.msra.mxu0 %v4261
    %4986 = vmatpush.msra.mxu0 %v4260
    %4987 = vmatpush.msra.mxu0 %v4259
    %4988 = vmatpush.msra.mxu0 %v4258
    %4989 = vmatmul.f32.gmra.mxu0 %v4968
    %v4990 = vpop.f32.mrf.mxu0
    %v4991 = vadd.f32 %v4965, %v4990
    %4992 = vmatmul.f32.gmra.mxu0 %v4971
    %v4993 = vpop.f32.mrf.mxu0
    %v4994 = vadd.f32 %v4965, %v4993
    %4995 = vdwg.mxu0
    %v4996 = vadd.f32 %v4158, %v4991
    %v4997 = vadd.f32 %v4159, %v4994
    %s4998 = scalar_lea.vmem %s61, 4
    %v4999 = vld [vmem:[%s4998] sm:$0x1]
    %s5000 = scalar_lea.vmem %s63, 4
    %v5001 = vld [vmem:[%s5000] sm:$0x1]
    %v5002 = vsel %vm165, %v4996, 0.0
    %5003 = vadd.xlane.f32.xlu0 %v5002
    %v5004 = vpop.xlane.xlu0 %5003
    %v5005 = vsel %vm165, %v4997, 0.0
    %5006 = vadd.xlane.f32.xlu0 %v5005
    %v5007 = vpop.xlane.xlu0 %5006
    %v5008 = vmul.f32 %v5004, %v178
    %v5009 = vmul.f32 %v5007, %v178
    %v5010 = vsub.f32 %v4996, %v5008
    %v5011 = vsub.f32 %v4997, %v5009
    %v5012 = vmul.f32 %v5010, %v5010
    %v5013 = vmul.f32 %v5011, %v5011
    %v5014 = vsel %vm165, %v5012, 0.0
    %5015 = vadd.xlane.f32.xlu0 %v5014
    %v5016 = vpop.xlane.xlu0 %5015
    %v5017 = vsel %vm165, %v5013, 0.0
    %5018 = vadd.xlane.f32.xlu0 %v5017
    %v5019 = vpop.xlane.xlu0 %5018
    %v5020 = vmul.f32 %v5016, 0.032258064
    %v5021 = vmul.f32 %v5019, 0.032258064
    %v5022 = vrsqrt.pop %v5020
    %v5023 = vmul.f32 %v5022, %v5020
    %v5024 = vmul.f32 %v5023, %v5022
    %v5025 = vmul.f32 0.5, %v5024
    %v5026 = vsub.f32 1.5, %v5025
    %v5027 = vmul.f32 %v5022, %v5026
    %v5028 = vmul.f32 %v5020, %v5027
    %vm5029 = vcmp.eq.f32.partialorder %v5020, inf
    %v5030 = vsel %vm5029, %v5020, %v5028
    %vm5031 = vcmp.eq.f32.partialorder %v5020, 0.0
    %v5032 = vand.u32 %v5020, 2147483648
    %v5033 = vsel %vm5031, %v5032, %v5030
    %v5034 = vrsqrt.pop %v5021
    %v5035 = vmul.f32 %v5034, %v5021
    %v5036 = vmul.f32 %v5035, %v5034
    %v5037 = vmul.f32 0.5, %v5036
    %v5038 = vsub.f32 1.5, %v5037
    %v5039 = vmul.f32 %v5034, %v5038
    %v5040 = vmul.f32 %v5021, %v5039
    %vm5041 = vcmp.eq.f32.partialorder %v5021, inf
    %v5042 = vsel %vm5041, %v5021, %v5040
    %vm5043 = vcmp.eq.f32.partialorder %v5021, 0.0
    %v5044 = vand.u32 %v5021, 2147483648
    %v5045 = vsel %vm5043, %v5044, %v5042
    %v5047 = vperm.slane %v4999, 0
    %v5049 = vmul.f32 %v5047, %v5010
    %v5050 = vmul.f32 %v5047, %v5011
    %v5051 = vadd.f32 %v5033, 1e-06
    %v5052 = vadd.f32 %v5045, 1e-06
    %v5053 = vrcp.pop %v5051
    %v5054 = vmul.f32 %v5051, %v5053
    %v5055 = vsub.f32 1.0, %v5054
    %v5056 = vmul.f32 %v5053, %v5055
    %v5057 = vadd.f32 %v5053, %v5056
    %vm5058 = vweird.f32 %v5051
    %vm5059 = vweird.f32 %v5053
    %vm5060 = vmor %vm5058, %vm5059
    %v5061 = vsel %vm5060, %v5053, %v5057
    %v5062 = vand.u32 2147483647, %v5051
    %vm5063 = vcmp.eq.f32.partialorder %v5062, 8.507059e+37
    %v5064 = vand.u32 %v5051, 2147483648
    %v5065 = vor.u32 1.1754944e-38, %v5064
    %v5066 = vsel %vm5063, %v5065, %v5061
    %v5067 = vrcp.pop %v5052
    %v5068 = vmul.f32 %v5052, %v5067
    %v5069 = vsub.f32 1.0, %v5068
    %v5070 = vmul.f32 %v5067, %v5069
    %v5071 = vadd.f32 %v5067, %v5070
    %vm5072 = vweird.f32 %v5052
    %vm5073 = vweird.f32 %v5067
    %vm5074 = vmor %vm5072, %vm5073
    %v5075 = vsel %vm5074, %v5067, %v5071
    %v5076 = vand.u32 2147483647, %v5052
    %vm5077 = vcmp.eq.f32.partialorder %v5076, 8.507059e+37
    %v5078 = vand.u32 %v5052, 2147483648
    %v5079 = vor.u32 1.1754944e-38, %v5078
    %v5080 = vsel %vm5077, %v5079, %v5075
    %v5081 = vmul.f32 %v5049, %v5066
    %v5082 = vmul.f32 %v5050, %v5080
    %v5084 = vperm.slane %v5001, 0
    %v5086 = vadd.f32 %v5081, %v5084
    %v5087 = vadd.f32 %v5082, %v5084
    %s5088 = scalar_lea.vmem %s41, 32
    %v5089 = vld [vmem:[%s5088] sm:$0xff]
    %v5090 = vld [vmem:[%s5088 + $0x8] sm:$0xff]
    %v5091 = vld [vmem:[%s5088 + $0x10] sm:$0xff]
    %v5092 = vld [vmem:[%s5088 + $0x18] sm:$0xff]
    %s5093 = scalar_lea.vmem %s43, 1
    %v5094 = vld [vmem:[%s5093] sm:$0x1]
    %s5095 = scalar_lea.vmem %s45, 32
    %v5096 = vld [vmem:[%s5095] sm:$0xff]
    %v5097 = vld [vmem:[%s5095 + $0x8] sm:$0xff]
    %v5098 = vld [vmem:[%s5095 + $0x10] sm:$0xff]
    %v5099 = vld [vmem:[%s5095 + $0x18] sm:$0xff]
    %s5100 = scalar_lea.vmem %s47, 1
    %v5101 = vld [vmem:[%s5100] sm:$0x1]
    %s5102 = scalar_lea.vmem %s49, 32
    %v5103 = vld [vmem:[%s5102] sm:$0xff]
    %v5104 = vld [vmem:[%s5102 + $0x8] sm:$0xff]
    %v5105 = vld [vmem:[%s5102 + $0x10] sm:$0xff]
    %v5106 = vld [vmem:[%s5102 + $0x18] sm:$0xff]
    %s5107 = scalar_lea.vmem %s51, 1
    %v5108 = vld [vmem:[%s5107] sm:$0x1]
    %v5110 = vperm.slane %v5094, 0
    %v5113 = vsel %vm165, %v5086, 0
    %v5116 = vsel %vm165, %v5087, 0
    %5118 = vmatpush.msra.mxu0 0.0
    %5119 = vmatpush.msra.mxu0 0.0
    %5120 = vmatpush.msra.mxu0 0.0
    %5121 = vmatpush.msra.mxu0 0.0
    %5122 = vmatpush.msra.mxu0 0.0
    %5123 = vmatpush.msra.mxu0 0.0
    %5124 = vmatpush.msra.mxu0 0.0
    %5125 = vmatpush.msra.mxu0 0.0
    %5126 = vmatpush.msra.mxu0 0.0
    %5127 = vmatpush.msra.mxu0 0.0
    %5128 = vmatpush.msra.mxu0 0.0
    %5129 = vmatpush.msra.mxu0 0.0
    %5130 = vmatpush.msra.mxu0 %v5092
    %5131 = vmatpush.msra.mxu0 %v5091
    %5132 = vmatpush.msra.mxu0 %v5090
    %5133 = vmatpush.msra.mxu0 %v5089
    %5134 = vmatmul.f32.gmra.mxu0 %v5113
    %v5135 = vpop.f32.mrf.mxu0
    %v5136 = vadd.f32 %v5110, %v5135
    %5137 = vmatmul.f32.gmra.mxu0 %v5116
    %v5138 = vpop.f32.mrf.mxu0
    %v5139 = vadd.f32 %v5110, %v5138
    %5140 = vdwg.mxu0
    %v5142 = vperm.slane %v5101, 0
    %5144 = vmatpush.msra.mxu0 0.0
    %5145 = vmatpush.msra.mxu0 0.0
    %5146 = vmatpush.msra.mxu0 0.0
    %5147 = vmatpush.msra.mxu0 0.0
    %5148 = vmatpush.msra.mxu0 0.0
    %5149 = vmatpush.msra.mxu0 0.0
    %5150 = vmatpush.msra.mxu0 0.0
    %5151 = vmatpush.msra.mxu0 0.0
    %5152 = vmatpush.msra.mxu0 0.0
    %5153 = vmatpush.msra.mxu0 0.0
    %5154 = vmatpush.msra.mxu0 0.0
    %5155 = vmatpush.msra.mxu0 0.0
    %5156 = vmatpush.msra.mxu0 %v5099
    %5157 = vmatpush.msra.mxu0 %v5098
    %5158 = vmatpush.msra.mxu0 %v5097
    %5159 = vmatpush.msra.mxu0 %v5096
    %5160 = vmatmul.f32.gmra.mxu0 %v3260
    %v5161 = vpop.f32.mrf.mxu0
    %v5162 = vadd.f32 %v5142, %v5161
    %5163 = vmatmul.f32.gmra.mxu0 %v3263
    %v5164 = vpop.f32.mrf.mxu0
    %v5165 = vadd.f32 %v5142, %v5164
    %5166 = vdwg.mxu0
    %v5168 = vsel %vm304, %v5136, 0
    %v5171 = vsel %vm304, %v5162, 0
    %5173 = vmatpush.xpose.msra.mxu0 0.0
    %5174 = vmatpush.xpose.msra.mxu0 0.0
    %5175 = vmatpush.xpose.msra.mxu0 0.0
    %5176 = vmatpush.xpose.msra.mxu0 0.0
    %5177 = vmatpush.xpose.msra.mxu0 0.0
    %5178 = vmatpush.xpose.msra.mxu0 0.0
    %5179 = vmatpush.xpose.msra.mxu0 0.0
    %5180 = vmatpush.xpose.msra.mxu0 0.0
    %5181 = vmatpush.xpose.msra.mxu0 0.0
    %5182 = vmatpush.xpose.msra.mxu0 0.0
    %5183 = vmatpush.xpose.msra.mxu0 0.0
    %5184 = vmatpush.xpose.msra.mxu0 0.0
    %5185 = vmatpush.xpose.msra.mxu0 0.0
    %5186 = vmatpush.xpose.msra.mxu0 0.0
    %5187 = vmatpush.xpose.msra.mxu0 0.0
    %5188 = vmatpush.xpose.msra.mxu0 %v5171
    %5189 = vmatmul.f32.gmra.mxu0 %v5168
    %v5190 = vpop.f32.mrf.mxu0
    %v5191 = vadd.f32 0.0, %v5190
    %5192 = vdwg.mxu0
    %v5194 = vsel %vm304, %v5139, 0
    %v5197 = vsel %vm304, %v5165, 0
    %5199 = vmatpush.xpose.msra.mxu0 0.0
    %5200 = vmatpush.xpose.msra.mxu0 0.0
    %5201 = vmatpush.xpose.msra.mxu0 0.0
    %5202 = vmatpush.xpose.msra.mxu0 0.0
    %5203 = vmatpush.xpose.msra.mxu0 0.0
    %5204 = vmatpush.xpose.msra.mxu0 0.0
    %5205 = vmatpush.xpose.msra.mxu0 0.0
    %5206 = vmatpush.xpose.msra.mxu0 0.0
    %5207 = vmatpush.xpose.msra.mxu0 0.0
    %5208 = vmatpush.xpose.msra.mxu0 0.0
    %5209 = vmatpush.xpose.msra.mxu0 0.0
    %5210 = vmatpush.xpose.msra.mxu0 0.0
    %5211 = vmatpush.xpose.msra.mxu0 0.0
    %5212 = vmatpush.xpose.msra.mxu0 0.0
    %5213 = vmatpush.xpose.msra.mxu0 0.0
    %5214 = vmatpush.xpose.msra.mxu0 %v5197
    %5215 = vmatmul.f32.gmra.mxu0 %v5194
    %v5216 = vpop.f32.mrf.mxu0
    %v5217 = vadd.f32 0.0, %v5216
    %5218 = vdwg.mxu0
    %v5219 = vmul.f32 %v5191, 0.35355338
    %v5220 = vmul.f32 %v5217, 0.35355338
    %v5221 = vsel %vm358, %v5219, -1e+09
    %v5222 = vsel %vm359, %v5220, -1e+09
    %v5223 = vsel %vm304, %v5221, -inf
    %5224 = vmax.xlane.f32.xlu0 %v5223
    %v5225 = vpop.xlane.xlu0 %5224
    %v5226 = vsel %vm304, %v5222, -inf
    %5227 = vmax.xlane.f32.xlu0 %v5226
    %v5228 = vpop.xlane.xlu0 %5227
    %v5229 = vsub.f32 %v5221, %v5225
    %v5230 = vsub.f32 %v5222, %v5228
    %v5231 = vmul.f32 %v5229, 1.442695
    %v5232 = vpow.pop %v5231
    %v5233 = vmul.f32 %v5230, 1.442695
    %v5234 = vpow.pop %v5233
    %v5235 = vsel %vm304, %v5232, 0.0
    %5236 = vadd.xlane.f32.xlu0 %v5235
    %v5237 = vpop.xlane.xlu0 %5236
    %v5238 = vsel %vm304, %v5234, 0.0
    %5239 = vadd.xlane.f32.xlu0 %v5238
    %v5240 = vpop.xlane.xlu0 %5239
    %v5241 = vrcp.pop %v5237
    %v5242 = vmul.f32 %v5237, %v5241
    %v5243 = vsub.f32 1.0, %v5242
    %v5244 = vmul.f32 %v5241, %v5243
    %v5245 = vadd.f32 %v5241, %v5244
    %vm5246 = vweird.f32 %v5237
    %vm5247 = vweird.f32 %v5241
    %vm5248 = vmor %vm5246, %vm5247
    %v5249 = vsel %vm5248, %v5241, %v5245
    %v5250 = vand.u32 2147483647, %v5237
    %vm5251 = vcmp.eq.f32.partialorder %v5250, 8.507059e+37
    %v5252 = vand.u32 %v5237, 2147483648
    %v5253 = vor.u32 1.1754944e-38, %v5252
    %v5254 = vsel %vm5251, %v5253, %v5249
    %v5255 = vrcp.pop %v5240
    %v5256 = vmul.f32 %v5240, %v5255
    %v5257 = vsub.f32 1.0, %v5256
    %v5258 = vmul.f32 %v5255, %v5257
    %v5259 = vadd.f32 %v5255, %v5258
    %vm5260 = vweird.f32 %v5240
    %vm5261 = vweird.f32 %v5255
    %vm5262 = vmor %vm5260, %vm5261
    %v5263 = vsel %vm5262, %v5255, %v5259
    %v5264 = vand.u32 2147483647, %v5240
    %vm5265 = vcmp.eq.f32.partialorder %v5264, 8.507059e+37
    %v5266 = vand.u32 %v5240, 2147483648
    %v5267 = vor.u32 1.1754944e-38, %v5266
    %v5268 = vsel %vm5265, %v5267, %v5263
    %v5269 = vmul.f32 %v5232, %v5254
    %v5270 = vmul.f32 %v5234, %v5268
    %5271 = vrot.lane.b32.xlu0 %v5162, 96
    %v5272 = vpop.permute.xlu0 %5271
    %v5275 = vsel %vm304, %v5269, 0
    %5277 = vmatpush.msra.mxu0 0.0
    %5278 = vmatpush.msra.mxu0 0.0
    %5279 = vmatpush.msra.mxu0 0.0
    %5280 = vmatpush.msra.mxu0 0.0
    %5281 = vmatpush.msra.mxu0 0.0
    %5282 = vmatpush.msra.mxu0 0.0
    %5283 = vmatpush.msra.mxu0 0.0
    %5284 = vmatpush.msra.mxu0 0.0
    %5285 = vmatpush.msra.mxu0 0.0
    %5286 = vmatpush.msra.mxu0 0.0
    %5287 = vmatpush.msra.mxu0 0.0
    %5288 = vmatpush.msra.mxu0 0.0
    %5289 = vmatpush.msra.mxu0 0.0
    %5290 = vmatpush.msra.mxu0 0.0
    %5291 = vmatpush.msra.mxu0 0.0
    %5292 = vmatpush.msra.mxu0 %v5272
    %5293 = vmatmul.f32.gmra.mxu0 %v5275
    %v5294 = vpop.f32.mrf.mxu0
    %v5295 = vadd.f32 0.0, %v5294
    %5296 = vdwg.mxu0
    %5297 = vrot.lane.b32.xlu0 %v5165, 96
    %v5298 = vpop.permute.xlu0 %5297
    %v5301 = vsel %vm304, %v5270, 0
    %5303 = vmatpush.msra.mxu0 0.0
    %5304 = vmatpush.msra.mxu0 0.0
    %5305 = vmatpush.msra.mxu0 0.0
    %5306 = vmatpush.msra.mxu0 0.0
    %5307 = vmatpush.msra.mxu0 0.0
    %5308 = vmatpush.msra.mxu0 0.0
    %5309 = vmatpush.msra.mxu0 0.0
    %5310 = vmatpush.msra.mxu0 0.0
    %5311 = vmatpush.msra.mxu0 0.0
    %5312 = vmatpush.msra.mxu0 0.0
    %5313 = vmatpush.msra.mxu0 0.0
    %5314 = vmatpush.msra.mxu0 0.0
    %5315 = vmatpush.msra.mxu0 0.0
    %5316 = vmatpush.msra.mxu0 0.0
    %5317 = vmatpush.msra.mxu0 0.0
    %5318 = vmatpush.msra.mxu0 %v5298
    %5319 = vmatmul.f32.gmra.mxu0 %v5301
    %v5320 = vpop.f32.mrf.mxu0
    %v5321 = vadd.f32 0.0, %v5320
    %5322 = vdwg.mxu0
    %5323 = vrot.lane.b32.xlu0 %v5136, 120
    %v5324 = vpop.permute.xlu0 %5323
    %5325 = vrot.lane.b32.xlu0 %v5162, 120
    %v5326 = vpop.permute.xlu0 %5325
    %v5327 = vsel %vm304, %v5324, 0
    %v5329 = vsel %vm304, %v5326, 0
    %5331 = vmatpush.xpose.msra.mxu0 0.0
    %5332 = vmatpush.xpose.msra.mxu0 0.0
    %5333 = vmatpush.xpose.msra.mxu0 0.0
    %5334 = vmatpush.xpose.msra.mxu0 0.0
    %5335 = vmatpush.xpose.msra.mxu0 0.0
    %5336 = vmatpush.xpose.msra.mxu0 0.0
    %5337 = vmatpush.xpose.msra.mxu0 0.0
    %5338 = vmatpush.xpose.msra.mxu0 0.0
    %5339 = vmatpush.xpose.msra.mxu0 0.0
    %5340 = vmatpush.xpose.msra.mxu0 0.0
    %5341 = vmatpush.xpose.msra.mxu0 0.0
    %5342 = vmatpush.xpose.msra.mxu0 0.0
    %5343 = vmatpush.xpose.msra.mxu0 0.0
    %5344 = vmatpush.xpose.msra.mxu0 0.0
    %5345 = vmatpush.xpose.msra.mxu0 0.0
    %5346 = vmatpush.xpose.msra.mxu0 %v5329
    %5347 = vmatmul.f32.gmra.mxu0 %v5327
    %v5348 = vpop.f32.mrf.mxu0
    %v5349 = vadd.f32 0.0, %v5348
    %5350 = vdwg.mxu0
    %5351 = vrot.lane.b32.xlu0 %v5139, 120
    %v5352 = vpop.permute.xlu0 %5351
    %5353 = vrot.lane.b32.xlu0 %v5165, 120
    %v5354 = vpop.permute.xlu0 %5353
    %v5355 = vsel %vm304, %v5352, 0
    %v5357 = vsel %vm304, %v5354, 0
    %5359 = vmatpush.xpose.msra.mxu0 0.0
    %5360 = vmatpush.xpose.msra.mxu0 0.0
    %5361 = vmatpush.xpose.msra.mxu0 0.0
    %5362 = vmatpush.xpose.msra.mxu0 0.0
    %5363 = vmatpush.xpose.msra.mxu0 0.0
    %5364 = vmatpush.xpose.msra.mxu0 0.0
    %5365 = vmatpush.xpose.msra.mxu0 0.0
    %5366 = vmatpush.xpose.msra.mxu0 0.0
    %5367 = vmatpush.xpose.msra.mxu0 0.0
    %5368 = vmatpush.xpose.msra.mxu0 0.0
    %5369 = vmatpush.xpose.msra.mxu0 0.0
    %5370 = vmatpush.xpose.msra.mxu0 0.0
    %5371 = vmatpush.xpose.msra.mxu0 0.0
    %5372 = vmatpush.xpose.msra.mxu0 0.0
    %5373 = vmatpush.xpose.msra.mxu0 0.0
    %5374 = vmatpush.xpose.msra.mxu0 %v5357
    %5375 = vmatmul.f32.gmra.mxu0 %v5355
    %v5376 = vpop.f32.mrf.mxu0
    %v5377 = vadd.f32 0.0, %v5376
    %5378 = vdwg.mxu0
    %v5379 = vmul.f32 %v5349, 0.35355338
    %v5380 = vmul.f32 %v5377, 0.35355338
    %v5381 = vsel %vm358, %v5379, -1e+09
    %v5382 = vsel %vm359, %v5380, -1e+09
    %v5383 = vsel %vm304, %v5381, -inf
    %5384 = vmax.xlane.f32.xlu0 %v5383
    %v5385 = vpop.xlane.xlu0 %5384
    %v5386 = vsel %vm304, %v5382, -inf
    %5387 = vmax.xlane.f32.xlu0 %v5386
    %v5388 = vpop.xlane.xlu0 %5387
    %v5389 = vsub.f32 %v5381, %v5385
    %v5390 = vsub.f32 %v5382, %v5388
    %v5391 = vmul.f32 %v5389, 1.442695
    %v5392 = vpow.pop %v5391
    %v5393 = vmul.f32 %v5390, 1.442695
    %v5394 = vpow.pop %v5393
    %v5395 = vsel %vm304, %v5392, 0.0
    %5396 = vadd.xlane.f32.xlu0 %v5395
    %v5397 = vpop.xlane.xlu0 %5396
    %v5398 = vsel %vm304, %v5394, 0.0
    %5399 = vadd.xlane.f32.xlu0 %v5398
    %v5400 = vpop.xlane.xlu0 %5399
    %v5401 = vrcp.pop %v5397
    %v5402 = vmul.f32 %v5397, %v5401
    %v5403 = vsub.f32 1.0, %v5402
    %v5404 = vmul.f32 %v5401, %v5403
    %v5405 = vadd.f32 %v5401, %v5404
    %vm5406 = vweird.f32 %v5397
    %vm5407 = vweird.f32 %v5401
    %vm5408 = vmor %vm5406, %vm5407
    %v5409 = vsel %vm5408, %v5401, %v5405
    %v5410 = vand.u32 2147483647, %v5397
    %vm5411 = vcmp.eq.f32.partialorder %v5410, 8.507059e+37
    %v5412 = vand.u32 %v5397, 2147483648
    %v5413 = vor.u32 1.1754944e-38, %v5412
    %v5414 = vsel %vm5411, %v5413, %v5409
    %v5415 = vrcp.pop %v5400
    %v5416 = vmul.f32 %v5400, %v5415
    %v5417 = vsub.f32 1.0, %v5416
    %v5418 = vmul.f32 %v5415, %v5417
    %v5419 = vadd.f32 %v5415, %v5418
    %vm5420 = vweird.f32 %v5400
    %vm5421 = vweird.f32 %v5415
    %vm5422 = vmor %vm5420, %vm5421
    %v5423 = vsel %vm5422, %v5415, %v5419
    %v5424 = vand.u32 2147483647, %v5400
    %vm5425 = vcmp.eq.f32.partialorder %v5424, 8.507059e+37
    %v5426 = vand.u32 %v5400, 2147483648
    %v5427 = vor.u32 1.1754944e-38, %v5426
    %v5428 = vsel %vm5425, %v5427, %v5423
    %v5429 = vmul.f32 %v5392, %v5414
    %v5430 = vmul.f32 %v5394, %v5428
    %5431 = vrot.lane.b32.xlu0 %v5162, 88
    %v5432 = vpop.permute.xlu0 %5431
    %v5435 = vsel %vm304, %v5429, 0
    %5437 = vmatpush.msra.mxu0 0.0
    %5438 = vmatpush.msra.mxu0 0.0
    %5439 = vmatpush.msra.mxu0 0.0
    %5440 = vmatpush.msra.mxu0 0.0
    %5441 = vmatpush.msra.mxu0 0.0
    %5442 = vmatpush.msra.mxu0 0.0
    %5443 = vmatpush.msra.mxu0 0.0
    %5444 = vmatpush.msra.mxu0 0.0
    %5445 = vmatpush.msra.mxu0 0.0
    %5446 = vmatpush.msra.mxu0 0.0
    %5447 = vmatpush.msra.mxu0 0.0
    %5448 = vmatpush.msra.mxu0 0.0
    %5449 = vmatpush.msra.mxu0 0.0
    %5450 = vmatpush.msra.mxu0 0.0
    %5451 = vmatpush.msra.mxu0 0.0
    %5452 = vmatpush.msra.mxu0 %v5432
    %5453 = vmatmul.f32.gmra.mxu0 %v5435
    %v5454 = vpop.f32.mrf.mxu0
    %v5455 = vadd.f32 0.0, %v5454
    %5456 = vdwg.mxu0
    %5457 = vrot.lane.b32.xlu0 %v5165, 88
    %v5458 = vpop.permute.xlu0 %5457
    %v5461 = vsel %vm304, %v5430, 0
    %5463 = vmatpush.msra.mxu0 0.0
    %5464 = vmatpush.msra.mxu0 0.0
    %5465 = vmatpush.msra.mxu0 0.0
    %5466 = vmatpush.msra.mxu0 0.0
    %5467 = vmatpush.msra.mxu0 0.0
    %5468 = vmatpush.msra.mxu0 0.0
    %5469 = vmatpush.msra.mxu0 0.0
    %5470 = vmatpush.msra.mxu0 0.0
    %5471 = vmatpush.msra.mxu0 0.0
    %5472 = vmatpush.msra.mxu0 0.0
    %5473 = vmatpush.msra.mxu0 0.0
    %5474 = vmatpush.msra.mxu0 0.0
    %5475 = vmatpush.msra.mxu0 0.0
    %5476 = vmatpush.msra.mxu0 0.0
    %5477 = vmatpush.msra.mxu0 0.0
    %5478 = vmatpush.msra.mxu0 %v5458
    %5479 = vmatmul.f32.gmra.mxu0 %v5461
    %v5480 = vpop.f32.mrf.mxu0
    %v5481 = vadd.f32 0.0, %v5480
    %5482 = vdwg.mxu0
    %5483 = vrot.lane.b32.xlu0 %v5136, 112
    %v5484 = vpop.permute.xlu0 %5483
    %5485 = vrot.lane.b32.xlu0 %v5162, 112
    %v5486 = vpop.permute.xlu0 %5485
    %v5487 = vsel %vm304, %v5484, 0
    %v5489 = vsel %vm304, %v5486, 0
    %5491 = vmatpush.xpose.msra.mxu0 0.0
    %5492 = vmatpush.xpose.msra.mxu0 0.0
    %5493 = vmatpush.xpose.msra.mxu0 0.0
    %5494 = vmatpush.xpose.msra.mxu0 0.0
    %5495 = vmatpush.xpose.msra.mxu0 0.0
    %5496 = vmatpush.xpose.msra.mxu0 0.0
    %5497 = vmatpush.xpose.msra.mxu0 0.0
    %5498 = vmatpush.xpose.msra.mxu0 0.0
    %5499 = vmatpush.xpose.msra.mxu0 0.0
    %5500 = vmatpush.xpose.msra.mxu0 0.0
    %5501 = vmatpush.xpose.msra.mxu0 0.0
    %5502 = vmatpush.xpose.msra.mxu0 0.0
    %5503 = vmatpush.xpose.msra.mxu0 0.0
    %5504 = vmatpush.xpose.msra.mxu0 0.0
    %5505 = vmatpush.xpose.msra.mxu0 0.0
    %5506 = vmatpush.xpose.msra.mxu0 %v5489
    %5507 = vmatmul.f32.gmra.mxu0 %v5487
    %v5508 = vpop.f32.mrf.mxu0
    %v5509 = vadd.f32 0.0, %v5508
    %5510 = vdwg.mxu0
    %5511 = vrot.lane.b32.xlu0 %v5139, 112
    %v5512 = vpop.permute.xlu0 %5511
    %5513 = vrot.lane.b32.xlu0 %v5165, 112
    %v5514 = vpop.permute.xlu0 %5513
    %v5515 = vsel %vm304, %v5512, 0
    %v5517 = vsel %vm304, %v5514, 0
    %5519 = vmatpush.xpose.msra.mxu0 0.0
    %5520 = vmatpush.xpose.msra.mxu0 0.0
    %5521 = vmatpush.xpose.msra.mxu0 0.0
    %5522 = vmatpush.xpose.msra.mxu0 0.0
    %5523 = vmatpush.xpose.msra.mxu0 0.0
    %5524 = vmatpush.xpose.msra.mxu0 0.0
    %5525 = vmatpush.xpose.msra.mxu0 0.0
    %5526 = vmatpush.xpose.msra.mxu0 0.0
    %5527 = vmatpush.xpose.msra.mxu0 0.0
    %5528 = vmatpush.xpose.msra.mxu0 0.0
    %5529 = vmatpush.xpose.msra.mxu0 0.0
    %5530 = vmatpush.xpose.msra.mxu0 0.0
    %5531 = vmatpush.xpose.msra.mxu0 0.0
    %5532 = vmatpush.xpose.msra.mxu0 0.0
    %5533 = vmatpush.xpose.msra.mxu0 0.0
    %5534 = vmatpush.xpose.msra.mxu0 %v5517
    %5535 = vmatmul.f32.gmra.mxu0 %v5515
    %v5536 = vpop.f32.mrf.mxu0
    %v5537 = vadd.f32 0.0, %v5536
    %5538 = vdwg.mxu0
    %v5539 = vmul.f32 %v5509, 0.35355338
    %v5540 = vmul.f32 %v5537, 0.35355338
    %v5541 = vsel %vm358, %v5539, -1e+09
    %v5542 = vsel %vm359, %v5540, -1e+09
    %v5543 = vsel %vm304, %v5541, -inf
    %5544 = vmax.xlane.f32.xlu0 %v5543
    %v5545 = vpop.xlane.xlu0 %5544
    %v5546 = vsel %vm304, %v5542, -inf
    %5547 = vmax.xlane.f32.xlu0 %v5546
    %v5548 = vpop.xlane.xlu0 %5547
    %v5549 = vsub.f32 %v5541, %v5545
    %v5550 = vsub.f32 %v5542, %v5548
    %v5551 = vmul.f32 %v5549, 1.442695
    %v5552 = vpow.pop %v5551
    %v5553 = vmul.f32 %v5550, 1.442695
    %v5554 = vpow.pop %v5553
    %v5555 = vsel %vm304, %v5552, 0.0
    %5556 = vadd.xlane.f32.xlu0 %v5555
    %v5557 = vpop.xlane.xlu0 %5556
    %v5558 = vsel %vm304, %v5554, 0.0
    %5559 = vadd.xlane.f32.xlu0 %v5558
    %v5560 = vpop.xlane.xlu0 %5559
    %v5561 = vrcp.pop %v5557
    %v5562 = vmul.f32 %v5557, %v5561
    %v5563 = vsub.f32 1.0, %v5562
    %v5564 = vmul.f32 %v5561, %v5563
    %v5565 = vadd.f32 %v5561, %v5564
    %vm5566 = vweird.f32 %v5557
    %vm5567 = vweird.f32 %v5561
    %vm5568 = vmor %vm5566, %vm5567
    %v5569 = vsel %vm5568, %v5561, %v5565
    %v5570 = vand.u32 2147483647, %v5557
    %vm5571 = vcmp.eq.f32.partialorder %v5570, 8.507059e+37
    %v5572 = vand.u32 %v5557, 2147483648
    %v5573 = vor.u32 1.1754944e-38, %v5572
    %v5574 = vsel %vm5571, %v5573, %v5569
    %v5575 = vrcp.pop %v5560
    %v5576 = vmul.f32 %v5560, %v5575
    %v5577 = vsub.f32 1.0, %v5576
    %v5578 = vmul.f32 %v5575, %v5577
    %v5579 = vadd.f32 %v5575, %v5578
    %vm5580 = vweird.f32 %v5560
    %vm5581 = vweird.f32 %v5575
    %vm5582 = vmor %vm5580, %vm5581
    %v5583 = vsel %vm5582, %v5575, %v5579
    %v5584 = vand.u32 2147483647, %v5560
    %vm5585 = vcmp.eq.f32.partialorder %v5584, 8.507059e+37
    %v5586 = vand.u32 %v5560, 2147483648
    %v5587 = vor.u32 1.1754944e-38, %v5586
    %v5588 = vsel %vm5585, %v5587, %v5583
    %v5589 = vmul.f32 %v5552, %v5574
    %v5590 = vmul.f32 %v5554, %v5588
    %5591 = vrot.lane.b32.xlu0 %v5162, 80
    %v5592 = vpop.permute.xlu0 %5591
    %v5595 = vsel %vm304, %v5589, 0
    %5597 = vmatpush.msra.mxu0 0.0
    %5598 = vmatpush.msra.mxu0 0.0
    %5599 = vmatpush.msra.mxu0 0.0
    %5600 = vmatpush.msra.mxu0 0.0
    %5601 = vmatpush.msra.mxu0 0.0
    %5602 = vmatpush.msra.mxu0 0.0
    %5603 = vmatpush.msra.mxu0 0.0
    %5604 = vmatpush.msra.mxu0 0.0
    %5605 = vmatpush.msra.mxu0 0.0
    %5606 = vmatpush.msra.mxu0 0.0
    %5607 = vmatpush.msra.mxu0 0.0
    %5608 = vmatpush.msra.mxu0 0.0
    %5609 = vmatpush.msra.mxu0 0.0
    %5610 = vmatpush.msra.mxu0 0.0
    %5611 = vmatpush.msra.mxu0 0.0
    %5612 = vmatpush.msra.mxu0 %v5592
    %5613 = vmatmul.f32.gmra.mxu0 %v5595
    %v5614 = vpop.f32.mrf.mxu0
    %v5615 = vadd.f32 0.0, %v5614
    %5616 = vdwg.mxu0
    %5617 = vrot.lane.b32.xlu0 %v5165, 80
    %v5618 = vpop.permute.xlu0 %5617
    %v5621 = vsel %vm304, %v5590, 0
    %5623 = vmatpush.msra.mxu0 0.0
    %5624 = vmatpush.msra.mxu0 0.0
    %5625 = vmatpush.msra.mxu0 0.0
    %5626 = vmatpush.msra.mxu0 0.0
    %5627 = vmatpush.msra.mxu0 0.0
    %5628 = vmatpush.msra.mxu0 0.0
    %5629 = vmatpush.msra.mxu0 0.0
    %5630 = vmatpush.msra.mxu0 0.0
    %5631 = vmatpush.msra.mxu0 0.0
    %5632 = vmatpush.msra.mxu0 0.0
    %5633 = vmatpush.msra.mxu0 0.0
    %5634 = vmatpush.msra.mxu0 0.0
    %5635 = vmatpush.msra.mxu0 0.0
    %5636 = vmatpush.msra.mxu0 0.0
    %5637 = vmatpush.msra.mxu0 0.0
    %5638 = vmatpush.msra.mxu0 %v5618
    %5639 = vmatmul.f32.gmra.mxu0 %v5621
    %v5640 = vpop.f32.mrf.mxu0
    %v5641 = vadd.f32 0.0, %v5640
    %5642 = vdwg.mxu0
    %5643 = vrot.lane.b32.xlu0 %v5136, 104
    %v5644 = vpop.permute.xlu0 %5643
    %5645 = vrot.lane.b32.xlu0 %v5162, 104
    %v5646 = vpop.permute.xlu0 %5645
    %v5647 = vsel %vm304, %v5644, 0
    %v5649 = vsel %vm304, %v5646, 0
    %5651 = vmatpush.xpose.msra.mxu0 0.0
    %5652 = vmatpush.xpose.msra.mxu0 0.0
    %5653 = vmatpush.xpose.msra.mxu0 0.0
    %5654 = vmatpush.xpose.msra.mxu0 0.0
    %5655 = vmatpush.xpose.msra.mxu0 0.0
    %5656 = vmatpush.xpose.msra.mxu0 0.0
    %5657 = vmatpush.xpose.msra.mxu0 0.0
    %5658 = vmatpush.xpose.msra.mxu0 0.0
    %5659 = vmatpush.xpose.msra.mxu0 0.0
    %5660 = vmatpush.xpose.msra.mxu0 0.0
    %5661 = vmatpush.xpose.msra.mxu0 0.0
    %5662 = vmatpush.xpose.msra.mxu0 0.0
    %5663 = vmatpush.xpose.msra.mxu0 0.0
    %5664 = vmatpush.xpose.msra.mxu0 0.0
    %5665 = vmatpush.xpose.msra.mxu0 0.0
    %5666 = vmatpush.xpose.msra.mxu0 %v5649
    %5667 = vmatmul.f32.gmra.mxu0 %v5647
    %v5668 = vpop.f32.mrf.mxu0
    %v5669 = vadd.f32 0.0, %v5668
    %5670 = vdwg.mxu0
    %5671 = vrot.lane.b32.xlu0 %v5139, 104
    %v5672 = vpop.permute.xlu0 %5671
    %5673 = vrot.lane.b32.xlu0 %v5165, 104
    %v5674 = vpop.permute.xlu0 %5673
    %v5675 = vsel %vm304, %v5672, 0
    %v5677 = vsel %vm304, %v5674, 0
    %5679 = vmatpush.xpose.msra.mxu0 0.0
    %5680 = vmatpush.xpose.msra.mxu0 0.0
    %5681 = vmatpush.xpose.msra.mxu0 0.0
    %5682 = vmatpush.xpose.msra.mxu0 0.0
    %5683 = vmatpush.xpose.msra.mxu0 0.0
    %5684 = vmatpush.xpose.msra.mxu0 0.0
    %5685 = vmatpush.xpose.msra.mxu0 0.0
    %5686 = vmatpush.xpose.msra.mxu0 0.0
    %5687 = vmatpush.xpose.msra.mxu0 0.0
    %5688 = vmatpush.xpose.msra.mxu0 0.0
    %5689 = vmatpush.xpose.msra.mxu0 0.0
    %5690 = vmatpush.xpose.msra.mxu0 0.0
    %5691 = vmatpush.xpose.msra.mxu0 0.0
    %5692 = vmatpush.xpose.msra.mxu0 0.0
    %5693 = vmatpush.xpose.msra.mxu0 0.0
    %5694 = vmatpush.xpose.msra.mxu0 %v5677
    %5695 = vmatmul.f32.gmra.mxu0 %v5675
    %v5696 = vpop.f32.mrf.mxu0
    %v5697 = vadd.f32 0.0, %v5696
    %5698 = vdwg.mxu0
    %v5699 = vmul.f32 %v5669, 0.35355338
    %v5700 = vmul.f32 %v5697, 0.35355338
    %v5701 = vsel %vm358, %v5699, -1e+09
    %v5702 = vsel %vm359, %v5700, -1e+09
    %v5703 = vsel %vm304, %v5701, -inf
    %5704 = vmax.xlane.f32.xlu0 %v5703
    %v5705 = vpop.xlane.xlu0 %5704
    %v5706 = vsel %vm304, %v5702, -inf
    %5707 = vmax.xlane.f32.xlu0 %v5706
    %v5708 = vpop.xlane.xlu0 %5707
    %v5709 = vsub.f32 %v5701, %v5705
    %v5710 = vsub.f32 %v5702, %v5708
    %v5711 = vmul.f32 %v5709, 1.442695
    %v5712 = vpow.pop %v5711
    %v5713 = vmul.f32 %v5710, 1.442695
    %v5714 = vpow.pop %v5713
    %v5715 = vsel %vm304, %v5712, 0.0
    %5716 = vadd.xlane.f32.xlu0 %v5715
    %v5717 = vpop.xlane.xlu0 %5716
    %v5718 = vsel %vm304, %v5714, 0.0
    %5719 = vadd.xlane.f32.xlu0 %v5718
    %v5720 = vpop.xlane.xlu0 %5719
    %v5721 = vrcp.pop %v5717
    %v5722 = vmul.f32 %v5717, %v5721
    %v5723 = vsub.f32 1.0, %v5722
    %v5724 = vmul.f32 %v5721, %v5723
    %v5725 = vadd.f32 %v5721, %v5724
    %vm5726 = vweird.f32 %v5717
    %vm5727 = vweird.f32 %v5721
    %vm5728 = vmor %vm5726, %vm5727
    %v5729 = vsel %vm5728, %v5721, %v5725
    %v5730 = vand.u32 2147483647, %v5717
    %vm5731 = vcmp.eq.f32.partialorder %v5730, 8.507059e+37
    %v5732 = vand.u32 %v5717, 2147483648
    %v5733 = vor.u32 1.1754944e-38, %v5732
    %v5734 = vsel %vm5731, %v5733, %v5729
    %v5735 = vrcp.pop %v5720
    %v5736 = vmul.f32 %v5720, %v5735
    %v5737 = vsub.f32 1.0, %v5736
    %v5738 = vmul.f32 %v5735, %v5737
    %v5739 = vadd.f32 %v5735, %v5738
    %vm5740 = vweird.f32 %v5720
    %vm5741 = vweird.f32 %v5735
    %vm5742 = vmor %vm5740, %vm5741
    %v5743 = vsel %vm5742, %v5735, %v5739
    %v5744 = vand.u32 2147483647, %v5720
    %vm5745 = vcmp.eq.f32.partialorder %v5744, 8.507059e+37
    %v5746 = vand.u32 %v5720, 2147483648
    %v5747 = vor.u32 1.1754944e-38, %v5746
    %v5748 = vsel %vm5745, %v5747, %v5743
    %v5749 = vmul.f32 %v5712, %v5734
    %v5750 = vmul.f32 %v5714, %v5748
    %5751 = vrot.lane.b32.xlu0 %v5162, 72
    %v5752 = vpop.permute.xlu0 %5751
    %v5755 = vsel %vm304, %v5749, 0
    %5757 = vmatpush.msra.mxu0 0.0
    %5758 = vmatpush.msra.mxu0 0.0
    %5759 = vmatpush.msra.mxu0 0.0
    %5760 = vmatpush.msra.mxu0 0.0
    %5761 = vmatpush.msra.mxu0 0.0
    %5762 = vmatpush.msra.mxu0 0.0
    %5763 = vmatpush.msra.mxu0 0.0
    %5764 = vmatpush.msra.mxu0 0.0
    %5765 = vmatpush.msra.mxu0 0.0
    %5766 = vmatpush.msra.mxu0 0.0
    %5767 = vmatpush.msra.mxu0 0.0
    %5768 = vmatpush.msra.mxu0 0.0
    %5769 = vmatpush.msra.mxu0 0.0
    %5770 = vmatpush.msra.mxu0 0.0
    %5771 = vmatpush.msra.mxu0 0.0
    %5772 = vmatpush.msra.mxu0 %v5752
    %5773 = vmatmul.f32.gmra.mxu0 %v5755
    %v5774 = vpop.f32.mrf.mxu0
    %v5775 = vadd.f32 0.0, %v5774
    %5776 = vdwg.mxu0
    %5777 = vrot.lane.b32.xlu0 %v5165, 72
    %v5778 = vpop.permute.xlu0 %5777
    %v5781 = vsel %vm304, %v5750, 0
    %5783 = vmatpush.msra.mxu0 0.0
    %5784 = vmatpush.msra.mxu0 0.0
    %5785 = vmatpush.msra.mxu0 0.0
    %5786 = vmatpush.msra.mxu0 0.0
    %5787 = vmatpush.msra.mxu0 0.0
    %5788 = vmatpush.msra.mxu0 0.0
    %5789 = vmatpush.msra.mxu0 0.0
    %5790 = vmatpush.msra.mxu0 0.0
    %5791 = vmatpush.msra.mxu0 0.0
    %5792 = vmatpush.msra.mxu0 0.0
    %5793 = vmatpush.msra.mxu0 0.0
    %5794 = vmatpush.msra.mxu0 0.0
    %5795 = vmatpush.msra.mxu0 0.0
    %5796 = vmatpush.msra.mxu0 0.0
    %5797 = vmatpush.msra.mxu0 0.0
    %5798 = vmatpush.msra.mxu0 %v5778
    %5799 = vmatmul.f32.gmra.mxu0 %v5781
    %v5800 = vpop.f32.mrf.mxu0
    %v5801 = vadd.f32 0.0, %v5800
    %5802 = vdwg.mxu0
    %5805 = vrot.lane.b32.xlu0 %v5455, 8
    %v5806 = vpop.permute.xlu0 %5805
    %5807 = vrot.lane.b32.xlu0 %v5481, 8
    %v5808 = vpop.permute.xlu0 %5807
    %5813 = vrot.lane.b32.xlu0 %v5615, 16
    %v5814 = vpop.permute.xlu0 %5813
    %5815 = vrot.lane.b32.xlu0 %v5641, 16
    %v5816 = vpop.permute.xlu0 %5815
    %5821 = vrot.lane.b32.xlu0 %v5775, 24
    %v5822 = vpop.permute.xlu0 %5821
    %5823 = vrot.lane.b32.xlu0 %v5801, 24
    %v5824 = vpop.permute.xlu0 %5823
    %v5827 = vsel %vm304, %v5295, %v5806
    %v5828 = vsel %vm304, %v5321, %v5808
    %v5829 = vsel %vm968, %v5827, %v5814
    %v5830 = vsel %vm968, %v5828, %v5816
    %v5831 = vsel %vm971, %v5829, %v5822
    %v5832 = vsel %vm971, %v5830, %v5824
    %v5834 = vperm.slane %v5108, 0
    %v5837 = vsel %vm165, %v5831, 0
    %v5840 = vsel %vm165, %v5832, 0
    %5842 = vmatpush.msra.mxu0 0.0
    %5843 = vmatpush.msra.mxu0 0.0
    %5844 = vmatpush.msra.mxu0 0.0
    %5845 = vmatpush.msra.mxu0 0.0
    %5846 = vmatpush.msra.mxu0 0.0
    %5847 = vmatpush.msra.mxu0 0.0
    %5848 = vmatpush.msra.mxu0 0.0
    %5849 = vmatpush.msra.mxu0 0.0
    %5850 = vmatpush.msra.mxu0 0.0
    %5851 = vmatpush.msra.mxu0 0.0
    %5852 = vmatpush.msra.mxu0 0.0
    %5853 = vmatpush.msra.mxu0 0.0
    %5854 = vmatpush.msra.mxu0 %v5106
    %5855 = vmatpush.msra.mxu0 %v5105
    %5856 = vmatpush.msra.mxu0 %v5104
    %5857 = vmatpush.msra.mxu0 %v5103
    %5858 = vmatmul.f32.gmra.mxu0 %v5837
    %v5859 = vpop.f32.mrf.mxu0
    %v5860 = vadd.f32 %v5834, %v5859
    %5861 = vmatmul.f32.gmra.mxu0 %v5840
    %v5862 = vpop.f32.mrf.mxu0
    %v5863 = vadd.f32 %v5834, %v5862
    %5864 = vdwg.mxu0
    %v5865 = vadd.f32 %v4996, %v5860
    %v5866 = vadd.f32 %v4997, %v5863
    %s5867 = scalar_lea.vmem %s61, 5
    %v5868 = vld [vmem:[%s5867] sm:$0x1]
    %s5869 = scalar_lea.vmem %s63, 5
    %v5870 = vld [vmem:[%s5869] sm:$0x1]
    %v5871 = vsel %vm165, %v5865, 0.0
    %5872 = vadd.xlane.f32.xlu0 %v5871
    %v5873 = vpop.xlane.xlu0 %5872
    %v5874 = vsel %vm165, %v5866, 0.0
    %5875 = vadd.xlane.f32.xlu0 %v5874
    %v5876 = vpop.xlane.xlu0 %5875
    %v5877 = vmul.f32 %v5873, %v178
    %v5878 = vmul.f32 %v5876, %v178
    %v5879 = vsub.f32 %v5865, %v5877
    %v5880 = vsub.f32 %v5866, %v5878
    %v5881 = vmul.f32 %v5879, %v5879
    %v5882 = vmul.f32 %v5880, %v5880
    %v5883 = vsel %vm165, %v5881, 0.0
    %5884 = vadd.xlane.f32.xlu0 %v5883
    %v5885 = vpop.xlane.xlu0 %5884
    %v5886 = vsel %vm165, %v5882, 0.0
    %5887 = vadd.xlane.f32.xlu0 %v5886
    %v5888 = vpop.xlane.xlu0 %5887
    %v5889 = vmul.f32 %v5885, 0.032258064
    %v5890 = vmul.f32 %v5888, 0.032258064
    %v5891 = vrsqrt.pop %v5889
    %v5892 = vmul.f32 %v5891, %v5889
    %v5893 = vmul.f32 %v5892, %v5891
    %v5894 = vmul.f32 0.5, %v5893
    %v5895 = vsub.f32 1.5, %v5894
    %v5896 = vmul.f32 %v5891, %v5895
    %v5897 = vmul.f32 %v5889, %v5896
    %vm5898 = vcmp.eq.f32.partialorder %v5889, inf
    %v5899 = vsel %vm5898, %v5889, %v5897
    %vm5900 = vcmp.eq.f32.partialorder %v5889, 0.0
    %v5901 = vand.u32 %v5889, 2147483648
    %v5902 = vsel %vm5900, %v5901, %v5899
    %v5903 = vrsqrt.pop %v5890
    %v5904 = vmul.f32 %v5903, %v5890
    %v5905 = vmul.f32 %v5904, %v5903
    %v5906 = vmul.f32 0.5, %v5905
    %v5907 = vsub.f32 1.5, %v5906
    %v5908 = vmul.f32 %v5903, %v5907
    %v5909 = vmul.f32 %v5890, %v5908
    %vm5910 = vcmp.eq.f32.partialorder %v5890, inf
    %v5911 = vsel %vm5910, %v5890, %v5909
    %vm5912 = vcmp.eq.f32.partialorder %v5890, 0.0
    %v5913 = vand.u32 %v5890, 2147483648
    %v5914 = vsel %vm5912, %v5913, %v5911
    %v5916 = vperm.slane %v5868, 0
    %v5918 = vmul.f32 %v5916, %v5879
    %v5919 = vmul.f32 %v5916, %v5880
    %v5920 = vadd.f32 %v5902, 1e-06
    %v5921 = vadd.f32 %v5914, 1e-06
    %v5922 = vrcp.pop %v5920
    %v5923 = vmul.f32 %v5920, %v5922
    %v5924 = vsub.f32 1.0, %v5923
    %v5925 = vmul.f32 %v5922, %v5924
    %v5926 = vadd.f32 %v5922, %v5925
    %vm5927 = vweird.f32 %v5920
    %vm5928 = vweird.f32 %v5922
    %vm5929 = vmor %vm5927, %vm5928
    %v5930 = vsel %vm5929, %v5922, %v5926
    %v5931 = vand.u32 2147483647, %v5920
    %vm5932 = vcmp.eq.f32.partialorder %v5931, 8.507059e+37
    %v5933 = vand.u32 %v5920, 2147483648
    %v5934 = vor.u32 1.1754944e-38, %v5933
    %v5935 = vsel %vm5932, %v5934, %v5930
    %v5936 = vrcp.pop %v5921
    %v5937 = vmul.f32 %v5921, %v5936
    %v5938 = vsub.f32 1.0, %v5937
    %v5939 = vmul.f32 %v5936, %v5938
    %v5940 = vadd.f32 %v5936, %v5939
    %vm5941 = vweird.f32 %v5921
    %vm5942 = vweird.f32 %v5936
    %vm5943 = vmor %vm5941, %vm5942
    %v5944 = vsel %vm5943, %v5936, %v5940
    %v5945 = vand.u32 2147483647, %v5921
    %vm5946 = vcmp.eq.f32.partialorder %v5945, 8.507059e+37
    %v5947 = vand.u32 %v5921, 2147483648
    %v5948 = vor.u32 1.1754944e-38, %v5947
    %v5949 = vsel %vm5946, %v5948, %v5944
    %v5950 = vmul.f32 %v5918, %v5935
    %v5951 = vmul.f32 %v5919, %v5949
    %v5953 = vperm.slane %v5870, 0
    %v5955 = vadd.f32 %v5950, %v5953
    %v5956 = vadd.f32 %v5951, %v5953
    %s5957 = scalar_lea.vmem %s53, 32
    %v5958 = vld [vmem:[%s5957] sm:$0xff]
    %v5959 = vld [vmem:[%s5957 + $0x8] sm:$0xff]
    %v5960 = vld [vmem:[%s5957 + $0x10] sm:$0xff]
    %v5961 = vld [vmem:[%s5957 + $0x18] sm:$0xff]
    %s5962 = scalar_lea.vmem %s55, 1
    %v5963 = vld [vmem:[%s5962] sm:$0x1]
    %s5964 = scalar_lea.vmem %s57, 64
    %v5965 = vld [vmem:[%s5964] sm:$0xff]
    %v5966 = vld [vmem:[%s5964 + $0x8] sm:$0xff]
    %v5967 = vld [vmem:[%s5964 + $0x10] sm:$0xff]
    %v5968 = vld [vmem:[%s5964 + $0x18] sm:$0xff]
    %v5969 = vld [vmem:[%s5964 + $0x20] sm:$0xff]
    %v5970 = vld [vmem:[%s5964 + $0x28] sm:$0xff]
    %v5971 = vld [vmem:[%s5964 + $0x30] sm:$0xff]
    %v5972 = vld [vmem:[%s5964 + $0x38] sm:$0xff]
    %s5973 = scalar_lea.vmem %s59, 1
    %v5974 = vld [vmem:[%s5973] sm:$0x1]
    %v5976 = vperm.slane %v5963, 0
    %v5979 = vsel %vm165, %v5955, 0
    %v5982 = vsel %vm165, %v5956, 0
    %5984 = vmatpush.msra.mxu0 0.0
    %5985 = vmatpush.msra.mxu0 0.0
    %5986 = vmatpush.msra.mxu0 0.0
    %5987 = vmatpush.msra.mxu0 0.0
    %5988 = vmatpush.msra.mxu0 0.0
    %5989 = vmatpush.msra.mxu0 0.0
    %5990 = vmatpush.msra.mxu0 0.0
    %5991 = vmatpush.msra.mxu0 0.0
    %5992 = vmatpush.msra.mxu0 0.0
    %5993 = vmatpush.msra.mxu0 0.0
    %5994 = vmatpush.msra.mxu0 0.0
    %5995 = vmatpush.msra.mxu0 0.0
    %5996 = vmatpush.msra.mxu0 %v5961
    %5997 = vmatpush.msra.mxu0 %v5960
    %5998 = vmatpush.msra.mxu0 %v5959
    %5999 = vmatpush.msra.mxu0 %v5958
    %6000 = vmatmul.f32.gmra.mxu0 %v5979
    %v6001 = vpop.f32.mrf.mxu0
    %v6002 = vadd.f32 %v5976, %v6001
    %6003 = vmatmul.f32.gmra.mxu0 %v5982
    %v6004 = vpop.f32.mrf.mxu0
    %v6005 = vadd.f32 %v5976, %v6004
    %6006 = vdwg.mxu0
    %v6007 = vmax.f32 %v6002, 0.0
    %v6008 = vmax.f32 %v6005, 0.0
    %v6010 = vperm.slane %v5974, 0
    %v6013 = vsel %vm1149, %v6007, 0
    %v6016 = vsel %vm1149, %v6008, 0
    %6018 = vmatpush.msra.mxu0 0.0
    %6019 = vmatpush.msra.mxu0 0.0
    %6020 = vmatpush.msra.mxu0 0.0
    %6021 = vmatpush.msra.mxu0 0.0
    %6022 = vmatpush.msra.mxu0 0.0
    %6023 = vmatpush.msra.mxu0 0.0
    %6024 = vmatpush.msra.mxu0 0.0
    %6025 = vmatpush.msra.mxu0 0.0
    %6026 = vmatpush.msra.mxu0 %v5972
    %6027 = vmatpush.msra.mxu0 %v5971
    %6028 = vmatpush.msra.mxu0 %v5970
    %6029 = vmatpush.msra.mxu0 %v5969
    %6030 = vmatpush.msra.mxu0 %v5968
    %6031 = vmatpush.msra.mxu0 %v5967
    %6032 = vmatpush.msra.mxu0 %v5966
    %6033 = vmatpush.msra.mxu0 %v5965
    %6034 = vmatmul.f32.gmra.mxu0 %v6013
    %v6035 = vpop.f32.mrf.mxu0
    %v6036 = vadd.f32 %v6010, %v6035
    %6037 = vmatmul.f32.gmra.mxu0 %v6016
    %v6038 = vpop.f32.mrf.mxu0
    %v6039 = vadd.f32 %v6010, %v6038
    %6040 = vdwg.mxu0
    %v6041 = vadd.f32 %v5865, %v6036
    %v6042 = vadd.f32 %v5866, %v6039
    %v6043 = vld [vmem:[%s65] sm:$0x1]
    %v6044 = vld [vmem:[%s67] sm:$0x1]
    %v6045 = vsel %vm165, %v6041, 0.0
    %6046 = vadd.xlane.f32.xlu0 %v6045
    %v6047 = vpop.xlane.xlu0 %6046
    %v6048 = vsel %vm165, %v6042, 0.0
    %6049 = vadd.xlane.f32.xlu0 %v6048
    %v6050 = vpop.xlane.xlu0 %6049
    %v6051 = vmul.f32 %v6047, %v178
    %v6052 = vmul.f32 %v6050, %v178
    %v6053 = vsub.f32 %v6041, %v6051
    %v6054 = vsub.f32 %v6042, %v6052
    %v6055 = vmul.f32 %v6053, %v6053
    %v6056 = vmul.f32 %v6054, %v6054
    %v6057 = vsel %vm165, %v6055, 0.0
    %6058 = vadd.xlane.f32.xlu0 %v6057
    %v6059 = vpop.xlane.xlu0 %6058
    %v6060 = vsel %vm165, %v6056, 0.0
    %6061 = vadd.xlane.f32.xlu0 %v6060
    %v6062 = vpop.xlane.xlu0 %6061
    %v6063 = vmul.f32 %v6059, 0.032258064
    %v6064 = vmul.f32 %v6062, 0.032258064
    %v6065 = vrsqrt.pop %v6063
    %v6066 = vmul.f32 %v6065, %v6063
    %v6067 = vmul.f32 %v6066, %v6065
    %v6068 = vmul.f32 0.5, %v6067
    %v6069 = vsub.f32 1.5, %v6068
    %v6070 = vmul.f32 %v6065, %v6069
    %v6071 = vmul.f32 %v6063, %v6070
    %vm6072 = vcmp.eq.f32.partialorder %v6063, inf
    %v6073 = vsel %vm6072, %v6063, %v6071
    %vm6074 = vcmp.eq.f32.partialorder %v6063, 0.0
    %v6075 = vand.u32 %v6063, 2147483648
    %v6076 = vsel %vm6074, %v6075, %v6073
    %v6077 = vrsqrt.pop %v6064
    %v6078 = vmul.f32 %v6077, %v6064
    %v6079 = vmul.f32 %v6078, %v6077
    %v6080 = vmul.f32 0.5, %v6079
    %v6081 = vsub.f32 1.5, %v6080
    %v6082 = vmul.f32 %v6077, %v6081
    %v6083 = vmul.f32 %v6064, %v6082
    %vm6084 = vcmp.eq.f32.partialorder %v6064, inf
    %v6085 = vsel %vm6084, %v6064, %v6083
    %vm6086 = vcmp.eq.f32.partialorder %v6064, 0.0
    %v6087 = vand.u32 %v6064, 2147483648
    %v6088 = vsel %vm6086, %v6087, %v6085
    %v6090 = vperm.slane %v6043, 0
    %v6092 = vmul.f32 %v6090, %v6053
    %v6093 = vmul.f32 %v6090, %v6054
    %v6094 = vadd.f32 %v6076, 1e-06
    %v6095 = vadd.f32 %v6088, 1e-06
    %v6096 = vrcp.pop %v6094
    %v6097 = vmul.f32 %v6094, %v6096
    %v6098 = vsub.f32 1.0, %v6097
    %v6099 = vmul.f32 %v6096, %v6098
    %v6100 = vadd.f32 %v6096, %v6099
    %vm6101 = vweird.f32 %v6094
    %vm6102 = vweird.f32 %v6096
    %vm6103 = vmor %vm6101, %vm6102
    %v6104 = vsel %vm6103, %v6096, %v6100
    %v6105 = vand.u32 2147483647, %v6094
    %vm6106 = vcmp.eq.f32.partialorder %v6105, 8.507059e+37
    %v6107 = vand.u32 %v6094, 2147483648
    %v6108 = vor.u32 1.1754944e-38, %v6107
    %v6109 = vsel %vm6106, %v6108, %v6104
    %v6110 = vrcp.pop %v6095
    %v6111 = vmul.f32 %v6095, %v6110
    %v6112 = vsub.f32 1.0, %v6111
    %v6113 = vmul.f32 %v6110, %v6112
    %v6114 = vadd.f32 %v6110, %v6113
    %vm6115 = vweird.f32 %v6095
    %vm6116 = vweird.f32 %v6110
    %vm6117 = vmor %vm6115, %vm6116
    %v6118 = vsel %vm6117, %v6110, %v6114
    %v6119 = vand.u32 2147483647, %v6095
    %vm6120 = vcmp.eq.f32.partialorder %v6119, 8.507059e+37
    %v6121 = vand.u32 %v6095, 2147483648
    %v6122 = vor.u32 1.1754944e-38, %v6121
    %v6123 = vsel %vm6120, %v6122, %v6118
    %v6124 = vmul.f32 %v6092, %v6109
    %v6125 = vmul.f32 %v6093, %v6123
    %v6127 = vperm.slane %v6044, 0
    %v6129 = vadd.f32 %v6124, %v6127
    %v6130 = vadd.f32 %v6125, %v6127
    %v6131 = vld [vmem:[%s69] sm:$0xff]
    %v6132 = vld [vmem:[%s69 + $0x8] sm:$0xff]
    %v6133 = vld [vmem:[%s69 + $0x10] sm:$0xff]
    %v6134 = vld [vmem:[%s69 + $0x18] sm:$0xff]
    %v6135 = vld [vmem:[%s71] sm:$0x1]
    %v6137 = vperm.slane %v6135, 0
    %v6140 = vsel %vm165, %v6129, 0
    %v6143 = vsel %vm165, %v6130, 0
    %6145 = vmatpush.msra.mxu0 0.0
    %6146 = vmatpush.msra.mxu0 0.0
    %6147 = vmatpush.msra.mxu0 0.0
    %6148 = vmatpush.msra.mxu0 0.0
    %6149 = vmatpush.msra.mxu0 0.0
    %6150 = vmatpush.msra.mxu0 0.0
    %6151 = vmatpush.msra.mxu0 0.0
    %6152 = vmatpush.msra.mxu0 0.0
    %6153 = vmatpush.msra.mxu0 0.0
    %6154 = vmatpush.msra.mxu0 0.0
    %6155 = vmatpush.msra.mxu0 0.0
    %6156 = vmatpush.msra.mxu0 0.0
    %6157 = vmatpush.msra.mxu0 %v6134
    %6158 = vmatpush.msra.mxu0 %v6133
    %6159 = vmatpush.msra.mxu0 %v6132
    %6160 = vmatpush.msra.mxu0 %v6131
    %6161 = vmatmul.f32.gmra.mxu0 %v6140
    %v6162 = vpop.f32.mrf.mxu0
    %v6163 = vadd.f32 %v6137, %v6162
    %6164 = vmatmul.f32.gmra.mxu0 %v6143
    %v6165 = vpop.f32.mrf.mxu0
    %v6166 = vadd.f32 %v6137, %v6165
    %6167 = vdwg.mxu0
    %v6168 = vsel %vm968, %v6163, -inf
    %6169 = vmax.xlane.f32.xlu0 %v6168
    %v6170 = vpop.xlane.xlu0 %6169
    %v6171 = vsel %vm968, %v6166, -inf
    %6172 = vmax.xlane.f32.xlu0 %v6171
    %v6173 = vpop.xlane.xlu0 %6172
    %v6174 = vsub.f32 %v6163, %v6170
    %v6175 = vsub.f32 %v6166, %v6173
    %v6176 = vmul.f32 %v6174, 1.442695
    %v6177 = vpow.pop %v6176
    %v6178 = vmul.f32 %v6175, 1.442695
    %v6179 = vpow.pop %v6178
    %v6180 = vsel %vm968, %v6177, 0.0
    %6181 = vadd.xlane.f32.xlu0 %v6180
    %v6182 = vpop.xlane.xlu0 %6181
    %v6183 = vsel %vm968, %v6179, 0.0
    %6184 = vadd.xlane.f32.xlu0 %v6183
    %v6185 = vpop.xlane.xlu0 %6184
    %v6186 = vlog2.pop %v6182
    %v6187 = vmul.f32 %v6186, 0.6931472
    %v6188 = vlog2.pop %v6185
    %v6189 = vmul.f32 %v6188, 0.6931472
    %v6190 = vadd.f32 %v6187, %v6170
    %v6191 = vadd.f32 %v6189, %v6173
    %v6192 = vsub.f32 %v6163, %v6190
    %v6193 = vsub.f32 %v6166, %v6191
    %6194 = vst.msk [vmem:[#allocation2] sm:$0xff] %vm968, %v6192
    %6195 = vst.msk [vmem:[#allocation2 + $0x8] sm:$0xff] %vm968, %v6193
    // Predicated region
    $region146: #{encoder_decoder_forward.1} parent=1 // pred_check
      _
    $region147: #{encoder_decoder_forward.1} parent=1 // pred_check_branch
      %6197 = sbr.rel (0) target = $region149
    $region148: #{encoder_decoder_forward.1} parent=1 // pred_region
      %6199 = vsyncadd [#allocation3], 0
      %s6200 = sshll.u32 [#allocation2], 4
      %s6201 = int_to_ptr.vmem [resolvable:$true] %s6200
      %s6202 = sshll.u32 %s73, 4
      %s6203 = int_to_ptr.hbm [resolvable:$true] %s6202
      %6208 = dma.vmem_to_hbm [thread:$0]  %s6201, 256, %s6203, [#allocation3], 128, 128, 8
    $region149: #{encoder_decoder_forward.1} parent=1 // pred_fallthru
      _
    // Predicated region
    $region150: #{encoder_decoder_forward.1} parent=1 // pred_check
      _
    $region151: #{encoder_decoder_forward.1} parent=1 // pred_check_branch
      %6210 = sbr.rel (0) target = $region153
    $region152: #{encoder_decoder_forward.1} parent=1 // pred_region
      %6212 = dma.done [#allocation3], 256
    $region153: #{encoder_decoder_forward.1} parent=1 // pred_fallthru
      _
    %6213 = vsyncpa [#allocation3], 1

</llo_original>
